<compile_context>
chip_gen: v6e
topology: v6e:2x2x1
jax: 0.10.0
libtpu: 0.0.40
codegen_flags: <defaults>
</compile_context>

<pallas_src>
import math
from functools import partial

import numpy as np
import jax
import jax.numpy as jnp
from jax import lax
from jax.experimental import pallas as pl
from jax.experimental.pallas import tpu as pltpu

EPS = 1e-5


def _conv_block_kernel(x_ref, scale_ref, shift_ref, w_ref, b_ref, *rest,
                       add_residual: bool, compute_stats: bool):
    """One grid step:  conv3x3(relu(x*scale + shift)) + bias (+ residual),
    optionally emitting per-step [sum, sum_sq] of the conv output.

    x_ref     : (Nb, H, W, C)     activation entering BN->ReLU->conv
    scale_ref : (1, 1, C)         folded BN scale = gamma * rsqrt(var + eps)
    shift_ref : (1, 1, C)         folded BN shift = beta - mean * scale
    w_ref     : (3, 3*C, Cout)    conv weights, dy-major, dx lane-concatenated
    b_ref     : (1, 1, Cout)      conv bias
    res_ref   : (Nb, H, W, Cout)  identity-shortcut input (if add_residual)
    o_ref     : (Nb, H, W, Cout)  output
    stats_ref : (1, 2, Cout)      per-step [sum, sum_sq]     (if compute_stats)
    planes_ref: (Nb, H+2, W, 3*C) VMEM scratch (compute dtype)
    acc_ref   : (Nb*H*W, Cout)    VMEM scratch f32 accumulator
    """
    idx = 0
    if add_residual:
        res_ref = rest[idx]; idx += 1
    o_ref = rest[idx]; idx += 1
    if compute_stats:
        stats_ref = rest[idx]; idx += 1
    planes_ref = rest[idx]
    acc_ref = rest[idx + 1]

    Nb, H, W, C = x_ref.shape
    Cout = w_ref.shape[-1]
    M = Nb * H * W
    cdt = planes_ref.dtype

    # Fused pre-folded BatchNorm + ReLU.  Scalar math stays in f32 (v5e has no
    # bf16 VPU); a single downcast to the compute dtype feeds the MXU path.
    a = jnp.maximum(x_ref[...].astype(jnp.float32) * scale_ref[...]
                    + shift_ref[...], 0.0).astype(cdt)

    # Build the three dx-shifted, W-contiguous planes, lane-concatenated so
    # that each dy tap-row becomes a single K = 3*C contraction.  Only the
    # halo is zeroed (2 thin row stores + the shift fill); all stores are
    # sublane/lane aligned.  (The two edge shifts could also be done with
    # pltpu.roll on the sublane axis + a mask if the shuffle ever dominates.)
    zrow = jnp.zeros((Nb, 1, W, 3 * C), cdt)
    zcol = jnp.zeros((Nb, H, 1, C), cdt)
    planes_ref[:, 0:1, :, :] = zrow                      # top halo row
    planes_ref[:, H + 1:H + 2, :, :] = zrow              # bottom halo row
    planes_ref[:, 1:H + 1, :, 0:C] = jnp.concatenate(    # dx=0 plane
        [zcol, a[:, :, 0:W - 1, :]], axis=2)
    planes_ref[:, 1:H + 1, :, C:2 * C] = a               # dx=1 plane (center)
    planes_ref[:, 1:H + 1, :, 2 * C:3 * C] = jnp.concatenate(  # dx=2 plane
        [a[:, :, 1:W, :], zcol], axis=2)

    # conv3x3 = 3 accumulated (M, 3C) @ (3C, Cout) MXU contractions.  Mosaic
    # splits K=3*C into native MXU passes (K=128 on v5e, K=256 on v6e/v7x) and
    # accumulates; the explicit f32 VMEM accumulator is initialised with the
    # broadcast conv bias, so there is no separate bias add.  The per-dy slice
    # is along a non-layout axis and the reshape is layout-preserving
    # (W % 8 == 0, last dim a multiple of 128).
    acc_ref[...] = jnp.broadcast_to(b_ref[0].astype(jnp.float32), (M, Cout))
    for dy in range(3):
        patch = planes_ref[:, dy:dy + H, :, :].reshape(M, 3 * C)
        acc_ref[...] += jnp.dot(patch, w_ref[dy],
                                preferred_element_type=jnp.float32)

    acc = acc_ref[...]
    if compute_stats:
        # Partial sums so the wrapper can fold the *next* BatchNorm's batch
        # statistics without another HBM pass over this output.
        stats_ref[0, 0:1, :] = jnp.sum(acc, axis=0, keepdims=True)
        stats_ref[0, 1:2, :] = jnp.sum(acc * acc, axis=0, keepdims=True)

    out = acc.reshape(Nb, H, W, Cout)
    if add_residual:
        out = out + res_ref[...].astype(jnp.float32)
    o_ref[...] = out.astype(o_ref.dtype)


def _conv_block_call(x, scale, shift, w3, b, residual=None, *,
                     compute_stats=False, out_dtype=jnp.float32,
                     compute_dtype=jnp.float32, images_per_step=1):
    """y = conv3x3(relu(x*scale + shift)) + bias (+ residual), gridded over N."""
    N, H, W, C = x.shape
    Cout = w3.shape[-1]
    Nb = images_per_step
    assert N % Nb == 0, "batch must be divisible by images_per_step"
    steps = N // Nb

    img_in = pl.BlockSpec((Nb, H, W, C), lambda n: (n, 0, 0, 0))
    img_out = pl.BlockSpec((Nb, H, W, Cout), lambda n: (n, 0, 0, 0))

    def vec(c):
        return pl.BlockSpec((1, 1, c), lambda n: (0, 0, 0))

    in_specs = [img_in, vec(C), vec(C),
                pl.BlockSpec((3, 3 * C, Cout), lambda n: (0, 0, 0)),
                vec(Cout)]
    args = [x, scale, shift, w3.astype(compute_dtype), b]
    if residual is not None:
        in_specs.append(img_out)
        args.append(residual)

    out_specs = [img_out]
    out_shapes = [jax.ShapeDtypeStruct((N, H, W, Cout), out_dtype)]
    if compute_stats:
        out_specs.append(pl.BlockSpec((1, 2, Cout), lambda n: (n, 0, 0)))
        out_shapes.append(jax.ShapeDtypeStruct((steps, 2, Cout), jnp.float32))

    results = pl.pallas_call(
        partial(_conv_block_kernel,
                add_residual=residual is not None,
                compute_stats=compute_stats),
        grid=(steps,),
        in_specs=in_specs,
        out_specs=tuple(out_specs),
        out_shape=tuple(out_shapes),
        scratch_shapes=[
            pltpu.VMEM((Nb, H + 2, W, 3 * C), compute_dtype),
            pltpu.VMEM((Nb * H * W, Cout), jnp.float32),
        ],
        compiler_params=pltpu.CompilerParams(
            dimension_semantics=("parallel",),        # megacore over batch
            vmem_limit_bytes=32 * 1024 * 1024),
    )(*args)
    if compute_stats:
        return results            # (y, stats)
    return results[0]             # y only


def _fold_bn(mean, var, gamma, beta):
    scale = gamma * lax.rsqrt(var + EPS)
    return scale, beta - mean * scale


def block_forward_nhwc(x, params, *, compute_dtype=jnp.float32,
                       images_per_step=1):
    (g1, bt1, w1, cb1, g2, bt2, w2, cb2) = params
    N, H, W, C = x.shape
    nhw = float(N * H * W)

    # b1 statistics (training mode, biased variance) in one fused HBM pass.
    s = jnp.sum(x, axis=(0, 1, 2))
    ss = jnp.sum(x * x, axis=(0, 1, 2))
    m1 = s / nhw
    v1 = jnp.maximum(ss / nhw - m1 * m1, 0.0)
    s1, t1 = _fold_bn(m1, v1, g1, bt1)

    # h1 = c1(relu(b1(x)))   (+ per-step [sum,sum_sq] of h1 for b2's stats).
    # In the bf16 path h1 is stored in bf16 (stats stay f32): b2 stats come
    # from the f32 accumulator, so they are slightly inconsistent with the
    # bf16-rounded h1 fed to conv2 -- acceptable for the low-precision path.
    h1, st = _conv_block_call(
        x, s1.reshape(1, 1, C), t1.reshape(1, 1, C),
        w1.reshape(3, 3 * C, C), cb1.reshape(1, 1, C),
        compute_stats=True, out_dtype=compute_dtype,
        compute_dtype=compute_dtype, images_per_step=images_per_step)

    # b2 statistics folded from kernel-1 partial sums (no extra HBM pass).
    tot = jnp.sum(st, axis=0)                         # (2, C)
    m2 = tot[0] / nhw
    v2 = jnp.maximum(tot[1] / nhw - m2 * m2, 0.0)     # biased variance
    s2, t2 = _fold_bn(m2, v2, g2, bt2)

    # out = x + c2(relu(b2(h1)))  (residual add fused; stats skipped here).
    out = _conv_block_call(
        h1, s2.reshape(1, 1, C), t2.reshape(1, 1, C),
        w2.reshape(3, 3 * C, C), cb2.reshape(1, 1, C),
        residual=x, compute_stats=False, out_dtype=jnp.float32,
        compute_dtype=compute_dtype, images_per_step=images_per_step)
    return out


def block_forward(x_nchw, params, *, compute_dtype=jnp.float32,
                  images_per_step=1):
    # NCHW public interface for PyTorch parity.  The kernels are NHWC-native,
    # so in an NHWC model pipeline these two transposes disappear entirely.
    x = jnp.transpose(x_nchw, (0, 2, 3, 1))
    y = block_forward_nhwc(x, params, compute_dtype=compute_dtype,
                           images_per_step=images_per_step)
    return jnp.transpose(y, (0, 3, 1, 2))


def block_reference(x_nchw, params, *, compute_dtype=jnp.float32):
    """Pure-JAX reference (same math via XLA convs) for verification."""
    (g1, bt1, w1, cb1, g2, bt2, w2, cb2) = params
    x = jnp.transpose(x_nchw, (0, 2, 3, 1))

    def bn(h, g, bt):
        m = h.mean(axis=(0, 1, 2))
        v = jnp.square(h - m).mean(axis=(0, 1, 2))
        return (h - m) * lax.rsqrt(v + EPS) * g + bt

    def conv(h, w, cb):
        y = lax.conv_general_dilated(
            h.astype(compute_dtype), w.astype(compute_dtype),
            window_strides=(1, 1), padding="SAME",
            dimension_numbers=("NHWC", "HWIO", "NHWC"),
            preferred_element_type=jnp.float32)
        return y + cb

    h = jnp.maximum(bn(x, g1, bt1), 0.0)
    h = conv(h, w1, cb1)
    h = jnp.maximum(bn(h, g2, bt2), 0.0)
    h = conv(h, w2, cb2)
    return jnp.transpose(x + h, (0, 3, 1, 2))


def make_params(key, c):
    k1, k2, k3, k4 = jax.random.split(key, 4)
    fan = 3 * 3 * c
    # deterministic synthetic init (xavier-ish scale); HWIO conv weights
    w1 = jax.random.normal(k1, (3, 3, c, c), jnp.float32) * math.sqrt(2.0 / fan)
    w2 = jax.random.normal(k2, (3, 3, c, c), jnp.float32) * math.sqrt(2.0 / fan)
    cb1 = jax.random.normal(k3, (c,), jnp.float32) * 0.05
    cb2 = jax.random.normal(k4, (c,), jnp.float32) * 0.05
    # BatchNorm2d default affine init: gamma=1, beta=0
    g1 = jnp.ones((c,), jnp.float32)
    bt1 = jnp.zeros((c,), jnp.float32)
    g2 = jnp.ones((c,), jnp.float32)
    bt2 = jnp.zeros((c,), jnp.float32)
    return (g1, bt1, w1, cb1, g2, bt2, w2, cb2)


if __name__ == "__main__":
    # Block(in_ch=128, out_ch=128): lane-dense channel count, small batch /
    # spatial extent; N=4 gives the auto-pipeline several grid steps.
    N, C, H, W = 4, 128, 16, 16
    key = jax.random.PRNGKey(0)
    kx, kp = jax.random.split(key)
    x = jax.random.normal(kx, (N, C, H, W), jnp.float32)
    params = make_params(kp, C)

    # exact f32 path (PyTorch-equivalent semantics), one image per grid step
    fwd = jax.jit(partial(block_forward, compute_dtype=jnp.float32,
                          images_per_step=1))
    ref = jax.jit(partial(block_reference, compute_dtype=jnp.float32))
    out = jax.block_until_ready(fwd(x, params))
    expect = jax.block_until_ready(ref(x, params))
    np.testing.assert_allclose(np.asarray(out), np.asarray(expect),
                               rtol=5e-4, atol=5e-4)

    # bf16 MXU path (recommended for v6e/v7x and the matmul path on v5e),
    # two images per grid step (larger matmul M), checked vs. bf16 reference
    fwd_bf = jax.jit(partial(block_forward, compute_dtype=jnp.bfloat16,
                             images_per_step=2))
    ref_bf = jax.jit(partial(block_reference, compute_dtype=jnp.bfloat16))
    out_bf = jax.block_until_ready(fwd_bf(x, params))
    expect_bf = jax.block_until_ready(ref_bf(x, params))
    np.testing.assert_allclose(np.asarray(out_bf), np.asarray(expect_bf),
                               rtol=2e-2, atol=2e-2)

    print("KERNEL_OK")
</pallas_src>

<mosaic_0001>
module attributes {stable_mosaic.version = 11 : i64} {
  func.func @_conv_block_kernel(%arg0: i32, %arg1: memref<1x16x16x128xf32, #tpu.memory_space<vmem>>, %arg2: memref<1x1x128xf32, #tpu.memory_space<vmem>>, %arg3: memref<1x1x128xf32, #tpu.memory_space<vmem>>, %arg4: memref<3x384x128xf32, #tpu.memory_space<vmem>>, %arg5: memref<1x1x128xf32, #tpu.memory_space<vmem>>, %arg6: memref<1x16x16x128xf32, #tpu.memory_space<vmem>>, %arg7: memref<1x2x128xf32, #tpu.memory_space<vmem>>, %arg8: memref<1x18x16x384xf32, #tpu.memory_space<vmem>>, %arg9: memref<256x128xf32, #tpu.memory_space<vmem>>) attributes {dimension_semantics = [#tpu.dimension_semantics<parallel>], iteration_bounds = array<i64: 4>, scalar_prefetch = 0 : i64, scratch_operands = 2 : i64, tpu.core_type = #tpu.core_type<tc>, window_params = [{transform_indices = @transform_0, window_bounds = array<i64: 1, 16, 16, 128>}, {pipeline_mode = #tpu.pipeline_mode<synchronous>, transform_indices = @transform_1, window_bounds = array<i64: 1, 1, 128>}, {pipeline_mode = #tpu.pipeline_mode<synchronous>, transform_indices = @transform_2, window_bounds = array<i64: 1, 1, 128>}, {pipeline_mode = #tpu.pipeline_mode<synchronous>, transform_indices = @transform_3, window_bounds = array<i64: 3, 384, 128>}, {pipeline_mode = #tpu.pipeline_mode<synchronous>, transform_indices = @transform_4, window_bounds = array<i64: 1, 1, 128>}, {transform_indices = @transform_5, window_bounds = array<i64: 1, 16, 16, 128>}, {transform_indices = @transform_6, window_bounds = array<i64: 1, 2, 128>}]} {
    %c0 = arith.constant 0 : index
    %c0_0 = arith.constant 0 : index
    %c0_1 = arith.constant 0 : index
    %c0_2 = arith.constant 0 : index
    %0 = vector.load %arg1[%c0, %c0_0, %c0_1, %c0_2] : memref<1x16x16x128xf32, #tpu.memory_space<vmem>>, vector<1x16x16x128xf32>
    %c0_3 = arith.constant 0 : index
    %c0_4 = arith.constant 0 : index
    %c0_5 = arith.constant 0 : index
    %1 = vector.load %arg2[%c0_3, %c0_4, %c0_5] : memref<1x1x128xf32, #tpu.memory_space<vmem>>, vector<1x1x128xf32>
    %2 = vector.shape_cast %1 : vector<1x1x128xf32> to vector<1x1x1x128xf32>
    %3 = vector.broadcast %2 : vector<1x1x1x128xf32> to vector<1x16x16x128xf32>
    %4 = arith.mulf %0, %3 : vector<1x16x16x128xf32>
    %c0_6 = arith.constant 0 : index
    %c0_7 = arith.constant 0 : index
    %c0_8 = arith.constant 0 : index
    %5 = vector.load %arg3[%c0_6, %c0_7, %c0_8] : memref<1x1x128xf32, #tpu.memory_space<vmem>>, vector<1x1x128xf32>
    %6 = vector.shape_cast %5 : vector<1x1x128xf32> to vector<1x1x1x128xf32>
    %7 = vector.broadcast %6 : vector<1x1x1x128xf32> to vector<1x16x16x128xf32>
    %8 = arith.addf %4, %7 : vector<1x16x16x128xf32>
    %cst = arith.constant 0.000000e+00 : f32
    %9 = vector.broadcast %cst : f32 to vector<1x16x16x128xf32>
    %10 = arith.maximumf %8, %9 : vector<1x16x16x128xf32>
    %cst_9 = arith.constant 0.000000e+00 : f32
    %11 = vector.broadcast %cst_9 : f32 to vector<1x1x16x384xf32>
    %cst_10 = arith.constant 0.000000e+00 : f32
    %12 = vector.broadcast %cst_10 : f32 to vector<1x16x1x128xf32>
    %c0_11 = arith.constant 0 : index
    %c0_12 = arith.constant 0 : index
    %c0_13 = arith.constant 0 : index
    %c0_14 = arith.constant 0 : index
    %13 = vector.load %arg8[%c0_11, %c0_12, %c0_13, %c0_14] : memref<1x18x16x384xf32, #tpu.memory_space<vmem>>, vector<1x1x16x384xf32>
    tpu.vector_store %arg8[%c0_11, %c0_12, %c0_13, %c0_14], %11 {strides = array<i32>} : memref<1x18x16x384xf32, #tpu.memory_space<vmem>>, vector<1x1x16x384xf32>,
    %c0_15 = arith.constant 0 : index
    %c17 = arith.constant 17 : index
    %c0_16 = arith.constant 0 : index
    %c0_17 = arith.constant 0 : index
    %14 = vector.load %arg8[%c0_15, %c17, %c0_16, %c0_17] : memref<1x18x16x384xf32, #tpu.memory_space<vmem>>, vector<1x1x16x384xf32>
    tpu.vector_store %arg8[%c0_15, %c17, %c0_16, %c0_17], %11 {strides = array<i32>} : memref<1x18x16x384xf32, #tpu.memory_space<vmem>>, vector<1x1x16x384xf32>,
    %15 = vector.extract_strided_slice %10 {offsets = [0, 0, 0, 0], sizes = [1, 16, 15, 128], strides = [1, 1, 1, 1]} : vector<1x16x16x128xf32> to vector<1x16x15x128xf32>
    %16 = tpu.concatenate %12, %15 in 2 : vector<1x16x1x128xf32>, vector<1x16x15x128xf32> -> vector<1x16x16x128xf32>
    %c0_18 = arith.constant 0 : index
    %c1 = arith.constant 1 : index
    %c0_19 = arith.constant 0 : index
    %c0_20 = arith.constant 0 : index
    %17 = vector.load %arg8[%c0_18, %c1, %c0_19, %c0_20] : memref<1x18x16x384xf32, #tpu.memory_space<vmem>>, vector<1x16x16x128xf32>
    tpu.vector_store %arg8[%c0_18, %c1, %c0_19, %c0_20], %16 {strides = array<i32>} : memref<1x18x16x384xf32, #tpu.memory_space<vmem>>, vector<1x16x16x128xf32>,
    %c0_21 = arith.constant 0 : index
    %c1_22 = arith.constant 1 : index
    %c0_23 = arith.constant 0 : index
    %c128 = arith.constant 128 : index
    %18 = vector.load %arg8[%c0_21, %c1_22, %c0_23, %c128] : memref<1x18x16x384xf32, #tpu.memory_space<vmem>>, vector<1x16x16x128xf32>
    tpu.vector_store %arg8[%c0_21, %c1_22, %c0_23, %c128], %10 {strides = array<i32>} : memref<1x18x16x384xf32, #tpu.memory_space<vmem>>, vector<1x16x16x128xf32>,
    %19 = vector.extract_strided_slice %10 {offsets = [0, 0, 1, 0], sizes = [1, 16, 15, 128], strides = [1, 1, 1, 1]} : vector<1x16x16x128xf32> to vector<1x16x15x128xf32>
    %20 = tpu.concatenate %19, %12 in 2 : vector<1x16x15x128xf32>, vector<1x16x1x128xf32> -> vector<1x16x16x128xf32>
    %c0_24 = arith.constant 0 : index
    %c1_25 = arith.constant 1 : index
    %c0_26 = arith.constant 0 : index
    %c256 = arith.constant 256 : index
    %21 = vector.load %arg8[%c0_24, %c1_25, %c0_26, %c256] : memref<1x18x16x384xf32, #tpu.memory_space<vmem>>, vector<1x16x16x128xf32>
    tpu.vector_store %arg8[%c0_24, %c1_25, %c0_26, %c256], %20 {strides = array<i32>} : memref<1x18x16x384xf32, #tpu.memory_space<vmem>>, vector<1x16x16x128xf32>,
    %c0_27 = arith.constant 0 : index
    %c0_28 = arith.constant 0 : index
    %c0_29 = arith.constant 0 : index
    %22 = vector.load %arg5[%c0_27, %c0_28, %c0_29] : memref<1x1x128xf32, #tpu.memory_space<vmem>>, vector<1x1x128xf32>
    %23 = vector.shape_cast %22 : vector<1x1x128xf32> to vector<1x128xf32>
    %24 = vector.shape_cast %23 : vector<1x128xf32> to vector<1x128xf32>
    %25 = vector.broadcast %24 : vector<1x128xf32> to vector<256x128xf32>
    %c0_30 = arith.constant 0 : index
    %c0_31 = arith.constant 0 : index
    %26 = vector.load %arg9[%c0_30, %c0_31] : memref<256x128xf32, #tpu.memory_space<vmem>>, vector<256x128xf32>
    tpu.vector_store %arg9[%c0_30, %c0_31], %25 {strides = array<i32>} : memref<256x128xf32, #tpu.memory_space<vmem>>, vector<256x128xf32>,
    %c0_32 = arith.constant 0 : index
    %c0_33 = arith.constant 0 : index
    %c0_34 = arith.constant 0 : index
    %c0_35 = arith.constant 0 : index
    %27 = vector.load %arg8[%c0_32, %c0_33, %c0_34, %c0_35] : memref<1x18x16x384xf32, #tpu.memory_space<vmem>>, vector<1x16x16x384xf32>
    %28 = vector.shape_cast %27 : vector<1x16x16x384xf32> to vector<256x384xf32>
    %c0_36 = arith.constant 0 : index
    %c0_37 = arith.constant 0 : index
    %29 = vector.load %arg9[%c0_36, %c0_37] : memref<256x128xf32, #tpu.memory_space<vmem>>, vector<256x128xf32>
    %c0_38 = arith.constant 0 : index
    %c0_39 = arith.constant 0 : index
    %c0_40 = arith.constant 0 : index
    %30 = vector.load %arg4[%c0_38, %c0_39, %c0_40] : memref<3x384x128xf32, #tpu.memory_space<vmem>>, vector<1x384x128xf32>
    %31 = vector.shape_cast %30 : vector<1x384x128xf32> to vector<384x128xf32>
    %cst_41 = arith.constant dense<0.000000e+00> : vector<256x128xf32>
    %32 = tpu.matmul %28, %31, %cst_41 {dimension_numbers = #tpu.dot_dimension_numbers<[1], [0], [0], [1], [0, 0, 1, 1], [], []>} : vector<256x384xf32>, vector<384x128xf32>, vector<256x128xf32> -> vector<256x128xf32>
    %33 = arith.addf %29, %32 : vector<256x128xf32>
    %c0_42 = arith.constant 0 : index
    %c0_43 = arith.constant 0 : index
    %34 = vector.load %arg9[%c0_42, %c0_43] : memref<256x128xf32, #tpu.memory_space<vmem>>, vector<256x128xf32>
    tpu.vector_store %arg9[%c0_42, %c0_43], %33 {strides = array<i32>} : memref<256x128xf32, #tpu.memory_space<vmem>>, vector<256x128xf32>,
    %c0_44 = arith.constant 0 : index
    %c1_45 = arith.constant 1 : index
    %c0_46 = arith.constant 0 : index
    %c0_47 = arith.constant 0 : index
    %35 = vector.load %arg8[%c0_44, %c1_45, %c0_46, %c0_47] : memref<1x18x16x384xf32, #tpu.memory_space<vmem>>, vector<1x16x16x384xf32>
    %36 = vector.shape_cast %35 : vector<1x16x16x384xf32> to vector<256x384xf32>
    %c0_48 = arith.constant 0 : index
    %c0_49 = arith.constant 0 : index
    %37 = vector.load %arg9[%c0_48, %c0_49] : memref<256x128xf32, #tpu.memory_space<vmem>>, vector<256x128xf32>
    %c1_50 = arith.constant 1 : index
    %c0_51 = arith.constant 0 : index
    %c0_52 = arith.constant 0 : index
    %38 = vector.load %arg4[%c1_50, %c0_51, %c0_52] : memref<3x384x128xf32, #tpu.memory_space<vmem>>, vector<1x384x128xf32>
    %39 = vector.shape_cast %38 : vector<1x384x128xf32> to vector<384x128xf32>
    %cst_53 = arith.constant dense<0.000000e+00> : vector<256x128xf32>
    %40 = tpu.matmul %36, %39, %cst_53 {dimension_numbers = #tpu.dot_dimension_numbers<[1], [0], [0], [1], [0, 0, 1, 1], [], []>} : vector<256x384xf32>, vector<384x128xf32>, vector<256x128xf32> -> vector<256x128xf32>
    %41 = arith.addf %37, %40 : vector<256x128xf32>
    %c0_54 = arith.constant 0 : index
    %c0_55 = arith.constant 0 : index
    %42 = vector.load %arg9[%c0_54, %c0_55] : memref<256x128xf32, #tpu.memory_space<vmem>>, vector<256x128xf32>
    tpu.vector_store %arg9[%c0_54, %c0_55], %41 {strides = array<i32>} : memref<256x128xf32, #tpu.memory_space<vmem>>, vector<256x128xf32>,
    %c0_56 = arith.constant 0 : index
    %c2 = arith.constant 2 : index
    %c0_57 = arith.constant 0 : index
    %c0_58 = arith.constant 0 : index
    %43 = vector.load %arg8[%c0_56, %c2, %c0_57, %c0_58] : memref<1x18x16x384xf32, #tpu.memory_space<vmem>>, vector<1x16x16x384xf32>
    %44 = vector.shape_cast %43 : vector<1x16x16x384xf32> to vector<256x384xf32>
    %c0_59 = arith.constant 0 : index
    %c0_60 = arith.constant 0 : index
    %45 = vector.load %arg9[%c0_59, %c0_60] : memref<256x128xf32, #tpu.memory_space<vmem>>, vector<256x128xf32>
    %c2_61 = arith.constant 2 : index
    %c0_62 = arith.constant 0 : index
    %c0_63 = arith.constant 0 : index
    %46 = vector.load %arg4[%c2_61, %c0_62, %c0_63] : memref<3x384x128xf32, #tpu.memory_space<vmem>>, vector<1x384x128xf32>
    %47 = vector.shape_cast %46 : vector<1x384x128xf32> to vector<384x128xf32>
    %cst_64 = arith.constant dense<0.000000e+00> : vector<256x128xf32>
    %48 = tpu.matmul %44, %47, %cst_64 {dimension_numbers = #tpu.dot_dimension_numbers<[1], [0], [0], [1], [0, 0, 1, 1], [], []>} : vector<256x384xf32>, vector<384x128xf32>, vector<256x128xf32> -> vector<256x128xf32>
    %49 = arith.addf %45, %48 : vector<256x128xf32>
    %c0_65 = arith.constant 0 : index
    %c0_66 = arith.constant 0 : index
    %50 = vector.load %arg9[%c0_65, %c0_66] : memref<256x128xf32, #tpu.memory_space<vmem>>, vector<256x128xf32>
    tpu.vector_store %arg9[%c0_65, %c0_66], %49 {strides = array<i32>} : memref<256x128xf32, #tpu.memory_space<vmem>>, vector<256x128xf32>,
    %c0_67 = arith.constant 0 : index
    %c0_68 = arith.constant 0 : index
    %51 = vector.load %arg9[%c0_67, %c0_68] : memref<256x128xf32, #tpu.memory_space<vmem>>, vector<256x128xf32>
    %cst_69 = arith.constant dense<0.000000e+00> : vector<128xf32>
    %52 = vector.multi_reduction <add>, %51, %cst_69 [0] : vector<256x128xf32> to vector<128xf32>
    %53 = vector.shape_cast %52 : vector<128xf32> to vector<1x128xf32>
    %c0_70 = arith.constant 0 : index
    %c0_71 = arith.constant 0 : index
    %c0_72 = arith.constant 0 : index
    %54 = vector.load %arg7[%c0_70, %c0_71, %c0_72] : memref<1x2x128xf32, #tpu.memory_space<vmem>>, vector<1x1x128xf32>
    %55 = vector.shape_cast %54 : vector<1x1x128xf32> to vector<1x128xf32>
    %56 = vector.shape_cast %53 : vector<1x128xf32> to vector<1x1x128xf32>
    tpu.vector_store %arg7[%c0_70, %c0_71, %c0_72], %56 {strides = array<i32>} : memref<1x2x128xf32, #tpu.memory_space<vmem>>, vector<1x1x128xf32>,
    %57 = arith.mulf %51, %51 : vector<256x128xf32>
    %cst_73 = arith.constant dense<0.000000e+00> : vector<128xf32>
    %58 = vector.multi_reduction <add>, %57, %cst_73 [0] : vector<256x128xf32> to vector<128xf32>
    %59 = vector.shape_cast %58 : vector<128xf32> to vector<1x128xf32>
    %c0_74 = arith.constant 0 : index
    %c1_75 = arith.constant 1 : index
    %c0_76 = arith.constant 0 : index
    %60 = vector.load %arg7[%c0_74, %c1_75, %c0_76] : memref<1x2x128xf32, #tpu.memory_space<vmem>>, vector<1x1x128xf32>
    %61 = vector.shape_cast %60 : vector<1x1x128xf32> to vector<1x128xf32>
    %62 = vector.shape_cast %59 : vector<1x128xf32> to vector<1x1x128xf32>
    tpu.vector_store %arg7[%c0_74, %c1_75, %c0_76], %62 {strides = array<i32>} : memref<1x2x128xf32, #tpu.memory_space<vmem>>, vector<1x1x128xf32>,
    %63 = vector.shape_cast %51 : vector<256x128xf32> to vector<1x16x16x128xf32>
    %c0_77 = arith.constant 0 : index
    %c0_78 = arith.constant 0 : index
    %c0_79 = arith.constant 0 : index
    %c0_80 = arith.constant 0 : index
    %64 = vector.load %arg6[%c0_77, %c0_78, %c0_79, %c0_80] : memref<1x16x16x128xf32, #tpu.memory_space<vmem>>, vector<1x16x16x128xf32>
    tpu.vector_store %arg6[%c0_77, %c0_78, %c0_79, %c0_80], %63 {strides = array<i32>} : memref<1x16x16x128xf32, #tpu.memory_space<vmem>>, vector<1x16x16x128xf32>,
    return
  }
  func.func @transform_0(%arg0: i32) -> (i32, i32, i32, i32) {
    %c0_i32 = arith.constant 0 : i32
    %c0_i32_0 = arith.constant 0 : i32
    %c0_i32_1 = arith.constant 0 : i32
    %c0_i32_2 = arith.constant 0 : i32
    return %arg0, %c0_i32, %c0_i32_0, %c0_i32_1 : i32, i32, i32, i32
  }
  func.func @transform_1(%arg0: i32) -> (i32, i32, i32) {
    %c0_i32 = arith.constant 0 : i32
    %c0_i32_0 = arith.constant 0 : i32
    %c0_i32_1 = arith.constant 0 : i32
    %c0_i32_2 = arith.constant 0 : i32
    return %c0_i32, %c0_i32_0, %c0_i32_1 : i32, i32, i32
  }
  func.func @transform_2(%arg0: i32) -> (i32, i32, i32) {
    %c0_i32 = arith.constant 0 : i32
    %c0_i32_0 = arith.constant 0 : i32
    %c0_i32_1 = arith.constant 0 : i32
    %c0_i32_2 = arith.constant 0 : i32
    return %c0_i32, %c0_i32_0, %c0_i32_1 : i32, i32, i32
  }
  func.func @transform_3(%arg0: i32) -> (i32, i32, i32) {
    %c0_i32 = arith.constant 0 : i32
    %c0_i32_0 = arith.constant 0 : i32
    %c0_i32_1 = arith.constant 0 : i32
    %c0_i32_2 = arith.constant 0 : i32
    return %c0_i32, %c0_i32_0, %c0_i32_1 : i32, i32, i32
  }
  func.func @transform_4(%arg0: i32) -> (i32, i32, i32) {
    %c0_i32 = arith.constant 0 : i32
    %c0_i32_0 = arith.constant 0 : i32
    %c0_i32_1 = arith.constant 0 : i32
    %c0_i32_2 = arith.constant 0 : i32
    return %c0_i32, %c0_i32_0, %c0_i32_1 : i32, i32, i32
  }
  func.func @transform_5(%arg0: i32) -> (i32, i32, i32, i32) {
    %c0_i32 = arith.constant 0 : i32
    %c0_i32_0 = arith.constant 0 : i32
    %c0_i32_1 = arith.constant 0 : i32
    %c0_i32_2 = arith.constant 0 : i32
    return %arg0, %c0_i32, %c0_i32_0, %c0_i32_1 : i32, i32, i32, i32
  }
  func.func @transform_6(%arg0: i32) -> (i32, i32, i32) {
    %c0_i32 = arith.constant 0 : i32
    %c0_i32_0 = arith.constant 0 : i32
    %c0_i32_1 = arith.constant 0 : i32
    return %arg0, %c0_i32, %c0_i32_0 : i32, i32, i32
  }
}

module attributes {stable_mosaic.version = 11 : i64} {
  func.func @_conv_block_kernel(%arg0: i32, %arg1: memref<1x16x16x128xf32, #tpu.memory_space<vmem>>, %arg2: memref<1x1x128xf32, #tpu.memory_space<vmem>>, %arg3: memref<1x1x128xf32, #tpu.memory_space<vmem>>, %arg4: memref<3x384x128xf32, #tpu.memory_space<vmem>>, %arg5: memref<1x1x128xf32, #tpu.memory_space<vmem>>, %arg6: memref<1x16x16x128xf32, #tpu.memory_space<vmem>>, %arg7: memref<1x16x16x128xf32, #tpu.memory_space<vmem>>, %arg8: memref<1x18x16x384xf32, #tpu.memory_space<vmem>>, %arg9: memref<256x128xf32, #tpu.memory_space<vmem>>) attributes {dimension_semantics = [#tpu.dimension_semantics<parallel>], iteration_bounds = array<i64: 4>, scalar_prefetch = 0 : i64, scratch_operands = 2 : i64, tpu.core_type = #tpu.core_type<tc>, window_params = [{transform_indices = @transform_0, window_bounds = array<i64: 1, 16, 16, 128>}, {pipeline_mode = #tpu.pipeline_mode<synchronous>, transform_indices = @transform_1, window_bounds = array<i64: 1, 1, 128>}, {pipeline_mode = #tpu.pipeline_mode<synchronous>, transform_indices = @transform_2, window_bounds = array<i64: 1, 1, 128>}, {pipeline_mode = #tpu.pipeline_mode<synchronous>, transform_indices = @transform_3, window_bounds = array<i64: 3, 384, 128>}, {pipeline_mode = #tpu.pipeline_mode<synchronous>, transform_indices = @transform_4, window_bounds = array<i64: 1, 1, 128>}, {transform_indices = @transform_5, window_bounds = array<i64: 1, 16, 16, 128>}, {transform_indices = @transform_6, window_bounds = array<i64: 1, 16, 16, 128>}]} {
    %c0 = arith.constant 0 : index
    %c0_0 = arith.constant 0 : index
    %c0_1 = arith.constant 0 : index
    %c0_2 = arith.constant 0 : index
    %0 = vector.load %arg1[%c0, %c0_0, %c0_1, %c0_2] : memref<1x16x16x128xf32, #tpu.memory_space<vmem>>, vector<1x16x16x128xf32>
    %c0_3 = arith.constant 0 : index
    %c0_4 = arith.constant 0 : index
    %c0_5 = arith.constant 0 : index
    %1 = vector.load %arg2[%c0_3, %c0_4, %c0_5] : memref<1x1x128xf32, #tpu.memory_space<vmem>>, vector<1x1x128xf32>
    %2 = vector.shape_cast %1 : vector<1x1x128xf32> to vector<1x1x1x128xf32>
    %3 = vector.broadcast %2 : vector<1x1x1x128xf32> to vector<1x16x16x128xf32>
    %4 = arith.mulf %0, %3 : vector<1x16x16x128xf32>
    %c0_6 = arith.constant 0 : index
    %c0_7 = arith.constant 0 : index
    %c0_8 = arith.constant 0 : index
    %5 = vector.load %arg3[%c0_6, %c0_7, %c0_8] : memref<1x1x128xf32, #tpu.memory_space<vmem>>, vector<1x1x128xf32>
    %6 = vector.shape_cast %5 : vector<1x1x128xf32> to vector<1x1x1x128xf32>
    %7 = vector.broadcast %6 : vector<1x1x1x128xf32> to vector<1x16x16x128xf32>
    %8 = arith.addf %4, %7 : vector<1x16x16x128xf32>
    %cst = arith.constant 0.000000e+00 : f32
    %9 = vector.broadcast %cst : f32 to vector<1x16x16x128xf32>
    %10 = arith.maximumf %8, %9 : vector<1x16x16x128xf32>
    %cst_9 = arith.constant 0.000000e+00 : f32
    %11 = vector.broadcast %cst_9 : f32 to vector<1x1x16x384xf32>
    %cst_10 = arith.constant 0.000000e+00 : f32
    %12 = vector.broadcast %cst_10 : f32 to vector<1x16x1x128xf32>
    %c0_11 = arith.constant 0 : index
    %c0_12 = arith.constant 0 : index
    %c0_13 = arith.constant 0 : index
    %c0_14 = arith.constant 0 : index
    %13 = vector.load %arg8[%c0_11, %c0_12, %c0_13, %c0_14] : memref<1x18x16x384xf32, #tpu.memory_space<vmem>>, vector<1x1x16x384xf32>
    tpu.vector_store %arg8[%c0_11, %c0_12, %c0_13, %c0_14], %11 {strides = array<i32>} : memref<1x18x16x384xf32, #tpu.memory_space<vmem>>, vector<1x1x16x384xf32>,
    %c0_15 = arith.constant 0 : index
    %c17 = arith.constant 17 : index
    %c0_16 = arith.constant 0 : index
    %c0_17 = arith.constant 0 : index
    %14 = vector.load %arg8[%c0_15, %c17, %c0_16, %c0_17] : memref<1x18x16x384xf32, #tpu.memory_space<vmem>>, vector<1x1x16x384xf32>
    tpu.vector_store %arg8[%c0_15, %c17, %c0_16, %c0_17], %11 {strides = array<i32>} : memref<1x18x16x384xf32, #tpu.memory_space<vmem>>, vector<1x1x16x384xf32>,
    %15 = vector.extract_strided_slice %10 {offsets = [0, 0, 0, 0], sizes = [1, 16, 15, 128], strides = [1, 1, 1, 1]} : vector<1x16x16x128xf32> to vector<1x16x15x128xf32>
    %16 = tpu.concatenate %12, %15 in 2 : vector<1x16x1x128xf32>, vector<1x16x15x128xf32> -> vector<1x16x16x128xf32>
    %c0_18 = arith.constant 0 : index
    %c1 = arith.constant 1 : index
    %c0_19 = arith.constant 0 : index
    %c0_20 = arith.constant 0 : index
    %17 = vector.load %arg8[%c0_18, %c1, %c0_19, %c0_20] : memref<1x18x16x384xf32, #tpu.memory_space<vmem>>, vector<1x16x16x128xf32>
    tpu.vector_store %arg8[%c0_18, %c1, %c0_19, %c0_20], %16 {strides = array<i32>} : memref<1x18x16x384xf32, #tpu.memory_space<vmem>>, vector<1x16x16x128xf32>,
    %c0_21 = arith.constant 0 : index
    %c1_22 = arith.constant 1 : index
    %c0_23 = arith.constant 0 : index
    %c128 = arith.constant 128 : index
    %18 = vector.load %arg8[%c0_21, %c1_22, %c0_23, %c128] : memref<1x18x16x384xf32, #tpu.memory_space<vmem>>, vector<1x16x16x128xf32>
    tpu.vector_store %arg8[%c0_21, %c1_22, %c0_23, %c128], %10 {strides = array<i32>} : memref<1x18x16x384xf32, #tpu.memory_space<vmem>>, vector<1x16x16x128xf32>,
    %19 = vector.extract_strided_slice %10 {offsets = [0, 0, 1, 0], sizes = [1, 16, 15, 128], strides = [1, 1, 1, 1]} : vector<1x16x16x128xf32> to vector<1x16x15x128xf32>
    %20 = tpu.concatenate %19, %12 in 2 : vector<1x16x15x128xf32>, vector<1x16x1x128xf32> -> vector<1x16x16x128xf32>
    %c0_24 = arith.constant 0 : index
    %c1_25 = arith.constant 1 : index
    %c0_26 = arith.constant 0 : index
    %c256 = arith.constant 256 : index
    %21 = vector.load %arg8[%c0_24, %c1_25, %c0_26, %c256] : memref<1x18x16x384xf32, #tpu.memory_space<vmem>>, vector<1x16x16x128xf32>
    tpu.vector_store %arg8[%c0_24, %c1_25, %c0_26, %c256], %20 {strides = array<i32>} : memref<1x18x16x384xf32, #tpu.memory_space<vmem>>, vector<1x16x16x128xf32>,
    %c0_27 = arith.constant 0 : index
    %c0_28 = arith.constant 0 : index
    %c0_29 = arith.constant 0 : index
    %22 = vector.load %arg5[%c0_27, %c0_28, %c0_29] : memref<1x1x128xf32, #tpu.memory_space<vmem>>, vector<1x1x128xf32>
    %23 = vector.shape_cast %22 : vector<1x1x128xf32> to vector<1x128xf32>
    %24 = vector.shape_cast %23 : vector<1x128xf32> to vector<1x128xf32>
    %25 = vector.broadcast %24 : vector<1x128xf32> to vector<256x128xf32>
    %c0_30 = arith.constant 0 : index
    %c0_31 = arith.constant 0 : index
    %26 = vector.load %arg9[%c0_30, %c0_31] : memref<256x128xf32, #tpu.memory_space<vmem>>, vector<256x128xf32>
    tpu.vector_store %arg9[%c0_30, %c0_31], %25 {strides = array<i32>} : memref<256x128xf32, #tpu.memory_space<vmem>>, vector<256x128xf32>,
    %c0_32 = arith.constant 0 : index
    %c0_33 = arith.constant 0 : index
    %c0_34 = arith.constant 0 : index
    %c0_35 = arith.constant 0 : index
    %27 = vector.load %arg8[%c0_32, %c0_33, %c0_34, %c0_35] : memref<1x18x16x384xf32, #tpu.memory_space<vmem>>, vector<1x16x16x384xf32>
    %28 = vector.shape_cast %27 : vector<1x16x16x384xf32> to vector<256x384xf32>
    %c0_36 = arith.constant 0 : index
    %c0_37 = arith.constant 0 : index
    %29 = vector.load %arg9[%c0_36, %c0_37] : memref<256x128xf32, #tpu.memory_space<vmem>>, vector<256x128xf32>
    %c0_38 = arith.constant 0 : index
    %c0_39 = arith.constant 0 : index
    %c0_40 = arith.constant 0 : index
    %30 = vector.load %arg4[%c0_38, %c0_39, %c0_40] : memref<3x384x128xf32, #tpu.memory_space<vmem>>, vector<1x384x128xf32>
    %31 = vector.shape_cast %30 : vector<1x384x128xf32> to vector<384x128xf32>
    %cst_41 = arith.constant dense<0.000000e+00> : vector<256x128xf32>
    %32 = tpu.matmul %28, %31, %cst_41 {dimension_numbers = #tpu.dot_dimension_numbers<[1], [0], [0], [1], [0, 0, 1, 1], [], []>} : vector<256x384xf32>, vector<384x128xf32>, vector<256x128xf32> -> vector<256x128xf32>
    %33 = arith.addf %29, %32 : vector<256x128xf32>
    %c0_42 = arith.constant 0 : index
    %c0_43 = arith.constant 0 : index
    %34 = vector.load %arg9[%c0_42, %c0_43] : memref<256x128xf32, #tpu.memory_space<vmem>>, vector<256x128xf32>
    tpu.vector_store %arg9[%c0_42, %c0_43], %33 {strides = array<i32>} : memref<256x128xf32, #tpu.memory_space<vmem>>, vector<256x128xf32>,
    %c0_44 = arith.constant 0 : index
    %c1_45 = arith.constant 1 : index
    %c0_46 = arith.constant 0 : index
    %c0_47 = arith.constant 0 : index
    %35 = vector.load %arg8[%c0_44, %c1_45, %c0_46, %c0_47] : memref<1x18x16x384xf32, #tpu.memory_space<vmem>>, vector<1x16x16x384xf32>
    %36 = vector.shape_cast %35 : vector<1x16x16x384xf32> to vector<256x384xf32>
    %c0_48 = arith.constant 0 : index
    %c0_49 = arith.constant 0 : index
    %37 = vector.load %arg9[%c0_48, %c0_49] : memref<256x128xf32, #tpu.memory_space<vmem>>, vector<256x128xf32>
    %c1_50 = arith.constant 1 : index
    %c0_51 = arith.constant 0 : index
    %c0_52 = arith.constant 0 : index
    %38 = vector.load %arg4[%c1_50, %c0_51, %c0_52] : memref<3x384x128xf32, #tpu.memory_space<vmem>>, vector<1x384x128xf32>
    %39 = vector.shape_cast %38 : vector<1x384x128xf32> to vector<384x128xf32>
    %cst_53 = arith.constant dense<0.000000e+00> : vector<256x128xf32>
    %40 = tpu.matmul %36, %39, %cst_53 {dimension_numbers = #tpu.dot_dimension_numbers<[1], [0], [0], [1], [0, 0, 1, 1], [], []>} : vector<256x384xf32>, vector<384x128xf32>, vector<256x128xf32> -> vector<256x128xf32>
    %41 = arith.addf %37, %40 : vector<256x128xf32>
    %c0_54 = arith.constant 0 : index
    %c0_55 = arith.constant 0 : index
    %42 = vector.load %arg9[%c0_54, %c0_55] : memref<256x128xf32, #tpu.memory_space<vmem>>, vector<256x128xf32>
    tpu.vector_store %arg9[%c0_54, %c0_55], %41 {strides = array<i32>} : memref<256x128xf32, #tpu.memory_space<vmem>>, vector<256x128xf32>,
    %c0_56 = arith.constant 0 : index
    %c2 = arith.constant 2 : index
    %c0_57 = arith.constant 0 : index
    %c0_58 = arith.constant 0 : index
    %43 = vector.load %arg8[%c0_56, %c2, %c0_57, %c0_58] : memref<1x18x16x384xf32, #tpu.memory_space<vmem>>, vector<1x16x16x384xf32>
    %44 = vector.shape_cast %43 : vector<1x16x16x384xf32> to vector<256x384xf32>
    %c0_59 = arith.constant 0 : index
    %c0_60 = arith.constant 0 : index
    %45 = vector.load %arg9[%c0_59, %c0_60] : memref<256x128xf32, #tpu.memory_space<vmem>>, vector<256x128xf32>
    %c2_61 = arith.constant 2 : index
    %c0_62 = arith.constant 0 : index
    %c0_63 = arith.constant 0 : index
    %46 = vector.load %arg4[%c2_61, %c0_62, %c0_63] : memref<3x384x128xf32, #tpu.memory_space<vmem>>, vector<1x384x128xf32>
    %47 = vector.shape_cast %46 : vector<1x384x128xf32> to vector<384x128xf32>
    %cst_64 = arith.constant dense<0.000000e+00> : vector<256x128xf32>
    %48 = tpu.matmul %44, %47, %cst_64 {dimension_numbers = #tpu.dot_dimension_numbers<[1], [0], [0], [1], [0, 0, 1, 1], [], []>} : vector<256x384xf32>, vector<384x128xf32>, vector<256x128xf32> -> vector<256x128xf32>
    %49 = arith.addf %45, %48 : vector<256x128xf32>
    %c0_65 = arith.constant 0 : index
    %c0_66 = arith.constant 0 : index
    %50 = vector.load %arg9[%c0_65, %c0_66] : memref<256x128xf32, #tpu.memory_space<vmem>>, vector<256x128xf32>
    tpu.vector_store %arg9[%c0_65, %c0_66], %49 {strides = array<i32>} : memref<256x128xf32, #tpu.memory_space<vmem>>, vector<256x128xf32>,
    %c0_67 = arith.constant 0 : index
    %c0_68 = arith.constant 0 : index
    %51 = vector.load %arg9[%c0_67, %c0_68] : memref<256x128xf32, #tpu.memory_space<vmem>>, vector<256x128xf32>
    %52 = vector.shape_cast %51 : vector<256x128xf32> to vector<1x16x16x128xf32>
    %c0_69 = arith.constant 0 : index
    %c0_70 = arith.constant 0 : index
    %c0_71 = arith.constant 0 : index
    %c0_72 = arith.constant 0 : index
    %53 = vector.load %arg6[%c0_69, %c0_70, %c0_71, %c0_72] : memref<1x16x16x128xf32, #tpu.memory_space<vmem>>, vector<1x16x16x128xf32>
    %54 = arith.addf %52, %53 : vector<1x16x16x128xf32>
    %c0_73 = arith.constant 0 : index
    %c0_74 = arith.constant 0 : index
    %c0_75 = arith.constant 0 : index
    %c0_76 = arith.constant 0 : index
    %55 = vector.load %arg7[%c0_73, %c0_74, %c0_75, %c0_76] : memref<1x16x16x128xf32, #tpu.memory_space<vmem>>, vector<1x16x16x128xf32>
    tpu.vector_store %arg7[%c0_73, %c0_74, %c0_75, %c0_76], %54 {strides = array<i32>} : memref<1x16x16x128xf32, #tpu.memory_space<vmem>>, vector<1x16x16x128xf32>,
    return
  }
  func.func @transform_0(%arg0: i32) -> (i32, i32, i32, i32) {
    %c0_i32 = arith.constant 0 : i32
    %c0_i32_0 = arith.constant 0 : i32
    %c0_i32_1 = arith.constant 0 : i32
    %c0_i32_2 = arith.constant 0 : i32
    return %arg0, %c0_i32, %c0_i32_0, %c0_i32_1 : i32, i32, i32, i32
  }
  func.func @transform_1(%arg0: i32) -> (i32, i32, i32) {
    %c0_i32 = arith.constant 0 : i32
    %c0_i32_0 = arith.constant 0 : i32
    %c0_i32_1 = arith.constant 0 : i32
    %c0_i32_2 = arith.constant 0 : i32
    return %c0_i32, %c0_i32_0, %c0_i32_1 : i32, i32, i32
  }
  func.func @transform_2(%arg0: i32) -> (i32, i32, i32) {
    %c0_i32 = arith.constant 0 : i32
    %c0_i32_0 = arith.constant 0 : i32
    %c0_i32_1 = arith.constant 0 : i32
    %c0_i32_2 = arith.constant 0 : i32
    return %c0_i32, %c0_i32_0, %c0_i32_1 : i32, i32, i32
  }
  func.func @transform_3(%arg0: i32) -> (i32, i32, i32) {
    %c0_i32 = arith.constant 0 : i32
    %c0_i32_0 = arith.constant 0 : i32
    %c0_i32_1 = arith.constant 0 : i32
    %c0_i32_2 = arith.constant 0 : i32
    return %c0_i32, %c0_i32_0, %c0_i32_1 : i32, i32, i32
  }
  func.func @transform_4(%arg0: i32) -> (i32, i32, i32) {
    %c0_i32 = arith.constant 0 : i32
    %c0_i32_0 = arith.constant 0 : i32
    %c0_i32_1 = arith.constant 0 : i32
    %c0_i32_2 = arith.constant 0 : i32
    return %c0_i32, %c0_i32_0, %c0_i32_1 : i32, i32, i32
  }
  func.func @transform_5(%arg0: i32) -> (i32, i32, i32, i32) {
    %c0_i32 = arith.constant 0 : i32
    %c0_i32_0 = arith.constant 0 : i32
    %c0_i32_1 = arith.constant 0 : i32
    %c0_i32_2 = arith.constant 0 : i32
    return %arg0, %c0_i32, %c0_i32_0, %c0_i32_1 : i32, i32, i32, i32
  }
  func.func @transform_6(%arg0: i32) -> (i32, i32, i32, i32) {
    %c0_i32 = arith.constant 0 : i32
    %c0_i32_0 = arith.constant 0 : i32
    %c0_i32_1 = arith.constant 0 : i32
    %c0_i32_2 = arith.constant 0 : i32
    return %arg0, %c0_i32, %c0_i32_0, %c0_i32_1 : i32, i32, i32, i32
  }
}

</mosaic_0001>

<llo_original>
// kernel: block_forward.2
$region0: #{block_forward.2}
  #allocation0 [shape = 'u32[]', space=smem, size = 0x4, offset = 0x4, fixed_abs, tag = 'smem constant byte address 0x4 - core index']
  #allocation1 [shape = 'u32[144,128]{1,0:T(1,128)}', space=vmem, size = 0x12000, scoped, tag = 'internal scratch']
  #allocation2 [shape = 'f32[1,18,16,384]{3,2,1,0:T(8,128)}', space=vmem, size = 0x6c000, scoped, tag = 'scratch operand']
  #allocation3 [shape = 'f32[256,128]{1,0:T(8,128)}', space=vmem, size = 0x20000, scoped, tag = 'scratch operand']
  %s0 = inlined_call_operand.vmem [shape: f32[4,16,16,128], index: 0, kind: input, shape index: {}]
  %s1 = inlined_call_operand.vmem [shape: f32[1,1,128], index: 1, kind: input, shape index: {}]
  %s2 = inlined_call_operand.vmem [shape: f32[1,1,128], index: 2, kind: input, shape index: {}]
  %s3 = inlined_call_operand.hbm [shape: f32[3,384,128], index: 3, kind: input, shape index: {}]
  %s4 = inlined_call_operand.vmem [shape: f32[1,1,128], index: 4, kind: input, shape index: {}]
  %s5 = inlined_call_operand.vmem [shape: f32[4,16,16,128], index: 5, kind: output, shape index: {0}]
  %s6 = inlined_call_operand.vmem [shape: f32[4,2,128], index: 6, kind: output, shape index: {1}]
  %7 = xla_tuple %s5, %s6
  %s8 = sld [smem:[#allocation0]]
  $region65: #{block_forward.2} parent=0
    _
  %s10 = ssub.s32 1, %s8
  %s11 = scalar_select 0, %s10, %s8
  $region1: #{block_forward.2} parent=0
    #allocation4 [shape = 'u8[589824]{0}', space=vmem, size = 0x90000, scoped, tag = 'input window, operand 3, single buffered']
    #allocation5 [shape = 's32[2]{0}', space=sflag, size = 0x8, scoped, tag = 'scoped memory for block_forward.2']
    %12 = vsyncpa [#allocation5], 0
    loop: start=0, step=1, limit=6
    $region2: #{block_forward.2} parent=1 // loop_pre_header
      _
    $region3: #{block_forward.2} parent=1 // loop_header
      %s14 = sphi 0, %s18
      %p15 = scmp.ge.s32.totalorder %s14, 6
      %s24 = sphi 0, %s26
      %s27 = sphi 0, %s24
      %s28 = sphi 0, %s27
      %s44 = sphi 0, %s28
      %s48 = sphi 0, %s48
      %s50 = sphi 0, %s48
      %s51 = sphi 0, %s50
      %s65 = sphi 0, %s51
      %s69 = sphi 0, %s69
      %s71 = sphi 0, %s69
      %s72 = sphi 0, %s71
      %s86 = sphi 0, %s72
      %s90 = sphi 0, %s90
      %s92 = sphi 0, %s90
      %s93 = sphi 0, %s92
      %s107 = sphi 0, %s93
      %s111 = sphi 0, %s111
      %s113 = sphi 0, %s111
      %s114 = sphi 0, %s113
      %s128 = sphi 0, %s114
      %s134 = sphi 0, %s136
      %s137 = sphi 0, %s134
      %s138 = sphi 0, %s137
      %s154 = sphi 0, %s138
      %s160 = sphi 0, %s162
      %s163 = sphi 0, %s160
      %s164 = sphi 0, %s163
      %s180 = sphi 0, %s164
    $region4: #{block_forward.2} parent=1 // loop_header_branch
      %17 = sbr.rel (%p15) target = $region8
    $region5: #{block_forward.2} parent=1 // loop_body
      %s19 = ssub.s32 %s14, 1
      %s20 = ssub.s32 %s14, 2
      %s21 = sadd.s32 %s14, 1
      %s22 = ssub.s32 %s14, %s21
      %p23 = scmp.eq.s32.totalorder %s22, 0
      %s25 = sadd.s32 %s24, 1
      %s26 = scalar_select %p23, %s24, %s25
      %p29 = pneg %p23
      %p30 = scmp.eq.s32.totalorder %s14, 3
      %p31 = por %p29, %p30
      %p32 = scmp.ne.s32.totalorder %s24, %s27
      %p33 = scmp.eq.s32.totalorder %s14, 0
      %p34 = por %p32, %p33
      %p35 = scmp.ne.s32.totalorder %s24, %s27
      %p36 = scmp.eq.s32.totalorder %s19, 3
      %p37 = por %p35, %p36
      %p38 = scmp.ne.s32.totalorder %s27, %s28
      %p39 = scmp.eq.s32.totalorder %s19, 0
      %p40 = por %p38, %p39
      %p41 = scmp.ne.s32.totalorder %s27, %s28
      %p42 = scmp.eq.s32.totalorder %s20, 3
      %p43 = por %p41, %p42
      %p45 = scmp.ne.s32.totalorder %s28, %s44
      %p46 = scmp.eq.s32.totalorder %s20, 0
      %p47 = por %p45, %p46
      %s49 = sadd.s32 %s48, 1
      %p52 = scmp.eq.s32.totalorder %s14, 3
      %p53 = scmp.ne.s32.totalorder %s48, %s50
      %p54 = scmp.eq.s32.totalorder %s14, 0
      %p55 = por %p53, %p54
      %p56 = scmp.ne.s32.totalorder %s48, %s50
      %p57 = scmp.eq.s32.totalorder %s19, 3
      %p58 = por %p56, %p57
      %p59 = scmp.ne.s32.totalorder %s50, %s51
      %p60 = scmp.eq.s32.totalorder %s19, 0
      %p61 = por %p59, %p60
      %p62 = scmp.ne.s32.totalorder %s50, %s51
      %p63 = scmp.eq.s32.totalorder %s20, 3
      %p64 = por %p62, %p63
      %p66 = scmp.ne.s32.totalorder %s51, %s65
      %p67 = scmp.eq.s32.totalorder %s20, 0
      %p68 = por %p66, %p67
      %s70 = sadd.s32 %s69, 1
      %p73 = scmp.eq.s32.totalorder %s14, 3
      %p74 = scmp.ne.s32.totalorder %s69, %s71
      %p75 = scmp.eq.s32.totalorder %s14, 0
      %p76 = por %p74, %p75
      %p77 = scmp.ne.s32.totalorder %s69, %s71
      %p78 = scmp.eq.s32.totalorder %s19, 3
      %p79 = por %p77, %p78
      %p80 = scmp.ne.s32.totalorder %s71, %s72
      %p81 = scmp.eq.s32.totalorder %s19, 0
      %p82 = por %p80, %p81
      %p83 = scmp.ne.s32.totalorder %s71, %s72
      %p84 = scmp.eq.s32.totalorder %s20, 3
      %p85 = por %p83, %p84
      %p87 = scmp.ne.s32.totalorder %s72, %s86
      %p88 = scmp.eq.s32.totalorder %s20, 0
      %p89 = por %p87, %p88
      %s91 = sadd.s32 %s90, 1
      %p94 = scmp.eq.s32.totalorder %s14, 3
      %p95 = scmp.ne.s32.totalorder %s90, %s92
      %p96 = scmp.eq.s32.totalorder %s14, 0
      %p97 = por %p95, %p96
      %p98 = scmp.ne.s32.totalorder %s90, %s92
      %p99 = scmp.eq.s32.totalorder %s19, 3
      %p100 = por %p98, %p99
      %p101 = scmp.ne.s32.totalorder %s92, %s93
      %p102 = scmp.eq.s32.totalorder %s19, 0
      %p103 = por %p101, %p102
      %p104 = scmp.ne.s32.totalorder %s92, %s93
      %p105 = scmp.eq.s32.totalorder %s20, 3
      %p106 = por %p104, %p105
      %p108 = scmp.ne.s32.totalorder %s93, %s107
      %p109 = scmp.eq.s32.totalorder %s20, 0
      %p110 = por %p108, %p109
      %s112 = sadd.s32 %s111, 1
      %p115 = scmp.eq.s32.totalorder %s14, 3
      %p116 = scmp.ne.s32.totalorder %s111, %s113
      %p117 = scmp.eq.s32.totalorder %s14, 0
      %p118 = por %p116, %p117
      %p119 = scmp.ne.s32.totalorder %s111, %s113
      %p120 = scmp.eq.s32.totalorder %s19, 3
      %p121 = por %p119, %p120
      %p122 = scmp.ne.s32.totalorder %s113, %s114
      %p123 = scmp.eq.s32.totalorder %s19, 0
      %p124 = por %p122, %p123
      %p125 = scmp.ne.s32.totalorder %s113, %s114
      %p126 = scmp.eq.s32.totalorder %s20, 3
      %p127 = por %p125, %p126
      %p129 = scmp.ne.s32.totalorder %s114, %s128
      %p130 = scmp.eq.s32.totalorder %s20, 0
      %p131 = por %p129, %p130
      %s132 = ssub.s32 %s14, %s21
      %p133 = scmp.eq.s32.totalorder %s132, 0
      %s135 = sadd.s32 %s134, 1
      %s136 = scalar_select %p133, %s134, %s135
      %p139 = pneg %p133
      %p140 = scmp.eq.s32.totalorder %s14, 3
      %p141 = por %p139, %p140
      %p142 = scmp.ne.s32.totalorder %s134, %s137
      %p143 = scmp.eq.s32.totalorder %s14, 0
      %p144 = por %p142, %p143
      %p145 = scmp.ne.s32.totalorder %s134, %s137
      %p146 = scmp.eq.s32.totalorder %s19, 3
      %p147 = por %p145, %p146
      %p148 = scmp.ne.s32.totalorder %s137, %s138
      %p149 = scmp.eq.s32.totalorder %s19, 0
      %p150 = por %p148, %p149
      %p151 = scmp.ne.s32.totalorder %s137, %s138
      %p152 = scmp.eq.s32.totalorder %s20, 3
      %p153 = por %p151, %p152
      %p155 = scmp.ne.s32.totalorder %s138, %s154
      %p156 = scmp.eq.s32.totalorder %s20, 0
      %p157 = por %p155, %p156
      %s158 = ssub.s32 %s14, %s21
      %p159 = scmp.eq.s32.totalorder %s158, 0
      %s161 = sadd.s32 %s160, 1
      %s162 = scalar_select %p159, %s160, %s161
      %p165 = pneg %p159
      %p166 = scmp.eq.s32.totalorder %s14, 3
      %p167 = por %p165, %p166
      %p168 = scmp.ne.s32.totalorder %s160, %s163
      %p169 = scmp.eq.s32.totalorder %s14, 0
      %p170 = por %p168, %p169
      %p171 = scmp.ne.s32.totalorder %s160, %s163
      %p172 = scmp.eq.s32.totalorder %s19, 3
      %p173 = por %p171, %p172
      %p174 = scmp.ne.s32.totalorder %s163, %s164
      %p175 = scmp.eq.s32.totalorder %s19, 0
      %p176 = por %p174, %p175
      %p177 = scmp.ne.s32.totalorder %s163, %s164
      %p178 = scmp.eq.s32.totalorder %s20, 3
      %p179 = por %p177, %p178
      %p181 = scmp.ne.s32.totalorder %s164, %s180
      %p182 = scmp.eq.s32.totalorder %s20, 0
      %p183 = por %p181, %p182
      %p184 = scmp.le.s32.totalorder 1, %s14
      %p185 = scmp.lt.s32.totalorder %s14, 5
      %p186 = pnand %p184, %p185
      %p187 = pneg %p186
      // Predicated region
      $region9: #{block_forward.2} parent=5 // pred_check
        _
      $region10: #{block_forward.2} parent=5 // pred_check_branch
        %189 = sbr.rel (%p186) target = $region12
      $region11: #{block_forward.2} parent=5 // pred_region
        %s190 = ssub.s32 %s14, 1
        // Predicated region
        $region13: #{block_forward.2} parent=11 // pred_check
          %p191 = pneg %p61
        $region14: #{block_forward.2} parent=11 // pred_check_branch
          %193 = sbr.rel (%p191) target = $region16
        $region15: #{block_forward.2} parent=11 // pred_region
          _
        $region16: #{block_forward.2} parent=11 // pred_fallthru
          _
        // Predicated region
        $region17: #{block_forward.2} parent=11 // pred_check
          %p194 = pneg %p82
        $region18: #{block_forward.2} parent=11 // pred_check_branch
          %196 = sbr.rel (%p194) target = $region20
        $region19: #{block_forward.2} parent=11 // pred_region
          _
        $region20: #{block_forward.2} parent=11 // pred_fallthru
          _
        // Predicated region
        $region21: #{block_forward.2} parent=11 // pred_check
          %p197 = pneg %p103
        $region22: #{block_forward.2} parent=11 // pred_check_branch
          %199 = sbr.rel (%p197) target = $region24
        $region23: #{block_forward.2} parent=11 // pred_region
          %s201 = ssub.s32 18432, 18432
          %202 = vsyncadd [#allocation5], %s201
          %s203 = sshll.u32 [#allocation4], 4
          %s204 = int_to_ptr.vmem [resolvable:$true] %s203
          %209 = dma.hbm_to_vmem [thread:$0]  %s3, 18432, %s204, [#allocation5], 128, 128, 8
        $region24: #{block_forward.2} parent=11 // pred_fallthru
          _
        // Predicated region
        $region25: #{block_forward.2} parent=11 // pred_check
          %p210 = pneg %p124
        $region26: #{block_forward.2} parent=11 // pred_check_branch
          %212 = sbr.rel (%p210) target = $region28
        $region27: #{block_forward.2} parent=11 // pred_region
          _
        $region28: #{block_forward.2} parent=11 // pred_fallthru
          _
      $region12: #{block_forward.2} parent=5 // pred_fallthru
        _
      %p213 = scmp.lt.s32.totalorder %s14, 4
      // Predicated region
      $region29: #{block_forward.2} parent=5 // pred_check
        %p214 = pneg %p213
      $region30: #{block_forward.2} parent=5 // pred_check_branch
        %216 = sbr.rel (%p214) target = $region32
      $region31: #{block_forward.2} parent=5 // pred_region
        // Predicated region
        $region33: #{block_forward.2} parent=31 // pred_check
          %p217 = pneg %p34
        $region34: #{block_forward.2} parent=31 // pred_check_branch
          %219 = sbr.rel (%p217) target = $region36
        $region35: #{block_forward.2} parent=31 // pred_region
          %p220 = scmp.lt.s32.totalorder %s14, 3
          %s221 = scalar_select %p220, %s14, 3
          %s222 = smul.addr %s221, 32
          %s223 = smul.addr %s222, 8
          %s224 = scalar_lea.vmem %s0, %s223
        $region36: #{block_forward.2} parent=31 // pred_fallthru
          _
      $region32: #{block_forward.2} parent=5 // pred_fallthru
        _
      %p225 = scmp.le.s32.totalorder 1, %s14
      %p226 = scmp.lt.s32.totalorder %s14, 5
      %p227 = pnand %p225, %p226
      %p228 = pneg %p227
      // Predicated region
      $region37: #{block_forward.2} parent=5 // pred_check
        _
      $region38: #{block_forward.2} parent=5 // pred_check_branch
        %230 = sbr.rel (%p227) target = $region40
      $region39: #{block_forward.2} parent=5 // pred_region
        %s231 = ssub.s32 %s14, 1
        // Predicated region
        $region41: #{block_forward.2} parent=39 // pred_check
          %p232 = pneg %p103
        $region42: #{block_forward.2} parent=39 // pred_check_branch
          %234 = sbr.rel (%p232) target = $region44
        $region43: #{block_forward.2} parent=39 // pred_region
          %235 = dma.done [#allocation5], 18432
        $region44: #{block_forward.2} parent=39 // pred_fallthru
          _
        %p236 = scmp.lt.s32.totalorder %s19, 3
        %s237 = scalar_select %p236, %s19, 3
        %s238 = smul.addr %s237, 32
        %s239 = smul.addr %s238, 8
        %s240 = scalar_lea.vmem %s0, %s239
        %p241 = pneg %p40
        %p242 = pneg %p37
        %p243 = pneg %p61
        %p244 = pneg %p58
        %p245 = pneg %p82
        %p246 = pneg %p79
        %p247 = pneg %p103
        %p248 = pneg %p100
        %p249 = pneg %p124
        %p250 = pneg %p121
        %p251 = pneg %p150
        %p252 = pneg %p147
        %p253 = scmp.lt.s32.totalorder %s19, 3
        %s254 = scalar_select %p253, %s19, 3
        %s255 = smul.addr %s254, 32
        %s256 = smul.addr %s255, 8
        %s257 = scalar_lea.vmem %s5, %s256
        %p258 = pneg %p176
        %p259 = pneg %p173
        %p260 = scmp.lt.s32.totalorder %s19, 3
        %s261 = scalar_select %p260, %s19, 3
        %s262 = smul.addr %s261, 2
        %s263 = scalar_lea.vmem %s6, %s262
        %p264 = scmp.lt.s32.totalorder %s19, 3
        %s265 = scalar_select %p264, %s19, 3
        %s266 = smul.addr %s265, 32
        %s267 = smul.addr %s266, 8
        %s268 = scalar_lea.vmem %s0, %s267
        %p269 = scmp.lt.s32.totalorder %s19, 3
        %s270 = scalar_select %p269, %s19, 3
        %s271 = smul.addr %s270, 32
        %s272 = smul.addr %s271, 8
        %s273 = scalar_lea.vmem %s5, %s272
        %p274 = scmp.lt.s32.totalorder %s19, 3
        %s275 = scalar_select %p274, %s19, 3
        %s276 = smul.addr %s275, 2
        %s277 = scalar_lea.vmem %s6, %s276
        %v278 = vld [vmem:[%s268] sm:$0xff]
        %v279 = vld [vmem:[%s268 + $0x8] sm:$0xff]
        %v280 = vld [vmem:[%s268 + $0x10] sm:$0xff]
        %v281 = vld [vmem:[%s268 + $0x18] sm:$0xff]
        %v282 = vld [vmem:[%s268 + $0x20] sm:$0xff]
        %v283 = vld [vmem:[%s268 + $0x28] sm:$0xff]
        %v284 = vld [vmem:[%s268 + $0x30] sm:$0xff]
        %v285 = vld [vmem:[%s268 + $0x38] sm:$0xff]
        %v286 = vld [vmem:[%s268 + $0x40] sm:$0xff]
        %v287 = vld [vmem:[%s268 + $0x48] sm:$0xff]
        %v288 = vld [vmem:[%s268 + $0x50] sm:$0xff]
        %v289 = vld [vmem:[%s268 + $0x58] sm:$0xff]
        %v290 = vld [vmem:[%s268 + $0x60] sm:$0xff]
        %v291 = vld [vmem:[%s268 + $0x68] sm:$0xff]
        %v292 = vld [vmem:[%s268 + $0x70] sm:$0xff]
        %v293 = vld [vmem:[%s268 + $0x78] sm:$0xff]
        %v294 = vld [vmem:[%s268 + $0x80] sm:$0xff]
        %v295 = vld [vmem:[%s268 + $0x88] sm:$0xff]
        %v296 = vld [vmem:[%s268 + $0x90] sm:$0xff]
        %v297 = vld [vmem:[%s268 + $0x98] sm:$0xff]
        %v298 = vld [vmem:[%s268 + $0xa0] sm:$0xff]
        %v299 = vld [vmem:[%s268 + $0xa8] sm:$0xff]
        %v300 = vld [vmem:[%s268 + $0xb0] sm:$0xff]
        %v301 = vld [vmem:[%s268 + $0xb8] sm:$0xff]
        %v302 = vld [vmem:[%s268 + $0xc0] sm:$0xff]
        %v303 = vld [vmem:[%s268 + $0xc8] sm:$0xff]
        %v304 = vld [vmem:[%s268 + $0xd0] sm:$0xff]
        %v305 = vld [vmem:[%s268 + $0xd8] sm:$0xff]
        %v306 = vld [vmem:[%s268 + $0xe0] sm:$0xff]
        %v307 = vld [vmem:[%s268 + $0xe8] sm:$0xff]
        %v308 = vld [vmem:[%s268 + $0xf0] sm:$0xff]
        %v309 = vld [vmem:[%s268 + $0xf8] sm:$0xff]
        %v310 = vld [vmem:[%s1] sm:$0x1]
        %v312 = vlaneseq
        %v313 = vshrl.u32 %v312, 7
        %v314 = vsub.s32 0, %v313
        %v315 = vrot.slane %v310, %v314
        %v317 = vmul.f32 %v278, %v315
        %v318 = vmul.f32 %v279, %v315
        %v319 = vmul.f32 %v280, %v315
        %v320 = vmul.f32 %v281, %v315
        %v321 = vmul.f32 %v282, %v315
        %v322 = vmul.f32 %v283, %v315
        %v323 = vmul.f32 %v284, %v315
        %v324 = vmul.f32 %v285, %v315
        %v325 = vmul.f32 %v286, %v315
        %v326 = vmul.f32 %v287, %v315
        %v327 = vmul.f32 %v288, %v315
        %v328 = vmul.f32 %v289, %v315
        %v329 = vmul.f32 %v290, %v315
        %v330 = vmul.f32 %v291, %v315
        %v331 = vmul.f32 %v292, %v315
        %v332 = vmul.f32 %v293, %v315
        %v333 = vmul.f32 %v294, %v315
        %v334 = vmul.f32 %v295, %v315
        %v335 = vmul.f32 %v296, %v315
        %v336 = vmul.f32 %v297, %v315
        %v337 = vmul.f32 %v298, %v315
        %v338 = vmul.f32 %v299, %v315
        %v339 = vmul.f32 %v300, %v315
        %v340 = vmul.f32 %v301, %v315
        %v341 = vmul.f32 %v302, %v315
        %v342 = vmul.f32 %v303, %v315
        %v343 = vmul.f32 %v304, %v315
        %v344 = vmul.f32 %v305, %v315
        %v345 = vmul.f32 %v306, %v315
        %v346 = vmul.f32 %v307, %v315
        %v347 = vmul.f32 %v308, %v315
        %v348 = vmul.f32 %v309, %v315
        %v349 = vld [vmem:[%s2] sm:$0x1]
        %v351 = vlaneseq
        %v352 = vshrl.u32 %v351, 7
        %v353 = vsub.s32 0, %v352
        %v354 = vrot.slane %v349, %v353
        %v356 = vadd.f32 %v317, %v354
        %v357 = vadd.f32 %v318, %v354
        %v358 = vadd.f32 %v319, %v354
        %v359 = vadd.f32 %v320, %v354
        %v360 = vadd.f32 %v321, %v354
        %v361 = vadd.f32 %v322, %v354
        %v362 = vadd.f32 %v323, %v354
        %v363 = vadd.f32 %v324, %v354
        %v364 = vadd.f32 %v325, %v354
        %v365 = vadd.f32 %v326, %v354
        %v366 = vadd.f32 %v327, %v354
        %v367 = vadd.f32 %v328, %v354
        %v368 = vadd.f32 %v329, %v354
        %v369 = vadd.f32 %v330, %v354
        %v370 = vadd.f32 %v331, %v354
        %v371 = vadd.f32 %v332, %v354
        %v372 = vadd.f32 %v333, %v354
        %v373 = vadd.f32 %v334, %v354
        %v374 = vadd.f32 %v335, %v354
        %v375 = vadd.f32 %v336, %v354
        %v376 = vadd.f32 %v337, %v354
        %v377 = vadd.f32 %v338, %v354
        %v378 = vadd.f32 %v339, %v354
        %v379 = vadd.f32 %v340, %v354
        %v380 = vadd.f32 %v341, %v354
        %v381 = vadd.f32 %v342, %v354
        %v382 = vadd.f32 %v343, %v354
        %v383 = vadd.f32 %v344, %v354
        %v384 = vadd.f32 %v345, %v354
        %v385 = vadd.f32 %v346, %v354
        %v386 = vadd.f32 %v347, %v354
        %v387 = vadd.f32 %v348, %v354
        %v388 = vmax.f32 %v356, 0.0
        %v389 = vmax.f32 %v357, 0.0
        %v390 = vmax.f32 %v358, 0.0
        %v391 = vmax.f32 %v359, 0.0
        %v392 = vmax.f32 %v360, 0.0
        %v393 = vmax.f32 %v361, 0.0
        %v394 = vmax.f32 %v362, 0.0
        %v395 = vmax.f32 %v363, 0.0
        %v396 = vmax.f32 %v364, 0.0
        %v397 = vmax.f32 %v365, 0.0
        %v398 = vmax.f32 %v366, 0.0
        %v399 = vmax.f32 %v367, 0.0
        %v400 = vmax.f32 %v368, 0.0
        %v401 = vmax.f32 %v369, 0.0
        %v402 = vmax.f32 %v370, 0.0
        %v403 = vmax.f32 %v371, 0.0
        %v404 = vmax.f32 %v372, 0.0
        %v405 = vmax.f32 %v373, 0.0
        %v406 = vmax.f32 %v374, 0.0
        %v407 = vmax.f32 %v375, 0.0
        %v408 = vmax.f32 %v376, 0.0
        %v409 = vmax.f32 %v377, 0.0
        %v410 = vmax.f32 %v378, 0.0
        %v411 = vmax.f32 %v379, 0.0
        %v412 = vmax.f32 %v380, 0.0
        %v413 = vmax.f32 %v381, 0.0
        %v414 = vmax.f32 %v382, 0.0
        %v415 = vmax.f32 %v383, 0.0
        %v416 = vmax.f32 %v384, 0.0
        %v417 = vmax.f32 %v385, 0.0
        %v418 = vmax.f32 %v386, 0.0
        %v419 = vmax.f32 %v387, 0.0
        %420 = vst [vmem:[#allocation2] sm:$0xff] 0.0
        %421 = vst [vmem:[#allocation2 + $0x8] sm:$0xff] 0.0
        %422 = vst [vmem:[#allocation2 + $0x10] sm:$0xff] 0.0
        %423 = vst [vmem:[#allocation2 + $0x18] sm:$0xff] 0.0
        %424 = vst [vmem:[#allocation2 + $0x20] sm:$0xff] 0.0
        %425 = vst [vmem:[#allocation2 + $0x28] sm:$0xff] 0.0
        %s426 = scalar_lea.vmem [#allocation2], 816
        %427 = vst [vmem:[%s426] sm:$0xff] 0.0
        %428 = vst [vmem:[%s426 + $0x8] sm:$0xff] 0.0
        %429 = vst [vmem:[%s426 + $0x10] sm:$0xff] 0.0
        %430 = vst [vmem:[%s426 + $0x18] sm:$0xff] 0.0
        %431 = vst [vmem:[%s426 + $0x20] sm:$0xff] 0.0
        %432 = vst [vmem:[%s426 + $0x28] sm:$0xff] 0.0
        %vm465 = vcmask 1040384
        %v466 = vrot.slane %v388, 7
        %v467 = vrot.slane %v389, 7
        %v468 = vsel %vm465, %v466, %v467
        %v469 = vrot.slane %v390, 7
        %v470 = vrot.slane %v391, 7
        %v471 = vsel %vm465, %v469, %v470
        %v472 = vrot.slane %v392, 7
        %v473 = vrot.slane %v393, 7
        %v474 = vsel %vm465, %v472, %v473
        %v475 = vrot.slane %v394, 7
        %v476 = vrot.slane %v395, 7
        %v477 = vsel %vm465, %v475, %v476
        %v478 = vrot.slane %v396, 7
        %v479 = vrot.slane %v397, 7
        %v480 = vsel %vm465, %v478, %v479
        %v481 = vrot.slane %v398, 7
        %v482 = vrot.slane %v399, 7
        %v483 = vsel %vm465, %v481, %v482
        %v484 = vrot.slane %v400, 7
        %v485 = vrot.slane %v401, 7
        %v486 = vsel %vm465, %v484, %v485
        %v487 = vrot.slane %v402, 7
        %v488 = vrot.slane %v403, 7
        %v489 = vsel %vm465, %v487, %v488
        %v490 = vrot.slane %v404, 7
        %v491 = vrot.slane %v405, 7
        %v492 = vsel %vm465, %v490, %v491
        %v493 = vrot.slane %v406, 7
        %v494 = vrot.slane %v407, 7
        %v495 = vsel %vm465, %v493, %v494
        %v496 = vrot.slane %v408, 7
        %v497 = vrot.slane %v409, 7
        %v498 = vsel %vm465, %v496, %v497
        %v499 = vrot.slane %v410, 7
        %v500 = vrot.slane %v411, 7
        %v501 = vsel %vm465, %v499, %v500
        %v502 = vrot.slane %v412, 7
        %v503 = vrot.slane %v413, 7
        %v504 = vsel %vm465, %v502, %v503
        %v505 = vrot.slane %v414, 7
        %v506 = vrot.slane %v415, 7
        %v507 = vsel %vm465, %v505, %v506
        %v508 = vrot.slane %v416, 7
        %v509 = vrot.slane %v417, 7
        %v510 = vsel %vm465, %v508, %v509
        %v511 = vrot.slane %v418, 7
        %v512 = vrot.slane %v419, 7
        %v513 = vsel %vm465, %v511, %v512
        %v546 = vsel %vm465, 0.0, %v466
        %v547 = vsel %vm465, 0.0, %v469
        %v548 = vsel %vm465, 0.0, %v472
        %v549 = vsel %vm465, 0.0, %v475
        %v550 = vsel %vm465, 0.0, %v478
        %v551 = vsel %vm465, 0.0, %v481
        %v552 = vsel %vm465, 0.0, %v484
        %v553 = vsel %vm465, 0.0, %v487
        %v554 = vsel %vm465, 0.0, %v490
        %v555 = vsel %vm465, 0.0, %v493
        %v556 = vsel %vm465, 0.0, %v496
        %v557 = vsel %vm465, 0.0, %v499
        %v558 = vsel %vm465, 0.0, %v502
        %v559 = vsel %vm465, 0.0, %v505
        %v560 = vsel %vm465, 0.0, %v508
        %v561 = vsel %vm465, 0.0, %v511
        %s562 = scalar_lea.vmem [#allocation2], 48
        %563 = vst [vmem:[%s562] sm:$0xff] %v546
        %564 = vst [vmem:[%s562 + $0x18] sm:$0xff] %v468
        %565 = vst [vmem:[%s562 + $0x30] sm:$0xff] %v547
        %566 = vst [vmem:[%s562 + $0x48] sm:$0xff] %v471
        %567 = vst [vmem:[%s562 + $0x60] sm:$0xff] %v548
        %568 = vst [vmem:[%s562 + $0x78] sm:$0xff] %v474
        %569 = vst [vmem:[%s562 + $0x90] sm:$0xff] %v549
        %570 = vst [vmem:[%s562 + $0xa8] sm:$0xff] %v477
        %571 = vst [vmem:[%s562 + $0xc0] sm:$0xff] %v550
        %572 = vst [vmem:[%s562 + $0xd8] sm:$0xff] %v480
        %573 = vst [vmem:[%s562 + $0xf0] sm:$0xff] %v551
        %574 = vst [vmem:[%s562 + $0x108] sm:$0xff] %v483
        %575 = vst [vmem:[%s562 + $0x120] sm:$0xff] %v552
        %576 = vst [vmem:[%s562 + $0x138] sm:$0xff] %v486
        %577 = vst [vmem:[%s562 + $0x150] sm:$0xff] %v553
        %578 = vst [vmem:[%s562 + $0x168] sm:$0xff] %v489
        %579 = vst [vmem:[%s562 + $0x180] sm:$0xff] %v554
        %580 = vst [vmem:[%s562 + $0x198] sm:$0xff] %v492
        %581 = vst [vmem:[%s562 + $0x1b0] sm:$0xff] %v555
        %582 = vst [vmem:[%s562 + $0x1c8] sm:$0xff] %v495
        %583 = vst [vmem:[%s562 + $0x1e0] sm:$0xff] %v556
        %584 = vst [vmem:[%s562 + $0x1f8] sm:$0xff] %v498
        %585 = vst [vmem:[%s562 + $0x210] sm:$0xff] %v557
        %586 = vst [vmem:[%s562 + $0x228] sm:$0xff] %v501
        %587 = vst [vmem:[%s562 + $0x240] sm:$0xff] %v558
        %588 = vst [vmem:[%s562 + $0x258] sm:$0xff] %v504
        %589 = vst [vmem:[%s562 + $0x270] sm:$0xff] %v559
        %590 = vst [vmem:[%s562 + $0x288] sm:$0xff] %v507
        %591 = vst [vmem:[%s562 + $0x2a0] sm:$0xff] %v560
        %592 = vst [vmem:[%s562 + $0x2b8] sm:$0xff] %v510
        %593 = vst [vmem:[%s562 + $0x2d0] sm:$0xff] %v561
        %594 = vst [vmem:[%s562 + $0x2e8] sm:$0xff] %v513
        %595 = vst [vmem:[%s562 + $0x8] sm:$0xff] %v388
        %596 = vst [vmem:[%s562 + $0x20] sm:$0xff] %v389
        %597 = vst [vmem:[%s562 + $0x38] sm:$0xff] %v390
        %598 = vst [vmem:[%s562 + $0x50] sm:$0xff] %v391
        %599 = vst [vmem:[%s562 + $0x68] sm:$0xff] %v392
        %600 = vst [vmem:[%s562 + $0x80] sm:$0xff] %v393
        %601 = vst [vmem:[%s562 + $0x98] sm:$0xff] %v394
        %602 = vst [vmem:[%s562 + $0xb0] sm:$0xff] %v395
        %603 = vst [vmem:[%s562 + $0xc8] sm:$0xff] %v396
        %604 = vst [vmem:[%s562 + $0xe0] sm:$0xff] %v397
        %605 = vst [vmem:[%s562 + $0xf8] sm:$0xff] %v398
        %606 = vst [vmem:[%s562 + $0x110] sm:$0xff] %v399
        %607 = vst [vmem:[%s562 + $0x128] sm:$0xff] %v400
        %608 = vst [vmem:[%s562 + $0x140] sm:$0xff] %v401
        %609 = vst [vmem:[%s562 + $0x158] sm:$0xff] %v402
        %610 = vst [vmem:[%s562 + $0x170] sm:$0xff] %v403
        %611 = vst [vmem:[%s562 + $0x188] sm:$0xff] %v404
        %612 = vst [vmem:[%s562 + $0x1a0] sm:$0xff] %v405
        %613 = vst [vmem:[%s562 + $0x1b8] sm:$0xff] %v406
        %614 = vst [vmem:[%s562 + $0x1d0] sm:$0xff] %v407
        %615 = vst [vmem:[%s562 + $0x1e8] sm:$0xff] %v408
        %616 = vst [vmem:[%s562 + $0x200] sm:$0xff] %v409
        %617 = vst [vmem:[%s562 + $0x218] sm:$0xff] %v410
        %618 = vst [vmem:[%s562 + $0x230] sm:$0xff] %v411
        %619 = vst [vmem:[%s562 + $0x248] sm:$0xff] %v412
        %620 = vst [vmem:[%s562 + $0x260] sm:$0xff] %v413
        %621 = vst [vmem:[%s562 + $0x278] sm:$0xff] %v414
        %622 = vst [vmem:[%s562 + $0x290] sm:$0xff] %v415
        %623 = vst [vmem:[%s562 + $0x2a8] sm:$0xff] %v416
        %624 = vst [vmem:[%s562 + $0x2c0] sm:$0xff] %v417
        %625 = vst [vmem:[%s562 + $0x2d8] sm:$0xff] %v418
        %626 = vst [vmem:[%s562 + $0x2f0] sm:$0xff] %v419
        %vm627 = vcmask 1046528
        %v628 = vrot.slane %v388, 1
        %v629 = vrot.slane %v389, 1
        %v630 = vsel %vm627, %v628, %v629
        %v631 = vrot.slane %v390, 1
        %v632 = vrot.slane %v391, 1
        %v633 = vsel %vm627, %v631, %v632
        %v634 = vrot.slane %v392, 1
        %v635 = vrot.slane %v393, 1
        %v636 = vsel %vm627, %v634, %v635
        %v637 = vrot.slane %v394, 1
        %v638 = vrot.slane %v395, 1
        %v639 = vsel %vm627, %v637, %v638
        %v640 = vrot.slane %v396, 1
        %v641 = vrot.slane %v397, 1
        %v642 = vsel %vm627, %v640, %v641
        %v643 = vrot.slane %v398, 1
        %v644 = vrot.slane %v399, 1
        %v645 = vsel %vm627, %v643, %v644
        %v646 = vrot.slane %v400, 1
        %v647 = vrot.slane %v401, 1
        %v648 = vsel %vm627, %v646, %v647
        %v649 = vrot.slane %v402, 1
        %v650 = vrot.slane %v403, 1
        %v651 = vsel %vm627, %v649, %v650
        %v652 = vrot.slane %v404, 1
        %v653 = vrot.slane %v405, 1
        %v654 = vsel %vm627, %v652, %v653
        %v655 = vrot.slane %v406, 1
        %v656 = vrot.slane %v407, 1
        %v657 = vsel %vm627, %v655, %v656
        %v658 = vrot.slane %v408, 1
        %v659 = vrot.slane %v409, 1
        %v660 = vsel %vm627, %v658, %v659
        %v661 = vrot.slane %v410, 1
        %v662 = vrot.slane %v411, 1
        %v663 = vsel %vm627, %v661, %v662
        %v664 = vrot.slane %v412, 1
        %v665 = vrot.slane %v413, 1
        %v666 = vsel %vm627, %v664, %v665
        %v667 = vrot.slane %v414, 1
        %v668 = vrot.slane %v415, 1
        %v669 = vsel %vm627, %v667, %v668
        %v670 = vrot.slane %v416, 1
        %v671 = vrot.slane %v417, 1
        %v672 = vsel %vm627, %v670, %v671
        %v673 = vrot.slane %v418, 1
        %v674 = vrot.slane %v419, 1
        %v675 = vsel %vm627, %v673, %v674
        %v708 = vsel %vm627, %v629, 0.0
        %v709 = vsel %vm627, %v632, 0.0
        %v710 = vsel %vm627, %v635, 0.0
        %v711 = vsel %vm627, %v638, 0.0
        %v712 = vsel %vm627, %v641, 0.0
        %v713 = vsel %vm627, %v644, 0.0
        %v714 = vsel %vm627, %v647, 0.0
        %v715 = vsel %vm627, %v650, 0.0
        %v716 = vsel %vm627, %v653, 0.0
        %v717 = vsel %vm627, %v656, 0.0
        %v718 = vsel %vm627, %v659, 0.0
        %v719 = vsel %vm627, %v662, 0.0
        %v720 = vsel %vm627, %v665, 0.0
        %v721 = vsel %vm627, %v668, 0.0
        %v722 = vsel %vm627, %v671, 0.0
        %v723 = vsel %vm627, %v674, 0.0
        %724 = vst [vmem:[%s562 + $0x10] sm:$0xff] %v630
        %725 = vst [vmem:[%s562 + $0x28] sm:$0xff] %v708
        %726 = vst [vmem:[%s562 + $0x40] sm:$0xff] %v633
        %727 = vst [vmem:[%s562 + $0x58] sm:$0xff] %v709
        %728 = vst [vmem:[%s562 + $0x70] sm:$0xff] %v636
        %729 = vst [vmem:[%s562 + $0x88] sm:$0xff] %v710
        %730 = vst [vmem:[%s562 + $0xa0] sm:$0xff] %v639
        %731 = vst [vmem:[%s562 + $0xb8] sm:$0xff] %v711
        %732 = vst [vmem:[%s562 + $0xd0] sm:$0xff] %v642
        %733 = vst [vmem:[%s562 + $0xe8] sm:$0xff] %v712
        %734 = vst [vmem:[%s562 + $0x100] sm:$0xff] %v645
        %735 = vst [vmem:[%s562 + $0x118] sm:$0xff] %v713
        %736 = vst [vmem:[%s562 + $0x130] sm:$0xff] %v648
        %737 = vst [vmem:[%s562 + $0x148] sm:$0xff] %v714
        %738 = vst [vmem:[%s562 + $0x160] sm:$0xff] %v651
        %739 = vst [vmem:[%s562 + $0x178] sm:$0xff] %v715
        %740 = vst [vmem:[%s562 + $0x190] sm:$0xff] %v654
        %741 = vst [vmem:[%s562 + $0x1a8] sm:$0xff] %v716
        %742 = vst [vmem:[%s562 + $0x1c0] sm:$0xff] %v657
        %743 = vst [vmem:[%s562 + $0x1d8] sm:$0xff] %v717
        %744 = vst [vmem:[%s562 + $0x1f0] sm:$0xff] %v660
        %745 = vst [vmem:[%s562 + $0x208] sm:$0xff] %v718
        %746 = vst [vmem:[%s562 + $0x220] sm:$0xff] %v663
        %747 = vst [vmem:[%s562 + $0x238] sm:$0xff] %v719
        %748 = vst [vmem:[%s562 + $0x250] sm:$0xff] %v666
        %749 = vst [vmem:[%s562 + $0x268] sm:$0xff] %v720
        %750 = vst [vmem:[%s562 + $0x280] sm:$0xff] %v669
        %751 = vst [vmem:[%s562 + $0x298] sm:$0xff] %v721
        %752 = vst [vmem:[%s562 + $0x2b0] sm:$0xff] %v672
        %753 = vst [vmem:[%s562 + $0x2c8] sm:$0xff] %v722
        %754 = vst [vmem:[%s562 + $0x2e0] sm:$0xff] %v675
        %755 = vst [vmem:[%s562 + $0x2f8] sm:$0xff] %v723
        %v756 = vld [vmem:[%s4] sm:$0x1]
        %v758 = vlaneseq
        %v759 = vshrl.u32 %v758, 7
        %v760 = vsub.s32 0, %v759
        %v761 = vrot.slane %v756, %v760
        %763 = vst [vmem:[#allocation3] sm:$0xff] %v761
        %764 = vst [vmem:[#allocation3 + $0x8] sm:$0xff] %v761
        %765 = vst [vmem:[#allocation3 + $0x10] sm:$0xff] %v761
        %766 = vst [vmem:[#allocation3 + $0x18] sm:$0xff] %v761
        %767 = vst [vmem:[#allocation3 + $0x20] sm:$0xff] %v761
        %768 = vst [vmem:[#allocation3 + $0x28] sm:$0xff] %v761
        %769 = vst [vmem:[#allocation3 + $0x30] sm:$0xff] %v761
        %770 = vst [vmem:[#allocation3 + $0x38] sm:$0xff] %v761
        %771 = vst [vmem:[#allocation3 + $0x40] sm:$0xff] %v761
        %772 = vst [vmem:[#allocation3 + $0x48] sm:$0xff] %v761
        %773 = vst [vmem:[#allocation3 + $0x50] sm:$0xff] %v761
        %774 = vst [vmem:[#allocation3 + $0x58] sm:$0xff] %v761
        %775 = vst [vmem:[#allocation3 + $0x60] sm:$0xff] %v761
        %776 = vst [vmem:[#allocation3 + $0x68] sm:$0xff] %v761
        %777 = vst [vmem:[#allocation3 + $0x70] sm:$0xff] %v761
        %778 = vst [vmem:[#allocation3 + $0x78] sm:$0xff] %v761
        %779 = vst [vmem:[#allocation3 + $0x80] sm:$0xff] %v761
        %780 = vst [vmem:[#allocation3 + $0x88] sm:$0xff] %v761
        %781 = vst [vmem:[#allocation3 + $0x90] sm:$0xff] %v761
        %782 = vst [vmem:[#allocation3 + $0x98] sm:$0xff] %v761
        %783 = vst [vmem:[#allocation3 + $0xa0] sm:$0xff] %v761
        %784 = vst [vmem:[#allocation3 + $0xa8] sm:$0xff] %v761
        %785 = vst [vmem:[#allocation3 + $0xb0] sm:$0xff] %v761
        %786 = vst [vmem:[#allocation3 + $0xb8] sm:$0xff] %v761
        %787 = vst [vmem:[#allocation3 + $0xc0] sm:$0xff] %v761
        %788 = vst [vmem:[#allocation3 + $0xc8] sm:$0xff] %v761
        %789 = vst [vmem:[#allocation3 + $0xd0] sm:$0xff] %v761
        %790 = vst [vmem:[#allocation3 + $0xd8] sm:$0xff] %v761
        %791 = vst [vmem:[#allocation3 + $0xe0] sm:$0xff] %v761
        %792 = vst [vmem:[#allocation3 + $0xe8] sm:$0xff] %v761
        %793 = vst [vmem:[#allocation3 + $0xf0] sm:$0xff] %v761
        %794 = vst [vmem:[#allocation3 + $0xf8] sm:$0xff] %v761
        %v795 = vld [vmem:[#allocation2] sm:$0xff]
        %v796 = vld [vmem:[#allocation2 + $0x8] sm:$0xff]
        %v797 = vld [vmem:[#allocation2 + $0x10] sm:$0xff]
        %v798 = vld [vmem:[#allocation2 + $0x18] sm:$0xff]
        %v799 = vld [vmem:[#allocation2 + $0x20] sm:$0xff]
        %v800 = vld [vmem:[#allocation2 + $0x28] sm:$0xff]
        %v801 = vld [vmem:[#allocation2 + $0x30] sm:$0xff]
        %v802 = vld [vmem:[#allocation2 + $0x38] sm:$0xff]
        %v803 = vld [vmem:[#allocation2 + $0x40] sm:$0xff]
        %v804 = vld [vmem:[#allocation2 + $0x48] sm:$0xff]
        %v805 = vld [vmem:[#allocation2 + $0x50] sm:$0xff]
        %v806 = vld [vmem:[#allocation2 + $0x58] sm:$0xff]
        %v807 = vld [vmem:[#allocation2 + $0x60] sm:$0xff]
        %v808 = vld [vmem:[#allocation2 + $0x68] sm:$0xff]
        %v809 = vld [vmem:[#allocation2 + $0x70] sm:$0xff]
        %v810 = vld [vmem:[#allocation2 + $0x78] sm:$0xff]
        %v811 = vld [vmem:[#allocation2 + $0x80] sm:$0xff]
        %v812 = vld [vmem:[#allocation2 + $0x88] sm:$0xff]
        %v813 = vld [vmem:[#allocation2 + $0x90] sm:$0xff]
        %v814 = vld [vmem:[#allocation2 + $0x98] sm:$0xff]
        %v815 = vld [vmem:[#allocation2 + $0xa0] sm:$0xff]
        %v816 = vld [vmem:[#allocation2 + $0xa8] sm:$0xff]
        %v817 = vld [vmem:[#allocation2 + $0xb0] sm:$0xff]
        %v818 = vld [vmem:[#allocation2 + $0xb8] sm:$0xff]
        %v819 = vld [vmem:[#allocation2 + $0xc0] sm:$0xff]
        %v820 = vld [vmem:[#allocation2 + $0xc8] sm:$0xff]
        %v821 = vld [vmem:[#allocation2 + $0xd0] sm:$0xff]
        %v822 = vld [vmem:[#allocation2 + $0xd8] sm:$0xff]
        %v823 = vld [vmem:[#allocation2 + $0xe0] sm:$0xff]
        %v824 = vld [vmem:[#allocation2 + $0xe8] sm:$0xff]
        %v825 = vld [vmem:[#allocation2 + $0xf0] sm:$0xff]
        %v826 = vld [vmem:[#allocation2 + $0xf8] sm:$0xff]
        %v827 = vld [vmem:[#allocation2 + $0x100] sm:$0xff]
        %v828 = vld [vmem:[#allocation2 + $0x108] sm:$0xff]
        %v829 = vld [vmem:[#allocation2 + $0x110] sm:$0xff]
        %v830 = vld [vmem:[#allocation2 + $0x118] sm:$0xff]
        %v831 = vld [vmem:[#allocation2 + $0x120] sm:$0xff]
        %v832 = vld [vmem:[#allocation2 + $0x128] sm:$0xff]
        %v833 = vld [vmem:[#allocation2 + $0x130] sm:$0xff]
        %v834 = vld [vmem:[#allocation2 + $0x138] sm:$0xff]
        %v835 = vld [vmem:[#allocation2 + $0x140] sm:$0xff]
        %v836 = vld [vmem:[#allocation2 + $0x148] sm:$0xff]
        %v837 = vld [vmem:[#allocation2 + $0x150] sm:$0xff]
        %v838 = vld [vmem:[#allocation2 + $0x158] sm:$0xff]
        %v839 = vld [vmem:[#allocation2 + $0x160] sm:$0xff]
        %v840 = vld [vmem:[#allocation2 + $0x168] sm:$0xff]
        %v841 = vld [vmem:[#allocation2 + $0x170] sm:$0xff]
        %v842 = vld [vmem:[#allocation2 + $0x178] sm:$0xff]
        %v843 = vld [vmem:[#allocation2 + $0x180] sm:$0xff]
        %v844 = vld [vmem:[#allocation2 + $0x188] sm:$0xff]
        %v845 = vld [vmem:[#allocation2 + $0x190] sm:$0xff]
        %v846 = vld [vmem:[#allocation2 + $0x198] sm:$0xff]
        %v847 = vld [vmem:[#allocation2 + $0x1a0] sm:$0xff]
        %v848 = vld [vmem:[#allocation2 + $0x1a8] sm:$0xff]
        %v849 = vld [vmem:[#allocation2 + $0x1b0] sm:$0xff]
        %v850 = vld [vmem:[#allocation2 + $0x1b8] sm:$0xff]
        %v851 = vld [vmem:[#allocation2 + $0x1c0] sm:$0xff]
        %v852 = vld [vmem:[#allocation2 + $0x1c8] sm:$0xff]
        %v853 = vld [vmem:[#allocation2 + $0x1d0] sm:$0xff]
        %v854 = vld [vmem:[#allocation2 + $0x1d8] sm:$0xff]
        %v855 = vld [vmem:[#allocation2 + $0x1e0] sm:$0xff]
        %v856 = vld [vmem:[#allocation2 + $0x1e8] sm:$0xff]
        %v857 = vld [vmem:[#allocation2 + $0x1f0] sm:$0xff]
        %v858 = vld [vmem:[#allocation2 + $0x1f8] sm:$0xff]
        %v859 = vld [vmem:[#allocation2 + $0x200] sm:$0xff]
        %v860 = vld [vmem:[#allocation2 + $0x208] sm:$0xff]
        %v861 = vld [vmem:[#allocation2 + $0x210] sm:$0xff]
        %v862 = vld [vmem:[#allocation2 + $0x218] sm:$0xff]
        %v863 = vld [vmem:[#allocation2 + $0x220] sm:$0xff]
        %v864 = vld [vmem:[#allocation2 + $0x228] sm:$0xff]
        %v865 = vld [vmem:[#allocation2 + $0x230] sm:$0xff]
        %v866 = vld [vmem:[#allocation2 + $0x238] sm:$0xff]
        %v867 = vld [vmem:[#allocation2 + $0x240] sm:$0xff]
        %v868 = vld [vmem:[#allocation2 + $0x248] sm:$0xff]
        %v869 = vld [vmem:[#allocation2 + $0x250] sm:$0xff]
        %v870 = vld [vmem:[#allocation2 + $0x258] sm:$0xff]
        %v871 = vld [vmem:[#allocation2 + $0x260] sm:$0xff]
        %v872 = vld [vmem:[#allocation2 + $0x268] sm:$0xff]
        %v873 = vld [vmem:[#allocation2 + $0x270] sm:$0xff]
        %v874 = vld [vmem:[#allocation2 + $0x278] sm:$0xff]
        %v875 = vld [vmem:[#allocation2 + $0x280] sm:$0xff]
        %v876 = vld [vmem:[#allocation2 + $0x288] sm:$0xff]
        %v877 = vld [vmem:[#allocation2 + $0x290] sm:$0xff]
        %v878 = vld [vmem:[#allocation2 + $0x298] sm:$0xff]
        %v879 = vld [vmem:[#allocation2 + $0x2a0] sm:$0xff]
        %v880 = vld [vmem:[#allocation2 + $0x2a8] sm:$0xff]
        %v881 = vld [vmem:[#allocation2 + $0x2b0] sm:$0xff]
        %v882 = vld [vmem:[#allocation2 + $0x2b8] sm:$0xff]
        %v883 = vld [vmem:[#allocation2 + $0x2c0] sm:$0xff]
        %v884 = vld [vmem:[#allocation2 + $0x2c8] sm:$0xff]
        %v885 = vld [vmem:[#allocation2 + $0x2d0] sm:$0xff]
        %v886 = vld [vmem:[#allocation2 + $0x2d8] sm:$0xff]
        %v887 = vld [vmem:[#allocation2 + $0x2e0] sm:$0xff]
        %v888 = vld [vmem:[#allocation2 + $0x2e8] sm:$0xff]
        %v889 = vld [vmem:[#allocation2 + $0x2f0] sm:$0xff]
        %v890 = vld [vmem:[#allocation2 + $0x2f8] sm:$0xff]
        %v891 = vld [vmem:[#allocation3] sm:$0xff]
        %v892 = vld [vmem:[#allocation3 + $0x8] sm:$0xff]
        %v893 = vld [vmem:[#allocation3 + $0x10] sm:$0xff]
        %v894 = vld [vmem:[#allocation3 + $0x18] sm:$0xff]
        %v895 = vld [vmem:[#allocation3 + $0x20] sm:$0xff]
        %v896 = vld [vmem:[#allocation3 + $0x28] sm:$0xff]
        %v897 = vld [vmem:[#allocation3 + $0x30] sm:$0xff]
        %v898 = vld [vmem:[#allocation3 + $0x38] sm:$0xff]
        %v899 = vld [vmem:[#allocation3 + $0x40] sm:$0xff]
        %v900 = vld [vmem:[#allocation3 + $0x48] sm:$0xff]
        %v901 = vld [vmem:[#allocation3 + $0x50] sm:$0xff]
        %v902 = vld [vmem:[#allocation3 + $0x58] sm:$0xff]
        %v903 = vld [vmem:[#allocation3 + $0x60] sm:$0xff]
        %v904 = vld [vmem:[#allocation3 + $0x68] sm:$0xff]
        %v905 = vld [vmem:[#allocation3 + $0x70] sm:$0xff]
        %v906 = vld [vmem:[#allocation3 + $0x78] sm:$0xff]
        %v907 = vld [vmem:[#allocation3 + $0x80] sm:$0xff]
        %v908 = vld [vmem:[#allocation3 + $0x88] sm:$0xff]
        %v909 = vld [vmem:[#allocation3 + $0x90] sm:$0xff]
        %v910 = vld [vmem:[#allocation3 + $0x98] sm:$0xff]
        %v911 = vld [vmem:[#allocation3 + $0xa0] sm:$0xff]
        %v912 = vld [vmem:[#allocation3 + $0xa8] sm:$0xff]
        %v913 = vld [vmem:[#allocation3 + $0xb0] sm:$0xff]
        %v914 = vld [vmem:[#allocation3 + $0xb8] sm:$0xff]
        %v915 = vld [vmem:[#allocation3 + $0xc0] sm:$0xff]
        %v916 = vld [vmem:[#allocation3 + $0xc8] sm:$0xff]
        %v917 = vld [vmem:[#allocation3 + $0xd0] sm:$0xff]
        %v918 = vld [vmem:[#allocation3 + $0xd8] sm:$0xff]
        %v919 = vld [vmem:[#allocation3 + $0xe0] sm:$0xff]
        %v920 = vld [vmem:[#allocation3 + $0xe8] sm:$0xff]
        %v921 = vld [vmem:[#allocation3 + $0xf0] sm:$0xff]
        %v922 = vld [vmem:[#allocation3 + $0xf8] sm:$0xff]
        %v923 = vld [vmem:[#allocation4] sm:$0xff]
        %v924 = vld [vmem:[#allocation4 + $0x8] sm:$0xff]
        %v925 = vld [vmem:[#allocation4 + $0x10] sm:$0xff]
        %v926 = vld [vmem:[#allocation4 + $0x18] sm:$0xff]
        %v927 = vld [vmem:[#allocation4 + $0x20] sm:$0xff]
        %v928 = vld [vmem:[#allocation4 + $0x28] sm:$0xff]
        %v929 = vld [vmem:[#allocation4 + $0x30] sm:$0xff]
        %v930 = vld [vmem:[#allocation4 + $0x38] sm:$0xff]
        %v931 = vld [vmem:[#allocation4 + $0x40] sm:$0xff]
        %v932 = vld [vmem:[#allocation4 + $0x48] sm:$0xff]
        %v933 = vld [vmem:[#allocation4 + $0x50] sm:$0xff]
        %v934 = vld [vmem:[#allocation4 + $0x58] sm:$0xff]
        %v935 = vld [vmem:[#allocation4 + $0x60] sm:$0xff]
        %v936 = vld [vmem:[#allocation4 + $0x68] sm:$0xff]
        %v937 = vld [vmem:[#allocation4 + $0x70] sm:$0xff]
        %v938 = vld [vmem:[#allocation4 + $0x78] sm:$0xff]
        %v939 = vld [vmem:[#allocation4 + $0x80] sm:$0xff]
        %v940 = vld [vmem:[#allocation4 + $0x88] sm:$0xff]
        %v941 = vld [vmem:[#allocation4 + $0x90] sm:$0xff]
        %v942 = vld [vmem:[#allocation4 + $0x98] sm:$0xff]
        %v943 = vld [vmem:[#allocation4 + $0xa0] sm:$0xff]
        %v944 = vld [vmem:[#allocation4 + $0xa8] sm:$0xff]
        %v945 = vld [vmem:[#allocation4 + $0xb0] sm:$0xff]
        %v946 = vld [vmem:[#allocation4 + $0xb8] sm:$0xff]
        %v947 = vld [vmem:[#allocation4 + $0xc0] sm:$0xff]
        %v948 = vld [vmem:[#allocation4 + $0xc8] sm:$0xff]
        %v949 = vld [vmem:[#allocation4 + $0xd0] sm:$0xff]
        %v950 = vld [vmem:[#allocation4 + $0xd8] sm:$0xff]
        %v951 = vld [vmem:[#allocation4 + $0xe0] sm:$0xff]
        %v952 = vld [vmem:[#allocation4 + $0xe8] sm:$0xff]
        %v953 = vld [vmem:[#allocation4 + $0xf0] sm:$0xff]
        %v954 = vld [vmem:[#allocation4 + $0xf8] sm:$0xff]
        %v955 = vld [vmem:[#allocation4 + $0x100] sm:$0xff]
        %v956 = vld [vmem:[#allocation4 + $0x108] sm:$0xff]
        %v957 = vld [vmem:[#allocation4 + $0x110] sm:$0xff]
        %v958 = vld [vmem:[#allocation4 + $0x118] sm:$0xff]
        %v959 = vld [vmem:[#allocation4 + $0x120] sm:$0xff]
        %v960 = vld [vmem:[#allocation4 + $0x128] sm:$0xff]
        %v961 = vld [vmem:[#allocation4 + $0x130] sm:$0xff]
        %v962 = vld [vmem:[#allocation4 + $0x138] sm:$0xff]
        %v963 = vld [vmem:[#allocation4 + $0x140] sm:$0xff]
        %v964 = vld [vmem:[#allocation4 + $0x148] sm:$0xff]
        %v965 = vld [vmem:[#allocation4 + $0x150] sm:$0xff]
        %v966 = vld [vmem:[#allocation4 + $0x158] sm:$0xff]
        %v967 = vld [vmem:[#allocation4 + $0x160] sm:$0xff]
        %v968 = vld [vmem:[#allocation4 + $0x168] sm:$0xff]
        %v969 = vld [vmem:[#allocation4 + $0x170] sm:$0xff]
        %v970 = vld [vmem:[#allocation4 + $0x178] sm:$0xff]
        %971 = vmatprep.subr.mxu0 0.0
        %972 = vmatpush1.msra.mxu0 %v938
        %973 = vmatprep.subr.mxu0 0.0
        %974 = vmatpush1.msra.mxu0 %v937
        %975 = vmatprep.subr.mxu0 0.0
        %976 = vmatpush1.msra.mxu0 %v936
        %977 = vmatprep.subr.mxu0 0.0
        %978 = vmatpush1.msra.mxu0 %v935
        %979 = vmatprep.subr.mxu0 0.0
        %980 = vmatpush1.msra.mxu0 %v934
        %981 = vmatprep.subr.mxu0 0.0
        %982 = vmatpush1.msra.mxu0 %v933
        %983 = vmatprep.subr.mxu0 0.0
        %984 = vmatpush1.msra.mxu0 %v932
        %985 = vmatprep.subr.mxu0 0.0
        %986 = vmatpush1.msra.mxu0 %v931
        %987 = vmatprep.subr.mxu0 0.0
        %988 = vmatpush1.msra.mxu0 %v930
        %989 = vmatprep.subr.mxu0 0.0
        %990 = vmatpush1.msra.mxu0 %v929
        %991 = vmatprep.subr.mxu0 0.0
        %992 = vmatpush1.msra.mxu0 %v928
        %993 = vmatprep.subr.mxu0 0.0
        %994 = vmatpush1.msra.mxu0 %v927
        %995 = vmatprep.subr.mxu0 0.0
        %996 = vmatpush1.msra.mxu0 %v926
        %997 = vmatprep.subr.mxu0 0.0
        %998 = vmatpush1.msra.mxu0 %v925
        %999 = vmatprep.subr.mxu0 0.0
        %1000 = vmatpush1.msra.mxu0 %v924
        %1001 = vmatprep.subr.mxu0 0.0
        %1002 = vmatpush1.msra.mxu0 %v923
        %1003 = vmatprep.subr.mxu0 0.0
        %1004 = vmatpush2.msra.mxu0 %v954
        %1005 = vmatprep.subr.mxu0 0.0
        %1006 = vmatpush2.msra.mxu0 %v953
        %1007 = vmatprep.subr.mxu0 0.0
        %1008 = vmatpush2.msra.mxu0 %v952
        %1009 = vmatprep.subr.mxu0 0.0
        %1010 = vmatpush2.msra.mxu0 %v951
        %1011 = vmatprep.subr.mxu0 0.0
        %1012 = vmatpush2.msra.mxu0 %v950
        %1013 = vmatprep.subr.mxu0 0.0
        %1014 = vmatpush2.msra.mxu0 %v949
        %1015 = vmatprep.subr.mxu0 0.0
        %1016 = vmatpush2.msra.mxu0 %v948
        %1017 = vmatprep.subr.mxu0 0.0
        %1018 = vmatpush2.msra.mxu0 %v947
        %1019 = vmatprep.subr.mxu0 0.0
        %1020 = vmatpush2.msra.mxu0 %v946
        %1021 = vmatprep.subr.mxu0 0.0
        %1022 = vmatpush2.msra.mxu0 %v945
        %1023 = vmatprep.subr.mxu0 0.0
        %1024 = vmatpush2.msra.mxu0 %v944
        %1025 = vmatprep.subr.mxu0 0.0
        %1026 = vmatpush2.msra.mxu0 %v943
        %1027 = vmatprep.subr.mxu0 0.0
        %1028 = vmatpush2.msra.mxu0 %v942
        %1029 = vmatprep.subr.mxu0 0.0
        %1030 = vmatpush2.msra.mxu0 %v941
        %1031 = vmatprep.subr.mxu0 0.0
        %1032 = vmatpush2.msra.mxu0 %v940
        %1033 = vmatprep.subr.mxu0 0.0
        %1034 = vmatpush2.msra.mxu0 %v939
        %1035 = vmatprep.mubr.f32.mxu0 %v796
        %1036 = vmatmul.mubr.f32.gmra.mxu0 %v795
        %v1037 = vpop.f32.mrf.mxu0
        %v1038 = vadd.f32 0.0, %v1037
        %v1039 = vpop.f32.mrf.mxu0
        %1040 = vmatprep.mubr.f32.mxu0 %v799
        %1041 = vmatmul.mubr.f32.gmra.mxu0 %v798
        %v1042 = vpop.f32.mrf.mxu0
        %v1043 = vadd.f32 0.0, %v1042
        %v1044 = vpop.f32.mrf.mxu0
        %1045 = vmatprep.mubr.f32.mxu0 %v802
        %1046 = vmatmul.mubr.f32.gmra.mxu0 %v801
        %v1047 = vpop.f32.mrf.mxu0
        %v1048 = vadd.f32 0.0, %v1047
        %v1049 = vpop.f32.mrf.mxu0
        %1050 = vmatprep.mubr.f32.mxu0 %v805
        %1051 = vmatmul.mubr.f32.gmra.mxu0 %v804
        %v1052 = vpop.f32.mrf.mxu0
        %v1053 = vadd.f32 0.0, %v1052
        %v1054 = vpop.f32.mrf.mxu0
        %1055 = vmatprep.mubr.f32.mxu0 %v808
        %1056 = vmatmul.mubr.f32.gmra.mxu0 %v807
        %v1057 = vpop.f32.mrf.mxu0
        %v1058 = vadd.f32 0.0, %v1057
        %v1059 = vpop.f32.mrf.mxu0
        %1060 = vmatprep.mubr.f32.mxu0 %v811
        %1061 = vmatmul.mubr.f32.gmra.mxu0 %v810
        %v1062 = vpop.f32.mrf.mxu0
        %v1063 = vadd.f32 0.0, %v1062
        %v1064 = vpop.f32.mrf.mxu0
        %1065 = vmatprep.mubr.f32.mxu0 %v814
        %1066 = vmatmul.mubr.f32.gmra.mxu0 %v813
        %v1067 = vpop.f32.mrf.mxu0
        %v1068 = vadd.f32 0.0, %v1067
        %v1069 = vpop.f32.mrf.mxu0
        %1070 = vmatprep.mubr.f32.mxu0 %v817
        %1071 = vmatmul.mubr.f32.gmra.mxu0 %v816
        %v1072 = vpop.f32.mrf.mxu0
        %v1073 = vadd.f32 0.0, %v1072
        %v1074 = vpop.f32.mrf.mxu0
        %1075 = vmatprep.mubr.f32.mxu0 %v820
        %1076 = vmatmul.mubr.f32.gmra.mxu0 %v819
        %v1077 = vpop.f32.mrf.mxu0
        %v1078 = vadd.f32 0.0, %v1077
        %v1079 = vpop.f32.mrf.mxu0
        %1080 = vmatprep.mubr.f32.mxu0 %v823
        %1081 = vmatmul.mubr.f32.gmra.mxu0 %v822
        %v1082 = vpop.f32.mrf.mxu0
        %v1083 = vadd.f32 0.0, %v1082
        %v1084 = vpop.f32.mrf.mxu0
        %1085 = vmatprep.mubr.f32.mxu0 %v826
        %1086 = vmatmul.mubr.f32.gmra.mxu0 %v825
        %v1087 = vpop.f32.mrf.mxu0
        %v1088 = vadd.f32 0.0, %v1087
        %v1089 = vpop.f32.mrf.mxu0
        %1090 = vmatprep.mubr.f32.mxu0 %v829
        %1091 = vmatmul.mubr.f32.gmra.mxu0 %v828
        %v1092 = vpop.f32.mrf.mxu0
        %v1093 = vadd.f32 0.0, %v1092
        %v1094 = vpop.f32.mrf.mxu0
        %1095 = vmatprep.mubr.f32.mxu0 %v832
        %1096 = vmatmul.mubr.f32.gmra.mxu0 %v831
        %v1097 = vpop.f32.mrf.mxu0
        %v1098 = vadd.f32 0.0, %v1097
        %v1099 = vpop.f32.mrf.mxu0
        %1100 = vmatprep.mubr.f32.mxu0 %v835
        %1101 = vmatmul.mubr.f32.gmra.mxu0 %v834
        %v1102 = vpop.f32.mrf.mxu0
        %v1103 = vadd.f32 0.0, %v1102
        %v1104 = vpop.f32.mrf.mxu0
        %1105 = vmatprep.mubr.f32.mxu0 %v838
        %1106 = vmatmul.mubr.f32.gmra.mxu0 %v837
        %v1107 = vpop.f32.mrf.mxu0
        %v1108 = vadd.f32 0.0, %v1107
        %v1109 = vpop.f32.mrf.mxu0
        %1110 = vmatprep.mubr.f32.mxu0 %v841
        %1111 = vmatmul.mubr.f32.gmra.mxu0 %v840
        %v1112 = vpop.f32.mrf.mxu0
        %v1113 = vadd.f32 0.0, %v1112
        %v1114 = vpop.f32.mrf.mxu0
        %1115 = vmatprep.mubr.f32.mxu0 %v844
        %1116 = vmatmul.mubr.f32.gmra.mxu0 %v843
        %v1117 = vpop.f32.mrf.mxu0
        %v1118 = vadd.f32 0.0, %v1117
        %v1119 = vpop.f32.mrf.mxu0
        %1120 = vmatprep.mubr.f32.mxu0 %v847
        %1121 = vmatmul.mubr.f32.gmra.mxu0 %v846
        %v1122 = vpop.f32.mrf.mxu0
        %v1123 = vadd.f32 0.0, %v1122
        %v1124 = vpop.f32.mrf.mxu0
        %1125 = vmatprep.mubr.f32.mxu0 %v850
        %1126 = vmatmul.mubr.f32.gmra.mxu0 %v849
        %v1127 = vpop.f32.mrf.mxu0
        %v1128 = vadd.f32 0.0, %v1127
        %v1129 = vpop.f32.mrf.mxu0
        %1130 = vmatprep.mubr.f32.mxu0 %v853
        %1131 = vmatmul.mubr.f32.gmra.mxu0 %v852
        %v1132 = vpop.f32.mrf.mxu0
        %v1133 = vadd.f32 0.0, %v1132
        %v1134 = vpop.f32.mrf.mxu0
        %1135 = vmatprep.mubr.f32.mxu0 %v856
        %1136 = vmatmul.mubr.f32.gmra.mxu0 %v855
        %v1137 = vpop.f32.mrf.mxu0
        %v1138 = vadd.f32 0.0, %v1137
        %v1139 = vpop.f32.mrf.mxu0
        %1140 = vmatprep.mubr.f32.mxu0 %v859
        %1141 = vmatmul.mubr.f32.gmra.mxu0 %v858
        %v1142 = vpop.f32.mrf.mxu0
        %v1143 = vadd.f32 0.0, %v1142
        %v1144 = vpop.f32.mrf.mxu0
        %1145 = vmatprep.mubr.f32.mxu0 %v862
        %1146 = vmatmul.mubr.f32.gmra.mxu0 %v861
        %v1147 = vpop.f32.mrf.mxu0
        %v1148 = vadd.f32 0.0, %v1147
        %v1149 = vpop.f32.mrf.mxu0
        %1150 = vmatprep.mubr.f32.mxu0 %v865
        %1151 = vmatmul.mubr.f32.gmra.mxu0 %v864
        %v1152 = vpop.f32.mrf.mxu0
        %v1153 = vadd.f32 0.0, %v1152
        %v1154 = vpop.f32.mrf.mxu0
        %1155 = vmatprep.mubr.f32.mxu0 %v868
        %1156 = vmatmul.mubr.f32.gmra.mxu0 %v867
        %v1157 = vpop.f32.mrf.mxu0
        %v1158 = vadd.f32 0.0, %v1157
        %v1159 = vpop.f32.mrf.mxu0
        %1160 = vmatprep.mubr.f32.mxu0 %v871
        %1161 = vmatmul.mubr.f32.gmra.mxu0 %v870
        %v1162 = vpop.f32.mrf.mxu0
        %v1163 = vadd.f32 0.0, %v1162
        %v1164 = vpop.f32.mrf.mxu0
        %1165 = vmatprep.mubr.f32.mxu0 %v874
        %1166 = vmatmul.mubr.f32.gmra.mxu0 %v873
        %v1167 = vpop.f32.mrf.mxu0
        %v1168 = vadd.f32 0.0, %v1167
        %v1169 = vpop.f32.mrf.mxu0
        %1170 = vmatprep.mubr.f32.mxu0 %v877
        %1171 = vmatmul.mubr.f32.gmra.mxu0 %v876
        %v1172 = vpop.f32.mrf.mxu0
        %v1173 = vadd.f32 0.0, %v1172
        %v1174 = vpop.f32.mrf.mxu0
        %1175 = vmatprep.mubr.f32.mxu0 %v880
        %1176 = vmatmul.mubr.f32.gmra.mxu0 %v879
        %v1177 = vpop.f32.mrf.mxu0
        %v1178 = vadd.f32 0.0, %v1177
        %v1179 = vpop.f32.mrf.mxu0
        %1180 = vmatprep.mubr.f32.mxu0 %v883
        %1181 = vmatmul.mubr.f32.gmra.mxu0 %v882
        %v1182 = vpop.f32.mrf.mxu0
        %v1183 = vadd.f32 0.0, %v1182
        %v1184 = vpop.f32.mrf.mxu0
        %1185 = vmatprep.mubr.f32.mxu0 %v886
        %1186 = vmatmul.mubr.f32.gmra.mxu0 %v885
        %v1187 = vpop.f32.mrf.mxu0
        %v1188 = vadd.f32 0.0, %v1187
        %v1189 = vpop.f32.mrf.mxu0
        %1190 = vmatprep.mubr.f32.mxu0 %v889
        %1191 = vmatmul.mubr.f32.gmra.mxu0 %v888
        %v1192 = vpop.f32.mrf.mxu0
        %v1193 = vadd.f32 0.0, %v1192
        %v1194 = vpop.f32.mrf.mxu0
        %1195 = vdwg.mxu0
        %1196 = vmatprep.subr.mxu0 0.0
        %1197 = vmatpush1.msra.mxu0 %v970
        %1198 = vmatprep.subr.mxu0 0.0
        %1199 = vmatpush1.msra.mxu0 %v969
        %1200 = vmatprep.subr.mxu0 0.0
        %1201 = vmatpush1.msra.mxu0 %v968
        %1202 = vmatprep.subr.mxu0 0.0
        %1203 = vmatpush1.msra.mxu0 %v967
        %1204 = vmatprep.subr.mxu0 0.0
        %1205 = vmatpush1.msra.mxu0 %v966
        %1206 = vmatprep.subr.mxu0 0.0
        %1207 = vmatpush1.msra.mxu0 %v965
        %1208 = vmatprep.subr.mxu0 0.0
        %1209 = vmatpush1.msra.mxu0 %v964
        %1210 = vmatprep.subr.mxu0 0.0
        %1211 = vmatpush1.msra.mxu0 %v963
        %1212 = vmatprep.subr.mxu0 0.0
        %1213 = vmatpush1.msra.mxu0 %v962
        %1214 = vmatprep.subr.mxu0 0.0
        %1215 = vmatpush1.msra.mxu0 %v961
        %1216 = vmatprep.subr.mxu0 0.0
        %1217 = vmatpush1.msra.mxu0 %v960
        %1218 = vmatprep.subr.mxu0 0.0
        %1219 = vmatpush1.msra.mxu0 %v959
        %1220 = vmatprep.subr.mxu0 0.0
        %1221 = vmatpush1.msra.mxu0 %v958
        %1222 = vmatprep.subr.mxu0 0.0
        %1223 = vmatpush1.msra.mxu0 %v957
        %1224 = vmatprep.subr.mxu0 0.0
        %1225 = vmatpush1.msra.mxu0 %v956
        %1226 = vmatprep.subr.mxu0 0.0
        %1227 = vmatpush1.msra.mxu0 %v955
        %1228 = vmatprep.subr.mxu0 0.0
        %1229 = vmatpush2.msra.mxu0 0.0
        %1230 = vmatprep.subr.mxu0 0.0
        %1231 = vmatpush2.msra.mxu0 0.0
        %1232 = vmatprep.subr.mxu0 0.0
        %1233 = vmatpush2.msra.mxu0 0.0
        %1234 = vmatprep.subr.mxu0 0.0
        %1235 = vmatpush2.msra.mxu0 0.0
        %1236 = vmatprep.subr.mxu0 0.0
        %1237 = vmatpush2.msra.mxu0 0.0
        %1238 = vmatprep.subr.mxu0 0.0
        %1239 = vmatpush2.msra.mxu0 0.0
        %1240 = vmatprep.subr.mxu0 0.0
        %1241 = vmatpush2.msra.mxu0 0.0
        %1242 = vmatprep.subr.mxu0 0.0
        %1243 = vmatpush2.msra.mxu0 0.0
        %1244 = vmatprep.subr.mxu0 0.0
        %1245 = vmatpush2.msra.mxu0 0.0
        %1246 = vmatprep.subr.mxu0 0.0
        %1247 = vmatpush2.msra.mxu0 0.0
        %1248 = vmatprep.subr.mxu0 0.0
        %1249 = vmatpush2.msra.mxu0 0.0
        %1250 = vmatprep.subr.mxu0 0.0
        %1251 = vmatpush2.msra.mxu0 0.0
        %1252 = vmatprep.subr.mxu0 0.0
        %1253 = vmatpush2.msra.mxu0 0.0
        %1254 = vmatprep.subr.mxu0 0.0
        %1255 = vmatpush2.msra.mxu0 0.0
        %1256 = vmatprep.subr.mxu0 0.0
        %1257 = vmatpush2.msra.mxu0 0.0
        %1258 = vmatprep.subr.mxu0 0.0
        %1259 = vmatpush2.msra.mxu0 0.0
        %1260 = vmatprep.mubr.f32.mxu0 0.0
        %1261 = vmatmul.mubr.f32.gmra.mxu0 %v797
        %v1262 = vpop.f32.mrf.mxu0
        %v1263 = vadd.f32 %v1038, %v1262
        %v1264 = vpop.f32.mrf.mxu0
        %1265 = vmatprep.mubr.f32.mxu0 0.0
        %1266 = vmatmul.mubr.f32.gmra.mxu0 %v800
        %v1267 = vpop.f32.mrf.mxu0
        %v1268 = vadd.f32 %v1043, %v1267
        %v1269 = vpop.f32.mrf.mxu0
        %1270 = vmatprep.mubr.f32.mxu0 0.0
        %1271 = vmatmul.mubr.f32.gmra.mxu0 %v803
        %v1272 = vpop.f32.mrf.mxu0
        %v1273 = vadd.f32 %v1048, %v1272
        %v1274 = vpop.f32.mrf.mxu0
        %1275 = vmatprep.mubr.f32.mxu0 0.0
        %1276 = vmatmul.mubr.f32.gmra.mxu0 %v806
        %v1277 = vpop.f32.mrf.mxu0
        %v1278 = vadd.f32 %v1053, %v1277
        %v1279 = vpop.f32.mrf.mxu0
        %1280 = vmatprep.mubr.f32.mxu0 0.0
        %1281 = vmatmul.mubr.f32.gmra.mxu0 %v809
        %v1282 = vpop.f32.mrf.mxu0
        %v1283 = vadd.f32 %v1058, %v1282
        %v1284 = vpop.f32.mrf.mxu0
        %1285 = vmatprep.mubr.f32.mxu0 0.0
        %1286 = vmatmul.mubr.f32.gmra.mxu0 %v812
        %v1287 = vpop.f32.mrf.mxu0
        %v1288 = vadd.f32 %v1063, %v1287
        %v1289 = vpop.f32.mrf.mxu0
        %1290 = vmatprep.mubr.f32.mxu0 0.0
        %1291 = vmatmul.mubr.f32.gmra.mxu0 %v815
        %v1292 = vpop.f32.mrf.mxu0
        %v1293 = vadd.f32 %v1068, %v1292
        %v1294 = vpop.f32.mrf.mxu0
        %1295 = vmatprep.mubr.f32.mxu0 0.0
        %1296 = vmatmul.mubr.f32.gmra.mxu0 %v818
        %v1297 = vpop.f32.mrf.mxu0
        %v1298 = vadd.f32 %v1073, %v1297
        %v1299 = vpop.f32.mrf.mxu0
        %1300 = vmatprep.mubr.f32.mxu0 0.0
        %1301 = vmatmul.mubr.f32.gmra.mxu0 %v821
        %v1302 = vpop.f32.mrf.mxu0
        %v1303 = vadd.f32 %v1078, %v1302
        %v1304 = vpop.f32.mrf.mxu0
        %1305 = vmatprep.mubr.f32.mxu0 0.0
        %1306 = vmatmul.mubr.f32.gmra.mxu0 %v824
        %v1307 = vpop.f32.mrf.mxu0
        %v1308 = vadd.f32 %v1083, %v1307
        %v1309 = vpop.f32.mrf.mxu0
        %1310 = vmatprep.mubr.f32.mxu0 0.0
        %1311 = vmatmul.mubr.f32.gmra.mxu0 %v827
        %v1312 = vpop.f32.mrf.mxu0
        %v1313 = vadd.f32 %v1088, %v1312
        %v1314 = vpop.f32.mrf.mxu0
        %1315 = vmatprep.mubr.f32.mxu0 0.0
        %1316 = vmatmul.mubr.f32.gmra.mxu0 %v830
        %v1317 = vpop.f32.mrf.mxu0
        %v1318 = vadd.f32 %v1093, %v1317
        %v1319 = vpop.f32.mrf.mxu0
        %1320 = vmatprep.mubr.f32.mxu0 0.0
        %1321 = vmatmul.mubr.f32.gmra.mxu0 %v833
        %v1322 = vpop.f32.mrf.mxu0
        %v1323 = vadd.f32 %v1098, %v1322
        %v1324 = vpop.f32.mrf.mxu0
        %1325 = vmatprep.mubr.f32.mxu0 0.0
        %1326 = vmatmul.mubr.f32.gmra.mxu0 %v836
        %v1327 = vpop.f32.mrf.mxu0
        %v1328 = vadd.f32 %v1103, %v1327
        %v1329 = vpop.f32.mrf.mxu0
        %1330 = vmatprep.mubr.f32.mxu0 0.0
        %1331 = vmatmul.mubr.f32.gmra.mxu0 %v839
        %v1332 = vpop.f32.mrf.mxu0
        %v1333 = vadd.f32 %v1108, %v1332
        %v1334 = vpop.f32.mrf.mxu0
        %1335 = vmatprep.mubr.f32.mxu0 0.0
        %1336 = vmatmul.mubr.f32.gmra.mxu0 %v842
        %v1337 = vpop.f32.mrf.mxu0
        %v1338 = vadd.f32 %v1113, %v1337
        %v1339 = vpop.f32.mrf.mxu0
        %1340 = vmatprep.mubr.f32.mxu0 0.0
        %1341 = vmatmul.mubr.f32.gmra.mxu0 %v845
        %v1342 = vpop.f32.mrf.mxu0
        %v1343 = vadd.f32 %v1118, %v1342
        %v1344 = vpop.f32.mrf.mxu0
        %1345 = vmatprep.mubr.f32.mxu0 0.0
        %1346 = vmatmul.mubr.f32.gmra.mxu0 %v848
        %v1347 = vpop.f32.mrf.mxu0
        %v1348 = vadd.f32 %v1123, %v1347
        %v1349 = vpop.f32.mrf.mxu0
        %1350 = vmatprep.mubr.f32.mxu0 0.0
        %1351 = vmatmul.mubr.f32.gmra.mxu0 %v851
        %v1352 = vpop.f32.mrf.mxu0
        %v1353 = vadd.f32 %v1128, %v1352
        %v1354 = vpop.f32.mrf.mxu0
        %1355 = vmatprep.mubr.f32.mxu0 0.0
        %1356 = vmatmul.mubr.f32.gmra.mxu0 %v854
        %v1357 = vpop.f32.mrf.mxu0
        %v1358 = vadd.f32 %v1133, %v1357
        %v1359 = vpop.f32.mrf.mxu0
        %1360 = vmatprep.mubr.f32.mxu0 0.0
        %1361 = vmatmul.mubr.f32.gmra.mxu0 %v857
        %v1362 = vpop.f32.mrf.mxu0
        %v1363 = vadd.f32 %v1138, %v1362
        %v1364 = vpop.f32.mrf.mxu0
        %1365 = vmatprep.mubr.f32.mxu0 0.0
        %1366 = vmatmul.mubr.f32.gmra.mxu0 %v860
        %v1367 = vpop.f32.mrf.mxu0
        %v1368 = vadd.f32 %v1143, %v1367
        %v1369 = vpop.f32.mrf.mxu0
        %1370 = vmatprep.mubr.f32.mxu0 0.0
        %1371 = vmatmul.mubr.f32.gmra.mxu0 %v863
        %v1372 = vpop.f32.mrf.mxu0
        %v1373 = vadd.f32 %v1148, %v1372
        %v1374 = vpop.f32.mrf.mxu0
        %1375 = vmatprep.mubr.f32.mxu0 0.0
        %1376 = vmatmul.mubr.f32.gmra.mxu0 %v866
        %v1377 = vpop.f32.mrf.mxu0
        %v1378 = vadd.f32 %v1153, %v1377
        %v1379 = vpop.f32.mrf.mxu0
        %1380 = vmatprep.mubr.f32.mxu0 0.0
        %1381 = vmatmul.mubr.f32.gmra.mxu0 %v869
        %v1382 = vpop.f32.mrf.mxu0
        %v1383 = vadd.f32 %v1158, %v1382
        %v1384 = vpop.f32.mrf.mxu0
        %1385 = vmatprep.mubr.f32.mxu0 0.0
        %1386 = vmatmul.mubr.f32.gmra.mxu0 %v872
        %v1387 = vpop.f32.mrf.mxu0
        %v1388 = vadd.f32 %v1163, %v1387
        %v1389 = vpop.f32.mrf.mxu0
        %1390 = vmatprep.mubr.f32.mxu0 0.0
        %1391 = vmatmul.mubr.f32.gmra.mxu0 %v875
        %v1392 = vpop.f32.mrf.mxu0
        %v1393 = vadd.f32 %v1168, %v1392
        %v1394 = vpop.f32.mrf.mxu0
        %1395 = vmatprep.mubr.f32.mxu0 0.0
        %1396 = vmatmul.mubr.f32.gmra.mxu0 %v878
        %v1397 = vpop.f32.mrf.mxu0
        %v1398 = vadd.f32 %v1173, %v1397
        %v1399 = vpop.f32.mrf.mxu0
        %1400 = vmatprep.mubr.f32.mxu0 0.0
        %1401 = vmatmul.mubr.f32.gmra.mxu0 %v881
        %v1402 = vpop.f32.mrf.mxu0
        %v1403 = vadd.f32 %v1178, %v1402
        %v1404 = vpop.f32.mrf.mxu0
        %1405 = vmatprep.mubr.f32.mxu0 0.0
        %1406 = vmatmul.mubr.f32.gmra.mxu0 %v884
        %v1407 = vpop.f32.mrf.mxu0
        %v1408 = vadd.f32 %v1183, %v1407
        %v1409 = vpop.f32.mrf.mxu0
        %1410 = vmatprep.mubr.f32.mxu0 0.0
        %1411 = vmatmul.mubr.f32.gmra.mxu0 %v887
        %v1412 = vpop.f32.mrf.mxu0
        %v1413 = vadd.f32 %v1188, %v1412
        %v1414 = vpop.f32.mrf.mxu0
        %1415 = vmatprep.mubr.f32.mxu0 0.0
        %1416 = vmatmul.mubr.f32.gmra.mxu0 %v890
        %v1417 = vpop.f32.mrf.mxu0
        %v1418 = vadd.f32 %v1193, %v1417
        %v1419 = vpop.f32.mrf.mxu0
        %1420 = vdwg.mxu0
        %v1421 = vadd.f32 %v891, %v1263
        %v1422 = vadd.f32 %v892, %v1268
        %v1423 = vadd.f32 %v893, %v1273
        %v1424 = vadd.f32 %v894, %v1278
        %v1425 = vadd.f32 %v895, %v1283
        %v1426 = vadd.f32 %v896, %v1288
        %v1427 = vadd.f32 %v897, %v1293
        %v1428 = vadd.f32 %v898, %v1298
        %v1429 = vadd.f32 %v899, %v1303
        %v1430 = vadd.f32 %v900, %v1308
        %v1431 = vadd.f32 %v901, %v1313
        %v1432 = vadd.f32 %v902, %v1318
        %v1433 = vadd.f32 %v903, %v1323
        %v1434 = vadd.f32 %v904, %v1328
        %v1435 = vadd.f32 %v905, %v1333
        %v1436 = vadd.f32 %v906, %v1338
        %v1437 = vadd.f32 %v907, %v1343
        %v1438 = vadd.f32 %v908, %v1348
        %v1439 = vadd.f32 %v909, %v1353
        %v1440 = vadd.f32 %v910, %v1358
        %v1441 = vadd.f32 %v911, %v1363
        %v1442 = vadd.f32 %v912, %v1368
        %v1443 = vadd.f32 %v913, %v1373
        %v1444 = vadd.f32 %v914, %v1378
        %v1445 = vadd.f32 %v915, %v1383
        %v1446 = vadd.f32 %v916, %v1388
        %v1447 = vadd.f32 %v917, %v1393
        %v1448 = vadd.f32 %v918, %v1398
        %v1449 = vadd.f32 %v919, %v1403
        %v1450 = vadd.f32 %v920, %v1408
        %v1451 = vadd.f32 %v921, %v1413
        %v1452 = vadd.f32 %v922, %v1418
        %1453 = vst [vmem:[#allocation3] sm:$0xff] %v1421
        %1454 = vst [vmem:[#allocation3 + $0x8] sm:$0xff] %v1422
        %1455 = vst [vmem:[#allocation3 + $0x10] sm:$0xff] %v1423
        %1456 = vst [vmem:[#allocation3 + $0x18] sm:$0xff] %v1424
        %1457 = vst [vmem:[#allocation3 + $0x20] sm:$0xff] %v1425
        %1458 = vst [vmem:[#allocation3 + $0x28] sm:$0xff] %v1426
        %1459 = vst [vmem:[#allocation3 + $0x30] sm:$0xff] %v1427
        %1460 = vst [vmem:[#allocation3 + $0x38] sm:$0xff] %v1428
        %1461 = vst [vmem:[#allocation3 + $0x40] sm:$0xff] %v1429
        %1462 = vst [vmem:[#allocation3 + $0x48] sm:$0xff] %v1430
        %1463 = vst [vmem:[#allocation3 + $0x50] sm:$0xff] %v1431
        %1464 = vst [vmem:[#allocation3 + $0x58] sm:$0xff] %v1432
        %1465 = vst [vmem:[#allocation3 + $0x60] sm:$0xff] %v1433
        %1466 = vst [vmem:[#allocation3 + $0x68] sm:$0xff] %v1434
        %1467 = vst [vmem:[#allocation3 + $0x70] sm:$0xff] %v1435
        %1468 = vst [vmem:[#allocation3 + $0x78] sm:$0xff] %v1436
        %1469 = vst [vmem:[#allocation3 + $0x80] sm:$0xff] %v1437
        %1470 = vst [vmem:[#allocation3 + $0x88] sm:$0xff] %v1438
        %1471 = vst [vmem:[#allocation3 + $0x90] sm:$0xff] %v1439
        %1472 = vst [vmem:[#allocation3 + $0x98] sm:$0xff] %v1440
        %1473 = vst [vmem:[#allocation3 + $0xa0] sm:$0xff] %v1441
        %1474 = vst [vmem:[#allocation3 + $0xa8] sm:$0xff] %v1442
        %1475 = vst [vmem:[#allocation3 + $0xb0] sm:$0xff] %v1443
        %1476 = vst [vmem:[#allocation3 + $0xb8] sm:$0xff] %v1444
        %1477 = vst [vmem:[#allocation3 + $0xc0] sm:$0xff] %v1445
        %1478 = vst [vmem:[#allocation3 + $0xc8] sm:$0xff] %v1446
        %1479 = vst [vmem:[#allocation3 + $0xd0] sm:$0xff] %v1447
        %1480 = vst [vmem:[#allocation3 + $0xd8] sm:$0xff] %v1448
        %1481 = vst [vmem:[#allocation3 + $0xe0] sm:$0xff] %v1449
        %1482 = vst [vmem:[#allocation3 + $0xe8] sm:$0xff] %v1450
        %1483 = vst [vmem:[#allocation3 + $0xf0] sm:$0xff] %v1451
        %1484 = vst [vmem:[#allocation3 + $0xf8] sm:$0xff] %v1452
        %v1485 = vld [vmem:[%s562] sm:$0xff]
        %v1486 = vld [vmem:[%s562 + $0x8] sm:$0xff]
        %v1487 = vld [vmem:[%s562 + $0x10] sm:$0xff]
        %v1488 = vld [vmem:[%s562 + $0x18] sm:$0xff]
        %v1489 = vld [vmem:[%s562 + $0x20] sm:$0xff]
        %v1490 = vld [vmem:[%s562 + $0x28] sm:$0xff]
        %v1491 = vld [vmem:[%s562 + $0x30] sm:$0xff]
        %v1492 = vld [vmem:[%s562 + $0x38] sm:$0xff]
        %v1493 = vld [vmem:[%s562 + $0x40] sm:$0xff]
        %v1494 = vld [vmem:[%s562 + $0x48] sm:$0xff]
        %v1495 = vld [vmem:[%s562 + $0x50] sm:$0xff]
        %v1496 = vld [vmem:[%s562 + $0x58] sm:$0xff]
        %v1497 = vld [vmem:[%s562 + $0x60] sm:$0xff]
        %v1498 = vld [vmem:[%s562 + $0x68] sm:$0xff]
        %v1499 = vld [vmem:[%s562 + $0x70] sm:$0xff]
        %v1500 = vld [vmem:[%s562 + $0x78] sm:$0xff]
        %v1501 = vld [vmem:[%s562 + $0x80] sm:$0xff]
        %v1502 = vld [vmem:[%s562 + $0x88] sm:$0xff]
        %v1503 = vld [vmem:[%s562 + $0x90] sm:$0xff]
        %v1504 = vld [vmem:[%s562 + $0x98] sm:$0xff]
        %v1505 = vld [vmem:[%s562 + $0xa0] sm:$0xff]
        %v1506 = vld [vmem:[%s562 + $0xa8] sm:$0xff]
        %v1507 = vld [vmem:[%s562 + $0xb0] sm:$0xff]
        %v1508 = vld [vmem:[%s562 + $0xb8] sm:$0xff]
        %v1509 = vld [vmem:[%s562 + $0xc0] sm:$0xff]
        %v1510 = vld [vmem:[%s562 + $0xc8] sm:$0xff]
        %v1511 = vld [vmem:[%s562 + $0xd0] sm:$0xff]
        %v1512 = vld [vmem:[%s562 + $0xd8] sm:$0xff]
        %v1513 = vld [vmem:[%s562 + $0xe0] sm:$0xff]
        %v1514 = vld [vmem:[%s562 + $0xe8] sm:$0xff]
        %v1515 = vld [vmem:[%s562 + $0xf0] sm:$0xff]
        %v1516 = vld [vmem:[%s562 + $0xf8] sm:$0xff]
        %v1517 = vld [vmem:[%s562 + $0x100] sm:$0xff]
        %v1518 = vld [vmem:[%s562 + $0x108] sm:$0xff]
        %v1519 = vld [vmem:[%s562 + $0x110] sm:$0xff]
        %v1520 = vld [vmem:[%s562 + $0x118] sm:$0xff]
        %v1521 = vld [vmem:[%s562 + $0x120] sm:$0xff]
        %v1522 = vld [vmem:[%s562 + $0x128] sm:$0xff]
        %v1523 = vld [vmem:[%s562 + $0x130] sm:$0xff]
        %v1524 = vld [vmem:[%s562 + $0x138] sm:$0xff]
        %v1525 = vld [vmem:[%s562 + $0x140] sm:$0xff]
        %v1526 = vld [vmem:[%s562 + $0x148] sm:$0xff]
        %v1527 = vld [vmem:[%s562 + $0x150] sm:$0xff]
        %v1528 = vld [vmem:[%s562 + $0x158] sm:$0xff]
        %v1529 = vld [vmem:[%s562 + $0x160] sm:$0xff]
        %v1530 = vld [vmem:[%s562 + $0x168] sm:$0xff]
        %v1531 = vld [vmem:[%s562 + $0x170] sm:$0xff]
        %v1532 = vld [vmem:[%s562 + $0x178] sm:$0xff]
        %v1533 = vld [vmem:[%s562 + $0x180] sm:$0xff]
        %v1534 = vld [vmem:[%s562 + $0x188] sm:$0xff]
        %v1535 = vld [vmem:[%s562 + $0x190] sm:$0xff]
        %v1536 = vld [vmem:[%s562 + $0x198] sm:$0xff]
        %v1537 = vld [vmem:[%s562 + $0x1a0] sm:$0xff]
        %v1538 = vld [vmem:[%s562 + $0x1a8] sm:$0xff]
        %v1539 = vld [vmem:[%s562 + $0x1b0] sm:$0xff]
        %v1540 = vld [vmem:[%s562 + $0x1b8] sm:$0xff]
        %v1541 = vld [vmem:[%s562 + $0x1c0] sm:$0xff]
        %v1542 = vld [vmem:[%s562 + $0x1c8] sm:$0xff]
        %v1543 = vld [vmem:[%s562 + $0x1d0] sm:$0xff]
        %v1544 = vld [vmem:[%s562 + $0x1d8] sm:$0xff]
        %v1545 = vld [vmem:[%s562 + $0x1e0] sm:$0xff]
        %v1546 = vld [vmem:[%s562 + $0x1e8] sm:$0xff]
        %v1547 = vld [vmem:[%s562 + $0x1f0] sm:$0xff]
        %v1548 = vld [vmem:[%s562 + $0x1f8] sm:$0xff]
        %v1549 = vld [vmem:[%s562 + $0x200] sm:$0xff]
        %v1550 = vld [vmem:[%s562 + $0x208] sm:$0xff]
        %v1551 = vld [vmem:[%s562 + $0x210] sm:$0xff]
        %v1552 = vld [vmem:[%s562 + $0x218] sm:$0xff]
        %v1553 = vld [vmem:[%s562 + $0x220] sm:$0xff]
        %v1554 = vld [vmem:[%s562 + $0x228] sm:$0xff]
        %v1555 = vld [vmem:[%s562 + $0x230] sm:$0xff]
        %v1556 = vld [vmem:[%s562 + $0x238] sm:$0xff]
        %v1557 = vld [vmem:[%s562 + $0x240] sm:$0xff]
        %v1558 = vld [vmem:[%s562 + $0x248] sm:$0xff]
        %v1559 = vld [vmem:[%s562 + $0x250] sm:$0xff]
        %v1560 = vld [vmem:[%s562 + $0x258] sm:$0xff]
        %v1561 = vld [vmem:[%s562 + $0x260] sm:$0xff]
        %v1562 = vld [vmem:[%s562 + $0x268] sm:$0xff]
        %v1563 = vld [vmem:[%s562 + $0x270] sm:$0xff]
        %v1564 = vld [vmem:[%s562 + $0x278] sm:$0xff]
        %v1565 = vld [vmem:[%s562 + $0x280] sm:$0xff]
        %v1566 = vld [vmem:[%s562 + $0x288] sm:$0xff]
        %v1567 = vld [vmem:[%s562 + $0x290] sm:$0xff]
        %v1568 = vld [vmem:[%s562 + $0x298] sm:$0xff]
        %v1569 = vld [vmem:[%s562 + $0x2a0] sm:$0xff]
        %v1570 = vld [vmem:[%s562 + $0x2a8] sm:$0xff]
        %v1571 = vld [vmem:[%s562 + $0x2b0] sm:$0xff]
        %v1572 = vld [vmem:[%s562 + $0x2b8] sm:$0xff]
        %v1573 = vld [vmem:[%s562 + $0x2c0] sm:$0xff]
        %v1574 = vld [vmem:[%s562 + $0x2c8] sm:$0xff]
        %v1575 = vld [vmem:[%s562 + $0x2d0] sm:$0xff]
        %v1576 = vld [vmem:[%s562 + $0x2d8] sm:$0xff]
        %v1577 = vld [vmem:[%s562 + $0x2e0] sm:$0xff]
        %v1578 = vld [vmem:[%s562 + $0x2e8] sm:$0xff]
        %v1579 = vld [vmem:[%s562 + $0x2f0] sm:$0xff]
        %v1580 = vld [vmem:[%s562 + $0x2f8] sm:$0xff]
        %v1581 = vld [vmem:[#allocation3] sm:$0xff]
        %v1582 = vld [vmem:[#allocation3 + $0x8] sm:$0xff]
        %v1583 = vld [vmem:[#allocation3 + $0x10] sm:$0xff]
        %v1584 = vld [vmem:[#allocation3 + $0x18] sm:$0xff]
        %v1585 = vld [vmem:[#allocation3 + $0x20] sm:$0xff]
        %v1586 = vld [vmem:[#allocation3 + $0x28] sm:$0xff]
        %v1587 = vld [vmem:[#allocation3 + $0x30] sm:$0xff]
        %v1588 = vld [vmem:[#allocation3 + $0x38] sm:$0xff]
        %v1589 = vld [vmem:[#allocation3 + $0x40] sm:$0xff]
        %v1590 = vld [vmem:[#allocation3 + $0x48] sm:$0xff]
        %v1591 = vld [vmem:[#allocation3 + $0x50] sm:$0xff]
        %v1592 = vld [vmem:[#allocation3 + $0x58] sm:$0xff]
        %v1593 = vld [vmem:[#allocation3 + $0x60] sm:$0xff]
        %v1594 = vld [vmem:[#allocation3 + $0x68] sm:$0xff]
        %v1595 = vld [vmem:[#allocation3 + $0x70] sm:$0xff]
        %v1596 = vld [vmem:[#allocation3 + $0x78] sm:$0xff]
        %v1597 = vld [vmem:[#allocation3 + $0x80] sm:$0xff]
        %v1598 = vld [vmem:[#allocation3 + $0x88] sm:$0xff]
        %v1599 = vld [vmem:[#allocation3 + $0x90] sm:$0xff]
        %v1600 = vld [vmem:[#allocation3 + $0x98] sm:$0xff]
        %v1601 = vld [vmem:[#allocation3 + $0xa0] sm:$0xff]
        %v1602 = vld [vmem:[#allocation3 + $0xa8] sm:$0xff]
        %v1603 = vld [vmem:[#allocation3 + $0xb0] sm:$0xff]
        %v1604 = vld [vmem:[#allocation3 + $0xb8] sm:$0xff]
        %v1605 = vld [vmem:[#allocation3 + $0xc0] sm:$0xff]
        %v1606 = vld [vmem:[#allocation3 + $0xc8] sm:$0xff]
        %v1607 = vld [vmem:[#allocation3 + $0xd0] sm:$0xff]
        %v1608 = vld [vmem:[#allocation3 + $0xd8] sm:$0xff]
        %v1609 = vld [vmem:[#allocation3 + $0xe0] sm:$0xff]
        %v1610 = vld [vmem:[#allocation3 + $0xe8] sm:$0xff]
        %v1611 = vld [vmem:[#allocation3 + $0xf0] sm:$0xff]
        %v1612 = vld [vmem:[#allocation3 + $0xf8] sm:$0xff]
        %s1613 = scalar_lea.vmem [#allocation4], 384
        %v1614 = vld [vmem:[%s1613] sm:$0xff]
        %v1615 = vld [vmem:[%s1613 + $0x8] sm:$0xff]
        %v1616 = vld [vmem:[%s1613 + $0x10] sm:$0xff]
        %v1617 = vld [vmem:[%s1613 + $0x18] sm:$0xff]
        %v1618 = vld [vmem:[%s1613 + $0x20] sm:$0xff]
        %v1619 = vld [vmem:[%s1613 + $0x28] sm:$0xff]
        %v1620 = vld [vmem:[%s1613 + $0x30] sm:$0xff]
        %v1621 = vld [vmem:[%s1613 + $0x38] sm:$0xff]
        %v1622 = vld [vmem:[%s1613 + $0x40] sm:$0xff]
        %v1623 = vld [vmem:[%s1613 + $0x48] sm:$0xff]
        %v1624 = vld [vmem:[%s1613 + $0x50] sm:$0xff]
        %v1625 = vld [vmem:[%s1613 + $0x58] sm:$0xff]
        %v1626 = vld [vmem:[%s1613 + $0x60] sm:$0xff]
        %v1627 = vld [vmem:[%s1613 + $0x68] sm:$0xff]
        %v1628 = vld [vmem:[%s1613 + $0x70] sm:$0xff]
        %v1629 = vld [vmem:[%s1613 + $0x78] sm:$0xff]
        %v1630 = vld [vmem:[%s1613 + $0x80] sm:$0xff]
        %v1631 = vld [vmem:[%s1613 + $0x88] sm:$0xff]
        %v1632 = vld [vmem:[%s1613 + $0x90] sm:$0xff]
        %v1633 = vld [vmem:[%s1613 + $0x98] sm:$0xff]
        %v1634 = vld [vmem:[%s1613 + $0xa0] sm:$0xff]
        %v1635 = vld [vmem:[%s1613 + $0xa8] sm:$0xff]
        %v1636 = vld [vmem:[%s1613 + $0xb0] sm:$0xff]
        %v1637 = vld [vmem:[%s1613 + $0xb8] sm:$0xff]
        %v1638 = vld [vmem:[%s1613 + $0xc0] sm:$0xff]
        %v1639 = vld [vmem:[%s1613 + $0xc8] sm:$0xff]
        %v1640 = vld [vmem:[%s1613 + $0xd0] sm:$0xff]
        %v1641 = vld [vmem:[%s1613 + $0xd8] sm:$0xff]
        %v1642 = vld [vmem:[%s1613 + $0xe0] sm:$0xff]
        %v1643 = vld [vmem:[%s1613 + $0xe8] sm:$0xff]
        %v1644 = vld [vmem:[%s1613 + $0xf0] sm:$0xff]
        %v1645 = vld [vmem:[%s1613 + $0xf8] sm:$0xff]
        %v1646 = vld [vmem:[%s1613 + $0x100] sm:$0xff]
        %v1647 = vld [vmem:[%s1613 + $0x108] sm:$0xff]
        %v1648 = vld [vmem:[%s1613 + $0x110] sm:$0xff]
        %v1649 = vld [vmem:[%s1613 + $0x118] sm:$0xff]
        %v1650 = vld [vmem:[%s1613 + $0x120] sm:$0xff]
        %v1651 = vld [vmem:[%s1613 + $0x128] sm:$0xff]
        %v1652 = vld [vmem:[%s1613 + $0x130] sm:$0xff]
        %v1653 = vld [vmem:[%s1613 + $0x138] sm:$0xff]
        %v1654 = vld [vmem:[%s1613 + $0x140] sm:$0xff]
        %v1655 = vld [vmem:[%s1613 + $0x148] sm:$0xff]
        %v1656 = vld [vmem:[%s1613 + $0x150] sm:$0xff]
        %v1657 = vld [vmem:[%s1613 + $0x158] sm:$0xff]
        %v1658 = vld [vmem:[%s1613 + $0x160] sm:$0xff]
        %v1659 = vld [vmem:[%s1613 + $0x168] sm:$0xff]
        %v1660 = vld [vmem:[%s1613 + $0x170] sm:$0xff]
        %v1661 = vld [vmem:[%s1613 + $0x178] sm:$0xff]
        %1662 = vmatprep.subr.mxu0 0.0
        %1663 = vmatpush1.msra.mxu0 %v1629
        %1664 = vmatprep.subr.mxu0 0.0
        %1665 = vmatpush1.msra.mxu0 %v1628
        %1666 = vmatprep.subr.mxu0 0.0
        %1667 = vmatpush1.msra.mxu0 %v1627
        %1668 = vmatprep.subr.mxu0 0.0
        %1669 = vmatpush1.msra.mxu0 %v1626
        %1670 = vmatprep.subr.mxu0 0.0
        %1671 = vmatpush1.msra.mxu0 %v1625
        %1672 = vmatprep.subr.mxu0 0.0
        %1673 = vmatpush1.msra.mxu0 %v1624
        %1674 = vmatprep.subr.mxu0 0.0
        %1675 = vmatpush1.msra.mxu0 %v1623
        %1676 = vmatprep.subr.mxu0 0.0
        %1677 = vmatpush1.msra.mxu0 %v1622
        %1678 = vmatprep.subr.mxu0 0.0
        %1679 = vmatpush1.msra.mxu0 %v1621
        %1680 = vmatprep.subr.mxu0 0.0
        %1681 = vmatpush1.msra.mxu0 %v1620
        %1682 = vmatprep.subr.mxu0 0.0
        %1683 = vmatpush1.msra.mxu0 %v1619
        %1684 = vmatprep.subr.mxu0 0.0
        %1685 = vmatpush1.msra.mxu0 %v1618
        %1686 = vmatprep.subr.mxu0 0.0
        %1687 = vmatpush1.msra.mxu0 %v1617
        %1688 = vmatprep.subr.mxu0 0.0
        %1689 = vmatpush1.msra.mxu0 %v1616
        %1690 = vmatprep.subr.mxu0 0.0
        %1691 = vmatpush1.msra.mxu0 %v1615
        %1692 = vmatprep.subr.mxu0 0.0
        %1693 = vmatpush1.msra.mxu0 %v1614
        %1694 = vmatprep.subr.mxu0 0.0
        %1695 = vmatpush2.msra.mxu0 %v1645
        %1696 = vmatprep.subr.mxu0 0.0
        %1697 = vmatpush2.msra.mxu0 %v1644
        %1698 = vmatprep.subr.mxu0 0.0
        %1699 = vmatpush2.msra.mxu0 %v1643
        %1700 = vmatprep.subr.mxu0 0.0
        %1701 = vmatpush2.msra.mxu0 %v1642
        %1702 = vmatprep.subr.mxu0 0.0
        %1703 = vmatpush2.msra.mxu0 %v1641
        %1704 = vmatprep.subr.mxu0 0.0
        %1705 = vmatpush2.msra.mxu0 %v1640
        %1706 = vmatprep.subr.mxu0 0.0
        %1707 = vmatpush2.msra.mxu0 %v1639
        %1708 = vmatprep.subr.mxu0 0.0
        %1709 = vmatpush2.msra.mxu0 %v1638
        %1710 = vmatprep.subr.mxu0 0.0
        %1711 = vmatpush2.msra.mxu0 %v1637
        %1712 = vmatprep.subr.mxu0 0.0
        %1713 = vmatpush2.msra.mxu0 %v1636
        %1714 = vmatprep.subr.mxu0 0.0
        %1715 = vmatpush2.msra.mxu0 %v1635
        %1716 = vmatprep.subr.mxu0 0.0
        %1717 = vmatpush2.msra.mxu0 %v1634
        %1718 = vmatprep.subr.mxu0 0.0
        %1719 = vmatpush2.msra.mxu0 %v1633
        %1720 = vmatprep.subr.mxu0 0.0
        %1721 = vmatpush2.msra.mxu0 %v1632
        %1722 = vmatprep.subr.mxu0 0.0
        %1723 = vmatpush2.msra.mxu0 %v1631
        %1724 = vmatprep.subr.mxu0 0.0
        %1725 = vmatpush2.msra.mxu0 %v1630
        %1726 = vmatprep.mubr.f32.mxu0 %v1486
        %1727 = vmatmul.mubr.f32.gmra.mxu0 %v1485
        %v1728 = vpop.f32.mrf.mxu0
        %v1729 = vadd.f32 0.0, %v1728
        %v1730 = vpop.f32.mrf.mxu0
        %1731 = vmatprep.mubr.f32.mxu0 %v1489
        %1732 = vmatmul.mubr.f32.gmra.mxu0 %v1488
        %v1733 = vpop.f32.mrf.mxu0
        %v1734 = vadd.f32 0.0, %v1733
        %v1735 = vpop.f32.mrf.mxu0
        %1736 = vmatprep.mubr.f32.mxu0 %v1492
        %1737 = vmatmul.mubr.f32.gmra.mxu0 %v1491
        %v1738 = vpop.f32.mrf.mxu0
        %v1739 = vadd.f32 0.0, %v1738
        %v1740 = vpop.f32.mrf.mxu0
        %1741 = vmatprep.mubr.f32.mxu0 %v1495
        %1742 = vmatmul.mubr.f32.gmra.mxu0 %v1494
        %v1743 = vpop.f32.mrf.mxu0
        %v1744 = vadd.f32 0.0, %v1743
        %v1745 = vpop.f32.mrf.mxu0
        %1746 = vmatprep.mubr.f32.mxu0 %v1498
        %1747 = vmatmul.mubr.f32.gmra.mxu0 %v1497
        %v1748 = vpop.f32.mrf.mxu0
        %v1749 = vadd.f32 0.0, %v1748
        %v1750 = vpop.f32.mrf.mxu0
        %1751 = vmatprep.mubr.f32.mxu0 %v1501
        %1752 = vmatmul.mubr.f32.gmra.mxu0 %v1500
        %v1753 = vpop.f32.mrf.mxu0
        %v1754 = vadd.f32 0.0, %v1753
        %v1755 = vpop.f32.mrf.mxu0
        %1756 = vmatprep.mubr.f32.mxu0 %v1504
        %1757 = vmatmul.mubr.f32.gmra.mxu0 %v1503
        %v1758 = vpop.f32.mrf.mxu0
        %v1759 = vadd.f32 0.0, %v1758
        %v1760 = vpop.f32.mrf.mxu0
        %1761 = vmatprep.mubr.f32.mxu0 %v1507
        %1762 = vmatmul.mubr.f32.gmra.mxu0 %v1506
        %v1763 = vpop.f32.mrf.mxu0
        %v1764 = vadd.f32 0.0, %v1763
        %v1765 = vpop.f32.mrf.mxu0
        %1766 = vmatprep.mubr.f32.mxu0 %v1510
        %1767 = vmatmul.mubr.f32.gmra.mxu0 %v1509
        %v1768 = vpop.f32.mrf.mxu0
        %v1769 = vadd.f32 0.0, %v1768
        %v1770 = vpop.f32.mrf.mxu0
        %1771 = vmatprep.mubr.f32.mxu0 %v1513
        %1772 = vmatmul.mubr.f32.gmra.mxu0 %v1512
        %v1773 = vpop.f32.mrf.mxu0
        %v1774 = vadd.f32 0.0, %v1773
        %v1775 = vpop.f32.mrf.mxu0
        %1776 = vmatprep.mubr.f32.mxu0 %v1516
        %1777 = vmatmul.mubr.f32.gmra.mxu0 %v1515
        %v1778 = vpop.f32.mrf.mxu0
        %v1779 = vadd.f32 0.0, %v1778
        %v1780 = vpop.f32.mrf.mxu0
        %1781 = vmatprep.mubr.f32.mxu0 %v1519
        %1782 = vmatmul.mubr.f32.gmra.mxu0 %v1518
        %v1783 = vpop.f32.mrf.mxu0
        %v1784 = vadd.f32 0.0, %v1783
        %v1785 = vpop.f32.mrf.mxu0
        %1786 = vmatprep.mubr.f32.mxu0 %v1522
        %1787 = vmatmul.mubr.f32.gmra.mxu0 %v1521
        %v1788 = vpop.f32.mrf.mxu0
        %v1789 = vadd.f32 0.0, %v1788
        %v1790 = vpop.f32.mrf.mxu0
        %1791 = vmatprep.mubr.f32.mxu0 %v1525
        %1792 = vmatmul.mubr.f32.gmra.mxu0 %v1524
        %v1793 = vpop.f32.mrf.mxu0
        %v1794 = vadd.f32 0.0, %v1793
        %v1795 = vpop.f32.mrf.mxu0
        %1796 = vmatprep.mubr.f32.mxu0 %v1528
        %1797 = vmatmul.mubr.f32.gmra.mxu0 %v1527
        %v1798 = vpop.f32.mrf.mxu0
        %v1799 = vadd.f32 0.0, %v1798
        %v1800 = vpop.f32.mrf.mxu0
        %1801 = vmatprep.mubr.f32.mxu0 %v1531
        %1802 = vmatmul.mubr.f32.gmra.mxu0 %v1530
        %v1803 = vpop.f32.mrf.mxu0
        %v1804 = vadd.f32 0.0, %v1803
        %v1805 = vpop.f32.mrf.mxu0
        %1806 = vmatprep.mubr.f32.mxu0 %v1534
        %1807 = vmatmul.mubr.f32.gmra.mxu0 %v1533
        %v1808 = vpop.f32.mrf.mxu0
        %v1809 = vadd.f32 0.0, %v1808
        %v1810 = vpop.f32.mrf.mxu0
        %1811 = vmatprep.mubr.f32.mxu0 %v1537
        %1812 = vmatmul.mubr.f32.gmra.mxu0 %v1536
        %v1813 = vpop.f32.mrf.mxu0
        %v1814 = vadd.f32 0.0, %v1813
        %v1815 = vpop.f32.mrf.mxu0
        %1816 = vmatprep.mubr.f32.mxu0 %v1540
        %1817 = vmatmul.mubr.f32.gmra.mxu0 %v1539
        %v1818 = vpop.f32.mrf.mxu0
        %v1819 = vadd.f32 0.0, %v1818
        %v1820 = vpop.f32.mrf.mxu0
        %1821 = vmatprep.mubr.f32.mxu0 %v1543
        %1822 = vmatmul.mubr.f32.gmra.mxu0 %v1542
        %v1823 = vpop.f32.mrf.mxu0
        %v1824 = vadd.f32 0.0, %v1823
        %v1825 = vpop.f32.mrf.mxu0
        %1826 = vmatprep.mubr.f32.mxu0 %v1546
        %1827 = vmatmul.mubr.f32.gmra.mxu0 %v1545
        %v1828 = vpop.f32.mrf.mxu0
        %v1829 = vadd.f32 0.0, %v1828
        %v1830 = vpop.f32.mrf.mxu0
        %1831 = vmatprep.mubr.f32.mxu0 %v1549
        %1832 = vmatmul.mubr.f32.gmra.mxu0 %v1548
        %v1833 = vpop.f32.mrf.mxu0
        %v1834 = vadd.f32 0.0, %v1833
        %v1835 = vpop.f32.mrf.mxu0
        %1836 = vmatprep.mubr.f32.mxu0 %v1552
        %1837 = vmatmul.mubr.f32.gmra.mxu0 %v1551
        %v1838 = vpop.f32.mrf.mxu0
        %v1839 = vadd.f32 0.0, %v1838
        %v1840 = vpop.f32.mrf.mxu0
        %1841 = vmatprep.mubr.f32.mxu0 %v1555
        %1842 = vmatmul.mubr.f32.gmra.mxu0 %v1554
        %v1843 = vpop.f32.mrf.mxu0
        %v1844 = vadd.f32 0.0, %v1843
        %v1845 = vpop.f32.mrf.mxu0
        %1846 = vmatprep.mubr.f32.mxu0 %v1558
        %1847 = vmatmul.mubr.f32.gmra.mxu0 %v1557
        %v1848 = vpop.f32.mrf.mxu0
        %v1849 = vadd.f32 0.0, %v1848
        %v1850 = vpop.f32.mrf.mxu0
        %1851 = vmatprep.mubr.f32.mxu0 %v1561
        %1852 = vmatmul.mubr.f32.gmra.mxu0 %v1560
        %v1853 = vpop.f32.mrf.mxu0
        %v1854 = vadd.f32 0.0, %v1853
        %v1855 = vpop.f32.mrf.mxu0
        %1856 = vmatprep.mubr.f32.mxu0 %v1564
        %1857 = vmatmul.mubr.f32.gmra.mxu0 %v1563
        %v1858 = vpop.f32.mrf.mxu0
        %v1859 = vadd.f32 0.0, %v1858
        %v1860 = vpop.f32.mrf.mxu0
        %1861 = vmatprep.mubr.f32.mxu0 %v1567
        %1862 = vmatmul.mubr.f32.gmra.mxu0 %v1566
        %v1863 = vpop.f32.mrf.mxu0
        %v1864 = vadd.f32 0.0, %v1863
        %v1865 = vpop.f32.mrf.mxu0
        %1866 = vmatprep.mubr.f32.mxu0 %v1570
        %1867 = vmatmul.mubr.f32.gmra.mxu0 %v1569
        %v1868 = vpop.f32.mrf.mxu0
        %v1869 = vadd.f32 0.0, %v1868
        %v1870 = vpop.f32.mrf.mxu0
        %1871 = vmatprep.mubr.f32.mxu0 %v1573
        %1872 = vmatmul.mubr.f32.gmra.mxu0 %v1572
        %v1873 = vpop.f32.mrf.mxu0
        %v1874 = vadd.f32 0.0, %v1873
        %v1875 = vpop.f32.mrf.mxu0
        %1876 = vmatprep.mubr.f32.mxu0 %v1576
        %1877 = vmatmul.mubr.f32.gmra.mxu0 %v1575
        %v1878 = vpop.f32.mrf.mxu0
        %v1879 = vadd.f32 0.0, %v1878
        %v1880 = vpop.f32.mrf.mxu0
        %1881 = vmatprep.mubr.f32.mxu0 %v1579
        %1882 = vmatmul.mubr.f32.gmra.mxu0 %v1578
        %v1883 = vpop.f32.mrf.mxu0
        %v1884 = vadd.f32 0.0, %v1883
        %v1885 = vpop.f32.mrf.mxu0
        %1886 = vdwg.mxu0
        %1887 = vmatprep.subr.mxu0 0.0
        %1888 = vmatpush1.msra.mxu0 %v1661
        %1889 = vmatprep.subr.mxu0 0.0
        %1890 = vmatpush1.msra.mxu0 %v1660
        %1891 = vmatprep.subr.mxu0 0.0
        %1892 = vmatpush1.msra.mxu0 %v1659
        %1893 = vmatprep.subr.mxu0 0.0
        %1894 = vmatpush1.msra.mxu0 %v1658
        %1895 = vmatprep.subr.mxu0 0.0
        %1896 = vmatpush1.msra.mxu0 %v1657
        %1897 = vmatprep.subr.mxu0 0.0
        %1898 = vmatpush1.msra.mxu0 %v1656
        %1899 = vmatprep.subr.mxu0 0.0
        %1900 = vmatpush1.msra.mxu0 %v1655
        %1901 = vmatprep.subr.mxu0 0.0
        %1902 = vmatpush1.msra.mxu0 %v1654
        %1903 = vmatprep.subr.mxu0 0.0
        %1904 = vmatpush1.msra.mxu0 %v1653
        %1905 = vmatprep.subr.mxu0 0.0
        %1906 = vmatpush1.msra.mxu0 %v1652
        %1907 = vmatprep.subr.mxu0 0.0
        %1908 = vmatpush1.msra.mxu0 %v1651
        %1909 = vmatprep.subr.mxu0 0.0
        %1910 = vmatpush1.msra.mxu0 %v1650
        %1911 = vmatprep.subr.mxu0 0.0
        %1912 = vmatpush1.msra.mxu0 %v1649
        %1913 = vmatprep.subr.mxu0 0.0
        %1914 = vmatpush1.msra.mxu0 %v1648
        %1915 = vmatprep.subr.mxu0 0.0
        %1916 = vmatpush1.msra.mxu0 %v1647
        %1917 = vmatprep.subr.mxu0 0.0
        %1918 = vmatpush1.msra.mxu0 %v1646
        %1919 = vmatprep.subr.mxu0 0.0
        %1920 = vmatpush2.msra.mxu0 0.0
        %1921 = vmatprep.subr.mxu0 0.0
        %1922 = vmatpush2.msra.mxu0 0.0
        %1923 = vmatprep.subr.mxu0 0.0
        %1924 = vmatpush2.msra.mxu0 0.0
        %1925 = vmatprep.subr.mxu0 0.0
        %1926 = vmatpush2.msra.mxu0 0.0
        %1927 = vmatprep.subr.mxu0 0.0
        %1928 = vmatpush2.msra.mxu0 0.0
        %1929 = vmatprep.subr.mxu0 0.0
        %1930 = vmatpush2.msra.mxu0 0.0
        %1931 = vmatprep.subr.mxu0 0.0
        %1932 = vmatpush2.msra.mxu0 0.0
        %1933 = vmatprep.subr.mxu0 0.0
        %1934 = vmatpush2.msra.mxu0 0.0
        %1935 = vmatprep.subr.mxu0 0.0
        %1936 = vmatpush2.msra.mxu0 0.0
        %1937 = vmatprep.subr.mxu0 0.0
        %1938 = vmatpush2.msra.mxu0 0.0
        %1939 = vmatprep.subr.mxu0 0.0
        %1940 = vmatpush2.msra.mxu0 0.0
        %1941 = vmatprep.subr.mxu0 0.0
        %1942 = vmatpush2.msra.mxu0 0.0
        %1943 = vmatprep.subr.mxu0 0.0
        %1944 = vmatpush2.msra.mxu0 0.0
        %1945 = vmatprep.subr.mxu0 0.0
        %1946 = vmatpush2.msra.mxu0 0.0
        %1947 = vmatprep.subr.mxu0 0.0
        %1948 = vmatpush2.msra.mxu0 0.0
        %1949 = vmatprep.subr.mxu0 0.0
        %1950 = vmatpush2.msra.mxu0 0.0
        %1951 = vmatprep.mubr.f32.mxu0 0.0
        %1952 = vmatmul.mubr.f32.gmra.mxu0 %v1487
        %v1953 = vpop.f32.mrf.mxu0
        %v1954 = vadd.f32 %v1729, %v1953
        %v1955 = vpop.f32.mrf.mxu0
        %1956 = vmatprep.mubr.f32.mxu0 0.0
        %1957 = vmatmul.mubr.f32.gmra.mxu0 %v1490
        %v1958 = vpop.f32.mrf.mxu0
        %v1959 = vadd.f32 %v1734, %v1958
        %v1960 = vpop.f32.mrf.mxu0
        %1961 = vmatprep.mubr.f32.mxu0 0.0
        %1962 = vmatmul.mubr.f32.gmra.mxu0 %v1493
        %v1963 = vpop.f32.mrf.mxu0
        %v1964 = vadd.f32 %v1739, %v1963
        %v1965 = vpop.f32.mrf.mxu0
        %1966 = vmatprep.mubr.f32.mxu0 0.0
        %1967 = vmatmul.mubr.f32.gmra.mxu0 %v1496
        %v1968 = vpop.f32.mrf.mxu0
        %v1969 = vadd.f32 %v1744, %v1968
        %v1970 = vpop.f32.mrf.mxu0
        %1971 = vmatprep.mubr.f32.mxu0 0.0
        %1972 = vmatmul.mubr.f32.gmra.mxu0 %v1499
        %v1973 = vpop.f32.mrf.mxu0
        %v1974 = vadd.f32 %v1749, %v1973
        %v1975 = vpop.f32.mrf.mxu0
        %1976 = vmatprep.mubr.f32.mxu0 0.0
        %1977 = vmatmul.mubr.f32.gmra.mxu0 %v1502
        %v1978 = vpop.f32.mrf.mxu0
        %v1979 = vadd.f32 %v1754, %v1978
        %v1980 = vpop.f32.mrf.mxu0
        %1981 = vmatprep.mubr.f32.mxu0 0.0
        %1982 = vmatmul.mubr.f32.gmra.mxu0 %v1505
        %v1983 = vpop.f32.mrf.mxu0
        %v1984 = vadd.f32 %v1759, %v1983
        %v1985 = vpop.f32.mrf.mxu0
        %1986 = vmatprep.mubr.f32.mxu0 0.0
        %1987 = vmatmul.mubr.f32.gmra.mxu0 %v1508
        %v1988 = vpop.f32.mrf.mxu0
        %v1989 = vadd.f32 %v1764, %v1988
        %v1990 = vpop.f32.mrf.mxu0
        %1991 = vmatprep.mubr.f32.mxu0 0.0
        %1992 = vmatmul.mubr.f32.gmra.mxu0 %v1511
        %v1993 = vpop.f32.mrf.mxu0
        %v1994 = vadd.f32 %v1769, %v1993
        %v1995 = vpop.f32.mrf.mxu0
        %1996 = vmatprep.mubr.f32.mxu0 0.0
        %1997 = vmatmul.mubr.f32.gmra.mxu0 %v1514
        %v1998 = vpop.f32.mrf.mxu0
        %v1999 = vadd.f32 %v1774, %v1998
        %v2000 = vpop.f32.mrf.mxu0
        %2001 = vmatprep.mubr.f32.mxu0 0.0
        %2002 = vmatmul.mubr.f32.gmra.mxu0 %v1517
        %v2003 = vpop.f32.mrf.mxu0
        %v2004 = vadd.f32 %v1779, %v2003
        %v2005 = vpop.f32.mrf.mxu0
        %2006 = vmatprep.mubr.f32.mxu0 0.0
        %2007 = vmatmul.mubr.f32.gmra.mxu0 %v1520
        %v2008 = vpop.f32.mrf.mxu0
        %v2009 = vadd.f32 %v1784, %v2008
        %v2010 = vpop.f32.mrf.mxu0
        %2011 = vmatprep.mubr.f32.mxu0 0.0
        %2012 = vmatmul.mubr.f32.gmra.mxu0 %v1523
        %v2013 = vpop.f32.mrf.mxu0
        %v2014 = vadd.f32 %v1789, %v2013
        %v2015 = vpop.f32.mrf.mxu0
        %2016 = vmatprep.mubr.f32.mxu0 0.0
        %2017 = vmatmul.mubr.f32.gmra.mxu0 %v1526
        %v2018 = vpop.f32.mrf.mxu0
        %v2019 = vadd.f32 %v1794, %v2018
        %v2020 = vpop.f32.mrf.mxu0
        %2021 = vmatprep.mubr.f32.mxu0 0.0
        %2022 = vmatmul.mubr.f32.gmra.mxu0 %v1529
        %v2023 = vpop.f32.mrf.mxu0
        %v2024 = vadd.f32 %v1799, %v2023
        %v2025 = vpop.f32.mrf.mxu0
        %2026 = vmatprep.mubr.f32.mxu0 0.0
        %2027 = vmatmul.mubr.f32.gmra.mxu0 %v1532
        %v2028 = vpop.f32.mrf.mxu0
        %v2029 = vadd.f32 %v1804, %v2028
        %v2030 = vpop.f32.mrf.mxu0
        %2031 = vmatprep.mubr.f32.mxu0 0.0
        %2032 = vmatmul.mubr.f32.gmra.mxu0 %v1535
        %v2033 = vpop.f32.mrf.mxu0
        %v2034 = vadd.f32 %v1809, %v2033
        %v2035 = vpop.f32.mrf.mxu0
        %2036 = vmatprep.mubr.f32.mxu0 0.0
        %2037 = vmatmul.mubr.f32.gmra.mxu0 %v1538
        %v2038 = vpop.f32.mrf.mxu0
        %v2039 = vadd.f32 %v1814, %v2038
        %v2040 = vpop.f32.mrf.mxu0
        %2041 = vmatprep.mubr.f32.mxu0 0.0
        %2042 = vmatmul.mubr.f32.gmra.mxu0 %v1541
        %v2043 = vpop.f32.mrf.mxu0
        %v2044 = vadd.f32 %v1819, %v2043
        %v2045 = vpop.f32.mrf.mxu0
        %2046 = vmatprep.mubr.f32.mxu0 0.0
        %2047 = vmatmul.mubr.f32.gmra.mxu0 %v1544
        %v2048 = vpop.f32.mrf.mxu0
        %v2049 = vadd.f32 %v1824, %v2048
        %v2050 = vpop.f32.mrf.mxu0
        %2051 = vmatprep.mubr.f32.mxu0 0.0
        %2052 = vmatmul.mubr.f32.gmra.mxu0 %v1547
        %v2053 = vpop.f32.mrf.mxu0
        %v2054 = vadd.f32 %v1829, %v2053
        %v2055 = vpop.f32.mrf.mxu0
        %2056 = vmatprep.mubr.f32.mxu0 0.0
        %2057 = vmatmul.mubr.f32.gmra.mxu0 %v1550
        %v2058 = vpop.f32.mrf.mxu0
        %v2059 = vadd.f32 %v1834, %v2058
        %v2060 = vpop.f32.mrf.mxu0
        %2061 = vmatprep.mubr.f32.mxu0 0.0
        %2062 = vmatmul.mubr.f32.gmra.mxu0 %v1553
        %v2063 = vpop.f32.mrf.mxu0
        %v2064 = vadd.f32 %v1839, %v2063
        %v2065 = vpop.f32.mrf.mxu0
        %2066 = vmatprep.mubr.f32.mxu0 0.0
        %2067 = vmatmul.mubr.f32.gmra.mxu0 %v1556
        %v2068 = vpop.f32.mrf.mxu0
        %v2069 = vadd.f32 %v1844, %v2068
        %v2070 = vpop.f32.mrf.mxu0
        %2071 = vmatprep.mubr.f32.mxu0 0.0
        %2072 = vmatmul.mubr.f32.gmra.mxu0 %v1559
        %v2073 = vpop.f32.mrf.mxu0
        %v2074 = vadd.f32 %v1849, %v2073
        %v2075 = vpop.f32.mrf.mxu0
        %2076 = vmatprep.mubr.f32.mxu0 0.0
        %2077 = vmatmul.mubr.f32.gmra.mxu0 %v1562
        %v2078 = vpop.f32.mrf.mxu0
        %v2079 = vadd.f32 %v1854, %v2078
        %v2080 = vpop.f32.mrf.mxu0
        %2081 = vmatprep.mubr.f32.mxu0 0.0
        %2082 = vmatmul.mubr.f32.gmra.mxu0 %v1565
        %v2083 = vpop.f32.mrf.mxu0
        %v2084 = vadd.f32 %v1859, %v2083
        %v2085 = vpop.f32.mrf.mxu0
        %2086 = vmatprep.mubr.f32.mxu0 0.0
        %2087 = vmatmul.mubr.f32.gmra.mxu0 %v1568
        %v2088 = vpop.f32.mrf.mxu0
        %v2089 = vadd.f32 %v1864, %v2088
        %v2090 = vpop.f32.mrf.mxu0
        %2091 = vmatprep.mubr.f32.mxu0 0.0
        %2092 = vmatmul.mubr.f32.gmra.mxu0 %v1571
        %v2093 = vpop.f32.mrf.mxu0
        %v2094 = vadd.f32 %v1869, %v2093
        %v2095 = vpop.f32.mrf.mxu0
        %2096 = vmatprep.mubr.f32.mxu0 0.0
        %2097 = vmatmul.mubr.f32.gmra.mxu0 %v1574
        %v2098 = vpop.f32.mrf.mxu0
        %v2099 = vadd.f32 %v1874, %v2098
        %v2100 = vpop.f32.mrf.mxu0
        %2101 = vmatprep.mubr.f32.mxu0 0.0
        %2102 = vmatmul.mubr.f32.gmra.mxu0 %v1577
        %v2103 = vpop.f32.mrf.mxu0
        %v2104 = vadd.f32 %v1879, %v2103
        %v2105 = vpop.f32.mrf.mxu0
        %2106 = vmatprep.mubr.f32.mxu0 0.0
        %2107 = vmatmul.mubr.f32.gmra.mxu0 %v1580
        %v2108 = vpop.f32.mrf.mxu0
        %v2109 = vadd.f32 %v1884, %v2108
        %v2110 = vpop.f32.mrf.mxu0
        %2111 = vdwg.mxu0
        %v2112 = vadd.f32 %v1581, %v1954
        %v2113 = vadd.f32 %v1582, %v1959
        %v2114 = vadd.f32 %v1583, %v1964
        %v2115 = vadd.f32 %v1584, %v1969
        %v2116 = vadd.f32 %v1585, %v1974
        %v2117 = vadd.f32 %v1586, %v1979
        %v2118 = vadd.f32 %v1587, %v1984
        %v2119 = vadd.f32 %v1588, %v1989
        %v2120 = vadd.f32 %v1589, %v1994
        %v2121 = vadd.f32 %v1590, %v1999
        %v2122 = vadd.f32 %v1591, %v2004
        %v2123 = vadd.f32 %v1592, %v2009
        %v2124 = vadd.f32 %v1593, %v2014
        %v2125 = vadd.f32 %v1594, %v2019
        %v2126 = vadd.f32 %v1595, %v2024
        %v2127 = vadd.f32 %v1596, %v2029
        %v2128 = vadd.f32 %v1597, %v2034
        %v2129 = vadd.f32 %v1598, %v2039
        %v2130 = vadd.f32 %v1599, %v2044
        %v2131 = vadd.f32 %v1600, %v2049
        %v2132 = vadd.f32 %v1601, %v2054
        %v2133 = vadd.f32 %v1602, %v2059
        %v2134 = vadd.f32 %v1603, %v2064
        %v2135 = vadd.f32 %v1604, %v2069
        %v2136 = vadd.f32 %v1605, %v2074
        %v2137 = vadd.f32 %v1606, %v2079
        %v2138 = vadd.f32 %v1607, %v2084
        %v2139 = vadd.f32 %v1608, %v2089
        %v2140 = vadd.f32 %v1609, %v2094
        %v2141 = vadd.f32 %v1610, %v2099
        %v2142 = vadd.f32 %v1611, %v2104
        %v2143 = vadd.f32 %v1612, %v2109
        %2144 = vst [vmem:[#allocation3] sm:$0xff] %v2112
        %2145 = vst [vmem:[#allocation3 + $0x8] sm:$0xff] %v2113
        %2146 = vst [vmem:[#allocation3 + $0x10] sm:$0xff] %v2114
        %2147 = vst [vmem:[#allocation3 + $0x18] sm:$0xff] %v2115
        %2148 = vst [vmem:[#allocation3 + $0x20] sm:$0xff] %v2116
        %2149 = vst [vmem:[#allocation3 + $0x28] sm:$0xff] %v2117
        %2150 = vst [vmem:[#allocation3 + $0x30] sm:$0xff] %v2118
        %2151 = vst [vmem:[#allocation3 + $0x38] sm:$0xff] %v2119
        %2152 = vst [vmem:[#allocation3 + $0x40] sm:$0xff] %v2120
        %2153 = vst [vmem:[#allocation3 + $0x48] sm:$0xff] %v2121
        %2154 = vst [vmem:[#allocation3 + $0x50] sm:$0xff] %v2122
        %2155 = vst [vmem:[#allocation3 + $0x58] sm:$0xff] %v2123
        %2156 = vst [vmem:[#allocation3 + $0x60] sm:$0xff] %v2124
        %2157 = vst [vmem:[#allocation3 + $0x68] sm:$0xff] %v2125
        %2158 = vst [vmem:[#allocation3 + $0x70] sm:$0xff] %v2126
        %2159 = vst [vmem:[#allocation3 + $0x78] sm:$0xff] %v2127
        %2160 = vst [vmem:[#allocation3 + $0x80] sm:$0xff] %v2128
        %2161 = vst [vmem:[#allocation3 + $0x88] sm:$0xff] %v2129
        %2162 = vst [vmem:[#allocation3 + $0x90] sm:$0xff] %v2130
        %2163 = vst [vmem:[#allocation3 + $0x98] sm:$0xff] %v2131
        %2164 = vst [vmem:[#allocation3 + $0xa0] sm:$0xff] %v2132
        %2165 = vst [vmem:[#allocation3 + $0xa8] sm:$0xff] %v2133
        %2166 = vst [vmem:[#allocation3 + $0xb0] sm:$0xff] %v2134
        %2167 = vst [vmem:[#allocation3 + $0xb8] sm:$0xff] %v2135
        %2168 = vst [vmem:[#allocation3 + $0xc0] sm:$0xff] %v2136
        %2169 = vst [vmem:[#allocation3 + $0xc8] sm:$0xff] %v2137
        %2170 = vst [vmem:[#allocation3 + $0xd0] sm:$0xff] %v2138
        %2171 = vst [vmem:[#allocation3 + $0xd8] sm:$0xff] %v2139
        %2172 = vst [vmem:[#allocation3 + $0xe0] sm:$0xff] %v2140
        %2173 = vst [vmem:[#allocation3 + $0xe8] sm:$0xff] %v2141
        %2174 = vst [vmem:[#allocation3 + $0xf0] sm:$0xff] %v2142
        %2175 = vst [vmem:[#allocation3 + $0xf8] sm:$0xff] %v2143
        %s2176 = scalar_lea.vmem [#allocation2], 96
        %v2177 = vld [vmem:[%s2176] sm:$0xff]
        %v2178 = vld [vmem:[%s2176 + $0x8] sm:$0xff]
        %v2179 = vld [vmem:[%s2176 + $0x10] sm:$0xff]
        %v2180 = vld [vmem:[%s2176 + $0x18] sm:$0xff]
        %v2181 = vld [vmem:[%s2176 + $0x20] sm:$0xff]
        %v2182 = vld [vmem:[%s2176 + $0x28] sm:$0xff]
        %v2183 = vld [vmem:[%s2176 + $0x30] sm:$0xff]
        %v2184 = vld [vmem:[%s2176 + $0x38] sm:$0xff]
        %v2185 = vld [vmem:[%s2176 + $0x40] sm:$0xff]
        %v2186 = vld [vmem:[%s2176 + $0x48] sm:$0xff]
        %v2187 = vld [vmem:[%s2176 + $0x50] sm:$0xff]
        %v2188 = vld [vmem:[%s2176 + $0x58] sm:$0xff]
        %v2189 = vld [vmem:[%s2176 + $0x60] sm:$0xff]
        %v2190 = vld [vmem:[%s2176 + $0x68] sm:$0xff]
        %v2191 = vld [vmem:[%s2176 + $0x70] sm:$0xff]
        %v2192 = vld [vmem:[%s2176 + $0x78] sm:$0xff]
        %v2193 = vld [vmem:[%s2176 + $0x80] sm:$0xff]
        %v2194 = vld [vmem:[%s2176 + $0x88] sm:$0xff]
        %v2195 = vld [vmem:[%s2176 + $0x90] sm:$0xff]
        %v2196 = vld [vmem:[%s2176 + $0x98] sm:$0xff]
        %v2197 = vld [vmem:[%s2176 + $0xa0] sm:$0xff]
        %v2198 = vld [vmem:[%s2176 + $0xa8] sm:$0xff]
        %v2199 = vld [vmem:[%s2176 + $0xb0] sm:$0xff]
        %v2200 = vld [vmem:[%s2176 + $0xb8] sm:$0xff]
        %v2201 = vld [vmem:[%s2176 + $0xc0] sm:$0xff]
        %v2202 = vld [vmem:[%s2176 + $0xc8] sm:$0xff]
        %v2203 = vld [vmem:[%s2176 + $0xd0] sm:$0xff]
        %v2204 = vld [vmem:[%s2176 + $0xd8] sm:$0xff]
        %v2205 = vld [vmem:[%s2176 + $0xe0] sm:$0xff]
        %v2206 = vld [vmem:[%s2176 + $0xe8] sm:$0xff]
        %v2207 = vld [vmem:[%s2176 + $0xf0] sm:$0xff]
        %v2208 = vld [vmem:[%s2176 + $0xf8] sm:$0xff]
        %v2209 = vld [vmem:[%s2176 + $0x100] sm:$0xff]
        %v2210 = vld [vmem:[%s2176 + $0x108] sm:$0xff]
        %v2211 = vld [vmem:[%s2176 + $0x110] sm:$0xff]
        %v2212 = vld [vmem:[%s2176 + $0x118] sm:$0xff]
        %v2213 = vld [vmem:[%s2176 + $0x120] sm:$0xff]
        %v2214 = vld [vmem:[%s2176 + $0x128] sm:$0xff]
        %v2215 = vld [vmem:[%s2176 + $0x130] sm:$0xff]
        %v2216 = vld [vmem:[%s2176 + $0x138] sm:$0xff]
        %v2217 = vld [vmem:[%s2176 + $0x140] sm:$0xff]
        %v2218 = vld [vmem:[%s2176 + $0x148] sm:$0xff]
        %v2219 = vld [vmem:[%s2176 + $0x150] sm:$0xff]
        %v2220 = vld [vmem:[%s2176 + $0x158] sm:$0xff]
        %v2221 = vld [vmem:[%s2176 + $0x160] sm:$0xff]
        %v2222 = vld [vmem:[%s2176 + $0x168] sm:$0xff]
        %v2223 = vld [vmem:[%s2176 + $0x170] sm:$0xff]
        %v2224 = vld [vmem:[%s2176 + $0x178] sm:$0xff]
        %v2225 = vld [vmem:[%s2176 + $0x180] sm:$0xff]
        %v2226 = vld [vmem:[%s2176 + $0x188] sm:$0xff]
        %v2227 = vld [vmem:[%s2176 + $0x190] sm:$0xff]
        %v2228 = vld [vmem:[%s2176 + $0x198] sm:$0xff]
        %v2229 = vld [vmem:[%s2176 + $0x1a0] sm:$0xff]
        %v2230 = vld [vmem:[%s2176 + $0x1a8] sm:$0xff]
        %v2231 = vld [vmem:[%s2176 + $0x1b0] sm:$0xff]
        %v2232 = vld [vmem:[%s2176 + $0x1b8] sm:$0xff]
        %v2233 = vld [vmem:[%s2176 + $0x1c0] sm:$0xff]
        %v2234 = vld [vmem:[%s2176 + $0x1c8] sm:$0xff]
        %v2235 = vld [vmem:[%s2176 + $0x1d0] sm:$0xff]
        %v2236 = vld [vmem:[%s2176 + $0x1d8] sm:$0xff]
        %v2237 = vld [vmem:[%s2176 + $0x1e0] sm:$0xff]
        %v2238 = vld [vmem:[%s2176 + $0x1e8] sm:$0xff]
        %v2239 = vld [vmem:[%s2176 + $0x1f0] sm:$0xff]
        %v2240 = vld [vmem:[%s2176 + $0x1f8] sm:$0xff]
        %v2241 = vld [vmem:[%s2176 + $0x200] sm:$0xff]
        %v2242 = vld [vmem:[%s2176 + $0x208] sm:$0xff]
        %v2243 = vld [vmem:[%s2176 + $0x210] sm:$0xff]
        %v2244 = vld [vmem:[%s2176 + $0x218] sm:$0xff]
        %v2245 = vld [vmem:[%s2176 + $0x220] sm:$0xff]
        %v2246 = vld [vmem:[%s2176 + $0x228] sm:$0xff]
        %v2247 = vld [vmem:[%s2176 + $0x230] sm:$0xff]
        %v2248 = vld [vmem:[%s2176 + $0x238] sm:$0xff]
        %v2249 = vld [vmem:[%s2176 + $0x240] sm:$0xff]
        %v2250 = vld [vmem:[%s2176 + $0x248] sm:$0xff]
        %v2251 = vld [vmem:[%s2176 + $0x250] sm:$0xff]
        %v2252 = vld [vmem:[%s2176 + $0x258] sm:$0xff]
        %v2253 = vld [vmem:[%s2176 + $0x260] sm:$0xff]
        %v2254 = vld [vmem:[%s2176 + $0x268] sm:$0xff]
        %v2255 = vld [vmem:[%s2176 + $0x270] sm:$0xff]
        %v2256 = vld [vmem:[%s2176 + $0x278] sm:$0xff]
        %v2257 = vld [vmem:[%s2176 + $0x280] sm:$0xff]
        %v2258 = vld [vmem:[%s2176 + $0x288] sm:$0xff]
        %v2259 = vld [vmem:[%s2176 + $0x290] sm:$0xff]
        %v2260 = vld [vmem:[%s2176 + $0x298] sm:$0xff]
        %v2261 = vld [vmem:[%s2176 + $0x2a0] sm:$0xff]
        %v2262 = vld [vmem:[%s2176 + $0x2a8] sm:$0xff]
        %v2263 = vld [vmem:[%s2176 + $0x2b0] sm:$0xff]
        %v2264 = vld [vmem:[%s2176 + $0x2b8] sm:$0xff]
        %v2265 = vld [vmem:[%s2176 + $0x2c0] sm:$0xff]
        %v2266 = vld [vmem:[%s2176 + $0x2c8] sm:$0xff]
        %v2267 = vld [vmem:[%s2176 + $0x2d0] sm:$0xff]
        %v2268 = vld [vmem:[%s2176 + $0x2d8] sm:$0xff]
        %v2269 = vld [vmem:[%s2176 + $0x2e0] sm:$0xff]
        %v2270 = vld [vmem:[%s2176 + $0x2e8] sm:$0xff]
        %v2271 = vld [vmem:[%s2176 + $0x2f0] sm:$0xff]
        %v2272 = vld [vmem:[%s2176 + $0x2f8] sm:$0xff]
        %v2273 = vld [vmem:[#allocation3] sm:$0xff]
        %v2274 = vld [vmem:[#allocation3 + $0x8] sm:$0xff]
        %v2275 = vld [vmem:[#allocation3 + $0x10] sm:$0xff]
        %v2276 = vld [vmem:[#allocation3 + $0x18] sm:$0xff]
        %v2277 = vld [vmem:[#allocation3 + $0x20] sm:$0xff]
        %v2278 = vld [vmem:[#allocation3 + $0x28] sm:$0xff]
        %v2279 = vld [vmem:[#allocation3 + $0x30] sm:$0xff]
        %v2280 = vld [vmem:[#allocation3 + $0x38] sm:$0xff]
        %v2281 = vld [vmem:[#allocation3 + $0x40] sm:$0xff]
        %v2282 = vld [vmem:[#allocation3 + $0x48] sm:$0xff]
        %v2283 = vld [vmem:[#allocation3 + $0x50] sm:$0xff]
        %v2284 = vld [vmem:[#allocation3 + $0x58] sm:$0xff]
        %v2285 = vld [vmem:[#allocation3 + $0x60] sm:$0xff]
        %v2286 = vld [vmem:[#allocation3 + $0x68] sm:$0xff]
        %v2287 = vld [vmem:[#allocation3 + $0x70] sm:$0xff]
        %v2288 = vld [vmem:[#allocation3 + $0x78] sm:$0xff]
        %v2289 = vld [vmem:[#allocation3 + $0x80] sm:$0xff]
        %v2290 = vld [vmem:[#allocation3 + $0x88] sm:$0xff]
        %v2291 = vld [vmem:[#allocation3 + $0x90] sm:$0xff]
        %v2292 = vld [vmem:[#allocation3 + $0x98] sm:$0xff]
        %v2293 = vld [vmem:[#allocation3 + $0xa0] sm:$0xff]
        %v2294 = vld [vmem:[#allocation3 + $0xa8] sm:$0xff]
        %v2295 = vld [vmem:[#allocation3 + $0xb0] sm:$0xff]
        %v2296 = vld [vmem:[#allocation3 + $0xb8] sm:$0xff]
        %v2297 = vld [vmem:[#allocation3 + $0xc0] sm:$0xff]
        %v2298 = vld [vmem:[#allocation3 + $0xc8] sm:$0xff]
        %v2299 = vld [vmem:[#allocation3 + $0xd0] sm:$0xff]
        %v2300 = vld [vmem:[#allocation3 + $0xd8] sm:$0xff]
        %v2301 = vld [vmem:[#allocation3 + $0xe0] sm:$0xff]
        %v2302 = vld [vmem:[#allocation3 + $0xe8] sm:$0xff]
        %v2303 = vld [vmem:[#allocation3 + $0xf0] sm:$0xff]
        %v2304 = vld [vmem:[#allocation3 + $0xf8] sm:$0xff]
        %s2305 = scalar_lea.vmem [#allocation4], 768
        %v2306 = vld [vmem:[%s2305] sm:$0xff]
        %v2307 = vld [vmem:[%s2305 + $0x8] sm:$0xff]
        %v2308 = vld [vmem:[%s2305 + $0x10] sm:$0xff]
        %v2309 = vld [vmem:[%s2305 + $0x18] sm:$0xff]
        %v2310 = vld [vmem:[%s2305 + $0x20] sm:$0xff]
        %v2311 = vld [vmem:[%s2305 + $0x28] sm:$0xff]
        %v2312 = vld [vmem:[%s2305 + $0x30] sm:$0xff]
        %v2313 = vld [vmem:[%s2305 + $0x38] sm:$0xff]
        %v2314 = vld [vmem:[%s2305 + $0x40] sm:$0xff]
        %v2315 = vld [vmem:[%s2305 + $0x48] sm:$0xff]
        %v2316 = vld [vmem:[%s2305 + $0x50] sm:$0xff]
        %v2317 = vld [vmem:[%s2305 + $0x58] sm:$0xff]
        %v2318 = vld [vmem:[%s2305 + $0x60] sm:$0xff]
        %v2319 = vld [vmem:[%s2305 + $0x68] sm:$0xff]
        %v2320 = vld [vmem:[%s2305 + $0x70] sm:$0xff]
        %v2321 = vld [vmem:[%s2305 + $0x78] sm:$0xff]
        %v2322 = vld [vmem:[%s2305 + $0x80] sm:$0xff]
        %v2323 = vld [vmem:[%s2305 + $0x88] sm:$0xff]
        %v2324 = vld [vmem:[%s2305 + $0x90] sm:$0xff]
        %v2325 = vld [vmem:[%s2305 + $0x98] sm:$0xff]
        %v2326 = vld [vmem:[%s2305 + $0xa0] sm:$0xff]
        %v2327 = vld [vmem:[%s2305 + $0xa8] sm:$0xff]
        %v2328 = vld [vmem:[%s2305 + $0xb0] sm:$0xff]
        %v2329 = vld [vmem:[%s2305 + $0xb8] sm:$0xff]
        %v2330 = vld [vmem:[%s2305 + $0xc0] sm:$0xff]
        %v2331 = vld [vmem:[%s2305 + $0xc8] sm:$0xff]
        %v2332 = vld [vmem:[%s2305 + $0xd0] sm:$0xff]
        %v2333 = vld [vmem:[%s2305 + $0xd8] sm:$0xff]
        %v2334 = vld [vmem:[%s2305 + $0xe0] sm:$0xff]
        %v2335 = vld [vmem:[%s2305 + $0xe8] sm:$0xff]
        %v2336 = vld [vmem:[%s2305 + $0xf0] sm:$0xff]
        %v2337 = vld [vmem:[%s2305 + $0xf8] sm:$0xff]
        %v2338 = vld [vmem:[%s2305 + $0x100] sm:$0xff]
        %v2339 = vld [vmem:[%s2305 + $0x108] sm:$0xff]
        %v2340 = vld [vmem:[%s2305 + $0x110] sm:$0xff]
        %v2341 = vld [vmem:[%s2305 + $0x118] sm:$0xff]
        %v2342 = vld [vmem:[%s2305 + $0x120] sm:$0xff]
        %v2343 = vld [vmem:[%s2305 + $0x128] sm:$0xff]
        %v2344 = vld [vmem:[%s2305 + $0x130] sm:$0xff]
        %v2345 = vld [vmem:[%s2305 + $0x138] sm:$0xff]
        %v2346 = vld [vmem:[%s2305 + $0x140] sm:$0xff]
        %v2347 = vld [vmem:[%s2305 + $0x148] sm:$0xff]
        %v2348 = vld [vmem:[%s2305 + $0x150] sm:$0xff]
        %v2349 = vld [vmem:[%s2305 + $0x158] sm:$0xff]
        %v2350 = vld [vmem:[%s2305 + $0x160] sm:$0xff]
        %v2351 = vld [vmem:[%s2305 + $0x168] sm:$0xff]
        %v2352 = vld [vmem:[%s2305 + $0x170] sm:$0xff]
        %v2353 = vld [vmem:[%s2305 + $0x178] sm:$0xff]
        %2354 = vmatprep.subr.mxu0 0.0
        %2355 = vmatpush1.msra.mxu0 %v2321
        %2356 = vmatprep.subr.mxu0 0.0
        %2357 = vmatpush1.msra.mxu0 %v2320
        %2358 = vmatprep.subr.mxu0 0.0
        %2359 = vmatpush1.msra.mxu0 %v2319
        %2360 = vmatprep.subr.mxu0 0.0
        %2361 = vmatpush1.msra.mxu0 %v2318
        %2362 = vmatprep.subr.mxu0 0.0
        %2363 = vmatpush1.msra.mxu0 %v2317
        %2364 = vmatprep.subr.mxu0 0.0
        %2365 = vmatpush1.msra.mxu0 %v2316
        %2366 = vmatprep.subr.mxu0 0.0
        %2367 = vmatpush1.msra.mxu0 %v2315
        %2368 = vmatprep.subr.mxu0 0.0
        %2369 = vmatpush1.msra.mxu0 %v2314
        %2370 = vmatprep.subr.mxu0 0.0
        %2371 = vmatpush1.msra.mxu0 %v2313
        %2372 = vmatprep.subr.mxu0 0.0
        %2373 = vmatpush1.msra.mxu0 %v2312
        %2374 = vmatprep.subr.mxu0 0.0
        %2375 = vmatpush1.msra.mxu0 %v2311
        %2376 = vmatprep.subr.mxu0 0.0
        %2377 = vmatpush1.msra.mxu0 %v2310
        %2378 = vmatprep.subr.mxu0 0.0
        %2379 = vmatpush1.msra.mxu0 %v2309
        %2380 = vmatprep.subr.mxu0 0.0
        %2381 = vmatpush1.msra.mxu0 %v2308
        %2382 = vmatprep.subr.mxu0 0.0
        %2383 = vmatpush1.msra.mxu0 %v2307
        %2384 = vmatprep.subr.mxu0 0.0
        %2385 = vmatpush1.msra.mxu0 %v2306
        %2386 = vmatprep.subr.mxu0 0.0
        %2387 = vmatpush2.msra.mxu0 %v2337
        %2388 = vmatprep.subr.mxu0 0.0
        %2389 = vmatpush2.msra.mxu0 %v2336
        %2390 = vmatprep.subr.mxu0 0.0
        %2391 = vmatpush2.msra.mxu0 %v2335
        %2392 = vmatprep.subr.mxu0 0.0
        %2393 = vmatpush2.msra.mxu0 %v2334
        %2394 = vmatprep.subr.mxu0 0.0
        %2395 = vmatpush2.msra.mxu0 %v2333
        %2396 = vmatprep.subr.mxu0 0.0
        %2397 = vmatpush2.msra.mxu0 %v2332
        %2398 = vmatprep.subr.mxu0 0.0
        %2399 = vmatpush2.msra.mxu0 %v2331
        %2400 = vmatprep.subr.mxu0 0.0
        %2401 = vmatpush2.msra.mxu0 %v2330
        %2402 = vmatprep.subr.mxu0 0.0
        %2403 = vmatpush2.msra.mxu0 %v2329
        %2404 = vmatprep.subr.mxu0 0.0
        %2405 = vmatpush2.msra.mxu0 %v2328
        %2406 = vmatprep.subr.mxu0 0.0
        %2407 = vmatpush2.msra.mxu0 %v2327
        %2408 = vmatprep.subr.mxu0 0.0
        %2409 = vmatpush2.msra.mxu0 %v2326
        %2410 = vmatprep.subr.mxu0 0.0
        %2411 = vmatpush2.msra.mxu0 %v2325
        %2412 = vmatprep.subr.mxu0 0.0
        %2413 = vmatpush2.msra.mxu0 %v2324
        %2414 = vmatprep.subr.mxu0 0.0
        %2415 = vmatpush2.msra.mxu0 %v2323
        %2416 = vmatprep.subr.mxu0 0.0
        %2417 = vmatpush2.msra.mxu0 %v2322
        %2418 = vmatprep.mubr.f32.mxu0 %v2178
        %2419 = vmatmul.mubr.f32.gmra.mxu0 %v2177
        %v2420 = vpop.f32.mrf.mxu0
        %v2421 = vadd.f32 0.0, %v2420
        %v2422 = vpop.f32.mrf.mxu0
        %2423 = vmatprep.mubr.f32.mxu0 %v2181
        %2424 = vmatmul.mubr.f32.gmra.mxu0 %v2180
        %v2425 = vpop.f32.mrf.mxu0
        %v2426 = vadd.f32 0.0, %v2425
        %v2427 = vpop.f32.mrf.mxu0
        %2428 = vmatprep.mubr.f32.mxu0 %v2184
        %2429 = vmatmul.mubr.f32.gmra.mxu0 %v2183
        %v2430 = vpop.f32.mrf.mxu0
        %v2431 = vadd.f32 0.0, %v2430
        %v2432 = vpop.f32.mrf.mxu0
        %2433 = vmatprep.mubr.f32.mxu0 %v2187
        %2434 = vmatmul.mubr.f32.gmra.mxu0 %v2186
        %v2435 = vpop.f32.mrf.mxu0
        %v2436 = vadd.f32 0.0, %v2435
        %v2437 = vpop.f32.mrf.mxu0
        %2438 = vmatprep.mubr.f32.mxu0 %v2190
        %2439 = vmatmul.mubr.f32.gmra.mxu0 %v2189
        %v2440 = vpop.f32.mrf.mxu0
        %v2441 = vadd.f32 0.0, %v2440
        %v2442 = vpop.f32.mrf.mxu0
        %2443 = vmatprep.mubr.f32.mxu0 %v2193
        %2444 = vmatmul.mubr.f32.gmra.mxu0 %v2192
        %v2445 = vpop.f32.mrf.mxu0
        %v2446 = vadd.f32 0.0, %v2445
        %v2447 = vpop.f32.mrf.mxu0
        %2448 = vmatprep.mubr.f32.mxu0 %v2196
        %2449 = vmatmul.mubr.f32.gmra.mxu0 %v2195
        %v2450 = vpop.f32.mrf.mxu0
        %v2451 = vadd.f32 0.0, %v2450
        %v2452 = vpop.f32.mrf.mxu0
        %2453 = vmatprep.mubr.f32.mxu0 %v2199
        %2454 = vmatmul.mubr.f32.gmra.mxu0 %v2198
        %v2455 = vpop.f32.mrf.mxu0
        %v2456 = vadd.f32 0.0, %v2455
        %v2457 = vpop.f32.mrf.mxu0
        %2458 = vmatprep.mubr.f32.mxu0 %v2202
        %2459 = vmatmul.mubr.f32.gmra.mxu0 %v2201
        %v2460 = vpop.f32.mrf.mxu0
        %v2461 = vadd.f32 0.0, %v2460
        %v2462 = vpop.f32.mrf.mxu0
        %2463 = vmatprep.mubr.f32.mxu0 %v2205
        %2464 = vmatmul.mubr.f32.gmra.mxu0 %v2204
        %v2465 = vpop.f32.mrf.mxu0
        %v2466 = vadd.f32 0.0, %v2465
        %v2467 = vpop.f32.mrf.mxu0
        %2468 = vmatprep.mubr.f32.mxu0 %v2208
        %2469 = vmatmul.mubr.f32.gmra.mxu0 %v2207
        %v2470 = vpop.f32.mrf.mxu0
        %v2471 = vadd.f32 0.0, %v2470
        %v2472 = vpop.f32.mrf.mxu0
        %2473 = vmatprep.mubr.f32.mxu0 %v2211
        %2474 = vmatmul.mubr.f32.gmra.mxu0 %v2210
        %v2475 = vpop.f32.mrf.mxu0
        %v2476 = vadd.f32 0.0, %v2475
        %v2477 = vpop.f32.mrf.mxu0
        %2478 = vmatprep.mubr.f32.mxu0 %v2214
        %2479 = vmatmul.mubr.f32.gmra.mxu0 %v2213
        %v2480 = vpop.f32.mrf.mxu0
        %v2481 = vadd.f32 0.0, %v2480
        %v2482 = vpop.f32.mrf.mxu0
        %2483 = vmatprep.mubr.f32.mxu0 %v2217
        %2484 = vmatmul.mubr.f32.gmra.mxu0 %v2216
        %v2485 = vpop.f32.mrf.mxu0
        %v2486 = vadd.f32 0.0, %v2485
        %v2487 = vpop.f32.mrf.mxu0
        %2488 = vmatprep.mubr.f32.mxu0 %v2220
        %2489 = vmatmul.mubr.f32.gmra.mxu0 %v2219
        %v2490 = vpop.f32.mrf.mxu0
        %v2491 = vadd.f32 0.0, %v2490
        %v2492 = vpop.f32.mrf.mxu0
        %2493 = vmatprep.mubr.f32.mxu0 %v2223
        %2494 = vmatmul.mubr.f32.gmra.mxu0 %v2222
        %v2495 = vpop.f32.mrf.mxu0
        %v2496 = vadd.f32 0.0, %v2495
        %v2497 = vpop.f32.mrf.mxu0
        %2498 = vmatprep.mubr.f32.mxu0 %v2226
        %2499 = vmatmul.mubr.f32.gmra.mxu0 %v2225
        %v2500 = vpop.f32.mrf.mxu0
        %v2501 = vadd.f32 0.0, %v2500
        %v2502 = vpop.f32.mrf.mxu0
        %2503 = vmatprep.mubr.f32.mxu0 %v2229
        %2504 = vmatmul.mubr.f32.gmra.mxu0 %v2228
        %v2505 = vpop.f32.mrf.mxu0
        %v2506 = vadd.f32 0.0, %v2505
        %v2507 = vpop.f32.mrf.mxu0
        %2508 = vmatprep.mubr.f32.mxu0 %v2232
        %2509 = vmatmul.mubr.f32.gmra.mxu0 %v2231
        %v2510 = vpop.f32.mrf.mxu0
        %v2511 = vadd.f32 0.0, %v2510
        %v2512 = vpop.f32.mrf.mxu0
        %2513 = vmatprep.mubr.f32.mxu0 %v2235
        %2514 = vmatmul.mubr.f32.gmra.mxu0 %v2234
        %v2515 = vpop.f32.mrf.mxu0
        %v2516 = vadd.f32 0.0, %v2515
        %v2517 = vpop.f32.mrf.mxu0
        %2518 = vmatprep.mubr.f32.mxu0 %v2238
        %2519 = vmatmul.mubr.f32.gmra.mxu0 %v2237
        %v2520 = vpop.f32.mrf.mxu0
        %v2521 = vadd.f32 0.0, %v2520
        %v2522 = vpop.f32.mrf.mxu0
        %2523 = vmatprep.mubr.f32.mxu0 %v2241
        %2524 = vmatmul.mubr.f32.gmra.mxu0 %v2240
        %v2525 = vpop.f32.mrf.mxu0
        %v2526 = vadd.f32 0.0, %v2525
        %v2527 = vpop.f32.mrf.mxu0
        %2528 = vmatprep.mubr.f32.mxu0 %v2244
        %2529 = vmatmul.mubr.f32.gmra.mxu0 %v2243
        %v2530 = vpop.f32.mrf.mxu0
        %v2531 = vadd.f32 0.0, %v2530
        %v2532 = vpop.f32.mrf.mxu0
        %2533 = vmatprep.mubr.f32.mxu0 %v2247
        %2534 = vmatmul.mubr.f32.gmra.mxu0 %v2246
        %v2535 = vpop.f32.mrf.mxu0
        %v2536 = vadd.f32 0.0, %v2535
        %v2537 = vpop.f32.mrf.mxu0
        %2538 = vmatprep.mubr.f32.mxu0 %v2250
        %2539 = vmatmul.mubr.f32.gmra.mxu0 %v2249
        %v2540 = vpop.f32.mrf.mxu0
        %v2541 = vadd.f32 0.0, %v2540
        %v2542 = vpop.f32.mrf.mxu0
        %2543 = vmatprep.mubr.f32.mxu0 %v2253
        %2544 = vmatmul.mubr.f32.gmra.mxu0 %v2252
        %v2545 = vpop.f32.mrf.mxu0
        %v2546 = vadd.f32 0.0, %v2545
        %v2547 = vpop.f32.mrf.mxu0
        %2548 = vmatprep.mubr.f32.mxu0 %v2256
        %2549 = vmatmul.mubr.f32.gmra.mxu0 %v2255
        %v2550 = vpop.f32.mrf.mxu0
        %v2551 = vadd.f32 0.0, %v2550
        %v2552 = vpop.f32.mrf.mxu0
        %2553 = vmatprep.mubr.f32.mxu0 %v2259
        %2554 = vmatmul.mubr.f32.gmra.mxu0 %v2258
        %v2555 = vpop.f32.mrf.mxu0
        %v2556 = vadd.f32 0.0, %v2555
        %v2557 = vpop.f32.mrf.mxu0
        %2558 = vmatprep.mubr.f32.mxu0 %v2262
        %2559 = vmatmul.mubr.f32.gmra.mxu0 %v2261
        %v2560 = vpop.f32.mrf.mxu0
        %v2561 = vadd.f32 0.0, %v2560
        %v2562 = vpop.f32.mrf.mxu0
        %2563 = vmatprep.mubr.f32.mxu0 %v2265
        %2564 = vmatmul.mubr.f32.gmra.mxu0 %v2264
        %v2565 = vpop.f32.mrf.mxu0
        %v2566 = vadd.f32 0.0, %v2565
        %v2567 = vpop.f32.mrf.mxu0
        %2568 = vmatprep.mubr.f32.mxu0 %v2268
        %2569 = vmatmul.mubr.f32.gmra.mxu0 %v2267
        %v2570 = vpop.f32.mrf.mxu0
        %v2571 = vadd.f32 0.0, %v2570
        %v2572 = vpop.f32.mrf.mxu0
        %2573 = vmatprep.mubr.f32.mxu0 %v2271
        %2574 = vmatmul.mubr.f32.gmra.mxu0 %v2270
        %v2575 = vpop.f32.mrf.mxu0
        %v2576 = vadd.f32 0.0, %v2575
        %v2577 = vpop.f32.mrf.mxu0
        %2578 = vdwg.mxu0
        %2579 = vmatprep.subr.mxu0 0.0
        %2580 = vmatpush1.msra.mxu0 %v2353
        %2581 = vmatprep.subr.mxu0 0.0
        %2582 = vmatpush1.msra.mxu0 %v2352
        %2583 = vmatprep.subr.mxu0 0.0
        %2584 = vmatpush1.msra.mxu0 %v2351
        %2585 = vmatprep.subr.mxu0 0.0
        %2586 = vmatpush1.msra.mxu0 %v2350
        %2587 = vmatprep.subr.mxu0 0.0
        %2588 = vmatpush1.msra.mxu0 %v2349
        %2589 = vmatprep.subr.mxu0 0.0
        %2590 = vmatpush1.msra.mxu0 %v2348
        %2591 = vmatprep.subr.mxu0 0.0
        %2592 = vmatpush1.msra.mxu0 %v2347
        %2593 = vmatprep.subr.mxu0 0.0
        %2594 = vmatpush1.msra.mxu0 %v2346
        %2595 = vmatprep.subr.mxu0 0.0
        %2596 = vmatpush1.msra.mxu0 %v2345
        %2597 = vmatprep.subr.mxu0 0.0
        %2598 = vmatpush1.msra.mxu0 %v2344
        %2599 = vmatprep.subr.mxu0 0.0
        %2600 = vmatpush1.msra.mxu0 %v2343
        %2601 = vmatprep.subr.mxu0 0.0
        %2602 = vmatpush1.msra.mxu0 %v2342
        %2603 = vmatprep.subr.mxu0 0.0
        %2604 = vmatpush1.msra.mxu0 %v2341
        %2605 = vmatprep.subr.mxu0 0.0
        %2606 = vmatpush1.msra.mxu0 %v2340
        %2607 = vmatprep.subr.mxu0 0.0
        %2608 = vmatpush1.msra.mxu0 %v2339
        %2609 = vmatprep.subr.mxu0 0.0
        %2610 = vmatpush1.msra.mxu0 %v2338
        %2611 = vmatprep.subr.mxu0 0.0
        %2612 = vmatpush2.msra.mxu0 0.0
        %2613 = vmatprep.subr.mxu0 0.0
        %2614 = vmatpush2.msra.mxu0 0.0
        %2615 = vmatprep.subr.mxu0 0.0
        %2616 = vmatpush2.msra.mxu0 0.0
        %2617 = vmatprep.subr.mxu0 0.0
        %2618 = vmatpush2.msra.mxu0 0.0
        %2619 = vmatprep.subr.mxu0 0.0
        %2620 = vmatpush2.msra.mxu0 0.0
        %2621 = vmatprep.subr.mxu0 0.0
        %2622 = vmatpush2.msra.mxu0 0.0
        %2623 = vmatprep.subr.mxu0 0.0
        %2624 = vmatpush2.msra.mxu0 0.0
        %2625 = vmatprep.subr.mxu0 0.0
        %2626 = vmatpush2.msra.mxu0 0.0
        %2627 = vmatprep.subr.mxu0 0.0
        %2628 = vmatpush2.msra.mxu0 0.0
        %2629 = vmatprep.subr.mxu0 0.0
        %2630 = vmatpush2.msra.mxu0 0.0
        %2631 = vmatprep.subr.mxu0 0.0
        %2632 = vmatpush2.msra.mxu0 0.0
        %2633 = vmatprep.subr.mxu0 0.0
        %2634 = vmatpush2.msra.mxu0 0.0
        %2635 = vmatprep.subr.mxu0 0.0
        %2636 = vmatpush2.msra.mxu0 0.0
        %2637 = vmatprep.subr.mxu0 0.0
        %2638 = vmatpush2.msra.mxu0 0.0
        %2639 = vmatprep.subr.mxu0 0.0
        %2640 = vmatpush2.msra.mxu0 0.0
        %2641 = vmatprep.subr.mxu0 0.0
        %2642 = vmatpush2.msra.mxu0 0.0
        %2643 = vmatprep.mubr.f32.mxu0 0.0
        %2644 = vmatmul.mubr.f32.gmra.mxu0 %v2179
        %v2645 = vpop.f32.mrf.mxu0
        %v2646 = vadd.f32 %v2421, %v2645
        %v2647 = vpop.f32.mrf.mxu0
        %2648 = vmatprep.mubr.f32.mxu0 0.0
        %2649 = vmatmul.mubr.f32.gmra.mxu0 %v2182
        %v2650 = vpop.f32.mrf.mxu0
        %v2651 = vadd.f32 %v2426, %v2650
        %v2652 = vpop.f32.mrf.mxu0
        %2653 = vmatprep.mubr.f32.mxu0 0.0
        %2654 = vmatmul.mubr.f32.gmra.mxu0 %v2185
        %v2655 = vpop.f32.mrf.mxu0
        %v2656 = vadd.f32 %v2431, %v2655
        %v2657 = vpop.f32.mrf.mxu0
        %2658 = vmatprep.mubr.f32.mxu0 0.0
        %2659 = vmatmul.mubr.f32.gmra.mxu0 %v2188
        %v2660 = vpop.f32.mrf.mxu0
        %v2661 = vadd.f32 %v2436, %v2660
        %v2662 = vpop.f32.mrf.mxu0
        %2663 = vmatprep.mubr.f32.mxu0 0.0
        %2664 = vmatmul.mubr.f32.gmra.mxu0 %v2191
        %v2665 = vpop.f32.mrf.mxu0
        %v2666 = vadd.f32 %v2441, %v2665
        %v2667 = vpop.f32.mrf.mxu0
        %2668 = vmatprep.mubr.f32.mxu0 0.0
        %2669 = vmatmul.mubr.f32.gmra.mxu0 %v2194
        %v2670 = vpop.f32.mrf.mxu0
        %v2671 = vadd.f32 %v2446, %v2670
        %v2672 = vpop.f32.mrf.mxu0
        %2673 = vmatprep.mubr.f32.mxu0 0.0
        %2674 = vmatmul.mubr.f32.gmra.mxu0 %v2197
        %v2675 = vpop.f32.mrf.mxu0
        %v2676 = vadd.f32 %v2451, %v2675
        %v2677 = vpop.f32.mrf.mxu0
        %2678 = vmatprep.mubr.f32.mxu0 0.0
        %2679 = vmatmul.mubr.f32.gmra.mxu0 %v2200
        %v2680 = vpop.f32.mrf.mxu0
        %v2681 = vadd.f32 %v2456, %v2680
        %v2682 = vpop.f32.mrf.mxu0
        %2683 = vmatprep.mubr.f32.mxu0 0.0
        %2684 = vmatmul.mubr.f32.gmra.mxu0 %v2203
        %v2685 = vpop.f32.mrf.mxu0
        %v2686 = vadd.f32 %v2461, %v2685
        %v2687 = vpop.f32.mrf.mxu0
        %2688 = vmatprep.mubr.f32.mxu0 0.0
        %2689 = vmatmul.mubr.f32.gmra.mxu0 %v2206
        %v2690 = vpop.f32.mrf.mxu0
        %v2691 = vadd.f32 %v2466, %v2690
        %v2692 = vpop.f32.mrf.mxu0
        %2693 = vmatprep.mubr.f32.mxu0 0.0
        %2694 = vmatmul.mubr.f32.gmra.mxu0 %v2209
        %v2695 = vpop.f32.mrf.mxu0
        %v2696 = vadd.f32 %v2471, %v2695
        %v2697 = vpop.f32.mrf.mxu0
        %2698 = vmatprep.mubr.f32.mxu0 0.0
        %2699 = vmatmul.mubr.f32.gmra.mxu0 %v2212
        %v2700 = vpop.f32.mrf.mxu0
        %v2701 = vadd.f32 %v2476, %v2700
        %v2702 = vpop.f32.mrf.mxu0
        %2703 = vmatprep.mubr.f32.mxu0 0.0
        %2704 = vmatmul.mubr.f32.gmra.mxu0 %v2215
        %v2705 = vpop.f32.mrf.mxu0
        %v2706 = vadd.f32 %v2481, %v2705
        %v2707 = vpop.f32.mrf.mxu0
        %2708 = vmatprep.mubr.f32.mxu0 0.0
        %2709 = vmatmul.mubr.f32.gmra.mxu0 %v2218
        %v2710 = vpop.f32.mrf.mxu0
        %v2711 = vadd.f32 %v2486, %v2710
        %v2712 = vpop.f32.mrf.mxu0
        %2713 = vmatprep.mubr.f32.mxu0 0.0
        %2714 = vmatmul.mubr.f32.gmra.mxu0 %v2221
        %v2715 = vpop.f32.mrf.mxu0
        %v2716 = vadd.f32 %v2491, %v2715
        %v2717 = vpop.f32.mrf.mxu0
        %2718 = vmatprep.mubr.f32.mxu0 0.0
        %2719 = vmatmul.mubr.f32.gmra.mxu0 %v2224
        %v2720 = vpop.f32.mrf.mxu0
        %v2721 = vadd.f32 %v2496, %v2720
        %v2722 = vpop.f32.mrf.mxu0
        %2723 = vmatprep.mubr.f32.mxu0 0.0
        %2724 = vmatmul.mubr.f32.gmra.mxu0 %v2227
        %v2725 = vpop.f32.mrf.mxu0
        %v2726 = vadd.f32 %v2501, %v2725
        %v2727 = vpop.f32.mrf.mxu0
        %2728 = vmatprep.mubr.f32.mxu0 0.0
        %2729 = vmatmul.mubr.f32.gmra.mxu0 %v2230
        %v2730 = vpop.f32.mrf.mxu0
        %v2731 = vadd.f32 %v2506, %v2730
        %v2732 = vpop.f32.mrf.mxu0
        %2733 = vmatprep.mubr.f32.mxu0 0.0
        %2734 = vmatmul.mubr.f32.gmra.mxu0 %v2233
        %v2735 = vpop.f32.mrf.mxu0
        %v2736 = vadd.f32 %v2511, %v2735
        %v2737 = vpop.f32.mrf.mxu0
        %2738 = vmatprep.mubr.f32.mxu0 0.0
        %2739 = vmatmul.mubr.f32.gmra.mxu0 %v2236
        %v2740 = vpop.f32.mrf.mxu0
        %v2741 = vadd.f32 %v2516, %v2740
        %v2742 = vpop.f32.mrf.mxu0
        %2743 = vmatprep.mubr.f32.mxu0 0.0
        %2744 = vmatmul.mubr.f32.gmra.mxu0 %v2239
        %v2745 = vpop.f32.mrf.mxu0
        %v2746 = vadd.f32 %v2521, %v2745
        %v2747 = vpop.f32.mrf.mxu0
        %2748 = vmatprep.mubr.f32.mxu0 0.0
        %2749 = vmatmul.mubr.f32.gmra.mxu0 %v2242
        %v2750 = vpop.f32.mrf.mxu0
        %v2751 = vadd.f32 %v2526, %v2750
        %v2752 = vpop.f32.mrf.mxu0
        %2753 = vmatprep.mubr.f32.mxu0 0.0
        %2754 = vmatmul.mubr.f32.gmra.mxu0 %v2245
        %v2755 = vpop.f32.mrf.mxu0
        %v2756 = vadd.f32 %v2531, %v2755
        %v2757 = vpop.f32.mrf.mxu0
        %2758 = vmatprep.mubr.f32.mxu0 0.0
        %2759 = vmatmul.mubr.f32.gmra.mxu0 %v2248
        %v2760 = vpop.f32.mrf.mxu0
        %v2761 = vadd.f32 %v2536, %v2760
        %v2762 = vpop.f32.mrf.mxu0
        %2763 = vmatprep.mubr.f32.mxu0 0.0
        %2764 = vmatmul.mubr.f32.gmra.mxu0 %v2251
        %v2765 = vpop.f32.mrf.mxu0
        %v2766 = vadd.f32 %v2541, %v2765
        %v2767 = vpop.f32.mrf.mxu0
        %2768 = vmatprep.mubr.f32.mxu0 0.0
        %2769 = vmatmul.mubr.f32.gmra.mxu0 %v2254
        %v2770 = vpop.f32.mrf.mxu0
        %v2771 = vadd.f32 %v2546, %v2770
        %v2772 = vpop.f32.mrf.mxu0
        %2773 = vmatprep.mubr.f32.mxu0 0.0
        %2774 = vmatmul.mubr.f32.gmra.mxu0 %v2257
        %v2775 = vpop.f32.mrf.mxu0
        %v2776 = vadd.f32 %v2551, %v2775
        %v2777 = vpop.f32.mrf.mxu0
        %2778 = vmatprep.mubr.f32.mxu0 0.0
        %2779 = vmatmul.mubr.f32.gmra.mxu0 %v2260
        %v2780 = vpop.f32.mrf.mxu0
        %v2781 = vadd.f32 %v2556, %v2780
        %v2782 = vpop.f32.mrf.mxu0
        %2783 = vmatprep.mubr.f32.mxu0 0.0
        %2784 = vmatmul.mubr.f32.gmra.mxu0 %v2263
        %v2785 = vpop.f32.mrf.mxu0
        %v2786 = vadd.f32 %v2561, %v2785
        %v2787 = vpop.f32.mrf.mxu0
        %2788 = vmatprep.mubr.f32.mxu0 0.0
        %2789 = vmatmul.mubr.f32.gmra.mxu0 %v2266
        %v2790 = vpop.f32.mrf.mxu0
        %v2791 = vadd.f32 %v2566, %v2790
        %v2792 = vpop.f32.mrf.mxu0
        %2793 = vmatprep.mubr.f32.mxu0 0.0
        %2794 = vmatmul.mubr.f32.gmra.mxu0 %v2269
        %v2795 = vpop.f32.mrf.mxu0
        %v2796 = vadd.f32 %v2571, %v2795
        %v2797 = vpop.f32.mrf.mxu0
        %2798 = vmatprep.mubr.f32.mxu0 0.0
        %2799 = vmatmul.mubr.f32.gmra.mxu0 %v2272
        %v2800 = vpop.f32.mrf.mxu0
        %v2801 = vadd.f32 %v2576, %v2800
        %v2802 = vpop.f32.mrf.mxu0
        %2803 = vdwg.mxu0
        %v2804 = vadd.f32 %v2273, %v2646
        %v2805 = vadd.f32 %v2274, %v2651
        %v2806 = vadd.f32 %v2275, %v2656
        %v2807 = vadd.f32 %v2276, %v2661
        %v2808 = vadd.f32 %v2277, %v2666
        %v2809 = vadd.f32 %v2278, %v2671
        %v2810 = vadd.f32 %v2279, %v2676
        %v2811 = vadd.f32 %v2280, %v2681
        %v2812 = vadd.f32 %v2281, %v2686
        %v2813 = vadd.f32 %v2282, %v2691
        %v2814 = vadd.f32 %v2283, %v2696
        %v2815 = vadd.f32 %v2284, %v2701
        %v2816 = vadd.f32 %v2285, %v2706
        %v2817 = vadd.f32 %v2286, %v2711
        %v2818 = vadd.f32 %v2287, %v2716
        %v2819 = vadd.f32 %v2288, %v2721
        %v2820 = vadd.f32 %v2289, %v2726
        %v2821 = vadd.f32 %v2290, %v2731
        %v2822 = vadd.f32 %v2291, %v2736
        %v2823 = vadd.f32 %v2292, %v2741
        %v2824 = vadd.f32 %v2293, %v2746
        %v2825 = vadd.f32 %v2294, %v2751
        %v2826 = vadd.f32 %v2295, %v2756
        %v2827 = vadd.f32 %v2296, %v2761
        %v2828 = vadd.f32 %v2297, %v2766
        %v2829 = vadd.f32 %v2298, %v2771
        %v2830 = vadd.f32 %v2299, %v2776
        %v2831 = vadd.f32 %v2300, %v2781
        %v2832 = vadd.f32 %v2301, %v2786
        %v2833 = vadd.f32 %v2302, %v2791
        %v2834 = vadd.f32 %v2303, %v2796
        %v2835 = vadd.f32 %v2304, %v2801
        %2836 = vst [vmem:[#allocation3] sm:$0xff] %v2804
        %2837 = vst [vmem:[#allocation3 + $0x8] sm:$0xff] %v2805
        %2838 = vst [vmem:[#allocation3 + $0x10] sm:$0xff] %v2806
        %2839 = vst [vmem:[#allocation3 + $0x18] sm:$0xff] %v2807
        %2840 = vst [vmem:[#allocation3 + $0x20] sm:$0xff] %v2808
        %2841 = vst [vmem:[#allocation3 + $0x28] sm:$0xff] %v2809
        %2842 = vst [vmem:[#allocation3 + $0x30] sm:$0xff] %v2810
        %2843 = vst [vmem:[#allocation3 + $0x38] sm:$0xff] %v2811
        %2844 = vst [vmem:[#allocation3 + $0x40] sm:$0xff] %v2812
        %2845 = vst [vmem:[#allocation3 + $0x48] sm:$0xff] %v2813
        %2846 = vst [vmem:[#allocation3 + $0x50] sm:$0xff] %v2814
        %2847 = vst [vmem:[#allocation3 + $0x58] sm:$0xff] %v2815
        %2848 = vst [vmem:[#allocation3 + $0x60] sm:$0xff] %v2816
        %2849 = vst [vmem:[#allocation3 + $0x68] sm:$0xff] %v2817
        %2850 = vst [vmem:[#allocation3 + $0x70] sm:$0xff] %v2818
        %2851 = vst [vmem:[#allocation3 + $0x78] sm:$0xff] %v2819
        %2852 = vst [vmem:[#allocation3 + $0x80] sm:$0xff] %v2820
        %2853 = vst [vmem:[#allocation3 + $0x88] sm:$0xff] %v2821
        %2854 = vst [vmem:[#allocation3 + $0x90] sm:$0xff] %v2822
        %2855 = vst [vmem:[#allocation3 + $0x98] sm:$0xff] %v2823
        %2856 = vst [vmem:[#allocation3 + $0xa0] sm:$0xff] %v2824
        %2857 = vst [vmem:[#allocation3 + $0xa8] sm:$0xff] %v2825
        %2858 = vst [vmem:[#allocation3 + $0xb0] sm:$0xff] %v2826
        %2859 = vst [vmem:[#allocation3 + $0xb8] sm:$0xff] %v2827
        %2860 = vst [vmem:[#allocation3 + $0xc0] sm:$0xff] %v2828
        %2861 = vst [vmem:[#allocation3 + $0xc8] sm:$0xff] %v2829
        %2862 = vst [vmem:[#allocation3 + $0xd0] sm:$0xff] %v2830
        %2863 = vst [vmem:[#allocation3 + $0xd8] sm:$0xff] %v2831
        %2864 = vst [vmem:[#allocation3 + $0xe0] sm:$0xff] %v2832
        %2865 = vst [vmem:[#allocation3 + $0xe8] sm:$0xff] %v2833
        %2866 = vst [vmem:[#allocation3 + $0xf0] sm:$0xff] %v2834
        %2867 = vst [vmem:[#allocation3 + $0xf8] sm:$0xff] %v2835
        %v2868 = vld [vmem:[#allocation3] sm:$0xff]
        %v2869 = vld [vmem:[#allocation3 + $0x8] sm:$0xff]
        %v2870 = vld [vmem:[#allocation3 + $0x10] sm:$0xff]
        %v2871 = vld [vmem:[#allocation3 + $0x18] sm:$0xff]
        %v2872 = vld [vmem:[#allocation3 + $0x20] sm:$0xff]
        %v2873 = vld [vmem:[#allocation3 + $0x28] sm:$0xff]
        %v2874 = vld [vmem:[#allocation3 + $0x30] sm:$0xff]
        %v2875 = vld [vmem:[#allocation3 + $0x38] sm:$0xff]
        %v2876 = vld [vmem:[#allocation3 + $0x40] sm:$0xff]
        %v2877 = vld [vmem:[#allocation3 + $0x48] sm:$0xff]
        %v2878 = vld [vmem:[#allocation3 + $0x50] sm:$0xff]
        %v2879 = vld [vmem:[#allocation3 + $0x58] sm:$0xff]
        %v2880 = vld [vmem:[#allocation3 + $0x60] sm:$0xff]
        %v2881 = vld [vmem:[#allocation3 + $0x68] sm:$0xff]
        %v2882 = vld [vmem:[#allocation3 + $0x70] sm:$0xff]
        %v2883 = vld [vmem:[#allocation3 + $0x78] sm:$0xff]
        %v2884 = vld [vmem:[#allocation3 + $0x80] sm:$0xff]
        %v2885 = vld [vmem:[#allocation3 + $0x88] sm:$0xff]
        %v2886 = vld [vmem:[#allocation3 + $0x90] sm:$0xff]
        %v2887 = vld [vmem:[#allocation3 + $0x98] sm:$0xff]
        %v2888 = vld [vmem:[#allocation3 + $0xa0] sm:$0xff]
        %v2889 = vld [vmem:[#allocation3 + $0xa8] sm:$0xff]
        %v2890 = vld [vmem:[#allocation3 + $0xb0] sm:$0xff]
        %v2891 = vld [vmem:[#allocation3 + $0xb8] sm:$0xff]
        %v2892 = vld [vmem:[#allocation3 + $0xc0] sm:$0xff]
        %v2893 = vld [vmem:[#allocation3 + $0xc8] sm:$0xff]
        %v2894 = vld [vmem:[#allocation3 + $0xd0] sm:$0xff]
        %v2895 = vld [vmem:[#allocation3 + $0xd8] sm:$0xff]
        %v2896 = vld [vmem:[#allocation3 + $0xe0] sm:$0xff]
        %v2897 = vld [vmem:[#allocation3 + $0xe8] sm:$0xff]
        %v2898 = vld [vmem:[#allocation3 + $0xf0] sm:$0xff]
        %v2899 = vld [vmem:[#allocation3 + $0xf8] sm:$0xff]
        %v2900 = vadd.f32 %v2868, %v2869
        %v2901 = vadd.f32 %v2900, %v2870
        %v2902 = vadd.f32 %v2901, %v2871
        %v2903 = vadd.f32 %v2902, %v2872
        %v2904 = vadd.f32 %v2903, %v2873
        %v2905 = vadd.f32 %v2904, %v2874
        %v2906 = vadd.f32 %v2905, %v2875
        %v2907 = vadd.f32 %v2906, %v2876
        %v2908 = vadd.f32 %v2907, %v2877
        %v2909 = vadd.f32 %v2908, %v2878
        %v2910 = vadd.f32 %v2909, %v2879
        %v2911 = vadd.f32 %v2910, %v2880
        %v2912 = vadd.f32 %v2911, %v2881
        %v2913 = vadd.f32 %v2912, %v2882
        %v2914 = vadd.f32 %v2913, %v2883
        %v2915 = vadd.f32 %v2914, %v2884
        %v2916 = vadd.f32 %v2915, %v2885
        %v2917 = vadd.f32 %v2916, %v2886
        %v2918 = vadd.f32 %v2917, %v2887
        %v2919 = vadd.f32 %v2918, %v2888
        %v2920 = vadd.f32 %v2919, %v2889
        %v2921 = vadd.f32 %v2920, %v2890
        %v2922 = vadd.f32 %v2921, %v2891
        %v2923 = vadd.f32 %v2922, %v2892
        %v2924 = vadd.f32 %v2923, %v2893
        %v2925 = vadd.f32 %v2924, %v2894
        %v2926 = vadd.f32 %v2925, %v2895
        %v2927 = vadd.f32 %v2926, %v2896
        %v2928 = vadd.f32 %v2927, %v2897
        %v2929 = vadd.f32 %v2928, %v2898
        %v2930 = vadd.f32 %v2929, %v2899
        %v2931 = vrot.slane %v2930, 4
        %v2932 = vadd.f32 %v2930, %v2931
        %v2933 = vrot.slane %v2932, 2
        %v2934 = vadd.f32 %v2932, %v2933
        %v2935 = vrot.slane %v2934, 1
        %v2936 = vadd.f32 %v2934, %v2935
        %2937 = vst [vmem:[%s277] sm:$0x1] %v2936
        %v2938 = vmul.f32 %v2868, %v2868
        %v2939 = vmul.f32 %v2869, %v2869
        %v2940 = vmul.f32 %v2870, %v2870
        %v2941 = vmul.f32 %v2871, %v2871
        %v2942 = vmul.f32 %v2872, %v2872
        %v2943 = vmul.f32 %v2873, %v2873
        %v2944 = vmul.f32 %v2874, %v2874
        %v2945 = vmul.f32 %v2875, %v2875
        %v2946 = vmul.f32 %v2876, %v2876
        %v2947 = vmul.f32 %v2877, %v2877
        %v2948 = vmul.f32 %v2878, %v2878
        %v2949 = vmul.f32 %v2879, %v2879
        %v2950 = vmul.f32 %v2880, %v2880
        %v2951 = vmul.f32 %v2881, %v2881
        %v2952 = vmul.f32 %v2882, %v2882
        %v2953 = vmul.f32 %v2883, %v2883
        %v2954 = vmul.f32 %v2884, %v2884
        %v2955 = vmul.f32 %v2885, %v2885
        %v2956 = vmul.f32 %v2886, %v2886
        %v2957 = vmul.f32 %v2887, %v2887
        %v2958 = vmul.f32 %v2888, %v2888
        %v2959 = vmul.f32 %v2889, %v2889
        %v2960 = vmul.f32 %v2890, %v2890
        %v2961 = vmul.f32 %v2891, %v2891
        %v2962 = vmul.f32 %v2892, %v2892
        %v2963 = vmul.f32 %v2893, %v2893
        %v2964 = vmul.f32 %v2894, %v2894
        %v2965 = vmul.f32 %v2895, %v2895
        %v2966 = vmul.f32 %v2896, %v2896
        %v2967 = vmul.f32 %v2897, %v2897
        %v2968 = vmul.f32 %v2898, %v2898
        %v2969 = vmul.f32 %v2899, %v2899
        %v2970 = vadd.f32 %v2938, %v2939
        %v2971 = vadd.f32 %v2970, %v2940
        %v2972 = vadd.f32 %v2971, %v2941
        %v2973 = vadd.f32 %v2972, %v2942
        %v2974 = vadd.f32 %v2973, %v2943
        %v2975 = vadd.f32 %v2974, %v2944
        %v2976 = vadd.f32 %v2975, %v2945
        %v2977 = vadd.f32 %v2976, %v2946
        %v2978 = vadd.f32 %v2977, %v2947
        %v2979 = vadd.f32 %v2978, %v2948
        %v2980 = vadd.f32 %v2979, %v2949
        %v2981 = vadd.f32 %v2980, %v2950
        %v2982 = vadd.f32 %v2981, %v2951
        %v2983 = vadd.f32 %v2982, %v2952
        %v2984 = vadd.f32 %v2983, %v2953
        %v2985 = vadd.f32 %v2984, %v2954
        %v2986 = vadd.f32 %v2985, %v2955
        %v2987 = vadd.f32 %v2986, %v2956
        %v2988 = vadd.f32 %v2987, %v2957
        %v2989 = vadd.f32 %v2988, %v2958
        %v2990 = vadd.f32 %v2989, %v2959
        %v2991 = vadd.f32 %v2990, %v2960
        %v2992 = vadd.f32 %v2991, %v2961
        %v2993 = vadd.f32 %v2992, %v2962
        %v2994 = vadd.f32 %v2993, %v2963
        %v2995 = vadd.f32 %v2994, %v2964
        %v2996 = vadd.f32 %v2995, %v2965
        %v2997 = vadd.f32 %v2996, %v2966
        %v2998 = vadd.f32 %v2997, %v2967
        %v2999 = vadd.f32 %v2998, %v2968
        %v3000 = vadd.f32 %v2999, %v2969
        %v3001 = vrot.slane %v3000, 4
        %v3002 = vadd.f32 %v3000, %v3001
        %v3003 = vrot.slane %v3002, 2
        %v3004 = vadd.f32 %v3002, %v3003
        %v3005 = vrot.slane %v3004, 1
        %v3006 = vadd.f32 %v3004, %v3005
        %3007 = vst [vmem:[%s277 + $0x1] sm:$0x1] %v3006
        %3008 = vst [vmem:[%s273] sm:$0xff] %v2868
        %3009 = vst [vmem:[%s273 + $0x8] sm:$0xff] %v2869
        %3010 = vst [vmem:[%s273 + $0x10] sm:$0xff] %v2870
        %3011 = vst [vmem:[%s273 + $0x18] sm:$0xff] %v2871
        %3012 = vst [vmem:[%s273 + $0x20] sm:$0xff] %v2872
        %3013 = vst [vmem:[%s273 + $0x28] sm:$0xff] %v2873
        %3014 = vst [vmem:[%s273 + $0x30] sm:$0xff] %v2874
        %3015 = vst [vmem:[%s273 + $0x38] sm:$0xff] %v2875
        %3016 = vst [vmem:[%s273 + $0x40] sm:$0xff] %v2876
        %3017 = vst [vmem:[%s273 + $0x48] sm:$0xff] %v2877
        %3018 = vst [vmem:[%s273 + $0x50] sm:$0xff] %v2878
        %3019 = vst [vmem:[%s273 + $0x58] sm:$0xff] %v2879
        %3020 = vst [vmem:[%s273 + $0x60] sm:$0xff] %v2880
        %3021 = vst [vmem:[%s273 + $0x68] sm:$0xff] %v2881
        %3022 = vst [vmem:[%s273 + $0x70] sm:$0xff] %v2882
        %3023 = vst [vmem:[%s273 + $0x78] sm:$0xff] %v2883
        %3024 = vst [vmem:[%s273 + $0x80] sm:$0xff] %v2884
        %3025 = vst [vmem:[%s273 + $0x88] sm:$0xff] %v2885
        %3026 = vst [vmem:[%s273 + $0x90] sm:$0xff] %v2886
        %3027 = vst [vmem:[%s273 + $0x98] sm:$0xff] %v2887
        %3028 = vst [vmem:[%s273 + $0xa0] sm:$0xff] %v2888
        %3029 = vst [vmem:[%s273 + $0xa8] sm:$0xff] %v2889
        %3030 = vst [vmem:[%s273 + $0xb0] sm:$0xff] %v2890
        %3031 = vst [vmem:[%s273 + $0xb8] sm:$0xff] %v2891
        %3032 = vst [vmem:[%s273 + $0xc0] sm:$0xff] %v2892
        %3033 = vst [vmem:[%s273 + $0xc8] sm:$0xff] %v2893
        %3034 = vst [vmem:[%s273 + $0xd0] sm:$0xff] %v2894
        %3035 = vst [vmem:[%s273 + $0xd8] sm:$0xff] %v2895
        %3036 = vst [vmem:[%s273 + $0xe0] sm:$0xff] %v2896
        %3037 = vst [vmem:[%s273 + $0xe8] sm:$0xff] %v2897
        %3038 = vst [vmem:[%s273 + $0xf0] sm:$0xff] %v2898
        %3039 = vst [vmem:[%s273 + $0xf8] sm:$0xff] %v2899
        %p3040 = scmp.lt.s32.totalorder %s19, 3
        %s3041 = scalar_select %p3040, %s19, 3
        %s3042 = smul.addr %s3041, 32
        %s3043 = smul.addr %s3042, 8
        %s3044 = scalar_lea.vmem %s5, %s3043
        %p3045 = scmp.lt.s32.totalorder %s19, 3
        %s3046 = scalar_select %p3045, %s19, 3
        %s3047 = smul.addr %s3046, 2
        %s3048 = scalar_lea.vmem %s6, %s3047
        // Predicated region
        $region45: #{block_forward.2} parent=39 // pred_check
          %p3049 = pneg %p147
        $region46: #{block_forward.2} parent=39 // pred_check_branch
          %3051 = sbr.rel (%p3049) target = $region48
        $region47: #{block_forward.2} parent=39 // pred_region
          _
        $region48: #{block_forward.2} parent=39 // pred_fallthru
          _
        // Predicated region
        $region49: #{block_forward.2} parent=39 // pred_check
          %p3052 = pneg %p173
        $region50: #{block_forward.2} parent=39 // pred_check_branch
          %3054 = sbr.rel (%p3052) target = $region52
        $region51: #{block_forward.2} parent=39 // pred_region
          _
        $region52: #{block_forward.2} parent=39 // pred_fallthru
          _
      $region40: #{block_forward.2} parent=5 // pred_fallthru
        _
      %p3055 = scmp.le.s32.totalorder 2, %s14
      // Predicated region
      $region53: #{block_forward.2} parent=5 // pred_check
        %p3056 = pneg %p3055
      $region54: #{block_forward.2} parent=5 // pred_check_branch
        %3058 = sbr.rel (%p3056) target = $region56
      $region55: #{block_forward.2} parent=5 // pred_region
        %s3059 = ssub.s32 %s14, 2
        // Predicated region
        $region57: #{block_forward.2} parent=55 // pred_check
          %p3060 = pneg %p153
        $region58: #{block_forward.2} parent=55 // pred_check_branch
          %3062 = sbr.rel (%p3060) target = $region60
        $region59: #{block_forward.2} parent=55 // pred_region
          %p3063 = scmp.lt.s32.totalorder %s20, 3
          %s3064 = scalar_select %p3063, %s20, 3
          %s3065 = smul.addr %s3064, 32
          %s3066 = smul.addr %s3065, 8
          %s3067 = scalar_lea.vmem %s5, %s3066
        $region60: #{block_forward.2} parent=55 // pred_fallthru
          _
        // Predicated region
        $region61: #{block_forward.2} parent=55 // pred_check
          %p3068 = pneg %p179
        $region62: #{block_forward.2} parent=55 // pred_check_branch
          %3070 = sbr.rel (%p3068) target = $region64
        $region63: #{block_forward.2} parent=55 // pred_region
          %p3071 = scmp.lt.s32.totalorder %s20, 3
          %s3072 = scalar_select %p3071, %s20, 3
          %s3073 = smul.addr %s3072, 2
          %s3074 = scalar_lea.vmem %s6, %s3073
        $region64: #{block_forward.2} parent=55 // pred_fallthru
          _
      $region56: #{block_forward.2} parent=5 // pred_fallthru
        _
    $region6: #{block_forward.2} parent=1 // loop_footer
      %s18 = sadd.s32 1, %s14
    $region7: #{block_forward.2} parent=1 // loop_footer_branch
      %13 = sbr.rel target = $region3
    $region8: #{block_forward.2} parent=1 // loop_exit
      _
    %3075 = vsyncpa [#allocation5], 1
    %s3076 = scalar_lea.sflag [#allocation5], 1
    %3077 = vsyncpa %s3076, 1

// kernel: block_forward.3
$region0: #{block_forward.3}
  #allocation0 [shape = 'u32[]', space=smem, size = 0x4, offset = 0x4, fixed_abs, tag = 'smem constant byte address 0x4 - core index']
  #allocation1 [shape = 'u32[144,128]{1,0:T(1,128)}', space=vmem, size = 0x12000, scoped, tag = 'internal scratch']
  #allocation2 [shape = 'f32[1,18,16,384]{3,2,1,0:T(8,128)}', space=vmem, size = 0x6c000, scoped, tag = 'scratch operand']
  #allocation3 [shape = 'f32[256,128]{1,0:T(8,128)}', space=vmem, size = 0x20000, scoped, tag = 'scratch operand']
  %s0 = inlined_call_operand.vmem [shape: f32[4,16,16,128], index: 0, kind: input, shape index: {}]
  %s1 = inlined_call_operand.vmem [shape: f32[1,1,128], index: 1, kind: input, shape index: {}]
  %s2 = inlined_call_operand.vmem [shape: f32[1,1,128], index: 2, kind: input, shape index: {}]
  %s3 = inlined_call_operand.vmem [shape: f32[3,384,128], index: 3, kind: input, shape index: {}]
  %s4 = inlined_call_operand.vmem [shape: f32[1,1,128], index: 4, kind: input, shape index: {}]
  %s5 = inlined_call_operand.vmem [shape: f32[4,16,16,128], index: 5, kind: input, shape index: {}]
  %s6 = inlined_call_operand.hbm [shape: f32[4,16,16,128], index: 6, kind: output, shape index: {}]
  %s7 = sld [smem:[#allocation0]]
  $region57: #{block_forward.3} parent=0
    _
  %s9 = ssub.s32 1, %s7
  %s10 = scalar_select 0, %s9, %s7
  $region1: #{block_forward.3} parent=0
    #allocation4 [shape = 'u8[262144]{0}', space=vmem, size = 0x40000, scoped, tag = 'output window, operand 0']
    #allocation5 [shape = 's32[2]{0}', space=sflag, size = 0x8, scoped, tag = 'scoped memory for block_forward.3']
    %11 = vsyncpa [#allocation5], 0
    %s12 = scalar_lea.sflag [#allocation5], 1
    %13 = vsyncpa %s12, 0
    loop: start=0, step=1, limit=6
    $region2: #{block_forward.3} parent=1 // loop_pre_header
      _
    $region3: #{block_forward.3} parent=1 // loop_header
      %s15 = sphi 0, %s19
      %p16 = scmp.ge.s32.totalorder %s15, 6
      %s25 = sphi 0, %s27
      %s28 = sphi 0, %s25
      %s29 = sphi 0, %s28
      %s45 = sphi 0, %s29
      %s49 = sphi 0, %s49
      %s51 = sphi 0, %s49
      %s52 = sphi 0, %s51
      %s66 = sphi 0, %s52
      %s70 = sphi 0, %s70
      %s72 = sphi 0, %s70
      %s73 = sphi 0, %s72
      %s87 = sphi 0, %s73
      %s91 = sphi 0, %s91
      %s93 = sphi 0, %s91
      %s94 = sphi 0, %s93
      %s108 = sphi 0, %s94
      %s112 = sphi 0, %s112
      %s114 = sphi 0, %s112
      %s115 = sphi 0, %s114
      %s129 = sphi 0, %s115
      %s135 = sphi 0, %s137
      %s138 = sphi 0, %s135
      %s139 = sphi 0, %s138
      %s155 = sphi 0, %s139
      %s161 = sphi 0, %s163
      %s164 = sphi 0, %s161
      %s165 = sphi 0, %s164
      %s181 = sphi 0, %s165
    $region4: #{block_forward.3} parent=1 // loop_header_branch
      %18 = sbr.rel (%p16) target = $region8
    $region5: #{block_forward.3} parent=1 // loop_body
      %s20 = ssub.s32 %s15, 1
      %s21 = ssub.s32 %s15, 2
      %s22 = sadd.s32 %s15, 1
      %s23 = ssub.s32 %s15, %s22
      %p24 = scmp.eq.s32.totalorder %s23, 0
      %s26 = sadd.s32 %s25, 1
      %s27 = scalar_select %p24, %s25, %s26
      %p30 = pneg %p24
      %p31 = scmp.eq.s32.totalorder %s15, 3
      %p32 = por %p30, %p31
      %p33 = scmp.ne.s32.totalorder %s25, %s28
      %p34 = scmp.eq.s32.totalorder %s15, 0
      %p35 = por %p33, %p34
      %p36 = scmp.ne.s32.totalorder %s25, %s28
      %p37 = scmp.eq.s32.totalorder %s20, 3
      %p38 = por %p36, %p37
      %p39 = scmp.ne.s32.totalorder %s28, %s29
      %p40 = scmp.eq.s32.totalorder %s20, 0
      %p41 = por %p39, %p40
      %p42 = scmp.ne.s32.totalorder %s28, %s29
      %p43 = scmp.eq.s32.totalorder %s21, 3
      %p44 = por %p42, %p43
      %p46 = scmp.ne.s32.totalorder %s29, %s45
      %p47 = scmp.eq.s32.totalorder %s21, 0
      %p48 = por %p46, %p47
      %s50 = sadd.s32 %s49, 1
      %p53 = scmp.eq.s32.totalorder %s15, 3
      %p54 = scmp.ne.s32.totalorder %s49, %s51
      %p55 = scmp.eq.s32.totalorder %s15, 0
      %p56 = por %p54, %p55
      %p57 = scmp.ne.s32.totalorder %s49, %s51
      %p58 = scmp.eq.s32.totalorder %s20, 3
      %p59 = por %p57, %p58
      %p60 = scmp.ne.s32.totalorder %s51, %s52
      %p61 = scmp.eq.s32.totalorder %s20, 0
      %p62 = por %p60, %p61
      %p63 = scmp.ne.s32.totalorder %s51, %s52
      %p64 = scmp.eq.s32.totalorder %s21, 3
      %p65 = por %p63, %p64
      %p67 = scmp.ne.s32.totalorder %s52, %s66
      %p68 = scmp.eq.s32.totalorder %s21, 0
      %p69 = por %p67, %p68
      %s71 = sadd.s32 %s70, 1
      %p74 = scmp.eq.s32.totalorder %s15, 3
      %p75 = scmp.ne.s32.totalorder %s70, %s72
      %p76 = scmp.eq.s32.totalorder %s15, 0
      %p77 = por %p75, %p76
      %p78 = scmp.ne.s32.totalorder %s70, %s72
      %p79 = scmp.eq.s32.totalorder %s20, 3
      %p80 = por %p78, %p79
      %p81 = scmp.ne.s32.totalorder %s72, %s73
      %p82 = scmp.eq.s32.totalorder %s20, 0
      %p83 = por %p81, %p82
      %p84 = scmp.ne.s32.totalorder %s72, %s73
      %p85 = scmp.eq.s32.totalorder %s21, 3
      %p86 = por %p84, %p85
      %p88 = scmp.ne.s32.totalorder %s73, %s87
      %p89 = scmp.eq.s32.totalorder %s21, 0
      %p90 = por %p88, %p89
      %s92 = sadd.s32 %s91, 1
      %p95 = scmp.eq.s32.totalorder %s15, 3
      %p96 = scmp.ne.s32.totalorder %s91, %s93
      %p97 = scmp.eq.s32.totalorder %s15, 0
      %p98 = por %p96, %p97
      %p99 = scmp.ne.s32.totalorder %s91, %s93
      %p100 = scmp.eq.s32.totalorder %s20, 3
      %p101 = por %p99, %p100
      %p102 = scmp.ne.s32.totalorder %s93, %s94
      %p103 = scmp.eq.s32.totalorder %s20, 0
      %p104 = por %p102, %p103
      %p105 = scmp.ne.s32.totalorder %s93, %s94
      %p106 = scmp.eq.s32.totalorder %s21, 3
      %p107 = por %p105, %p106
      %p109 = scmp.ne.s32.totalorder %s94, %s108
      %p110 = scmp.eq.s32.totalorder %s21, 0
      %p111 = por %p109, %p110
      %s113 = sadd.s32 %s112, 1
      %p116 = scmp.eq.s32.totalorder %s15, 3
      %p117 = scmp.ne.s32.totalorder %s112, %s114
      %p118 = scmp.eq.s32.totalorder %s15, 0
      %p119 = por %p117, %p118
      %p120 = scmp.ne.s32.totalorder %s112, %s114
      %p121 = scmp.eq.s32.totalorder %s20, 3
      %p122 = por %p120, %p121
      %p123 = scmp.ne.s32.totalorder %s114, %s115
      %p124 = scmp.eq.s32.totalorder %s20, 0
      %p125 = por %p123, %p124
      %p126 = scmp.ne.s32.totalorder %s114, %s115
      %p127 = scmp.eq.s32.totalorder %s21, 3
      %p128 = por %p126, %p127
      %p130 = scmp.ne.s32.totalorder %s115, %s129
      %p131 = scmp.eq.s32.totalorder %s21, 0
      %p132 = por %p130, %p131
      %s133 = ssub.s32 %s15, %s22
      %p134 = scmp.eq.s32.totalorder %s133, 0
      %s136 = sadd.s32 %s135, 1
      %s137 = scalar_select %p134, %s135, %s136
      %p140 = pneg %p134
      %p141 = scmp.eq.s32.totalorder %s15, 3
      %p142 = por %p140, %p141
      %p143 = scmp.ne.s32.totalorder %s135, %s138
      %p144 = scmp.eq.s32.totalorder %s15, 0
      %p145 = por %p143, %p144
      %p146 = scmp.ne.s32.totalorder %s135, %s138
      %p147 = scmp.eq.s32.totalorder %s20, 3
      %p148 = por %p146, %p147
      %p149 = scmp.ne.s32.totalorder %s138, %s139
      %p150 = scmp.eq.s32.totalorder %s20, 0
      %p151 = por %p149, %p150
      %p152 = scmp.ne.s32.totalorder %s138, %s139
      %p153 = scmp.eq.s32.totalorder %s21, 3
      %p154 = por %p152, %p153
      %p156 = scmp.ne.s32.totalorder %s139, %s155
      %p157 = scmp.eq.s32.totalorder %s21, 0
      %p158 = por %p156, %p157
      %s159 = ssub.s32 %s15, %s22
      %p160 = scmp.eq.s32.totalorder %s159, 0
      %s162 = sadd.s32 %s161, 1
      %s163 = scalar_select %p160, %s161, %s162
      %p166 = pneg %p160
      %p167 = scmp.eq.s32.totalorder %s15, 3
      %p168 = por %p166, %p167
      %p169 = scmp.ne.s32.totalorder %s161, %s164
      %p170 = scmp.eq.s32.totalorder %s15, 0
      %p171 = por %p169, %p170
      %p172 = scmp.ne.s32.totalorder %s161, %s164
      %p173 = scmp.eq.s32.totalorder %s20, 3
      %p174 = por %p172, %p173
      %p175 = scmp.ne.s32.totalorder %s164, %s165
      %p176 = scmp.eq.s32.totalorder %s20, 0
      %p177 = por %p175, %p176
      %p178 = scmp.ne.s32.totalorder %s164, %s165
      %p179 = scmp.eq.s32.totalorder %s21, 3
      %p180 = por %p178, %p179
      %p182 = scmp.ne.s32.totalorder %s165, %s181
      %p183 = scmp.eq.s32.totalorder %s21, 0
      %p184 = por %p182, %p183
      %p185 = scmp.le.s32.totalorder 1, %s15
      %p186 = scmp.lt.s32.totalorder %s15, 5
      %p187 = pnand %p185, %p186
      %p188 = pneg %p187
      // Predicated region
      $region9: #{block_forward.3} parent=5 // pred_check
        _
      $region10: #{block_forward.3} parent=5 // pred_check_branch
        %190 = sbr.rel (%p187) target = $region12
      $region11: #{block_forward.3} parent=5 // pred_region
        %s191 = ssub.s32 %s15, 1
        // Predicated region
        $region13: #{block_forward.3} parent=11 // pred_check
          %p192 = pneg %p62
        $region14: #{block_forward.3} parent=11 // pred_check_branch
          %194 = sbr.rel (%p192) target = $region16
        $region15: #{block_forward.3} parent=11 // pred_region
          _
        $region16: #{block_forward.3} parent=11 // pred_fallthru
          _
        // Predicated region
        $region17: #{block_forward.3} parent=11 // pred_check
          %p195 = pneg %p83
        $region18: #{block_forward.3} parent=11 // pred_check_branch
          %197 = sbr.rel (%p195) target = $region20
        $region19: #{block_forward.3} parent=11 // pred_region
          _
        $region20: #{block_forward.3} parent=11 // pred_fallthru
          _
        // Predicated region
        $region21: #{block_forward.3} parent=11 // pred_check
          %p198 = pneg %p104
        $region22: #{block_forward.3} parent=11 // pred_check_branch
          %200 = sbr.rel (%p198) target = $region24
        $region23: #{block_forward.3} parent=11 // pred_region
          _
        $region24: #{block_forward.3} parent=11 // pred_fallthru
          _
        // Predicated region
        $region25: #{block_forward.3} parent=11 // pred_check
          %p201 = pneg %p125
        $region26: #{block_forward.3} parent=11 // pred_check_branch
          %203 = sbr.rel (%p201) target = $region28
        $region27: #{block_forward.3} parent=11 // pred_region
          _
        $region28: #{block_forward.3} parent=11 // pred_fallthru
          _
      $region12: #{block_forward.3} parent=5 // pred_fallthru
        _
      %p204 = scmp.lt.s32.totalorder %s15, 4
      // Predicated region
      $region29: #{block_forward.3} parent=5 // pred_check
        %p205 = pneg %p204
      $region30: #{block_forward.3} parent=5 // pred_check_branch
        %207 = sbr.rel (%p205) target = $region32
      $region31: #{block_forward.3} parent=5 // pred_region
        // Predicated region
        $region33: #{block_forward.3} parent=31 // pred_check
          %p208 = pneg %p35
        $region34: #{block_forward.3} parent=31 // pred_check_branch
          %210 = sbr.rel (%p208) target = $region36
        $region35: #{block_forward.3} parent=31 // pred_region
          %p211 = scmp.lt.s32.totalorder %s15, 3
          %s212 = scalar_select %p211, %s15, 3
          %s213 = smul.addr %s212, 32
          %s214 = smul.addr %s213, 8
          %s215 = scalar_lea.vmem %s0, %s214
        $region36: #{block_forward.3} parent=31 // pred_fallthru
          _
        // Predicated region
        $region37: #{block_forward.3} parent=31 // pred_check
          %p216 = pneg %p145
        $region38: #{block_forward.3} parent=31 // pred_check_branch
          %218 = sbr.rel (%p216) target = $region40
        $region39: #{block_forward.3} parent=31 // pred_region
          %p219 = scmp.lt.s32.totalorder %s15, 3
          %s220 = scalar_select %p219, %s15, 3
          %s221 = smul.addr %s220, 32
          %s222 = smul.addr %s221, 8
          %s223 = scalar_lea.vmem %s5, %s222
        $region40: #{block_forward.3} parent=31 // pred_fallthru
          _
      $region32: #{block_forward.3} parent=5 // pred_fallthru
        _
      %p224 = scmp.le.s32.totalorder 1, %s15
      %p225 = scmp.lt.s32.totalorder %s15, 5
      %p226 = pnand %p224, %p225
      %p227 = pneg %p226
      // Predicated region
      $region41: #{block_forward.3} parent=5 // pred_check
        _
      $region42: #{block_forward.3} parent=5 // pred_check_branch
        %229 = sbr.rel (%p226) target = $region44
      $region43: #{block_forward.3} parent=5 // pred_region
        %s230 = ssub.s32 %s15, 1
        %p231 = scmp.lt.s32.totalorder %s20, 3
        %s232 = scalar_select %p231, %s20, 3
        %s233 = smul.addr %s232, 32
        %s234 = smul.addr %s233, 8
        %s235 = scalar_lea.vmem %s0, %s234
        %p236 = pneg %p41
        %p237 = pneg %p38
        %p238 = pneg %p62
        %p239 = pneg %p59
        %p240 = pneg %p83
        %p241 = pneg %p80
        %p242 = pneg %p104
        %p243 = pneg %p101
        %p244 = pneg %p125
        %p245 = pneg %p122
        %p246 = scmp.lt.s32.totalorder %s20, 3
        %s247 = scalar_select %p246, %s20, 3
        %s248 = smul.addr %s247, 32
        %s249 = smul.addr %s248, 8
        %s250 = scalar_lea.vmem %s5, %s249
        %p251 = pneg %p151
        %p252 = pneg %p148
        %p253 = pneg %p177
        %p254 = pneg %p174
        %s255 = sand.u32 %s164, 1
        %s256 = scalar_lea.sflag [#allocation5], %s255
        %s257 = sand.u32 %s164, 1
        %s258 = smul.addr %s257, 256
        %s259 = scalar_lea.vmem [#allocation4], %s258
        %p260 = scmp.lt.s32.totalorder %s20, 3
        %s261 = scalar_select %p260, %s20, 3
        %s262 = smul.addr %s261, 32
        %s263 = smul.addr %s262, 8
        %s264 = scalar_lea.vmem %s0, %s263
        %p265 = scmp.lt.s32.totalorder %s20, 3
        %s266 = scalar_select %p265, %s20, 3
        %s267 = smul.addr %s266, 32
        %s268 = smul.addr %s267, 8
        %s269 = scalar_lea.vmem %s5, %s268
        %v270 = vld [vmem:[%s264] sm:$0xff]
        %v271 = vld [vmem:[%s264 + $0x8] sm:$0xff]
        %v272 = vld [vmem:[%s264 + $0x10] sm:$0xff]
        %v273 = vld [vmem:[%s264 + $0x18] sm:$0xff]
        %v274 = vld [vmem:[%s264 + $0x20] sm:$0xff]
        %v275 = vld [vmem:[%s264 + $0x28] sm:$0xff]
        %v276 = vld [vmem:[%s264 + $0x30] sm:$0xff]
        %v277 = vld [vmem:[%s264 + $0x38] sm:$0xff]
        %v278 = vld [vmem:[%s264 + $0x40] sm:$0xff]
        %v279 = vld [vmem:[%s264 + $0x48] sm:$0xff]
        %v280 = vld [vmem:[%s264 + $0x50] sm:$0xff]
        %v281 = vld [vmem:[%s264 + $0x58] sm:$0xff]
        %v282 = vld [vmem:[%s264 + $0x60] sm:$0xff]
        %v283 = vld [vmem:[%s264 + $0x68] sm:$0xff]
        %v284 = vld [vmem:[%s264 + $0x70] sm:$0xff]
        %v285 = vld [vmem:[%s264 + $0x78] sm:$0xff]
        %v286 = vld [vmem:[%s264 + $0x80] sm:$0xff]
        %v287 = vld [vmem:[%s264 + $0x88] sm:$0xff]
        %v288 = vld [vmem:[%s264 + $0x90] sm:$0xff]
        %v289 = vld [vmem:[%s264 + $0x98] sm:$0xff]
        %v290 = vld [vmem:[%s264 + $0xa0] sm:$0xff]
        %v291 = vld [vmem:[%s264 + $0xa8] sm:$0xff]
        %v292 = vld [vmem:[%s264 + $0xb0] sm:$0xff]
        %v293 = vld [vmem:[%s264 + $0xb8] sm:$0xff]
        %v294 = vld [vmem:[%s264 + $0xc0] sm:$0xff]
        %v295 = vld [vmem:[%s264 + $0xc8] sm:$0xff]
        %v296 = vld [vmem:[%s264 + $0xd0] sm:$0xff]
        %v297 = vld [vmem:[%s264 + $0xd8] sm:$0xff]
        %v298 = vld [vmem:[%s264 + $0xe0] sm:$0xff]
        %v299 = vld [vmem:[%s264 + $0xe8] sm:$0xff]
        %v300 = vld [vmem:[%s264 + $0xf0] sm:$0xff]
        %v301 = vld [vmem:[%s264 + $0xf8] sm:$0xff]
        %v302 = vld [vmem:[%s1] sm:$0x1]
        %v304 = vlaneseq
        %v305 = vshrl.u32 %v304, 7
        %v306 = vsub.s32 0, %v305
        %v307 = vrot.slane %v302, %v306
        %v309 = vmul.f32 %v270, %v307
        %v310 = vmul.f32 %v271, %v307
        %v311 = vmul.f32 %v272, %v307
        %v312 = vmul.f32 %v273, %v307
        %v313 = vmul.f32 %v274, %v307
        %v314 = vmul.f32 %v275, %v307
        %v315 = vmul.f32 %v276, %v307
        %v316 = vmul.f32 %v277, %v307
        %v317 = vmul.f32 %v278, %v307
        %v318 = vmul.f32 %v279, %v307
        %v319 = vmul.f32 %v280, %v307
        %v320 = vmul.f32 %v281, %v307
        %v321 = vmul.f32 %v282, %v307
        %v322 = vmul.f32 %v283, %v307
        %v323 = vmul.f32 %v284, %v307
        %v324 = vmul.f32 %v285, %v307
        %v325 = vmul.f32 %v286, %v307
        %v326 = vmul.f32 %v287, %v307
        %v327 = vmul.f32 %v288, %v307
        %v328 = vmul.f32 %v289, %v307
        %v329 = vmul.f32 %v290, %v307
        %v330 = vmul.f32 %v291, %v307
        %v331 = vmul.f32 %v292, %v307
        %v332 = vmul.f32 %v293, %v307
        %v333 = vmul.f32 %v294, %v307
        %v334 = vmul.f32 %v295, %v307
        %v335 = vmul.f32 %v296, %v307
        %v336 = vmul.f32 %v297, %v307
        %v337 = vmul.f32 %v298, %v307
        %v338 = vmul.f32 %v299, %v307
        %v339 = vmul.f32 %v300, %v307
        %v340 = vmul.f32 %v301, %v307
        %v341 = vld [vmem:[%s2] sm:$0x1]
        %v343 = vlaneseq
        %v344 = vshrl.u32 %v343, 7
        %v345 = vsub.s32 0, %v344
        %v346 = vrot.slane %v341, %v345
        %v348 = vadd.f32 %v309, %v346
        %v349 = vadd.f32 %v310, %v346
        %v350 = vadd.f32 %v311, %v346
        %v351 = vadd.f32 %v312, %v346
        %v352 = vadd.f32 %v313, %v346
        %v353 = vadd.f32 %v314, %v346
        %v354 = vadd.f32 %v315, %v346
        %v355 = vadd.f32 %v316, %v346
        %v356 = vadd.f32 %v317, %v346
        %v357 = vadd.f32 %v318, %v346
        %v358 = vadd.f32 %v319, %v346
        %v359 = vadd.f32 %v320, %v346
        %v360 = vadd.f32 %v321, %v346
        %v361 = vadd.f32 %v322, %v346
        %v362 = vadd.f32 %v323, %v346
        %v363 = vadd.f32 %v324, %v346
        %v364 = vadd.f32 %v325, %v346
        %v365 = vadd.f32 %v326, %v346
        %v366 = vadd.f32 %v327, %v346
        %v367 = vadd.f32 %v328, %v346
        %v368 = vadd.f32 %v329, %v346
        %v369 = vadd.f32 %v330, %v346
        %v370 = vadd.f32 %v331, %v346
        %v371 = vadd.f32 %v332, %v346
        %v372 = vadd.f32 %v333, %v346
        %v373 = vadd.f32 %v334, %v346
        %v374 = vadd.f32 %v335, %v346
        %v375 = vadd.f32 %v336, %v346
        %v376 = vadd.f32 %v337, %v346
        %v377 = vadd.f32 %v338, %v346
        %v378 = vadd.f32 %v339, %v346
        %v379 = vadd.f32 %v340, %v346
        %v380 = vmax.f32 %v348, 0.0
        %v381 = vmax.f32 %v349, 0.0
        %v382 = vmax.f32 %v350, 0.0
        %v383 = vmax.f32 %v351, 0.0
        %v384 = vmax.f32 %v352, 0.0
        %v385 = vmax.f32 %v353, 0.0
        %v386 = vmax.f32 %v354, 0.0
        %v387 = vmax.f32 %v355, 0.0
        %v388 = vmax.f32 %v356, 0.0
        %v389 = vmax.f32 %v357, 0.0
        %v390 = vmax.f32 %v358, 0.0
        %v391 = vmax.f32 %v359, 0.0
        %v392 = vmax.f32 %v360, 0.0
        %v393 = vmax.f32 %v361, 0.0
        %v394 = vmax.f32 %v362, 0.0
        %v395 = vmax.f32 %v363, 0.0
        %v396 = vmax.f32 %v364, 0.0
        %v397 = vmax.f32 %v365, 0.0
        %v398 = vmax.f32 %v366, 0.0
        %v399 = vmax.f32 %v367, 0.0
        %v400 = vmax.f32 %v368, 0.0
        %v401 = vmax.f32 %v369, 0.0
        %v402 = vmax.f32 %v370, 0.0
        %v403 = vmax.f32 %v371, 0.0
        %v404 = vmax.f32 %v372, 0.0
        %v405 = vmax.f32 %v373, 0.0
        %v406 = vmax.f32 %v374, 0.0
        %v407 = vmax.f32 %v375, 0.0
        %v408 = vmax.f32 %v376, 0.0
        %v409 = vmax.f32 %v377, 0.0
        %v410 = vmax.f32 %v378, 0.0
        %v411 = vmax.f32 %v379, 0.0
        %412 = vst [vmem:[#allocation2] sm:$0xff] 0.0
        %413 = vst [vmem:[#allocation2 + $0x8] sm:$0xff] 0.0
        %414 = vst [vmem:[#allocation2 + $0x10] sm:$0xff] 0.0
        %415 = vst [vmem:[#allocation2 + $0x18] sm:$0xff] 0.0
        %416 = vst [vmem:[#allocation2 + $0x20] sm:$0xff] 0.0
        %417 = vst [vmem:[#allocation2 + $0x28] sm:$0xff] 0.0
        %s418 = scalar_lea.vmem [#allocation2], 816
        %419 = vst [vmem:[%s418] sm:$0xff] 0.0
        %420 = vst [vmem:[%s418 + $0x8] sm:$0xff] 0.0
        %421 = vst [vmem:[%s418 + $0x10] sm:$0xff] 0.0
        %422 = vst [vmem:[%s418 + $0x18] sm:$0xff] 0.0
        %423 = vst [vmem:[%s418 + $0x20] sm:$0xff] 0.0
        %424 = vst [vmem:[%s418 + $0x28] sm:$0xff] 0.0
        %vm457 = vcmask 1040384
        %v458 = vrot.slane %v380, 7
        %v459 = vrot.slane %v381, 7
        %v460 = vsel %vm457, %v458, %v459
        %v461 = vrot.slane %v382, 7
        %v462 = vrot.slane %v383, 7
        %v463 = vsel %vm457, %v461, %v462
        %v464 = vrot.slane %v384, 7
        %v465 = vrot.slane %v385, 7
        %v466 = vsel %vm457, %v464, %v465
        %v467 = vrot.slane %v386, 7
        %v468 = vrot.slane %v387, 7
        %v469 = vsel %vm457, %v467, %v468
        %v470 = vrot.slane %v388, 7
        %v471 = vrot.slane %v389, 7
        %v472 = vsel %vm457, %v470, %v471
        %v473 = vrot.slane %v390, 7
        %v474 = vrot.slane %v391, 7
        %v475 = vsel %vm457, %v473, %v474
        %v476 = vrot.slane %v392, 7
        %v477 = vrot.slane %v393, 7
        %v478 = vsel %vm457, %v476, %v477
        %v479 = vrot.slane %v394, 7
        %v480 = vrot.slane %v395, 7
        %v481 = vsel %vm457, %v479, %v480
        %v482 = vrot.slane %v396, 7
        %v483 = vrot.slane %v397, 7
        %v484 = vsel %vm457, %v482, %v483
        %v485 = vrot.slane %v398, 7
        %v486 = vrot.slane %v399, 7
        %v487 = vsel %vm457, %v485, %v486
        %v488 = vrot.slane %v400, 7
        %v489 = vrot.slane %v401, 7
        %v490 = vsel %vm457, %v488, %v489
        %v491 = vrot.slane %v402, 7
        %v492 = vrot.slane %v403, 7
        %v493 = vsel %vm457, %v491, %v492
        %v494 = vrot.slane %v404, 7
        %v495 = vrot.slane %v405, 7
        %v496 = vsel %vm457, %v494, %v495
        %v497 = vrot.slane %v406, 7
        %v498 = vrot.slane %v407, 7
        %v499 = vsel %vm457, %v497, %v498
        %v500 = vrot.slane %v408, 7
        %v501 = vrot.slane %v409, 7
        %v502 = vsel %vm457, %v500, %v501
        %v503 = vrot.slane %v410, 7
        %v504 = vrot.slane %v411, 7
        %v505 = vsel %vm457, %v503, %v504
        %v538 = vsel %vm457, 0.0, %v458
        %v539 = vsel %vm457, 0.0, %v461
        %v540 = vsel %vm457, 0.0, %v464
        %v541 = vsel %vm457, 0.0, %v467
        %v542 = vsel %vm457, 0.0, %v470
        %v543 = vsel %vm457, 0.0, %v473
        %v544 = vsel %vm457, 0.0, %v476
        %v545 = vsel %vm457, 0.0, %v479
        %v546 = vsel %vm457, 0.0, %v482
        %v547 = vsel %vm457, 0.0, %v485
        %v548 = vsel %vm457, 0.0, %v488
        %v549 = vsel %vm457, 0.0, %v491
        %v550 = vsel %vm457, 0.0, %v494
        %v551 = vsel %vm457, 0.0, %v497
        %v552 = vsel %vm457, 0.0, %v500
        %v553 = vsel %vm457, 0.0, %v503
        %s554 = scalar_lea.vmem [#allocation2], 48
        %555 = vst [vmem:[%s554] sm:$0xff] %v538
        %556 = vst [vmem:[%s554 + $0x18] sm:$0xff] %v460
        %557 = vst [vmem:[%s554 + $0x30] sm:$0xff] %v539
        %558 = vst [vmem:[%s554 + $0x48] sm:$0xff] %v463
        %559 = vst [vmem:[%s554 + $0x60] sm:$0xff] %v540
        %560 = vst [vmem:[%s554 + $0x78] sm:$0xff] %v466
        %561 = vst [vmem:[%s554 + $0x90] sm:$0xff] %v541
        %562 = vst [vmem:[%s554 + $0xa8] sm:$0xff] %v469
        %563 = vst [vmem:[%s554 + $0xc0] sm:$0xff] %v542
        %564 = vst [vmem:[%s554 + $0xd8] sm:$0xff] %v472
        %565 = vst [vmem:[%s554 + $0xf0] sm:$0xff] %v543
        %566 = vst [vmem:[%s554 + $0x108] sm:$0xff] %v475
        %567 = vst [vmem:[%s554 + $0x120] sm:$0xff] %v544
        %568 = vst [vmem:[%s554 + $0x138] sm:$0xff] %v478
        %569 = vst [vmem:[%s554 + $0x150] sm:$0xff] %v545
        %570 = vst [vmem:[%s554 + $0x168] sm:$0xff] %v481
        %571 = vst [vmem:[%s554 + $0x180] sm:$0xff] %v546
        %572 = vst [vmem:[%s554 + $0x198] sm:$0xff] %v484
        %573 = vst [vmem:[%s554 + $0x1b0] sm:$0xff] %v547
        %574 = vst [vmem:[%s554 + $0x1c8] sm:$0xff] %v487
        %575 = vst [vmem:[%s554 + $0x1e0] sm:$0xff] %v548
        %576 = vst [vmem:[%s554 + $0x1f8] sm:$0xff] %v490
        %577 = vst [vmem:[%s554 + $0x210] sm:$0xff] %v549
        %578 = vst [vmem:[%s554 + $0x228] sm:$0xff] %v493
        %579 = vst [vmem:[%s554 + $0x240] sm:$0xff] %v550
        %580 = vst [vmem:[%s554 + $0x258] sm:$0xff] %v496
        %581 = vst [vmem:[%s554 + $0x270] sm:$0xff] %v551
        %582 = vst [vmem:[%s554 + $0x288] sm:$0xff] %v499
        %583 = vst [vmem:[%s554 + $0x2a0] sm:$0xff] %v552
        %584 = vst [vmem:[%s554 + $0x2b8] sm:$0xff] %v502
        %585 = vst [vmem:[%s554 + $0x2d0] sm:$0xff] %v553
        %586 = vst [vmem:[%s554 + $0x2e8] sm:$0xff] %v505
        %587 = vst [vmem:[%s554 + $0x8] sm:$0xff] %v380
        %588 = vst [vmem:[%s554 + $0x20] sm:$0xff] %v381
        %589 = vst [vmem:[%s554 + $0x38] sm:$0xff] %v382
        %590 = vst [vmem:[%s554 + $0x50] sm:$0xff] %v383
        %591 = vst [vmem:[%s554 + $0x68] sm:$0xff] %v384
        %592 = vst [vmem:[%s554 + $0x80] sm:$0xff] %v385
        %593 = vst [vmem:[%s554 + $0x98] sm:$0xff] %v386
        %594 = vst [vmem:[%s554 + $0xb0] sm:$0xff] %v387
        %595 = vst [vmem:[%s554 + $0xc8] sm:$0xff] %v388
        %596 = vst [vmem:[%s554 + $0xe0] sm:$0xff] %v389
        %597 = vst [vmem:[%s554 + $0xf8] sm:$0xff] %v390
        %598 = vst [vmem:[%s554 + $0x110] sm:$0xff] %v391
        %599 = vst [vmem:[%s554 + $0x128] sm:$0xff] %v392
        %600 = vst [vmem:[%s554 + $0x140] sm:$0xff] %v393
        %601 = vst [vmem:[%s554 + $0x158] sm:$0xff] %v394
        %602 = vst [vmem:[%s554 + $0x170] sm:$0xff] %v395
        %603 = vst [vmem:[%s554 + $0x188] sm:$0xff] %v396
        %604 = vst [vmem:[%s554 + $0x1a0] sm:$0xff] %v397
        %605 = vst [vmem:[%s554 + $0x1b8] sm:$0xff] %v398
        %606 = vst [vmem:[%s554 + $0x1d0] sm:$0xff] %v399
        %607 = vst [vmem:[%s554 + $0x1e8] sm:$0xff] %v400
        %608 = vst [vmem:[%s554 + $0x200] sm:$0xff] %v401
        %609 = vst [vmem:[%s554 + $0x218] sm:$0xff] %v402
        %610 = vst [vmem:[%s554 + $0x230] sm:$0xff] %v403
        %611 = vst [vmem:[%s554 + $0x248] sm:$0xff] %v404
        %612 = vst [vmem:[%s554 + $0x260] sm:$0xff] %v405
        %613 = vst [vmem:[%s554 + $0x278] sm:$0xff] %v406
        %614 = vst [vmem:[%s554 + $0x290] sm:$0xff] %v407
        %615 = vst [vmem:[%s554 + $0x2a8] sm:$0xff] %v408
        %616 = vst [vmem:[%s554 + $0x2c0] sm:$0xff] %v409
        %617 = vst [vmem:[%s554 + $0x2d8] sm:$0xff] %v410
        %618 = vst [vmem:[%s554 + $0x2f0] sm:$0xff] %v411
        %vm619 = vcmask 1046528
        %v620 = vrot.slane %v380, 1
        %v621 = vrot.slane %v381, 1
        %v622 = vsel %vm619, %v620, %v621
        %v623 = vrot.slane %v382, 1
        %v624 = vrot.slane %v383, 1
        %v625 = vsel %vm619, %v623, %v624
        %v626 = vrot.slane %v384, 1
        %v627 = vrot.slane %v385, 1
        %v628 = vsel %vm619, %v626, %v627
        %v629 = vrot.slane %v386, 1
        %v630 = vrot.slane %v387, 1
        %v631 = vsel %vm619, %v629, %v630
        %v632 = vrot.slane %v388, 1
        %v633 = vrot.slane %v389, 1
        %v634 = vsel %vm619, %v632, %v633
        %v635 = vrot.slane %v390, 1
        %v636 = vrot.slane %v391, 1
        %v637 = vsel %vm619, %v635, %v636
        %v638 = vrot.slane %v392, 1
        %v639 = vrot.slane %v393, 1
        %v640 = vsel %vm619, %v638, %v639
        %v641 = vrot.slane %v394, 1
        %v642 = vrot.slane %v395, 1
        %v643 = vsel %vm619, %v641, %v642
        %v644 = vrot.slane %v396, 1
        %v645 = vrot.slane %v397, 1
        %v646 = vsel %vm619, %v644, %v645
        %v647 = vrot.slane %v398, 1
        %v648 = vrot.slane %v399, 1
        %v649 = vsel %vm619, %v647, %v648
        %v650 = vrot.slane %v400, 1
        %v651 = vrot.slane %v401, 1
        %v652 = vsel %vm619, %v650, %v651
        %v653 = vrot.slane %v402, 1
        %v654 = vrot.slane %v403, 1
        %v655 = vsel %vm619, %v653, %v654
        %v656 = vrot.slane %v404, 1
        %v657 = vrot.slane %v405, 1
        %v658 = vsel %vm619, %v656, %v657
        %v659 = vrot.slane %v406, 1
        %v660 = vrot.slane %v407, 1
        %v661 = vsel %vm619, %v659, %v660
        %v662 = vrot.slane %v408, 1
        %v663 = vrot.slane %v409, 1
        %v664 = vsel %vm619, %v662, %v663
        %v665 = vrot.slane %v410, 1
        %v666 = vrot.slane %v411, 1
        %v667 = vsel %vm619, %v665, %v666
        %v700 = vsel %vm619, %v621, 0.0
        %v701 = vsel %vm619, %v624, 0.0
        %v702 = vsel %vm619, %v627, 0.0
        %v703 = vsel %vm619, %v630, 0.0
        %v704 = vsel %vm619, %v633, 0.0
        %v705 = vsel %vm619, %v636, 0.0
        %v706 = vsel %vm619, %v639, 0.0
        %v707 = vsel %vm619, %v642, 0.0
        %v708 = vsel %vm619, %v645, 0.0
        %v709 = vsel %vm619, %v648, 0.0
        %v710 = vsel %vm619, %v651, 0.0
        %v711 = vsel %vm619, %v654, 0.0
        %v712 = vsel %vm619, %v657, 0.0
        %v713 = vsel %vm619, %v660, 0.0
        %v714 = vsel %vm619, %v663, 0.0
        %v715 = vsel %vm619, %v666, 0.0
        %716 = vst [vmem:[%s554 + $0x10] sm:$0xff] %v622
        %717 = vst [vmem:[%s554 + $0x28] sm:$0xff] %v700
        %718 = vst [vmem:[%s554 + $0x40] sm:$0xff] %v625
        %719 = vst [vmem:[%s554 + $0x58] sm:$0xff] %v701
        %720 = vst [vmem:[%s554 + $0x70] sm:$0xff] %v628
        %721 = vst [vmem:[%s554 + $0x88] sm:$0xff] %v702
        %722 = vst [vmem:[%s554 + $0xa0] sm:$0xff] %v631
        %723 = vst [vmem:[%s554 + $0xb8] sm:$0xff] %v703
        %724 = vst [vmem:[%s554 + $0xd0] sm:$0xff] %v634
        %725 = vst [vmem:[%s554 + $0xe8] sm:$0xff] %v704
        %726 = vst [vmem:[%s554 + $0x100] sm:$0xff] %v637
        %727 = vst [vmem:[%s554 + $0x118] sm:$0xff] %v705
        %728 = vst [vmem:[%s554 + $0x130] sm:$0xff] %v640
        %729 = vst [vmem:[%s554 + $0x148] sm:$0xff] %v706
        %730 = vst [vmem:[%s554 + $0x160] sm:$0xff] %v643
        %731 = vst [vmem:[%s554 + $0x178] sm:$0xff] %v707
        %732 = vst [vmem:[%s554 + $0x190] sm:$0xff] %v646
        %733 = vst [vmem:[%s554 + $0x1a8] sm:$0xff] %v708
        %734 = vst [vmem:[%s554 + $0x1c0] sm:$0xff] %v649
        %735 = vst [vmem:[%s554 + $0x1d8] sm:$0xff] %v709
        %736 = vst [vmem:[%s554 + $0x1f0] sm:$0xff] %v652
        %737 = vst [vmem:[%s554 + $0x208] sm:$0xff] %v710
        %738 = vst [vmem:[%s554 + $0x220] sm:$0xff] %v655
        %739 = vst [vmem:[%s554 + $0x238] sm:$0xff] %v711
        %740 = vst [vmem:[%s554 + $0x250] sm:$0xff] %v658
        %741 = vst [vmem:[%s554 + $0x268] sm:$0xff] %v712
        %742 = vst [vmem:[%s554 + $0x280] sm:$0xff] %v661
        %743 = vst [vmem:[%s554 + $0x298] sm:$0xff] %v713
        %744 = vst [vmem:[%s554 + $0x2b0] sm:$0xff] %v664
        %745 = vst [vmem:[%s554 + $0x2c8] sm:$0xff] %v714
        %746 = vst [vmem:[%s554 + $0x2e0] sm:$0xff] %v667
        %747 = vst [vmem:[%s554 + $0x2f8] sm:$0xff] %v715
        %v748 = vld [vmem:[%s4] sm:$0x1]
        %v750 = vlaneseq
        %v751 = vshrl.u32 %v750, 7
        %v752 = vsub.s32 0, %v751
        %v753 = vrot.slane %v748, %v752
        %755 = vst [vmem:[#allocation3] sm:$0xff] %v753
        %756 = vst [vmem:[#allocation3 + $0x8] sm:$0xff] %v753
        %757 = vst [vmem:[#allocation3 + $0x10] sm:$0xff] %v753
        %758 = vst [vmem:[#allocation3 + $0x18] sm:$0xff] %v753
        %759 = vst [vmem:[#allocation3 + $0x20] sm:$0xff] %v753
        %760 = vst [vmem:[#allocation3 + $0x28] sm:$0xff] %v753
        %761 = vst [vmem:[#allocation3 + $0x30] sm:$0xff] %v753
        %762 = vst [vmem:[#allocation3 + $0x38] sm:$0xff] %v753
        %763 = vst [vmem:[#allocation3 + $0x40] sm:$0xff] %v753
        %764 = vst [vmem:[#allocation3 + $0x48] sm:$0xff] %v753
        %765 = vst [vmem:[#allocation3 + $0x50] sm:$0xff] %v753
        %766 = vst [vmem:[#allocation3 + $0x58] sm:$0xff] %v753
        %767 = vst [vmem:[#allocation3 + $0x60] sm:$0xff] %v753
        %768 = vst [vmem:[#allocation3 + $0x68] sm:$0xff] %v753
        %769 = vst [vmem:[#allocation3 + $0x70] sm:$0xff] %v753
        %770 = vst [vmem:[#allocation3 + $0x78] sm:$0xff] %v753
        %771 = vst [vmem:[#allocation3 + $0x80] sm:$0xff] %v753
        %772 = vst [vmem:[#allocation3 + $0x88] sm:$0xff] %v753
        %773 = vst [vmem:[#allocation3 + $0x90] sm:$0xff] %v753
        %774 = vst [vmem:[#allocation3 + $0x98] sm:$0xff] %v753
        %775 = vst [vmem:[#allocation3 + $0xa0] sm:$0xff] %v753
        %776 = vst [vmem:[#allocation3 + $0xa8] sm:$0xff] %v753
        %777 = vst [vmem:[#allocation3 + $0xb0] sm:$0xff] %v753
        %778 = vst [vmem:[#allocation3 + $0xb8] sm:$0xff] %v753
        %779 = vst [vmem:[#allocation3 + $0xc0] sm:$0xff] %v753
        %780 = vst [vmem:[#allocation3 + $0xc8] sm:$0xff] %v753
        %781 = vst [vmem:[#allocation3 + $0xd0] sm:$0xff] %v753
        %782 = vst [vmem:[#allocation3 + $0xd8] sm:$0xff] %v753
        %783 = vst [vmem:[#allocation3 + $0xe0] sm:$0xff] %v753
        %784 = vst [vmem:[#allocation3 + $0xe8] sm:$0xff] %v753
        %785 = vst [vmem:[#allocation3 + $0xf0] sm:$0xff] %v753
        %786 = vst [vmem:[#allocation3 + $0xf8] sm:$0xff] %v753
        %v787 = vld [vmem:[#allocation2] sm:$0xff]
        %v788 = vld [vmem:[#allocation2 + $0x8] sm:$0xff]
        %v789 = vld [vmem:[#allocation2 + $0x10] sm:$0xff]
        %v790 = vld [vmem:[#allocation2 + $0x18] sm:$0xff]
        %v791 = vld [vmem:[#allocation2 + $0x20] sm:$0xff]
        %v792 = vld [vmem:[#allocation2 + $0x28] sm:$0xff]
        %v793 = vld [vmem:[#allocation2 + $0x30] sm:$0xff]
        %v794 = vld [vmem:[#allocation2 + $0x38] sm:$0xff]
        %v795 = vld [vmem:[#allocation2 + $0x40] sm:$0xff]
        %v796 = vld [vmem:[#allocation2 + $0x48] sm:$0xff]
        %v797 = vld [vmem:[#allocation2 + $0x50] sm:$0xff]
        %v798 = vld [vmem:[#allocation2 + $0x58] sm:$0xff]
        %v799 = vld [vmem:[#allocation2 + $0x60] sm:$0xff]
        %v800 = vld [vmem:[#allocation2 + $0x68] sm:$0xff]
        %v801 = vld [vmem:[#allocation2 + $0x70] sm:$0xff]
        %v802 = vld [vmem:[#allocation2 + $0x78] sm:$0xff]
        %v803 = vld [vmem:[#allocation2 + $0x80] sm:$0xff]
        %v804 = vld [vmem:[#allocation2 + $0x88] sm:$0xff]
        %v805 = vld [vmem:[#allocation2 + $0x90] sm:$0xff]
        %v806 = vld [vmem:[#allocation2 + $0x98] sm:$0xff]
        %v807 = vld [vmem:[#allocation2 + $0xa0] sm:$0xff]
        %v808 = vld [vmem:[#allocation2 + $0xa8] sm:$0xff]
        %v809 = vld [vmem:[#allocation2 + $0xb0] sm:$0xff]
        %v810 = vld [vmem:[#allocation2 + $0xb8] sm:$0xff]
        %v811 = vld [vmem:[#allocation2 + $0xc0] sm:$0xff]
        %v812 = vld [vmem:[#allocation2 + $0xc8] sm:$0xff]
        %v813 = vld [vmem:[#allocation2 + $0xd0] sm:$0xff]
        %v814 = vld [vmem:[#allocation2 + $0xd8] sm:$0xff]
        %v815 = vld [vmem:[#allocation2 + $0xe0] sm:$0xff]
        %v816 = vld [vmem:[#allocation2 + $0xe8] sm:$0xff]
        %v817 = vld [vmem:[#allocation2 + $0xf0] sm:$0xff]
        %v818 = vld [vmem:[#allocation2 + $0xf8] sm:$0xff]
        %v819 = vld [vmem:[#allocation2 + $0x100] sm:$0xff]
        %v820 = vld [vmem:[#allocation2 + $0x108] sm:$0xff]
        %v821 = vld [vmem:[#allocation2 + $0x110] sm:$0xff]
        %v822 = vld [vmem:[#allocation2 + $0x118] sm:$0xff]
        %v823 = vld [vmem:[#allocation2 + $0x120] sm:$0xff]
        %v824 = vld [vmem:[#allocation2 + $0x128] sm:$0xff]
        %v825 = vld [vmem:[#allocation2 + $0x130] sm:$0xff]
        %v826 = vld [vmem:[#allocation2 + $0x138] sm:$0xff]
        %v827 = vld [vmem:[#allocation2 + $0x140] sm:$0xff]
        %v828 = vld [vmem:[#allocation2 + $0x148] sm:$0xff]
        %v829 = vld [vmem:[#allocation2 + $0x150] sm:$0xff]
        %v830 = vld [vmem:[#allocation2 + $0x158] sm:$0xff]
        %v831 = vld [vmem:[#allocation2 + $0x160] sm:$0xff]
        %v832 = vld [vmem:[#allocation2 + $0x168] sm:$0xff]
        %v833 = vld [vmem:[#allocation2 + $0x170] sm:$0xff]
        %v834 = vld [vmem:[#allocation2 + $0x178] sm:$0xff]
        %v835 = vld [vmem:[#allocation2 + $0x180] sm:$0xff]
        %v836 = vld [vmem:[#allocation2 + $0x188] sm:$0xff]
        %v837 = vld [vmem:[#allocation2 + $0x190] sm:$0xff]
        %v838 = vld [vmem:[#allocation2 + $0x198] sm:$0xff]
        %v839 = vld [vmem:[#allocation2 + $0x1a0] sm:$0xff]
        %v840 = vld [vmem:[#allocation2 + $0x1a8] sm:$0xff]
        %v841 = vld [vmem:[#allocation2 + $0x1b0] sm:$0xff]
        %v842 = vld [vmem:[#allocation2 + $0x1b8] sm:$0xff]
        %v843 = vld [vmem:[#allocation2 + $0x1c0] sm:$0xff]
        %v844 = vld [vmem:[#allocation2 + $0x1c8] sm:$0xff]
        %v845 = vld [vmem:[#allocation2 + $0x1d0] sm:$0xff]
        %v846 = vld [vmem:[#allocation2 + $0x1d8] sm:$0xff]
        %v847 = vld [vmem:[#allocation2 + $0x1e0] sm:$0xff]
        %v848 = vld [vmem:[#allocation2 + $0x1e8] sm:$0xff]
        %v849 = vld [vmem:[#allocation2 + $0x1f0] sm:$0xff]
        %v850 = vld [vmem:[#allocation2 + $0x1f8] sm:$0xff]
        %v851 = vld [vmem:[#allocation2 + $0x200] sm:$0xff]
        %v852 = vld [vmem:[#allocation2 + $0x208] sm:$0xff]
        %v853 = vld [vmem:[#allocation2 + $0x210] sm:$0xff]
        %v854 = vld [vmem:[#allocation2 + $0x218] sm:$0xff]
        %v855 = vld [vmem:[#allocation2 + $0x220] sm:$0xff]
        %v856 = vld [vmem:[#allocation2 + $0x228] sm:$0xff]
        %v857 = vld [vmem:[#allocation2 + $0x230] sm:$0xff]
        %v858 = vld [vmem:[#allocation2 + $0x238] sm:$0xff]
        %v859 = vld [vmem:[#allocation2 + $0x240] sm:$0xff]
        %v860 = vld [vmem:[#allocation2 + $0x248] sm:$0xff]
        %v861 = vld [vmem:[#allocation2 + $0x250] sm:$0xff]
        %v862 = vld [vmem:[#allocation2 + $0x258] sm:$0xff]
        %v863 = vld [vmem:[#allocation2 + $0x260] sm:$0xff]
        %v864 = vld [vmem:[#allocation2 + $0x268] sm:$0xff]
        %v865 = vld [vmem:[#allocation2 + $0x270] sm:$0xff]
        %v866 = vld [vmem:[#allocation2 + $0x278] sm:$0xff]
        %v867 = vld [vmem:[#allocation2 + $0x280] sm:$0xff]
        %v868 = vld [vmem:[#allocation2 + $0x288] sm:$0xff]
        %v869 = vld [vmem:[#allocation2 + $0x290] sm:$0xff]
        %v870 = vld [vmem:[#allocation2 + $0x298] sm:$0xff]
        %v871 = vld [vmem:[#allocation2 + $0x2a0] sm:$0xff]
        %v872 = vld [vmem:[#allocation2 + $0x2a8] sm:$0xff]
        %v873 = vld [vmem:[#allocation2 + $0x2b0] sm:$0xff]
        %v874 = vld [vmem:[#allocation2 + $0x2b8] sm:$0xff]
        %v875 = vld [vmem:[#allocation2 + $0x2c0] sm:$0xff]
        %v876 = vld [vmem:[#allocation2 + $0x2c8] sm:$0xff]
        %v877 = vld [vmem:[#allocation2 + $0x2d0] sm:$0xff]
        %v878 = vld [vmem:[#allocation2 + $0x2d8] sm:$0xff]
        %v879 = vld [vmem:[#allocation2 + $0x2e0] sm:$0xff]
        %v880 = vld [vmem:[#allocation2 + $0x2e8] sm:$0xff]
        %v881 = vld [vmem:[#allocation2 + $0x2f0] sm:$0xff]
        %v882 = vld [vmem:[#allocation2 + $0x2f8] sm:$0xff]
        %v883 = vld [vmem:[#allocation3] sm:$0xff]
        %v884 = vld [vmem:[#allocation3 + $0x8] sm:$0xff]
        %v885 = vld [vmem:[#allocation3 + $0x10] sm:$0xff]
        %v886 = vld [vmem:[#allocation3 + $0x18] sm:$0xff]
        %v887 = vld [vmem:[#allocation3 + $0x20] sm:$0xff]
        %v888 = vld [vmem:[#allocation3 + $0x28] sm:$0xff]
        %v889 = vld [vmem:[#allocation3 + $0x30] sm:$0xff]
        %v890 = vld [vmem:[#allocation3 + $0x38] sm:$0xff]
        %v891 = vld [vmem:[#allocation3 + $0x40] sm:$0xff]
        %v892 = vld [vmem:[#allocation3 + $0x48] sm:$0xff]
        %v893 = vld [vmem:[#allocation3 + $0x50] sm:$0xff]
        %v894 = vld [vmem:[#allocation3 + $0x58] sm:$0xff]
        %v895 = vld [vmem:[#allocation3 + $0x60] sm:$0xff]
        %v896 = vld [vmem:[#allocation3 + $0x68] sm:$0xff]
        %v897 = vld [vmem:[#allocation3 + $0x70] sm:$0xff]
        %v898 = vld [vmem:[#allocation3 + $0x78] sm:$0xff]
        %v899 = vld [vmem:[#allocation3 + $0x80] sm:$0xff]
        %v900 = vld [vmem:[#allocation3 + $0x88] sm:$0xff]
        %v901 = vld [vmem:[#allocation3 + $0x90] sm:$0xff]
        %v902 = vld [vmem:[#allocation3 + $0x98] sm:$0xff]
        %v903 = vld [vmem:[#allocation3 + $0xa0] sm:$0xff]
        %v904 = vld [vmem:[#allocation3 + $0xa8] sm:$0xff]
        %v905 = vld [vmem:[#allocation3 + $0xb0] sm:$0xff]
        %v906 = vld [vmem:[#allocation3 + $0xb8] sm:$0xff]
        %v907 = vld [vmem:[#allocation3 + $0xc0] sm:$0xff]
        %v908 = vld [vmem:[#allocation3 + $0xc8] sm:$0xff]
        %v909 = vld [vmem:[#allocation3 + $0xd0] sm:$0xff]
        %v910 = vld [vmem:[#allocation3 + $0xd8] sm:$0xff]
        %v911 = vld [vmem:[#allocation3 + $0xe0] sm:$0xff]
        %v912 = vld [vmem:[#allocation3 + $0xe8] sm:$0xff]
        %v913 = vld [vmem:[#allocation3 + $0xf0] sm:$0xff]
        %v914 = vld [vmem:[#allocation3 + $0xf8] sm:$0xff]
        %v915 = vld [vmem:[%s3] sm:$0xff]
        %v916 = vld [vmem:[%s3 + $0x8] sm:$0xff]
        %v917 = vld [vmem:[%s3 + $0x10] sm:$0xff]
        %v918 = vld [vmem:[%s3 + $0x18] sm:$0xff]
        %v919 = vld [vmem:[%s3 + $0x20] sm:$0xff]
        %v920 = vld [vmem:[%s3 + $0x28] sm:$0xff]
        %v921 = vld [vmem:[%s3 + $0x30] sm:$0xff]
        %v922 = vld [vmem:[%s3 + $0x38] sm:$0xff]
        %v923 = vld [vmem:[%s3 + $0x40] sm:$0xff]
        %v924 = vld [vmem:[%s3 + $0x48] sm:$0xff]
        %v925 = vld [vmem:[%s3 + $0x50] sm:$0xff]
        %v926 = vld [vmem:[%s3 + $0x58] sm:$0xff]
        %v927 = vld [vmem:[%s3 + $0x60] sm:$0xff]
        %v928 = vld [vmem:[%s3 + $0x68] sm:$0xff]
        %v929 = vld [vmem:[%s3 + $0x70] sm:$0xff]
        %v930 = vld [vmem:[%s3 + $0x78] sm:$0xff]
        %v931 = vld [vmem:[%s3 + $0x80] sm:$0xff]
        %v932 = vld [vmem:[%s3 + $0x88] sm:$0xff]
        %v933 = vld [vmem:[%s3 + $0x90] sm:$0xff]
        %v934 = vld [vmem:[%s3 + $0x98] sm:$0xff]
        %v935 = vld [vmem:[%s3 + $0xa0] sm:$0xff]
        %v936 = vld [vmem:[%s3 + $0xa8] sm:$0xff]
        %v937 = vld [vmem:[%s3 + $0xb0] sm:$0xff]
        %v938 = vld [vmem:[%s3 + $0xb8] sm:$0xff]
        %v939 = vld [vmem:[%s3 + $0xc0] sm:$0xff]
        %v940 = vld [vmem:[%s3 + $0xc8] sm:$0xff]
        %v941 = vld [vmem:[%s3 + $0xd0] sm:$0xff]
        %v942 = vld [vmem:[%s3 + $0xd8] sm:$0xff]
        %v943 = vld [vmem:[%s3 + $0xe0] sm:$0xff]
        %v944 = vld [vmem:[%s3 + $0xe8] sm:$0xff]
        %v945 = vld [vmem:[%s3 + $0xf0] sm:$0xff]
        %v946 = vld [vmem:[%s3 + $0xf8] sm:$0xff]
        %v947 = vld [vmem:[%s3 + $0x100] sm:$0xff]
        %v948 = vld [vmem:[%s3 + $0x108] sm:$0xff]
        %v949 = vld [vmem:[%s3 + $0x110] sm:$0xff]
        %v950 = vld [vmem:[%s3 + $0x118] sm:$0xff]
        %v951 = vld [vmem:[%s3 + $0x120] sm:$0xff]
        %v952 = vld [vmem:[%s3 + $0x128] sm:$0xff]
        %v953 = vld [vmem:[%s3 + $0x130] sm:$0xff]
        %v954 = vld [vmem:[%s3 + $0x138] sm:$0xff]
        %v955 = vld [vmem:[%s3 + $0x140] sm:$0xff]
        %v956 = vld [vmem:[%s3 + $0x148] sm:$0xff]
        %v957 = vld [vmem:[%s3 + $0x150] sm:$0xff]
        %v958 = vld [vmem:[%s3 + $0x158] sm:$0xff]
        %v959 = vld [vmem:[%s3 + $0x160] sm:$0xff]
        %v960 = vld [vmem:[%s3 + $0x168] sm:$0xff]
        %v961 = vld [vmem:[%s3 + $0x170] sm:$0xff]
        %v962 = vld [vmem:[%s3 + $0x178] sm:$0xff]
        %963 = vmatprep.subr.mxu0 0.0
        %964 = vmatpush1.msra.mxu0 %v930
        %965 = vmatprep.subr.mxu0 0.0
        %966 = vmatpush1.msra.mxu0 %v929
        %967 = vmatprep.subr.mxu0 0.0
        %968 = vmatpush1.msra.mxu0 %v928
        %969 = vmatprep.subr.mxu0 0.0
        %970 = vmatpush1.msra.mxu0 %v927
        %971 = vmatprep.subr.mxu0 0.0
        %972 = vmatpush1.msra.mxu0 %v926
        %973 = vmatprep.subr.mxu0 0.0
        %974 = vmatpush1.msra.mxu0 %v925
        %975 = vmatprep.subr.mxu0 0.0
        %976 = vmatpush1.msra.mxu0 %v924
        %977 = vmatprep.subr.mxu0 0.0
        %978 = vmatpush1.msra.mxu0 %v923
        %979 = vmatprep.subr.mxu0 0.0
        %980 = vmatpush1.msra.mxu0 %v922
        %981 = vmatprep.subr.mxu0 0.0
        %982 = vmatpush1.msra.mxu0 %v921
        %983 = vmatprep.subr.mxu0 0.0
        %984 = vmatpush1.msra.mxu0 %v920
        %985 = vmatprep.subr.mxu0 0.0
        %986 = vmatpush1.msra.mxu0 %v919
        %987 = vmatprep.subr.mxu0 0.0
        %988 = vmatpush1.msra.mxu0 %v918
        %989 = vmatprep.subr.mxu0 0.0
        %990 = vmatpush1.msra.mxu0 %v917
        %991 = vmatprep.subr.mxu0 0.0
        %992 = vmatpush1.msra.mxu0 %v916
        %993 = vmatprep.subr.mxu0 0.0
        %994 = vmatpush1.msra.mxu0 %v915
        %995 = vmatprep.subr.mxu0 0.0
        %996 = vmatpush2.msra.mxu0 %v946
        %997 = vmatprep.subr.mxu0 0.0
        %998 = vmatpush2.msra.mxu0 %v945
        %999 = vmatprep.subr.mxu0 0.0
        %1000 = vmatpush2.msra.mxu0 %v944
        %1001 = vmatprep.subr.mxu0 0.0
        %1002 = vmatpush2.msra.mxu0 %v943
        %1003 = vmatprep.subr.mxu0 0.0
        %1004 = vmatpush2.msra.mxu0 %v942
        %1005 = vmatprep.subr.mxu0 0.0
        %1006 = vmatpush2.msra.mxu0 %v941
        %1007 = vmatprep.subr.mxu0 0.0
        %1008 = vmatpush2.msra.mxu0 %v940
        %1009 = vmatprep.subr.mxu0 0.0
        %1010 = vmatpush2.msra.mxu0 %v939
        %1011 = vmatprep.subr.mxu0 0.0
        %1012 = vmatpush2.msra.mxu0 %v938
        %1013 = vmatprep.subr.mxu0 0.0
        %1014 = vmatpush2.msra.mxu0 %v937
        %1015 = vmatprep.subr.mxu0 0.0
        %1016 = vmatpush2.msra.mxu0 %v936
        %1017 = vmatprep.subr.mxu0 0.0
        %1018 = vmatpush2.msra.mxu0 %v935
        %1019 = vmatprep.subr.mxu0 0.0
        %1020 = vmatpush2.msra.mxu0 %v934
        %1021 = vmatprep.subr.mxu0 0.0
        %1022 = vmatpush2.msra.mxu0 %v933
        %1023 = vmatprep.subr.mxu0 0.0
        %1024 = vmatpush2.msra.mxu0 %v932
        %1025 = vmatprep.subr.mxu0 0.0
        %1026 = vmatpush2.msra.mxu0 %v931
        %1027 = vmatprep.mubr.f32.mxu0 %v788
        %1028 = vmatmul.mubr.f32.gmra.mxu0 %v787
        %v1029 = vpop.f32.mrf.mxu0
        %v1030 = vadd.f32 0.0, %v1029
        %v1031 = vpop.f32.mrf.mxu0
        %1032 = vmatprep.mubr.f32.mxu0 %v791
        %1033 = vmatmul.mubr.f32.gmra.mxu0 %v790
        %v1034 = vpop.f32.mrf.mxu0
        %v1035 = vadd.f32 0.0, %v1034
        %v1036 = vpop.f32.mrf.mxu0
        %1037 = vmatprep.mubr.f32.mxu0 %v794
        %1038 = vmatmul.mubr.f32.gmra.mxu0 %v793
        %v1039 = vpop.f32.mrf.mxu0
        %v1040 = vadd.f32 0.0, %v1039
        %v1041 = vpop.f32.mrf.mxu0
        %1042 = vmatprep.mubr.f32.mxu0 %v797
        %1043 = vmatmul.mubr.f32.gmra.mxu0 %v796
        %v1044 = vpop.f32.mrf.mxu0
        %v1045 = vadd.f32 0.0, %v1044
        %v1046 = vpop.f32.mrf.mxu0
        %1047 = vmatprep.mubr.f32.mxu0 %v800
        %1048 = vmatmul.mubr.f32.gmra.mxu0 %v799
        %v1049 = vpop.f32.mrf.mxu0
        %v1050 = vadd.f32 0.0, %v1049
        %v1051 = vpop.f32.mrf.mxu0
        %1052 = vmatprep.mubr.f32.mxu0 %v803
        %1053 = vmatmul.mubr.f32.gmra.mxu0 %v802
        %v1054 = vpop.f32.mrf.mxu0
        %v1055 = vadd.f32 0.0, %v1054
        %v1056 = vpop.f32.mrf.mxu0
        %1057 = vmatprep.mubr.f32.mxu0 %v806
        %1058 = vmatmul.mubr.f32.gmra.mxu0 %v805
        %v1059 = vpop.f32.mrf.mxu0
        %v1060 = vadd.f32 0.0, %v1059
        %v1061 = vpop.f32.mrf.mxu0
        %1062 = vmatprep.mubr.f32.mxu0 %v809
        %1063 = vmatmul.mubr.f32.gmra.mxu0 %v808
        %v1064 = vpop.f32.mrf.mxu0
        %v1065 = vadd.f32 0.0, %v1064
        %v1066 = vpop.f32.mrf.mxu0
        %1067 = vmatprep.mubr.f32.mxu0 %v812
        %1068 = vmatmul.mubr.f32.gmra.mxu0 %v811
        %v1069 = vpop.f32.mrf.mxu0
        %v1070 = vadd.f32 0.0, %v1069
        %v1071 = vpop.f32.mrf.mxu0
        %1072 = vmatprep.mubr.f32.mxu0 %v815
        %1073 = vmatmul.mubr.f32.gmra.mxu0 %v814
        %v1074 = vpop.f32.mrf.mxu0
        %v1075 = vadd.f32 0.0, %v1074
        %v1076 = vpop.f32.mrf.mxu0
        %1077 = vmatprep.mubr.f32.mxu0 %v818
        %1078 = vmatmul.mubr.f32.gmra.mxu0 %v817
        %v1079 = vpop.f32.mrf.mxu0
        %v1080 = vadd.f32 0.0, %v1079
        %v1081 = vpop.f32.mrf.mxu0
        %1082 = vmatprep.mubr.f32.mxu0 %v821
        %1083 = vmatmul.mubr.f32.gmra.mxu0 %v820
        %v1084 = vpop.f32.mrf.mxu0
        %v1085 = vadd.f32 0.0, %v1084
        %v1086 = vpop.f32.mrf.mxu0
        %1087 = vmatprep.mubr.f32.mxu0 %v824
        %1088 = vmatmul.mubr.f32.gmra.mxu0 %v823
        %v1089 = vpop.f32.mrf.mxu0
        %v1090 = vadd.f32 0.0, %v1089
        %v1091 = vpop.f32.mrf.mxu0
        %1092 = vmatprep.mubr.f32.mxu0 %v827
        %1093 = vmatmul.mubr.f32.gmra.mxu0 %v826
        %v1094 = vpop.f32.mrf.mxu0
        %v1095 = vadd.f32 0.0, %v1094
        %v1096 = vpop.f32.mrf.mxu0
        %1097 = vmatprep.mubr.f32.mxu0 %v830
        %1098 = vmatmul.mubr.f32.gmra.mxu0 %v829
        %v1099 = vpop.f32.mrf.mxu0
        %v1100 = vadd.f32 0.0, %v1099
        %v1101 = vpop.f32.mrf.mxu0
        %1102 = vmatprep.mubr.f32.mxu0 %v833
        %1103 = vmatmul.mubr.f32.gmra.mxu0 %v832
        %v1104 = vpop.f32.mrf.mxu0
        %v1105 = vadd.f32 0.0, %v1104
        %v1106 = vpop.f32.mrf.mxu0
        %1107 = vmatprep.mubr.f32.mxu0 %v836
        %1108 = vmatmul.mubr.f32.gmra.mxu0 %v835
        %v1109 = vpop.f32.mrf.mxu0
        %v1110 = vadd.f32 0.0, %v1109
        %v1111 = vpop.f32.mrf.mxu0
        %1112 = vmatprep.mubr.f32.mxu0 %v839
        %1113 = vmatmul.mubr.f32.gmra.mxu0 %v838
        %v1114 = vpop.f32.mrf.mxu0
        %v1115 = vadd.f32 0.0, %v1114
        %v1116 = vpop.f32.mrf.mxu0
        %1117 = vmatprep.mubr.f32.mxu0 %v842
        %1118 = vmatmul.mubr.f32.gmra.mxu0 %v841
        %v1119 = vpop.f32.mrf.mxu0
        %v1120 = vadd.f32 0.0, %v1119
        %v1121 = vpop.f32.mrf.mxu0
        %1122 = vmatprep.mubr.f32.mxu0 %v845
        %1123 = vmatmul.mubr.f32.gmra.mxu0 %v844
        %v1124 = vpop.f32.mrf.mxu0
        %v1125 = vadd.f32 0.0, %v1124
        %v1126 = vpop.f32.mrf.mxu0
        %1127 = vmatprep.mubr.f32.mxu0 %v848
        %1128 = vmatmul.mubr.f32.gmra.mxu0 %v847
        %v1129 = vpop.f32.mrf.mxu0
        %v1130 = vadd.f32 0.0, %v1129
        %v1131 = vpop.f32.mrf.mxu0
        %1132 = vmatprep.mubr.f32.mxu0 %v851
        %1133 = vmatmul.mubr.f32.gmra.mxu0 %v850
        %v1134 = vpop.f32.mrf.mxu0
        %v1135 = vadd.f32 0.0, %v1134
        %v1136 = vpop.f32.mrf.mxu0
        %1137 = vmatprep.mubr.f32.mxu0 %v854
        %1138 = vmatmul.mubr.f32.gmra.mxu0 %v853
        %v1139 = vpop.f32.mrf.mxu0
        %v1140 = vadd.f32 0.0, %v1139
        %v1141 = vpop.f32.mrf.mxu0
        %1142 = vmatprep.mubr.f32.mxu0 %v857
        %1143 = vmatmul.mubr.f32.gmra.mxu0 %v856
        %v1144 = vpop.f32.mrf.mxu0
        %v1145 = vadd.f32 0.0, %v1144
        %v1146 = vpop.f32.mrf.mxu0
        %1147 = vmatprep.mubr.f32.mxu0 %v860
        %1148 = vmatmul.mubr.f32.gmra.mxu0 %v859
        %v1149 = vpop.f32.mrf.mxu0
        %v1150 = vadd.f32 0.0, %v1149
        %v1151 = vpop.f32.mrf.mxu0
        %1152 = vmatprep.mubr.f32.mxu0 %v863
        %1153 = vmatmul.mubr.f32.gmra.mxu0 %v862
        %v1154 = vpop.f32.mrf.mxu0
        %v1155 = vadd.f32 0.0, %v1154
        %v1156 = vpop.f32.mrf.mxu0
        %1157 = vmatprep.mubr.f32.mxu0 %v866
        %1158 = vmatmul.mubr.f32.gmra.mxu0 %v865
        %v1159 = vpop.f32.mrf.mxu0
        %v1160 = vadd.f32 0.0, %v1159
        %v1161 = vpop.f32.mrf.mxu0
        %1162 = vmatprep.mubr.f32.mxu0 %v869
        %1163 = vmatmul.mubr.f32.gmra.mxu0 %v868
        %v1164 = vpop.f32.mrf.mxu0
        %v1165 = vadd.f32 0.0, %v1164
        %v1166 = vpop.f32.mrf.mxu0
        %1167 = vmatprep.mubr.f32.mxu0 %v872
        %1168 = vmatmul.mubr.f32.gmra.mxu0 %v871
        %v1169 = vpop.f32.mrf.mxu0
        %v1170 = vadd.f32 0.0, %v1169
        %v1171 = vpop.f32.mrf.mxu0
        %1172 = vmatprep.mubr.f32.mxu0 %v875
        %1173 = vmatmul.mubr.f32.gmra.mxu0 %v874
        %v1174 = vpop.f32.mrf.mxu0
        %v1175 = vadd.f32 0.0, %v1174
        %v1176 = vpop.f32.mrf.mxu0
        %1177 = vmatprep.mubr.f32.mxu0 %v878
        %1178 = vmatmul.mubr.f32.gmra.mxu0 %v877
        %v1179 = vpop.f32.mrf.mxu0
        %v1180 = vadd.f32 0.0, %v1179
        %v1181 = vpop.f32.mrf.mxu0
        %1182 = vmatprep.mubr.f32.mxu0 %v881
        %1183 = vmatmul.mubr.f32.gmra.mxu0 %v880
        %v1184 = vpop.f32.mrf.mxu0
        %v1185 = vadd.f32 0.0, %v1184
        %v1186 = vpop.f32.mrf.mxu0
        %1187 = vdwg.mxu0
        %1188 = vmatprep.subr.mxu0 0.0
        %1189 = vmatpush1.msra.mxu0 %v962
        %1190 = vmatprep.subr.mxu0 0.0
        %1191 = vmatpush1.msra.mxu0 %v961
        %1192 = vmatprep.subr.mxu0 0.0
        %1193 = vmatpush1.msra.mxu0 %v960
        %1194 = vmatprep.subr.mxu0 0.0
        %1195 = vmatpush1.msra.mxu0 %v959
        %1196 = vmatprep.subr.mxu0 0.0
        %1197 = vmatpush1.msra.mxu0 %v958
        %1198 = vmatprep.subr.mxu0 0.0
        %1199 = vmatpush1.msra.mxu0 %v957
        %1200 = vmatprep.subr.mxu0 0.0
        %1201 = vmatpush1.msra.mxu0 %v956
        %1202 = vmatprep.subr.mxu0 0.0
        %1203 = vmatpush1.msra.mxu0 %v955
        %1204 = vmatprep.subr.mxu0 0.0
        %1205 = vmatpush1.msra.mxu0 %v954
        %1206 = vmatprep.subr.mxu0 0.0
        %1207 = vmatpush1.msra.mxu0 %v953
        %1208 = vmatprep.subr.mxu0 0.0
        %1209 = vmatpush1.msra.mxu0 %v952
        %1210 = vmatprep.subr.mxu0 0.0
        %1211 = vmatpush1.msra.mxu0 %v951
        %1212 = vmatprep.subr.mxu0 0.0
        %1213 = vmatpush1.msra.mxu0 %v950
        %1214 = vmatprep.subr.mxu0 0.0
        %1215 = vmatpush1.msra.mxu0 %v949
        %1216 = vmatprep.subr.mxu0 0.0
        %1217 = vmatpush1.msra.mxu0 %v948
        %1218 = vmatprep.subr.mxu0 0.0
        %1219 = vmatpush1.msra.mxu0 %v947
        %1220 = vmatprep.subr.mxu0 0.0
        %1221 = vmatpush2.msra.mxu0 0.0
        %1222 = vmatprep.subr.mxu0 0.0
        %1223 = vmatpush2.msra.mxu0 0.0
        %1224 = vmatprep.subr.mxu0 0.0
        %1225 = vmatpush2.msra.mxu0 0.0
        %1226 = vmatprep.subr.mxu0 0.0
        %1227 = vmatpush2.msra.mxu0 0.0
        %1228 = vmatprep.subr.mxu0 0.0
        %1229 = vmatpush2.msra.mxu0 0.0
        %1230 = vmatprep.subr.mxu0 0.0
        %1231 = vmatpush2.msra.mxu0 0.0
        %1232 = vmatprep.subr.mxu0 0.0
        %1233 = vmatpush2.msra.mxu0 0.0
        %1234 = vmatprep.subr.mxu0 0.0
        %1235 = vmatpush2.msra.mxu0 0.0
        %1236 = vmatprep.subr.mxu0 0.0
        %1237 = vmatpush2.msra.mxu0 0.0
        %1238 = vmatprep.subr.mxu0 0.0
        %1239 = vmatpush2.msra.mxu0 0.0
        %1240 = vmatprep.subr.mxu0 0.0
        %1241 = vmatpush2.msra.mxu0 0.0
        %1242 = vmatprep.subr.mxu0 0.0
        %1243 = vmatpush2.msra.mxu0 0.0
        %1244 = vmatprep.subr.mxu0 0.0
        %1245 = vmatpush2.msra.mxu0 0.0
        %1246 = vmatprep.subr.mxu0 0.0
        %1247 = vmatpush2.msra.mxu0 0.0
        %1248 = vmatprep.subr.mxu0 0.0
        %1249 = vmatpush2.msra.mxu0 0.0
        %1250 = vmatprep.subr.mxu0 0.0
        %1251 = vmatpush2.msra.mxu0 0.0
        %1252 = vmatprep.mubr.f32.mxu0 0.0
        %1253 = vmatmul.mubr.f32.gmra.mxu0 %v789
        %v1254 = vpop.f32.mrf.mxu0
        %v1255 = vadd.f32 %v1030, %v1254
        %v1256 = vpop.f32.mrf.mxu0
        %1257 = vmatprep.mubr.f32.mxu0 0.0
        %1258 = vmatmul.mubr.f32.gmra.mxu0 %v792
        %v1259 = vpop.f32.mrf.mxu0
        %v1260 = vadd.f32 %v1035, %v1259
        %v1261 = vpop.f32.mrf.mxu0
        %1262 = vmatprep.mubr.f32.mxu0 0.0
        %1263 = vmatmul.mubr.f32.gmra.mxu0 %v795
        %v1264 = vpop.f32.mrf.mxu0
        %v1265 = vadd.f32 %v1040, %v1264
        %v1266 = vpop.f32.mrf.mxu0
        %1267 = vmatprep.mubr.f32.mxu0 0.0
        %1268 = vmatmul.mubr.f32.gmra.mxu0 %v798
        %v1269 = vpop.f32.mrf.mxu0
        %v1270 = vadd.f32 %v1045, %v1269
        %v1271 = vpop.f32.mrf.mxu0
        %1272 = vmatprep.mubr.f32.mxu0 0.0
        %1273 = vmatmul.mubr.f32.gmra.mxu0 %v801
        %v1274 = vpop.f32.mrf.mxu0
        %v1275 = vadd.f32 %v1050, %v1274
        %v1276 = vpop.f32.mrf.mxu0
        %1277 = vmatprep.mubr.f32.mxu0 0.0
        %1278 = vmatmul.mubr.f32.gmra.mxu0 %v804
        %v1279 = vpop.f32.mrf.mxu0
        %v1280 = vadd.f32 %v1055, %v1279
        %v1281 = vpop.f32.mrf.mxu0
        %1282 = vmatprep.mubr.f32.mxu0 0.0
        %1283 = vmatmul.mubr.f32.gmra.mxu0 %v807
        %v1284 = vpop.f32.mrf.mxu0
        %v1285 = vadd.f32 %v1060, %v1284
        %v1286 = vpop.f32.mrf.mxu0
        %1287 = vmatprep.mubr.f32.mxu0 0.0
        %1288 = vmatmul.mubr.f32.gmra.mxu0 %v810
        %v1289 = vpop.f32.mrf.mxu0
        %v1290 = vadd.f32 %v1065, %v1289
        %v1291 = vpop.f32.mrf.mxu0
        %1292 = vmatprep.mubr.f32.mxu0 0.0
        %1293 = vmatmul.mubr.f32.gmra.mxu0 %v813
        %v1294 = vpop.f32.mrf.mxu0
        %v1295 = vadd.f32 %v1070, %v1294
        %v1296 = vpop.f32.mrf.mxu0
        %1297 = vmatprep.mubr.f32.mxu0 0.0
        %1298 = vmatmul.mubr.f32.gmra.mxu0 %v816
        %v1299 = vpop.f32.mrf.mxu0
        %v1300 = vadd.f32 %v1075, %v1299
        %v1301 = vpop.f32.mrf.mxu0
        %1302 = vmatprep.mubr.f32.mxu0 0.0
        %1303 = vmatmul.mubr.f32.gmra.mxu0 %v819
        %v1304 = vpop.f32.mrf.mxu0
        %v1305 = vadd.f32 %v1080, %v1304
        %v1306 = vpop.f32.mrf.mxu0
        %1307 = vmatprep.mubr.f32.mxu0 0.0
        %1308 = vmatmul.mubr.f32.gmra.mxu0 %v822
        %v1309 = vpop.f32.mrf.mxu0
        %v1310 = vadd.f32 %v1085, %v1309
        %v1311 = vpop.f32.mrf.mxu0
        %1312 = vmatprep.mubr.f32.mxu0 0.0
        %1313 = vmatmul.mubr.f32.gmra.mxu0 %v825
        %v1314 = vpop.f32.mrf.mxu0
        %v1315 = vadd.f32 %v1090, %v1314
        %v1316 = vpop.f32.mrf.mxu0
        %1317 = vmatprep.mubr.f32.mxu0 0.0
        %1318 = vmatmul.mubr.f32.gmra.mxu0 %v828
        %v1319 = vpop.f32.mrf.mxu0
        %v1320 = vadd.f32 %v1095, %v1319
        %v1321 = vpop.f32.mrf.mxu0
        %1322 = vmatprep.mubr.f32.mxu0 0.0
        %1323 = vmatmul.mubr.f32.gmra.mxu0 %v831
        %v1324 = vpop.f32.mrf.mxu0
        %v1325 = vadd.f32 %v1100, %v1324
        %v1326 = vpop.f32.mrf.mxu0
        %1327 = vmatprep.mubr.f32.mxu0 0.0
        %1328 = vmatmul.mubr.f32.gmra.mxu0 %v834
        %v1329 = vpop.f32.mrf.mxu0
        %v1330 = vadd.f32 %v1105, %v1329
        %v1331 = vpop.f32.mrf.mxu0
        %1332 = vmatprep.mubr.f32.mxu0 0.0
        %1333 = vmatmul.mubr.f32.gmra.mxu0 %v837
        %v1334 = vpop.f32.mrf.mxu0
        %v1335 = vadd.f32 %v1110, %v1334
        %v1336 = vpop.f32.mrf.mxu0
        %1337 = vmatprep.mubr.f32.mxu0 0.0
        %1338 = vmatmul.mubr.f32.gmra.mxu0 %v840
        %v1339 = vpop.f32.mrf.mxu0
        %v1340 = vadd.f32 %v1115, %v1339
        %v1341 = vpop.f32.mrf.mxu0
        %1342 = vmatprep.mubr.f32.mxu0 0.0
        %1343 = vmatmul.mubr.f32.gmra.mxu0 %v843
        %v1344 = vpop.f32.mrf.mxu0
        %v1345 = vadd.f32 %v1120, %v1344
        %v1346 = vpop.f32.mrf.mxu0
        %1347 = vmatprep.mubr.f32.mxu0 0.0
        %1348 = vmatmul.mubr.f32.gmra.mxu0 %v846
        %v1349 = vpop.f32.mrf.mxu0
        %v1350 = vadd.f32 %v1125, %v1349
        %v1351 = vpop.f32.mrf.mxu0
        %1352 = vmatprep.mubr.f32.mxu0 0.0
        %1353 = vmatmul.mubr.f32.gmra.mxu0 %v849
        %v1354 = vpop.f32.mrf.mxu0
        %v1355 = vadd.f32 %v1130, %v1354
        %v1356 = vpop.f32.mrf.mxu0
        %1357 = vmatprep.mubr.f32.mxu0 0.0
        %1358 = vmatmul.mubr.f32.gmra.mxu0 %v852
        %v1359 = vpop.f32.mrf.mxu0
        %v1360 = vadd.f32 %v1135, %v1359
        %v1361 = vpop.f32.mrf.mxu0
        %1362 = vmatprep.mubr.f32.mxu0 0.0
        %1363 = vmatmul.mubr.f32.gmra.mxu0 %v855
        %v1364 = vpop.f32.mrf.mxu0
        %v1365 = vadd.f32 %v1140, %v1364
        %v1366 = vpop.f32.mrf.mxu0
        %1367 = vmatprep.mubr.f32.mxu0 0.0
        %1368 = vmatmul.mubr.f32.gmra.mxu0 %v858
        %v1369 = vpop.f32.mrf.mxu0
        %v1370 = vadd.f32 %v1145, %v1369
        %v1371 = vpop.f32.mrf.mxu0
        %1372 = vmatprep.mubr.f32.mxu0 0.0
        %1373 = vmatmul.mubr.f32.gmra.mxu0 %v861
        %v1374 = vpop.f32.mrf.mxu0
        %v1375 = vadd.f32 %v1150, %v1374
        %v1376 = vpop.f32.mrf.mxu0
        %1377 = vmatprep.mubr.f32.mxu0 0.0
        %1378 = vmatmul.mubr.f32.gmra.mxu0 %v864
        %v1379 = vpop.f32.mrf.mxu0
        %v1380 = vadd.f32 %v1155, %v1379
        %v1381 = vpop.f32.mrf.mxu0
        %1382 = vmatprep.mubr.f32.mxu0 0.0
        %1383 = vmatmul.mubr.f32.gmra.mxu0 %v867
        %v1384 = vpop.f32.mrf.mxu0
        %v1385 = vadd.f32 %v1160, %v1384
        %v1386 = vpop.f32.mrf.mxu0
        %1387 = vmatprep.mubr.f32.mxu0 0.0
        %1388 = vmatmul.mubr.f32.gmra.mxu0 %v870
        %v1389 = vpop.f32.mrf.mxu0
        %v1390 = vadd.f32 %v1165, %v1389
        %v1391 = vpop.f32.mrf.mxu0
        %1392 = vmatprep.mubr.f32.mxu0 0.0
        %1393 = vmatmul.mubr.f32.gmra.mxu0 %v873
        %v1394 = vpop.f32.mrf.mxu0
        %v1395 = vadd.f32 %v1170, %v1394
        %v1396 = vpop.f32.mrf.mxu0
        %1397 = vmatprep.mubr.f32.mxu0 0.0
        %1398 = vmatmul.mubr.f32.gmra.mxu0 %v876
        %v1399 = vpop.f32.mrf.mxu0
        %v1400 = vadd.f32 %v1175, %v1399
        %v1401 = vpop.f32.mrf.mxu0
        %1402 = vmatprep.mubr.f32.mxu0 0.0
        %1403 = vmatmul.mubr.f32.gmra.mxu0 %v879
        %v1404 = vpop.f32.mrf.mxu0
        %v1405 = vadd.f32 %v1180, %v1404
        %v1406 = vpop.f32.mrf.mxu0
        %1407 = vmatprep.mubr.f32.mxu0 0.0
        %1408 = vmatmul.mubr.f32.gmra.mxu0 %v882
        %v1409 = vpop.f32.mrf.mxu0
        %v1410 = vadd.f32 %v1185, %v1409
        %v1411 = vpop.f32.mrf.mxu0
        %1412 = vdwg.mxu0
        %v1413 = vadd.f32 %v883, %v1255
        %v1414 = vadd.f32 %v884, %v1260
        %v1415 = vadd.f32 %v885, %v1265
        %v1416 = vadd.f32 %v886, %v1270
        %v1417 = vadd.f32 %v887, %v1275
        %v1418 = vadd.f32 %v888, %v1280
        %v1419 = vadd.f32 %v889, %v1285
        %v1420 = vadd.f32 %v890, %v1290
        %v1421 = vadd.f32 %v891, %v1295
        %v1422 = vadd.f32 %v892, %v1300
        %v1423 = vadd.f32 %v893, %v1305
        %v1424 = vadd.f32 %v894, %v1310
        %v1425 = vadd.f32 %v895, %v1315
        %v1426 = vadd.f32 %v896, %v1320
        %v1427 = vadd.f32 %v897, %v1325
        %v1428 = vadd.f32 %v898, %v1330
        %v1429 = vadd.f32 %v899, %v1335
        %v1430 = vadd.f32 %v900, %v1340
        %v1431 = vadd.f32 %v901, %v1345
        %v1432 = vadd.f32 %v902, %v1350
        %v1433 = vadd.f32 %v903, %v1355
        %v1434 = vadd.f32 %v904, %v1360
        %v1435 = vadd.f32 %v905, %v1365
        %v1436 = vadd.f32 %v906, %v1370
        %v1437 = vadd.f32 %v907, %v1375
        %v1438 = vadd.f32 %v908, %v1380
        %v1439 = vadd.f32 %v909, %v1385
        %v1440 = vadd.f32 %v910, %v1390
        %v1441 = vadd.f32 %v911, %v1395
        %v1442 = vadd.f32 %v912, %v1400
        %v1443 = vadd.f32 %v913, %v1405
        %v1444 = vadd.f32 %v914, %v1410
        %1445 = vst [vmem:[#allocation3] sm:$0xff] %v1413
        %1446 = vst [vmem:[#allocation3 + $0x8] sm:$0xff] %v1414
        %1447 = vst [vmem:[#allocation3 + $0x10] sm:$0xff] %v1415
        %1448 = vst [vmem:[#allocation3 + $0x18] sm:$0xff] %v1416
        %1449 = vst [vmem:[#allocation3 + $0x20] sm:$0xff] %v1417
        %1450 = vst [vmem:[#allocation3 + $0x28] sm:$0xff] %v1418
        %1451 = vst [vmem:[#allocation3 + $0x30] sm:$0xff] %v1419
        %1452 = vst [vmem:[#allocation3 + $0x38] sm:$0xff] %v1420
        %1453 = vst [vmem:[#allocation3 + $0x40] sm:$0xff] %v1421
        %1454 = vst [vmem:[#allocation3 + $0x48] sm:$0xff] %v1422
        %1455 = vst [vmem:[#allocation3 + $0x50] sm:$0xff] %v1423
        %1456 = vst [vmem:[#allocation3 + $0x58] sm:$0xff] %v1424
        %1457 = vst [vmem:[#allocation3 + $0x60] sm:$0xff] %v1425
        %1458 = vst [vmem:[#allocation3 + $0x68] sm:$0xff] %v1426
        %1459 = vst [vmem:[#allocation3 + $0x70] sm:$0xff] %v1427
        %1460 = vst [vmem:[#allocation3 + $0x78] sm:$0xff] %v1428
        %1461 = vst [vmem:[#allocation3 + $0x80] sm:$0xff] %v1429
        %1462 = vst [vmem:[#allocation3 + $0x88] sm:$0xff] %v1430
        %1463 = vst [vmem:[#allocation3 + $0x90] sm:$0xff] %v1431
        %1464 = vst [vmem:[#allocation3 + $0x98] sm:$0xff] %v1432
        %1465 = vst [vmem:[#allocation3 + $0xa0] sm:$0xff] %v1433
        %1466 = vst [vmem:[#allocation3 + $0xa8] sm:$0xff] %v1434
        %1467 = vst [vmem:[#allocation3 + $0xb0] sm:$0xff] %v1435
        %1468 = vst [vmem:[#allocation3 + $0xb8] sm:$0xff] %v1436
        %1469 = vst [vmem:[#allocation3 + $0xc0] sm:$0xff] %v1437
        %1470 = vst [vmem:[#allocation3 + $0xc8] sm:$0xff] %v1438
        %1471 = vst [vmem:[#allocation3 + $0xd0] sm:$0xff] %v1439
        %1472 = vst [vmem:[#allocation3 + $0xd8] sm:$0xff] %v1440
        %1473 = vst [vmem:[#allocation3 + $0xe0] sm:$0xff] %v1441
        %1474 = vst [vmem:[#allocation3 + $0xe8] sm:$0xff] %v1442
        %1475 = vst [vmem:[#allocation3 + $0xf0] sm:$0xff] %v1443
        %1476 = vst [vmem:[#allocation3 + $0xf8] sm:$0xff] %v1444
        %v1477 = vld [vmem:[%s554] sm:$0xff]
        %v1478 = vld [vmem:[%s554 + $0x8] sm:$0xff]
        %v1479 = vld [vmem:[%s554 + $0x10] sm:$0xff]
        %v1480 = vld [vmem:[%s554 + $0x18] sm:$0xff]
        %v1481 = vld [vmem:[%s554 + $0x20] sm:$0xff]
        %v1482 = vld [vmem:[%s554 + $0x28] sm:$0xff]
        %v1483 = vld [vmem:[%s554 + $0x30] sm:$0xff]
        %v1484 = vld [vmem:[%s554 + $0x38] sm:$0xff]
        %v1485 = vld [vmem:[%s554 + $0x40] sm:$0xff]
        %v1486 = vld [vmem:[%s554 + $0x48] sm:$0xff]
        %v1487 = vld [vmem:[%s554 + $0x50] sm:$0xff]
        %v1488 = vld [vmem:[%s554 + $0x58] sm:$0xff]
        %v1489 = vld [vmem:[%s554 + $0x60] sm:$0xff]
        %v1490 = vld [vmem:[%s554 + $0x68] sm:$0xff]
        %v1491 = vld [vmem:[%s554 + $0x70] sm:$0xff]
        %v1492 = vld [vmem:[%s554 + $0x78] sm:$0xff]
        %v1493 = vld [vmem:[%s554 + $0x80] sm:$0xff]
        %v1494 = vld [vmem:[%s554 + $0x88] sm:$0xff]
        %v1495 = vld [vmem:[%s554 + $0x90] sm:$0xff]
        %v1496 = vld [vmem:[%s554 + $0x98] sm:$0xff]
        %v1497 = vld [vmem:[%s554 + $0xa0] sm:$0xff]
        %v1498 = vld [vmem:[%s554 + $0xa8] sm:$0xff]
        %v1499 = vld [vmem:[%s554 + $0xb0] sm:$0xff]
        %v1500 = vld [vmem:[%s554 + $0xb8] sm:$0xff]
        %v1501 = vld [vmem:[%s554 + $0xc0] sm:$0xff]
        %v1502 = vld [vmem:[%s554 + $0xc8] sm:$0xff]
        %v1503 = vld [vmem:[%s554 + $0xd0] sm:$0xff]
        %v1504 = vld [vmem:[%s554 + $0xd8] sm:$0xff]
        %v1505 = vld [vmem:[%s554 + $0xe0] sm:$0xff]
        %v1506 = vld [vmem:[%s554 + $0xe8] sm:$0xff]
        %v1507 = vld [vmem:[%s554 + $0xf0] sm:$0xff]
        %v1508 = vld [vmem:[%s554 + $0xf8] sm:$0xff]
        %v1509 = vld [vmem:[%s554 + $0x100] sm:$0xff]
        %v1510 = vld [vmem:[%s554 + $0x108] sm:$0xff]
        %v1511 = vld [vmem:[%s554 + $0x110] sm:$0xff]
        %v1512 = vld [vmem:[%s554 + $0x118] sm:$0xff]
        %v1513 = vld [vmem:[%s554 + $0x120] sm:$0xff]
        %v1514 = vld [vmem:[%s554 + $0x128] sm:$0xff]
        %v1515 = vld [vmem:[%s554 + $0x130] sm:$0xff]
        %v1516 = vld [vmem:[%s554 + $0x138] sm:$0xff]
        %v1517 = vld [vmem:[%s554 + $0x140] sm:$0xff]
        %v1518 = vld [vmem:[%s554 + $0x148] sm:$0xff]
        %v1519 = vld [vmem:[%s554 + $0x150] sm:$0xff]
        %v1520 = vld [vmem:[%s554 + $0x158] sm:$0xff]
        %v1521 = vld [vmem:[%s554 + $0x160] sm:$0xff]
        %v1522 = vld [vmem:[%s554 + $0x168] sm:$0xff]
        %v1523 = vld [vmem:[%s554 + $0x170] sm:$0xff]
        %v1524 = vld [vmem:[%s554 + $0x178] sm:$0xff]
        %v1525 = vld [vmem:[%s554 + $0x180] sm:$0xff]
        %v1526 = vld [vmem:[%s554 + $0x188] sm:$0xff]
        %v1527 = vld [vmem:[%s554 + $0x190] sm:$0xff]
        %v1528 = vld [vmem:[%s554 + $0x198] sm:$0xff]
        %v1529 = vld [vmem:[%s554 + $0x1a0] sm:$0xff]
        %v1530 = vld [vmem:[%s554 + $0x1a8] sm:$0xff]
        %v1531 = vld [vmem:[%s554 + $0x1b0] sm:$0xff]
        %v1532 = vld [vmem:[%s554 + $0x1b8] sm:$0xff]
        %v1533 = vld [vmem:[%s554 + $0x1c0] sm:$0xff]
        %v1534 = vld [vmem:[%s554 + $0x1c8] sm:$0xff]
        %v1535 = vld [vmem:[%s554 + $0x1d0] sm:$0xff]
        %v1536 = vld [vmem:[%s554 + $0x1d8] sm:$0xff]
        %v1537 = vld [vmem:[%s554 + $0x1e0] sm:$0xff]
        %v1538 = vld [vmem:[%s554 + $0x1e8] sm:$0xff]
        %v1539 = vld [vmem:[%s554 + $0x1f0] sm:$0xff]
        %v1540 = vld [vmem:[%s554 + $0x1f8] sm:$0xff]
        %v1541 = vld [vmem:[%s554 + $0x200] sm:$0xff]
        %v1542 = vld [vmem:[%s554 + $0x208] sm:$0xff]
        %v1543 = vld [vmem:[%s554 + $0x210] sm:$0xff]
        %v1544 = vld [vmem:[%s554 + $0x218] sm:$0xff]
        %v1545 = vld [vmem:[%s554 + $0x220] sm:$0xff]
        %v1546 = vld [vmem:[%s554 + $0x228] sm:$0xff]
        %v1547 = vld [vmem:[%s554 + $0x230] sm:$0xff]
        %v1548 = vld [vmem:[%s554 + $0x238] sm:$0xff]
        %v1549 = vld [vmem:[%s554 + $0x240] sm:$0xff]
        %v1550 = vld [vmem:[%s554 + $0x248] sm:$0xff]
        %v1551 = vld [vmem:[%s554 + $0x250] sm:$0xff]
        %v1552 = vld [vmem:[%s554 + $0x258] sm:$0xff]
        %v1553 = vld [vmem:[%s554 + $0x260] sm:$0xff]
        %v1554 = vld [vmem:[%s554 + $0x268] sm:$0xff]
        %v1555 = vld [vmem:[%s554 + $0x270] sm:$0xff]
        %v1556 = vld [vmem:[%s554 + $0x278] sm:$0xff]
        %v1557 = vld [vmem:[%s554 + $0x280] sm:$0xff]
        %v1558 = vld [vmem:[%s554 + $0x288] sm:$0xff]
        %v1559 = vld [vmem:[%s554 + $0x290] sm:$0xff]
        %v1560 = vld [vmem:[%s554 + $0x298] sm:$0xff]
        %v1561 = vld [vmem:[%s554 + $0x2a0] sm:$0xff]
        %v1562 = vld [vmem:[%s554 + $0x2a8] sm:$0xff]
        %v1563 = vld [vmem:[%s554 + $0x2b0] sm:$0xff]
        %v1564 = vld [vmem:[%s554 + $0x2b8] sm:$0xff]
        %v1565 = vld [vmem:[%s554 + $0x2c0] sm:$0xff]
        %v1566 = vld [vmem:[%s554 + $0x2c8] sm:$0xff]
        %v1567 = vld [vmem:[%s554 + $0x2d0] sm:$0xff]
        %v1568 = vld [vmem:[%s554 + $0x2d8] sm:$0xff]
        %v1569 = vld [vmem:[%s554 + $0x2e0] sm:$0xff]
        %v1570 = vld [vmem:[%s554 + $0x2e8] sm:$0xff]
        %v1571 = vld [vmem:[%s554 + $0x2f0] sm:$0xff]
        %v1572 = vld [vmem:[%s554 + $0x2f8] sm:$0xff]
        %v1573 = vld [vmem:[#allocation3] sm:$0xff]
        %v1574 = vld [vmem:[#allocation3 + $0x8] sm:$0xff]
        %v1575 = vld [vmem:[#allocation3 + $0x10] sm:$0xff]
        %v1576 = vld [vmem:[#allocation3 + $0x18] sm:$0xff]
        %v1577 = vld [vmem:[#allocation3 + $0x20] sm:$0xff]
        %v1578 = vld [vmem:[#allocation3 + $0x28] sm:$0xff]
        %v1579 = vld [vmem:[#allocation3 + $0x30] sm:$0xff]
        %v1580 = vld [vmem:[#allocation3 + $0x38] sm:$0xff]
        %v1581 = vld [vmem:[#allocation3 + $0x40] sm:$0xff]
        %v1582 = vld [vmem:[#allocation3 + $0x48] sm:$0xff]
        %v1583 = vld [vmem:[#allocation3 + $0x50] sm:$0xff]
        %v1584 = vld [vmem:[#allocation3 + $0x58] sm:$0xff]
        %v1585 = vld [vmem:[#allocation3 + $0x60] sm:$0xff]
        %v1586 = vld [vmem:[#allocation3 + $0x68] sm:$0xff]
        %v1587 = vld [vmem:[#allocation3 + $0x70] sm:$0xff]
        %v1588 = vld [vmem:[#allocation3 + $0x78] sm:$0xff]
        %v1589 = vld [vmem:[#allocation3 + $0x80] sm:$0xff]
        %v1590 = vld [vmem:[#allocation3 + $0x88] sm:$0xff]
        %v1591 = vld [vmem:[#allocation3 + $0x90] sm:$0xff]
        %v1592 = vld [vmem:[#allocation3 + $0x98] sm:$0xff]
        %v1593 = vld [vmem:[#allocation3 + $0xa0] sm:$0xff]
        %v1594 = vld [vmem:[#allocation3 + $0xa8] sm:$0xff]
        %v1595 = vld [vmem:[#allocation3 + $0xb0] sm:$0xff]
        %v1596 = vld [vmem:[#allocation3 + $0xb8] sm:$0xff]
        %v1597 = vld [vmem:[#allocation3 + $0xc0] sm:$0xff]
        %v1598 = vld [vmem:[#allocation3 + $0xc8] sm:$0xff]
        %v1599 = vld [vmem:[#allocation3 + $0xd0] sm:$0xff]
        %v1600 = vld [vmem:[#allocation3 + $0xd8] sm:$0xff]
        %v1601 = vld [vmem:[#allocation3 + $0xe0] sm:$0xff]
        %v1602 = vld [vmem:[#allocation3 + $0xe8] sm:$0xff]
        %v1603 = vld [vmem:[#allocation3 + $0xf0] sm:$0xff]
        %v1604 = vld [vmem:[#allocation3 + $0xf8] sm:$0xff]
        %s1605 = scalar_lea.vmem %s3, 384
        %v1606 = vld [vmem:[%s1605] sm:$0xff]
        %v1607 = vld [vmem:[%s1605 + $0x8] sm:$0xff]
        %v1608 = vld [vmem:[%s1605 + $0x10] sm:$0xff]
        %v1609 = vld [vmem:[%s1605 + $0x18] sm:$0xff]
        %v1610 = vld [vmem:[%s1605 + $0x20] sm:$0xff]
        %v1611 = vld [vmem:[%s1605 + $0x28] sm:$0xff]
        %v1612 = vld [vmem:[%s1605 + $0x30] sm:$0xff]
        %v1613 = vld [vmem:[%s1605 + $0x38] sm:$0xff]
        %v1614 = vld [vmem:[%s1605 + $0x40] sm:$0xff]
        %v1615 = vld [vmem:[%s1605 + $0x48] sm:$0xff]
        %v1616 = vld [vmem:[%s1605 + $0x50] sm:$0xff]
        %v1617 = vld [vmem:[%s1605 + $0x58] sm:$0xff]
        %v1618 = vld [vmem:[%s1605 + $0x60] sm:$0xff]
        %v1619 = vld [vmem:[%s1605 + $0x68] sm:$0xff]
        %v1620 = vld [vmem:[%s1605 + $0x70] sm:$0xff]
        %v1621 = vld [vmem:[%s1605 + $0x78] sm:$0xff]
        %v1622 = vld [vmem:[%s1605 + $0x80] sm:$0xff]
        %v1623 = vld [vmem:[%s1605 + $0x88] sm:$0xff]
        %v1624 = vld [vmem:[%s1605 + $0x90] sm:$0xff]
        %v1625 = vld [vmem:[%s1605 + $0x98] sm:$0xff]
        %v1626 = vld [vmem:[%s1605 + $0xa0] sm:$0xff]
        %v1627 = vld [vmem:[%s1605 + $0xa8] sm:$0xff]
        %v1628 = vld [vmem:[%s1605 + $0xb0] sm:$0xff]
        %v1629 = vld [vmem:[%s1605 + $0xb8] sm:$0xff]
        %v1630 = vld [vmem:[%s1605 + $0xc0] sm:$0xff]
        %v1631 = vld [vmem:[%s1605 + $0xc8] sm:$0xff]
        %v1632 = vld [vmem:[%s1605 + $0xd0] sm:$0xff]
        %v1633 = vld [vmem:[%s1605 + $0xd8] sm:$0xff]
        %v1634 = vld [vmem:[%s1605 + $0xe0] sm:$0xff]
        %v1635 = vld [vmem:[%s1605 + $0xe8] sm:$0xff]
        %v1636 = vld [vmem:[%s1605 + $0xf0] sm:$0xff]
        %v1637 = vld [vmem:[%s1605 + $0xf8] sm:$0xff]
        %v1638 = vld [vmem:[%s1605 + $0x100] sm:$0xff]
        %v1639 = vld [vmem:[%s1605 + $0x108] sm:$0xff]
        %v1640 = vld [vmem:[%s1605 + $0x110] sm:$0xff]
        %v1641 = vld [vmem:[%s1605 + $0x118] sm:$0xff]
        %v1642 = vld [vmem:[%s1605 + $0x120] sm:$0xff]
        %v1643 = vld [vmem:[%s1605 + $0x128] sm:$0xff]
        %v1644 = vld [vmem:[%s1605 + $0x130] sm:$0xff]
        %v1645 = vld [vmem:[%s1605 + $0x138] sm:$0xff]
        %v1646 = vld [vmem:[%s1605 + $0x140] sm:$0xff]
        %v1647 = vld [vmem:[%s1605 + $0x148] sm:$0xff]
        %v1648 = vld [vmem:[%s1605 + $0x150] sm:$0xff]
        %v1649 = vld [vmem:[%s1605 + $0x158] sm:$0xff]
        %v1650 = vld [vmem:[%s1605 + $0x160] sm:$0xff]
        %v1651 = vld [vmem:[%s1605 + $0x168] sm:$0xff]
        %v1652 = vld [vmem:[%s1605 + $0x170] sm:$0xff]
        %v1653 = vld [vmem:[%s1605 + $0x178] sm:$0xff]
        %1654 = vmatprep.subr.mxu0 0.0
        %1655 = vmatpush1.msra.mxu0 %v1621
        %1656 = vmatprep.subr.mxu0 0.0
        %1657 = vmatpush1.msra.mxu0 %v1620
        %1658 = vmatprep.subr.mxu0 0.0
        %1659 = vmatpush1.msra.mxu0 %v1619
        %1660 = vmatprep.subr.mxu0 0.0
        %1661 = vmatpush1.msra.mxu0 %v1618
        %1662 = vmatprep.subr.mxu0 0.0
        %1663 = vmatpush1.msra.mxu0 %v1617
        %1664 = vmatprep.subr.mxu0 0.0
        %1665 = vmatpush1.msra.mxu0 %v1616
        %1666 = vmatprep.subr.mxu0 0.0
        %1667 = vmatpush1.msra.mxu0 %v1615
        %1668 = vmatprep.subr.mxu0 0.0
        %1669 = vmatpush1.msra.mxu0 %v1614
        %1670 = vmatprep.subr.mxu0 0.0
        %1671 = vmatpush1.msra.mxu0 %v1613
        %1672 = vmatprep.subr.mxu0 0.0
        %1673 = vmatpush1.msra.mxu0 %v1612
        %1674 = vmatprep.subr.mxu0 0.0
        %1675 = vmatpush1.msra.mxu0 %v1611
        %1676 = vmatprep.subr.mxu0 0.0
        %1677 = vmatpush1.msra.mxu0 %v1610
        %1678 = vmatprep.subr.mxu0 0.0
        %1679 = vmatpush1.msra.mxu0 %v1609
        %1680 = vmatprep.subr.mxu0 0.0
        %1681 = vmatpush1.msra.mxu0 %v1608
        %1682 = vmatprep.subr.mxu0 0.0
        %1683 = vmatpush1.msra.mxu0 %v1607
        %1684 = vmatprep.subr.mxu0 0.0
        %1685 = vmatpush1.msra.mxu0 %v1606
        %1686 = vmatprep.subr.mxu0 0.0
        %1687 = vmatpush2.msra.mxu0 %v1637
        %1688 = vmatprep.subr.mxu0 0.0
        %1689 = vmatpush2.msra.mxu0 %v1636
        %1690 = vmatprep.subr.mxu0 0.0
        %1691 = vmatpush2.msra.mxu0 %v1635
        %1692 = vmatprep.subr.mxu0 0.0
        %1693 = vmatpush2.msra.mxu0 %v1634
        %1694 = vmatprep.subr.mxu0 0.0
        %1695 = vmatpush2.msra.mxu0 %v1633
        %1696 = vmatprep.subr.mxu0 0.0
        %1697 = vmatpush2.msra.mxu0 %v1632
        %1698 = vmatprep.subr.mxu0 0.0
        %1699 = vmatpush2.msra.mxu0 %v1631
        %1700 = vmatprep.subr.mxu0 0.0
        %1701 = vmatpush2.msra.mxu0 %v1630
        %1702 = vmatprep.subr.mxu0 0.0
        %1703 = vmatpush2.msra.mxu0 %v1629
        %1704 = vmatprep.subr.mxu0 0.0
        %1705 = vmatpush2.msra.mxu0 %v1628
        %1706 = vmatprep.subr.mxu0 0.0
        %1707 = vmatpush2.msra.mxu0 %v1627
        %1708 = vmatprep.subr.mxu0 0.0
        %1709 = vmatpush2.msra.mxu0 %v1626
        %1710 = vmatprep.subr.mxu0 0.0
        %1711 = vmatpush2.msra.mxu0 %v1625
        %1712 = vmatprep.subr.mxu0 0.0
        %1713 = vmatpush2.msra.mxu0 %v1624
        %1714 = vmatprep.subr.mxu0 0.0
        %1715 = vmatpush2.msra.mxu0 %v1623
        %1716 = vmatprep.subr.mxu0 0.0
        %1717 = vmatpush2.msra.mxu0 %v1622
        %1718 = vmatprep.mubr.f32.mxu0 %v1478
        %1719 = vmatmul.mubr.f32.gmra.mxu0 %v1477
        %v1720 = vpop.f32.mrf.mxu0
        %v1721 = vadd.f32 0.0, %v1720
        %v1722 = vpop.f32.mrf.mxu0
        %1723 = vmatprep.mubr.f32.mxu0 %v1481
        %1724 = vmatmul.mubr.f32.gmra.mxu0 %v1480
        %v1725 = vpop.f32.mrf.mxu0
        %v1726 = vadd.f32 0.0, %v1725
        %v1727 = vpop.f32.mrf.mxu0
        %1728 = vmatprep.mubr.f32.mxu0 %v1484
        %1729 = vmatmul.mubr.f32.gmra.mxu0 %v1483
        %v1730 = vpop.f32.mrf.mxu0
        %v1731 = vadd.f32 0.0, %v1730
        %v1732 = vpop.f32.mrf.mxu0
        %1733 = vmatprep.mubr.f32.mxu0 %v1487
        %1734 = vmatmul.mubr.f32.gmra.mxu0 %v1486
        %v1735 = vpop.f32.mrf.mxu0
        %v1736 = vadd.f32 0.0, %v1735
        %v1737 = vpop.f32.mrf.mxu0
        %1738 = vmatprep.mubr.f32.mxu0 %v1490
        %1739 = vmatmul.mubr.f32.gmra.mxu0 %v1489
        %v1740 = vpop.f32.mrf.mxu0
        %v1741 = vadd.f32 0.0, %v1740
        %v1742 = vpop.f32.mrf.mxu0
        %1743 = vmatprep.mubr.f32.mxu0 %v1493
        %1744 = vmatmul.mubr.f32.gmra.mxu0 %v1492
        %v1745 = vpop.f32.mrf.mxu0
        %v1746 = vadd.f32 0.0, %v1745
        %v1747 = vpop.f32.mrf.mxu0
        %1748 = vmatprep.mubr.f32.mxu0 %v1496
        %1749 = vmatmul.mubr.f32.gmra.mxu0 %v1495
        %v1750 = vpop.f32.mrf.mxu0
        %v1751 = vadd.f32 0.0, %v1750
        %v1752 = vpop.f32.mrf.mxu0
        %1753 = vmatprep.mubr.f32.mxu0 %v1499
        %1754 = vmatmul.mubr.f32.gmra.mxu0 %v1498
        %v1755 = vpop.f32.mrf.mxu0
        %v1756 = vadd.f32 0.0, %v1755
        %v1757 = vpop.f32.mrf.mxu0
        %1758 = vmatprep.mubr.f32.mxu0 %v1502
        %1759 = vmatmul.mubr.f32.gmra.mxu0 %v1501
        %v1760 = vpop.f32.mrf.mxu0
        %v1761 = vadd.f32 0.0, %v1760
        %v1762 = vpop.f32.mrf.mxu0
        %1763 = vmatprep.mubr.f32.mxu0 %v1505
        %1764 = vmatmul.mubr.f32.gmra.mxu0 %v1504
        %v1765 = vpop.f32.mrf.mxu0
        %v1766 = vadd.f32 0.0, %v1765
        %v1767 = vpop.f32.mrf.mxu0
        %1768 = vmatprep.mubr.f32.mxu0 %v1508
        %1769 = vmatmul.mubr.f32.gmra.mxu0 %v1507
        %v1770 = vpop.f32.mrf.mxu0
        %v1771 = vadd.f32 0.0, %v1770
        %v1772 = vpop.f32.mrf.mxu0
        %1773 = vmatprep.mubr.f32.mxu0 %v1511
        %1774 = vmatmul.mubr.f32.gmra.mxu0 %v1510
        %v1775 = vpop.f32.mrf.mxu0
        %v1776 = vadd.f32 0.0, %v1775
        %v1777 = vpop.f32.mrf.mxu0
        %1778 = vmatprep.mubr.f32.mxu0 %v1514
        %1779 = vmatmul.mubr.f32.gmra.mxu0 %v1513
        %v1780 = vpop.f32.mrf.mxu0
        %v1781 = vadd.f32 0.0, %v1780
        %v1782 = vpop.f32.mrf.mxu0
        %1783 = vmatprep.mubr.f32.mxu0 %v1517
        %1784 = vmatmul.mubr.f32.gmra.mxu0 %v1516
        %v1785 = vpop.f32.mrf.mxu0
        %v1786 = vadd.f32 0.0, %v1785
        %v1787 = vpop.f32.mrf.mxu0
        %1788 = vmatprep.mubr.f32.mxu0 %v1520
        %1789 = vmatmul.mubr.f32.gmra.mxu0 %v1519
        %v1790 = vpop.f32.mrf.mxu0
        %v1791 = vadd.f32 0.0, %v1790
        %v1792 = vpop.f32.mrf.mxu0
        %1793 = vmatprep.mubr.f32.mxu0 %v1523
        %1794 = vmatmul.mubr.f32.gmra.mxu0 %v1522
        %v1795 = vpop.f32.mrf.mxu0
        %v1796 = vadd.f32 0.0, %v1795
        %v1797 = vpop.f32.mrf.mxu0
        %1798 = vmatprep.mubr.f32.mxu0 %v1526
        %1799 = vmatmul.mubr.f32.gmra.mxu0 %v1525
        %v1800 = vpop.f32.mrf.mxu0
        %v1801 = vadd.f32 0.0, %v1800
        %v1802 = vpop.f32.mrf.mxu0
        %1803 = vmatprep.mubr.f32.mxu0 %v1529
        %1804 = vmatmul.mubr.f32.gmra.mxu0 %v1528
        %v1805 = vpop.f32.mrf.mxu0
        %v1806 = vadd.f32 0.0, %v1805
        %v1807 = vpop.f32.mrf.mxu0
        %1808 = vmatprep.mubr.f32.mxu0 %v1532
        %1809 = vmatmul.mubr.f32.gmra.mxu0 %v1531
        %v1810 = vpop.f32.mrf.mxu0
        %v1811 = vadd.f32 0.0, %v1810
        %v1812 = vpop.f32.mrf.mxu0
        %1813 = vmatprep.mubr.f32.mxu0 %v1535
        %1814 = vmatmul.mubr.f32.gmra.mxu0 %v1534
        %v1815 = vpop.f32.mrf.mxu0
        %v1816 = vadd.f32 0.0, %v1815
        %v1817 = vpop.f32.mrf.mxu0
        %1818 = vmatprep.mubr.f32.mxu0 %v1538
        %1819 = vmatmul.mubr.f32.gmra.mxu0 %v1537
        %v1820 = vpop.f32.mrf.mxu0
        %v1821 = vadd.f32 0.0, %v1820
        %v1822 = vpop.f32.mrf.mxu0
        %1823 = vmatprep.mubr.f32.mxu0 %v1541
        %1824 = vmatmul.mubr.f32.gmra.mxu0 %v1540
        %v1825 = vpop.f32.mrf.mxu0
        %v1826 = vadd.f32 0.0, %v1825
        %v1827 = vpop.f32.mrf.mxu0
        %1828 = vmatprep.mubr.f32.mxu0 %v1544
        %1829 = vmatmul.mubr.f32.gmra.mxu0 %v1543
        %v1830 = vpop.f32.mrf.mxu0
        %v1831 = vadd.f32 0.0, %v1830
        %v1832 = vpop.f32.mrf.mxu0
        %1833 = vmatprep.mubr.f32.mxu0 %v1547
        %1834 = vmatmul.mubr.f32.gmra.mxu0 %v1546
        %v1835 = vpop.f32.mrf.mxu0
        %v1836 = vadd.f32 0.0, %v1835
        %v1837 = vpop.f32.mrf.mxu0
        %1838 = vmatprep.mubr.f32.mxu0 %v1550
        %1839 = vmatmul.mubr.f32.gmra.mxu0 %v1549
        %v1840 = vpop.f32.mrf.mxu0
        %v1841 = vadd.f32 0.0, %v1840
        %v1842 = vpop.f32.mrf.mxu0
        %1843 = vmatprep.mubr.f32.mxu0 %v1553
        %1844 = vmatmul.mubr.f32.gmra.mxu0 %v1552
        %v1845 = vpop.f32.mrf.mxu0
        %v1846 = vadd.f32 0.0, %v1845
        %v1847 = vpop.f32.mrf.mxu0
        %1848 = vmatprep.mubr.f32.mxu0 %v1556
        %1849 = vmatmul.mubr.f32.gmra.mxu0 %v1555
        %v1850 = vpop.f32.mrf.mxu0
        %v1851 = vadd.f32 0.0, %v1850
        %v1852 = vpop.f32.mrf.mxu0
        %1853 = vmatprep.mubr.f32.mxu0 %v1559
        %1854 = vmatmul.mubr.f32.gmra.mxu0 %v1558
        %v1855 = vpop.f32.mrf.mxu0
        %v1856 = vadd.f32 0.0, %v1855
        %v1857 = vpop.f32.mrf.mxu0
        %1858 = vmatprep.mubr.f32.mxu0 %v1562
        %1859 = vmatmul.mubr.f32.gmra.mxu0 %v1561
        %v1860 = vpop.f32.mrf.mxu0
        %v1861 = vadd.f32 0.0, %v1860
        %v1862 = vpop.f32.mrf.mxu0
        %1863 = vmatprep.mubr.f32.mxu0 %v1565
        %1864 = vmatmul.mubr.f32.gmra.mxu0 %v1564
        %v1865 = vpop.f32.mrf.mxu0
        %v1866 = vadd.f32 0.0, %v1865
        %v1867 = vpop.f32.mrf.mxu0
        %1868 = vmatprep.mubr.f32.mxu0 %v1568
        %1869 = vmatmul.mubr.f32.gmra.mxu0 %v1567
        %v1870 = vpop.f32.mrf.mxu0
        %v1871 = vadd.f32 0.0, %v1870
        %v1872 = vpop.f32.mrf.mxu0
        %1873 = vmatprep.mubr.f32.mxu0 %v1571
        %1874 = vmatmul.mubr.f32.gmra.mxu0 %v1570
        %v1875 = vpop.f32.mrf.mxu0
        %v1876 = vadd.f32 0.0, %v1875
        %v1877 = vpop.f32.mrf.mxu0
        %1878 = vdwg.mxu0
        %1879 = vmatprep.subr.mxu0 0.0
        %1880 = vmatpush1.msra.mxu0 %v1653
        %1881 = vmatprep.subr.mxu0 0.0
        %1882 = vmatpush1.msra.mxu0 %v1652
        %1883 = vmatprep.subr.mxu0 0.0
        %1884 = vmatpush1.msra.mxu0 %v1651
        %1885 = vmatprep.subr.mxu0 0.0
        %1886 = vmatpush1.msra.mxu0 %v1650
        %1887 = vmatprep.subr.mxu0 0.0
        %1888 = vmatpush1.msra.mxu0 %v1649
        %1889 = vmatprep.subr.mxu0 0.0
        %1890 = vmatpush1.msra.mxu0 %v1648
        %1891 = vmatprep.subr.mxu0 0.0
        %1892 = vmatpush1.msra.mxu0 %v1647
        %1893 = vmatprep.subr.mxu0 0.0
        %1894 = vmatpush1.msra.mxu0 %v1646
        %1895 = vmatprep.subr.mxu0 0.0
        %1896 = vmatpush1.msra.mxu0 %v1645
        %1897 = vmatprep.subr.mxu0 0.0
        %1898 = vmatpush1.msra.mxu0 %v1644
        %1899 = vmatprep.subr.mxu0 0.0
        %1900 = vmatpush1.msra.mxu0 %v1643
        %1901 = vmatprep.subr.mxu0 0.0
        %1902 = vmatpush1.msra.mxu0 %v1642
        %1903 = vmatprep.subr.mxu0 0.0
        %1904 = vmatpush1.msra.mxu0 %v1641
        %1905 = vmatprep.subr.mxu0 0.0
        %1906 = vmatpush1.msra.mxu0 %v1640
        %1907 = vmatprep.subr.mxu0 0.0
        %1908 = vmatpush1.msra.mxu0 %v1639
        %1909 = vmatprep.subr.mxu0 0.0
        %1910 = vmatpush1.msra.mxu0 %v1638
        %1911 = vmatprep.subr.mxu0 0.0
        %1912 = vmatpush2.msra.mxu0 0.0
        %1913 = vmatprep.subr.mxu0 0.0
        %1914 = vmatpush2.msra.mxu0 0.0
        %1915 = vmatprep.subr.mxu0 0.0
        %1916 = vmatpush2.msra.mxu0 0.0
        %1917 = vmatprep.subr.mxu0 0.0
        %1918 = vmatpush2.msra.mxu0 0.0
        %1919 = vmatprep.subr.mxu0 0.0
        %1920 = vmatpush2.msra.mxu0 0.0
        %1921 = vmatprep.subr.mxu0 0.0
        %1922 = vmatpush2.msra.mxu0 0.0
        %1923 = vmatprep.subr.mxu0 0.0
        %1924 = vmatpush2.msra.mxu0 0.0
        %1925 = vmatprep.subr.mxu0 0.0
        %1926 = vmatpush2.msra.mxu0 0.0
        %1927 = vmatprep.subr.mxu0 0.0
        %1928 = vmatpush2.msra.mxu0 0.0
        %1929 = vmatprep.subr.mxu0 0.0
        %1930 = vmatpush2.msra.mxu0 0.0
        %1931 = vmatprep.subr.mxu0 0.0
        %1932 = vmatpush2.msra.mxu0 0.0
        %1933 = vmatprep.subr.mxu0 0.0
        %1934 = vmatpush2.msra.mxu0 0.0
        %1935 = vmatprep.subr.mxu0 0.0
        %1936 = vmatpush2.msra.mxu0 0.0
        %1937 = vmatprep.subr.mxu0 0.0
        %1938 = vmatpush2.msra.mxu0 0.0
        %1939 = vmatprep.subr.mxu0 0.0
        %1940 = vmatpush2.msra.mxu0 0.0
        %1941 = vmatprep.subr.mxu0 0.0
        %1942 = vmatpush2.msra.mxu0 0.0
        %1943 = vmatprep.mubr.f32.mxu0 0.0
        %1944 = vmatmul.mubr.f32.gmra.mxu0 %v1479
        %v1945 = vpop.f32.mrf.mxu0
        %v1946 = vadd.f32 %v1721, %v1945
        %v1947 = vpop.f32.mrf.mxu0
        %1948 = vmatprep.mubr.f32.mxu0 0.0
        %1949 = vmatmul.mubr.f32.gmra.mxu0 %v1482
        %v1950 = vpop.f32.mrf.mxu0
        %v1951 = vadd.f32 %v1726, %v1950
        %v1952 = vpop.f32.mrf.mxu0
        %1953 = vmatprep.mubr.f32.mxu0 0.0
        %1954 = vmatmul.mubr.f32.gmra.mxu0 %v1485
        %v1955 = vpop.f32.mrf.mxu0
        %v1956 = vadd.f32 %v1731, %v1955
        %v1957 = vpop.f32.mrf.mxu0
        %1958 = vmatprep.mubr.f32.mxu0 0.0
        %1959 = vmatmul.mubr.f32.gmra.mxu0 %v1488
        %v1960 = vpop.f32.mrf.mxu0
        %v1961 = vadd.f32 %v1736, %v1960
        %v1962 = vpop.f32.mrf.mxu0
        %1963 = vmatprep.mubr.f32.mxu0 0.0
        %1964 = vmatmul.mubr.f32.gmra.mxu0 %v1491
        %v1965 = vpop.f32.mrf.mxu0
        %v1966 = vadd.f32 %v1741, %v1965
        %v1967 = vpop.f32.mrf.mxu0
        %1968 = vmatprep.mubr.f32.mxu0 0.0
        %1969 = vmatmul.mubr.f32.gmra.mxu0 %v1494
        %v1970 = vpop.f32.mrf.mxu0
        %v1971 = vadd.f32 %v1746, %v1970
        %v1972 = vpop.f32.mrf.mxu0
        %1973 = vmatprep.mubr.f32.mxu0 0.0
        %1974 = vmatmul.mubr.f32.gmra.mxu0 %v1497
        %v1975 = vpop.f32.mrf.mxu0
        %v1976 = vadd.f32 %v1751, %v1975
        %v1977 = vpop.f32.mrf.mxu0
        %1978 = vmatprep.mubr.f32.mxu0 0.0
        %1979 = vmatmul.mubr.f32.gmra.mxu0 %v1500
        %v1980 = vpop.f32.mrf.mxu0
        %v1981 = vadd.f32 %v1756, %v1980
        %v1982 = vpop.f32.mrf.mxu0
        %1983 = vmatprep.mubr.f32.mxu0 0.0
        %1984 = vmatmul.mubr.f32.gmra.mxu0 %v1503
        %v1985 = vpop.f32.mrf.mxu0
        %v1986 = vadd.f32 %v1761, %v1985
        %v1987 = vpop.f32.mrf.mxu0
        %1988 = vmatprep.mubr.f32.mxu0 0.0
        %1989 = vmatmul.mubr.f32.gmra.mxu0 %v1506
        %v1990 = vpop.f32.mrf.mxu0
        %v1991 = vadd.f32 %v1766, %v1990
        %v1992 = vpop.f32.mrf.mxu0
        %1993 = vmatprep.mubr.f32.mxu0 0.0
        %1994 = vmatmul.mubr.f32.gmra.mxu0 %v1509
        %v1995 = vpop.f32.mrf.mxu0
        %v1996 = vadd.f32 %v1771, %v1995
        %v1997 = vpop.f32.mrf.mxu0
        %1998 = vmatprep.mubr.f32.mxu0 0.0
        %1999 = vmatmul.mubr.f32.gmra.mxu0 %v1512
        %v2000 = vpop.f32.mrf.mxu0
        %v2001 = vadd.f32 %v1776, %v2000
        %v2002 = vpop.f32.mrf.mxu0
        %2003 = vmatprep.mubr.f32.mxu0 0.0
        %2004 = vmatmul.mubr.f32.gmra.mxu0 %v1515
        %v2005 = vpop.f32.mrf.mxu0
        %v2006 = vadd.f32 %v1781, %v2005
        %v2007 = vpop.f32.mrf.mxu0
        %2008 = vmatprep.mubr.f32.mxu0 0.0
        %2009 = vmatmul.mubr.f32.gmra.mxu0 %v1518
        %v2010 = vpop.f32.mrf.mxu0
        %v2011 = vadd.f32 %v1786, %v2010
        %v2012 = vpop.f32.mrf.mxu0
        %2013 = vmatprep.mubr.f32.mxu0 0.0
        %2014 = vmatmul.mubr.f32.gmra.mxu0 %v1521
        %v2015 = vpop.f32.mrf.mxu0
        %v2016 = vadd.f32 %v1791, %v2015
        %v2017 = vpop.f32.mrf.mxu0
        %2018 = vmatprep.mubr.f32.mxu0 0.0
        %2019 = vmatmul.mubr.f32.gmra.mxu0 %v1524
        %v2020 = vpop.f32.mrf.mxu0
        %v2021 = vadd.f32 %v1796, %v2020
        %v2022 = vpop.f32.mrf.mxu0
        %2023 = vmatprep.mubr.f32.mxu0 0.0
        %2024 = vmatmul.mubr.f32.gmra.mxu0 %v1527
        %v2025 = vpop.f32.mrf.mxu0
        %v2026 = vadd.f32 %v1801, %v2025
        %v2027 = vpop.f32.mrf.mxu0
        %2028 = vmatprep.mubr.f32.mxu0 0.0
        %2029 = vmatmul.mubr.f32.gmra.mxu0 %v1530
        %v2030 = vpop.f32.mrf.mxu0
        %v2031 = vadd.f32 %v1806, %v2030
        %v2032 = vpop.f32.mrf.mxu0
        %2033 = vmatprep.mubr.f32.mxu0 0.0
        %2034 = vmatmul.mubr.f32.gmra.mxu0 %v1533
        %v2035 = vpop.f32.mrf.mxu0
        %v2036 = vadd.f32 %v1811, %v2035
        %v2037 = vpop.f32.mrf.mxu0
        %2038 = vmatprep.mubr.f32.mxu0 0.0
        %2039 = vmatmul.mubr.f32.gmra.mxu0 %v1536
        %v2040 = vpop.f32.mrf.mxu0
        %v2041 = vadd.f32 %v1816, %v2040
        %v2042 = vpop.f32.mrf.mxu0
        %2043 = vmatprep.mubr.f32.mxu0 0.0
        %2044 = vmatmul.mubr.f32.gmra.mxu0 %v1539
        %v2045 = vpop.f32.mrf.mxu0
        %v2046 = vadd.f32 %v1821, %v2045
        %v2047 = vpop.f32.mrf.mxu0
        %2048 = vmatprep.mubr.f32.mxu0 0.0
        %2049 = vmatmul.mubr.f32.gmra.mxu0 %v1542
        %v2050 = vpop.f32.mrf.mxu0
        %v2051 = vadd.f32 %v1826, %v2050
        %v2052 = vpop.f32.mrf.mxu0
        %2053 = vmatprep.mubr.f32.mxu0 0.0
        %2054 = vmatmul.mubr.f32.gmra.mxu0 %v1545
        %v2055 = vpop.f32.mrf.mxu0
        %v2056 = vadd.f32 %v1831, %v2055
        %v2057 = vpop.f32.mrf.mxu0
        %2058 = vmatprep.mubr.f32.mxu0 0.0
        %2059 = vmatmul.mubr.f32.gmra.mxu0 %v1548
        %v2060 = vpop.f32.mrf.mxu0
        %v2061 = vadd.f32 %v1836, %v2060
        %v2062 = vpop.f32.mrf.mxu0
        %2063 = vmatprep.mubr.f32.mxu0 0.0
        %2064 = vmatmul.mubr.f32.gmra.mxu0 %v1551
        %v2065 = vpop.f32.mrf.mxu0
        %v2066 = vadd.f32 %v1841, %v2065
        %v2067 = vpop.f32.mrf.mxu0
        %2068 = vmatprep.mubr.f32.mxu0 0.0
        %2069 = vmatmul.mubr.f32.gmra.mxu0 %v1554
        %v2070 = vpop.f32.mrf.mxu0
        %v2071 = vadd.f32 %v1846, %v2070
        %v2072 = vpop.f32.mrf.mxu0
        %2073 = vmatprep.mubr.f32.mxu0 0.0
        %2074 = vmatmul.mubr.f32.gmra.mxu0 %v1557
        %v2075 = vpop.f32.mrf.mxu0
        %v2076 = vadd.f32 %v1851, %v2075
        %v2077 = vpop.f32.mrf.mxu0
        %2078 = vmatprep.mubr.f32.mxu0 0.0
        %2079 = vmatmul.mubr.f32.gmra.mxu0 %v1560
        %v2080 = vpop.f32.mrf.mxu0
        %v2081 = vadd.f32 %v1856, %v2080
        %v2082 = vpop.f32.mrf.mxu0
        %2083 = vmatprep.mubr.f32.mxu0 0.0
        %2084 = vmatmul.mubr.f32.gmra.mxu0 %v1563
        %v2085 = vpop.f32.mrf.mxu0
        %v2086 = vadd.f32 %v1861, %v2085
        %v2087 = vpop.f32.mrf.mxu0
        %2088 = vmatprep.mubr.f32.mxu0 0.0
        %2089 = vmatmul.mubr.f32.gmra.mxu0 %v1566
        %v2090 = vpop.f32.mrf.mxu0
        %v2091 = vadd.f32 %v1866, %v2090
        %v2092 = vpop.f32.mrf.mxu0
        %2093 = vmatprep.mubr.f32.mxu0 0.0
        %2094 = vmatmul.mubr.f32.gmra.mxu0 %v1569
        %v2095 = vpop.f32.mrf.mxu0
        %v2096 = vadd.f32 %v1871, %v2095
        %v2097 = vpop.f32.mrf.mxu0
        %2098 = vmatprep.mubr.f32.mxu0 0.0
        %2099 = vmatmul.mubr.f32.gmra.mxu0 %v1572
        %v2100 = vpop.f32.mrf.mxu0
        %v2101 = vadd.f32 %v1876, %v2100
        %v2102 = vpop.f32.mrf.mxu0
        %2103 = vdwg.mxu0
        %v2104 = vadd.f32 %v1573, %v1946
        %v2105 = vadd.f32 %v1574, %v1951
        %v2106 = vadd.f32 %v1575, %v1956
        %v2107 = vadd.f32 %v1576, %v1961
        %v2108 = vadd.f32 %v1577, %v1966
        %v2109 = vadd.f32 %v1578, %v1971
        %v2110 = vadd.f32 %v1579, %v1976
        %v2111 = vadd.f32 %v1580, %v1981
        %v2112 = vadd.f32 %v1581, %v1986
        %v2113 = vadd.f32 %v1582, %v1991
        %v2114 = vadd.f32 %v1583, %v1996
        %v2115 = vadd.f32 %v1584, %v2001
        %v2116 = vadd.f32 %v1585, %v2006
        %v2117 = vadd.f32 %v1586, %v2011
        %v2118 = vadd.f32 %v1587, %v2016
        %v2119 = vadd.f32 %v1588, %v2021
        %v2120 = vadd.f32 %v1589, %v2026
        %v2121 = vadd.f32 %v1590, %v2031
        %v2122 = vadd.f32 %v1591, %v2036
        %v2123 = vadd.f32 %v1592, %v2041
        %v2124 = vadd.f32 %v1593, %v2046
        %v2125 = vadd.f32 %v1594, %v2051
        %v2126 = vadd.f32 %v1595, %v2056
        %v2127 = vadd.f32 %v1596, %v2061
        %v2128 = vadd.f32 %v1597, %v2066
        %v2129 = vadd.f32 %v1598, %v2071
        %v2130 = vadd.f32 %v1599, %v2076
        %v2131 = vadd.f32 %v1600, %v2081
        %v2132 = vadd.f32 %v1601, %v2086
        %v2133 = vadd.f32 %v1602, %v2091
        %v2134 = vadd.f32 %v1603, %v2096
        %v2135 = vadd.f32 %v1604, %v2101
        %2136 = vst [vmem:[#allocation3] sm:$0xff] %v2104
        %2137 = vst [vmem:[#allocation3 + $0x8] sm:$0xff] %v2105
        %2138 = vst [vmem:[#allocation3 + $0x10] sm:$0xff] %v2106
        %2139 = vst [vmem:[#allocation3 + $0x18] sm:$0xff] %v2107
        %2140 = vst [vmem:[#allocation3 + $0x20] sm:$0xff] %v2108
        %2141 = vst [vmem:[#allocation3 + $0x28] sm:$0xff] %v2109
        %2142 = vst [vmem:[#allocation3 + $0x30] sm:$0xff] %v2110
        %2143 = vst [vmem:[#allocation3 + $0x38] sm:$0xff] %v2111
        %2144 = vst [vmem:[#allocation3 + $0x40] sm:$0xff] %v2112
        %2145 = vst [vmem:[#allocation3 + $0x48] sm:$0xff] %v2113
        %2146 = vst [vmem:[#allocation3 + $0x50] sm:$0xff] %v2114
        %2147 = vst [vmem:[#allocation3 + $0x58] sm:$0xff] %v2115
        %2148 = vst [vmem:[#allocation3 + $0x60] sm:$0xff] %v2116
        %2149 = vst [vmem:[#allocation3 + $0x68] sm:$0xff] %v2117
        %2150 = vst [vmem:[#allocation3 + $0x70] sm:$0xff] %v2118
        %2151 = vst [vmem:[#allocation3 + $0x78] sm:$0xff] %v2119
        %2152 = vst [vmem:[#allocation3 + $0x80] sm:$0xff] %v2120
        %2153 = vst [vmem:[#allocation3 + $0x88] sm:$0xff] %v2121
        %2154 = vst [vmem:[#allocation3 + $0x90] sm:$0xff] %v2122
        %2155 = vst [vmem:[#allocation3 + $0x98] sm:$0xff] %v2123
        %2156 = vst [vmem:[#allocation3 + $0xa0] sm:$0xff] %v2124
        %2157 = vst [vmem:[#allocation3 + $0xa8] sm:$0xff] %v2125
        %2158 = vst [vmem:[#allocation3 + $0xb0] sm:$0xff] %v2126
        %2159 = vst [vmem:[#allocation3 + $0xb8] sm:$0xff] %v2127
        %2160 = vst [vmem:[#allocation3 + $0xc0] sm:$0xff] %v2128
        %2161 = vst [vmem:[#allocation3 + $0xc8] sm:$0xff] %v2129
        %2162 = vst [vmem:[#allocation3 + $0xd0] sm:$0xff] %v2130
        %2163 = vst [vmem:[#allocation3 + $0xd8] sm:$0xff] %v2131
        %2164 = vst [vmem:[#allocation3 + $0xe0] sm:$0xff] %v2132
        %2165 = vst [vmem:[#allocation3 + $0xe8] sm:$0xff] %v2133
        %2166 = vst [vmem:[#allocation3 + $0xf0] sm:$0xff] %v2134
        %2167 = vst [vmem:[#allocation3 + $0xf8] sm:$0xff] %v2135
        %s2168 = scalar_lea.vmem [#allocation2], 96
        %v2169 = vld [vmem:[%s2168] sm:$0xff]
        %v2170 = vld [vmem:[%s2168 + $0x8] sm:$0xff]
        %v2171 = vld [vmem:[%s2168 + $0x10] sm:$0xff]
        %v2172 = vld [vmem:[%s2168 + $0x18] sm:$0xff]
        %v2173 = vld [vmem:[%s2168 + $0x20] sm:$0xff]
        %v2174 = vld [vmem:[%s2168 + $0x28] sm:$0xff]
        %v2175 = vld [vmem:[%s2168 + $0x30] sm:$0xff]
        %v2176 = vld [vmem:[%s2168 + $0x38] sm:$0xff]
        %v2177 = vld [vmem:[%s2168 + $0x40] sm:$0xff]
        %v2178 = vld [vmem:[%s2168 + $0x48] sm:$0xff]
        %v2179 = vld [vmem:[%s2168 + $0x50] sm:$0xff]
        %v2180 = vld [vmem:[%s2168 + $0x58] sm:$0xff]
        %v2181 = vld [vmem:[%s2168 + $0x60] sm:$0xff]
        %v2182 = vld [vmem:[%s2168 + $0x68] sm:$0xff]
        %v2183 = vld [vmem:[%s2168 + $0x70] sm:$0xff]
        %v2184 = vld [vmem:[%s2168 + $0x78] sm:$0xff]
        %v2185 = vld [vmem:[%s2168 + $0x80] sm:$0xff]
        %v2186 = vld [vmem:[%s2168 + $0x88] sm:$0xff]
        %v2187 = vld [vmem:[%s2168 + $0x90] sm:$0xff]
        %v2188 = vld [vmem:[%s2168 + $0x98] sm:$0xff]
        %v2189 = vld [vmem:[%s2168 + $0xa0] sm:$0xff]
        %v2190 = vld [vmem:[%s2168 + $0xa8] sm:$0xff]
        %v2191 = vld [vmem:[%s2168 + $0xb0] sm:$0xff]
        %v2192 = vld [vmem:[%s2168 + $0xb8] sm:$0xff]
        %v2193 = vld [vmem:[%s2168 + $0xc0] sm:$0xff]
        %v2194 = vld [vmem:[%s2168 + $0xc8] sm:$0xff]
        %v2195 = vld [vmem:[%s2168 + $0xd0] sm:$0xff]
        %v2196 = vld [vmem:[%s2168 + $0xd8] sm:$0xff]
        %v2197 = vld [vmem:[%s2168 + $0xe0] sm:$0xff]
        %v2198 = vld [vmem:[%s2168 + $0xe8] sm:$0xff]
        %v2199 = vld [vmem:[%s2168 + $0xf0] sm:$0xff]
        %v2200 = vld [vmem:[%s2168 + $0xf8] sm:$0xff]
        %v2201 = vld [vmem:[%s2168 + $0x100] sm:$0xff]
        %v2202 = vld [vmem:[%s2168 + $0x108] sm:$0xff]
        %v2203 = vld [vmem:[%s2168 + $0x110] sm:$0xff]
        %v2204 = vld [vmem:[%s2168 + $0x118] sm:$0xff]
        %v2205 = vld [vmem:[%s2168 + $0x120] sm:$0xff]
        %v2206 = vld [vmem:[%s2168 + $0x128] sm:$0xff]
        %v2207 = vld [vmem:[%s2168 + $0x130] sm:$0xff]
        %v2208 = vld [vmem:[%s2168 + $0x138] sm:$0xff]
        %v2209 = vld [vmem:[%s2168 + $0x140] sm:$0xff]
        %v2210 = vld [vmem:[%s2168 + $0x148] sm:$0xff]
        %v2211 = vld [vmem:[%s2168 + $0x150] sm:$0xff]
        %v2212 = vld [vmem:[%s2168 + $0x158] sm:$0xff]
        %v2213 = vld [vmem:[%s2168 + $0x160] sm:$0xff]
        %v2214 = vld [vmem:[%s2168 + $0x168] sm:$0xff]
        %v2215 = vld [vmem:[%s2168 + $0x170] sm:$0xff]
        %v2216 = vld [vmem:[%s2168 + $0x178] sm:$0xff]
        %v2217 = vld [vmem:[%s2168 + $0x180] sm:$0xff]
        %v2218 = vld [vmem:[%s2168 + $0x188] sm:$0xff]
        %v2219 = vld [vmem:[%s2168 + $0x190] sm:$0xff]
        %v2220 = vld [vmem:[%s2168 + $0x198] sm:$0xff]
        %v2221 = vld [vmem:[%s2168 + $0x1a0] sm:$0xff]
        %v2222 = vld [vmem:[%s2168 + $0x1a8] sm:$0xff]
        %v2223 = vld [vmem:[%s2168 + $0x1b0] sm:$0xff]
        %v2224 = vld [vmem:[%s2168 + $0x1b8] sm:$0xff]
        %v2225 = vld [vmem:[%s2168 + $0x1c0] sm:$0xff]
        %v2226 = vld [vmem:[%s2168 + $0x1c8] sm:$0xff]
        %v2227 = vld [vmem:[%s2168 + $0x1d0] sm:$0xff]
        %v2228 = vld [vmem:[%s2168 + $0x1d8] sm:$0xff]
        %v2229 = vld [vmem:[%s2168 + $0x1e0] sm:$0xff]
        %v2230 = vld [vmem:[%s2168 + $0x1e8] sm:$0xff]
        %v2231 = vld [vmem:[%s2168 + $0x1f0] sm:$0xff]
        %v2232 = vld [vmem:[%s2168 + $0x1f8] sm:$0xff]
        %v2233 = vld [vmem:[%s2168 + $0x200] sm:$0xff]
        %v2234 = vld [vmem:[%s2168 + $0x208] sm:$0xff]
        %v2235 = vld [vmem:[%s2168 + $0x210] sm:$0xff]
        %v2236 = vld [vmem:[%s2168 + $0x218] sm:$0xff]
        %v2237 = vld [vmem:[%s2168 + $0x220] sm:$0xff]
        %v2238 = vld [vmem:[%s2168 + $0x228] sm:$0xff]
        %v2239 = vld [vmem:[%s2168 + $0x230] sm:$0xff]
        %v2240 = vld [vmem:[%s2168 + $0x238] sm:$0xff]
        %v2241 = vld [vmem:[%s2168 + $0x240] sm:$0xff]
        %v2242 = vld [vmem:[%s2168 + $0x248] sm:$0xff]
        %v2243 = vld [vmem:[%s2168 + $0x250] sm:$0xff]
        %v2244 = vld [vmem:[%s2168 + $0x258] sm:$0xff]
        %v2245 = vld [vmem:[%s2168 + $0x260] sm:$0xff]
        %v2246 = vld [vmem:[%s2168 + $0x268] sm:$0xff]
        %v2247 = vld [vmem:[%s2168 + $0x270] sm:$0xff]
        %v2248 = vld [vmem:[%s2168 + $0x278] sm:$0xff]
        %v2249 = vld [vmem:[%s2168 + $0x280] sm:$0xff]
        %v2250 = vld [vmem:[%s2168 + $0x288] sm:$0xff]
        %v2251 = vld [vmem:[%s2168 + $0x290] sm:$0xff]
        %v2252 = vld [vmem:[%s2168 + $0x298] sm:$0xff]
        %v2253 = vld [vmem:[%s2168 + $0x2a0] sm:$0xff]
        %v2254 = vld [vmem:[%s2168 + $0x2a8] sm:$0xff]
        %v2255 = vld [vmem:[%s2168 + $0x2b0] sm:$0xff]
        %v2256 = vld [vmem:[%s2168 + $0x2b8] sm:$0xff]
        %v2257 = vld [vmem:[%s2168 + $0x2c0] sm:$0xff]
        %v2258 = vld [vmem:[%s2168 + $0x2c8] sm:$0xff]
        %v2259 = vld [vmem:[%s2168 + $0x2d0] sm:$0xff]
        %v2260 = vld [vmem:[%s2168 + $0x2d8] sm:$0xff]
        %v2261 = vld [vmem:[%s2168 + $0x2e0] sm:$0xff]
        %v2262 = vld [vmem:[%s2168 + $0x2e8] sm:$0xff]
        %v2263 = vld [vmem:[%s2168 + $0x2f0] sm:$0xff]
        %v2264 = vld [vmem:[%s2168 + $0x2f8] sm:$0xff]
        %v2265 = vld [vmem:[#allocation3] sm:$0xff]
        %v2266 = vld [vmem:[#allocation3 + $0x8] sm:$0xff]
        %v2267 = vld [vmem:[#allocation3 + $0x10] sm:$0xff]
        %v2268 = vld [vmem:[#allocation3 + $0x18] sm:$0xff]
        %v2269 = vld [vmem:[#allocation3 + $0x20] sm:$0xff]
        %v2270 = vld [vmem:[#allocation3 + $0x28] sm:$0xff]
        %v2271 = vld [vmem:[#allocation3 + $0x30] sm:$0xff]
        %v2272 = vld [vmem:[#allocation3 + $0x38] sm:$0xff]
        %v2273 = vld [vmem:[#allocation3 + $0x40] sm:$0xff]
        %v2274 = vld [vmem:[#allocation3 + $0x48] sm:$0xff]
        %v2275 = vld [vmem:[#allocation3 + $0x50] sm:$0xff]
        %v2276 = vld [vmem:[#allocation3 + $0x58] sm:$0xff]
        %v2277 = vld [vmem:[#allocation3 + $0x60] sm:$0xff]
        %v2278 = vld [vmem:[#allocation3 + $0x68] sm:$0xff]
        %v2279 = vld [vmem:[#allocation3 + $0x70] sm:$0xff]
        %v2280 = vld [vmem:[#allocation3 + $0x78] sm:$0xff]
        %v2281 = vld [vmem:[#allocation3 + $0x80] sm:$0xff]
        %v2282 = vld [vmem:[#allocation3 + $0x88] sm:$0xff]
        %v2283 = vld [vmem:[#allocation3 + $0x90] sm:$0xff]
        %v2284 = vld [vmem:[#allocation3 + $0x98] sm:$0xff]
        %v2285 = vld [vmem:[#allocation3 + $0xa0] sm:$0xff]
        %v2286 = vld [vmem:[#allocation3 + $0xa8] sm:$0xff]
        %v2287 = vld [vmem:[#allocation3 + $0xb0] sm:$0xff]
        %v2288 = vld [vmem:[#allocation3 + $0xb8] sm:$0xff]
        %v2289 = vld [vmem:[#allocation3 + $0xc0] sm:$0xff]
        %v2290 = vld [vmem:[#allocation3 + $0xc8] sm:$0xff]
        %v2291 = vld [vmem:[#allocation3 + $0xd0] sm:$0xff]
        %v2292 = vld [vmem:[#allocation3 + $0xd8] sm:$0xff]
        %v2293 = vld [vmem:[#allocation3 + $0xe0] sm:$0xff]
        %v2294 = vld [vmem:[#allocation3 + $0xe8] sm:$0xff]
        %v2295 = vld [vmem:[#allocation3 + $0xf0] sm:$0xff]
        %v2296 = vld [vmem:[#allocation3 + $0xf8] sm:$0xff]
        %s2297 = scalar_lea.vmem %s3, 768
        %v2298 = vld [vmem:[%s2297] sm:$0xff]
        %v2299 = vld [vmem:[%s2297 + $0x8] sm:$0xff]
        %v2300 = vld [vmem:[%s2297 + $0x10] sm:$0xff]
        %v2301 = vld [vmem:[%s2297 + $0x18] sm:$0xff]
        %v2302 = vld [vmem:[%s2297 + $0x20] sm:$0xff]
        %v2303 = vld [vmem:[%s2297 + $0x28] sm:$0xff]
        %v2304 = vld [vmem:[%s2297 + $0x30] sm:$0xff]
        %v2305 = vld [vmem:[%s2297 + $0x38] sm:$0xff]
        %v2306 = vld [vmem:[%s2297 + $0x40] sm:$0xff]
        %v2307 = vld [vmem:[%s2297 + $0x48] sm:$0xff]
        %v2308 = vld [vmem:[%s2297 + $0x50] sm:$0xff]
        %v2309 = vld [vmem:[%s2297 + $0x58] sm:$0xff]
        %v2310 = vld [vmem:[%s2297 + $0x60] sm:$0xff]
        %v2311 = vld [vmem:[%s2297 + $0x68] sm:$0xff]
        %v2312 = vld [vmem:[%s2297 + $0x70] sm:$0xff]
        %v2313 = vld [vmem:[%s2297 + $0x78] sm:$0xff]
        %v2314 = vld [vmem:[%s2297 + $0x80] sm:$0xff]
        %v2315 = vld [vmem:[%s2297 + $0x88] sm:$0xff]
        %v2316 = vld [vmem:[%s2297 + $0x90] sm:$0xff]
        %v2317 = vld [vmem:[%s2297 + $0x98] sm:$0xff]
        %v2318 = vld [vmem:[%s2297 + $0xa0] sm:$0xff]
        %v2319 = vld [vmem:[%s2297 + $0xa8] sm:$0xff]
        %v2320 = vld [vmem:[%s2297 + $0xb0] sm:$0xff]
        %v2321 = vld [vmem:[%s2297 + $0xb8] sm:$0xff]
        %v2322 = vld [vmem:[%s2297 + $0xc0] sm:$0xff]
        %v2323 = vld [vmem:[%s2297 + $0xc8] sm:$0xff]
        %v2324 = vld [vmem:[%s2297 + $0xd0] sm:$0xff]
        %v2325 = vld [vmem:[%s2297 + $0xd8] sm:$0xff]
        %v2326 = vld [vmem:[%s2297 + $0xe0] sm:$0xff]
        %v2327 = vld [vmem:[%s2297 + $0xe8] sm:$0xff]
        %v2328 = vld [vmem:[%s2297 + $0xf0] sm:$0xff]
        %v2329 = vld [vmem:[%s2297 + $0xf8] sm:$0xff]
        %v2330 = vld [vmem:[%s2297 + $0x100] sm:$0xff]
        %v2331 = vld [vmem:[%s2297 + $0x108] sm:$0xff]
        %v2332 = vld [vmem:[%s2297 + $0x110] sm:$0xff]
        %v2333 = vld [vmem:[%s2297 + $0x118] sm:$0xff]
        %v2334 = vld [vmem:[%s2297 + $0x120] sm:$0xff]
        %v2335 = vld [vmem:[%s2297 + $0x128] sm:$0xff]
        %v2336 = vld [vmem:[%s2297 + $0x130] sm:$0xff]
        %v2337 = vld [vmem:[%s2297 + $0x138] sm:$0xff]
        %v2338 = vld [vmem:[%s2297 + $0x140] sm:$0xff]
        %v2339 = vld [vmem:[%s2297 + $0x148] sm:$0xff]
        %v2340 = vld [vmem:[%s2297 + $0x150] sm:$0xff]
        %v2341 = vld [vmem:[%s2297 + $0x158] sm:$0xff]
        %v2342 = vld [vmem:[%s2297 + $0x160] sm:$0xff]
        %v2343 = vld [vmem:[%s2297 + $0x168] sm:$0xff]
        %v2344 = vld [vmem:[%s2297 + $0x170] sm:$0xff]
        %v2345 = vld [vmem:[%s2297 + $0x178] sm:$0xff]
        %2346 = vmatprep.subr.mxu0 0.0
        %2347 = vmatpush1.msra.mxu0 %v2313
        %2348 = vmatprep.subr.mxu0 0.0
        %2349 = vmatpush1.msra.mxu0 %v2312
        %2350 = vmatprep.subr.mxu0 0.0
        %2351 = vmatpush1.msra.mxu0 %v2311
        %2352 = vmatprep.subr.mxu0 0.0
        %2353 = vmatpush1.msra.mxu0 %v2310
        %2354 = vmatprep.subr.mxu0 0.0
        %2355 = vmatpush1.msra.mxu0 %v2309
        %2356 = vmatprep.subr.mxu0 0.0
        %2357 = vmatpush1.msra.mxu0 %v2308
        %2358 = vmatprep.subr.mxu0 0.0
        %2359 = vmatpush1.msra.mxu0 %v2307
        %2360 = vmatprep.subr.mxu0 0.0
        %2361 = vmatpush1.msra.mxu0 %v2306
        %2362 = vmatprep.subr.mxu0 0.0
        %2363 = vmatpush1.msra.mxu0 %v2305
        %2364 = vmatprep.subr.mxu0 0.0
        %2365 = vmatpush1.msra.mxu0 %v2304
        %2366 = vmatprep.subr.mxu0 0.0
        %2367 = vmatpush1.msra.mxu0 %v2303
        %2368 = vmatprep.subr.mxu0 0.0
        %2369 = vmatpush1.msra.mxu0 %v2302
        %2370 = vmatprep.subr.mxu0 0.0
        %2371 = vmatpush1.msra.mxu0 %v2301
        %2372 = vmatprep.subr.mxu0 0.0
        %2373 = vmatpush1.msra.mxu0 %v2300
        %2374 = vmatprep.subr.mxu0 0.0
        %2375 = vmatpush1.msra.mxu0 %v2299
        %2376 = vmatprep.subr.mxu0 0.0
        %2377 = vmatpush1.msra.mxu0 %v2298
        %2378 = vmatprep.subr.mxu0 0.0
        %2379 = vmatpush2.msra.mxu0 %v2329
        %2380 = vmatprep.subr.mxu0 0.0
        %2381 = vmatpush2.msra.mxu0 %v2328
        %2382 = vmatprep.subr.mxu0 0.0
        %2383 = vmatpush2.msra.mxu0 %v2327
        %2384 = vmatprep.subr.mxu0 0.0
        %2385 = vmatpush2.msra.mxu0 %v2326
        %2386 = vmatprep.subr.mxu0 0.0
        %2387 = vmatpush2.msra.mxu0 %v2325
        %2388 = vmatprep.subr.mxu0 0.0
        %2389 = vmatpush2.msra.mxu0 %v2324
        %2390 = vmatprep.subr.mxu0 0.0
        %2391 = vmatpush2.msra.mxu0 %v2323
        %2392 = vmatprep.subr.mxu0 0.0
        %2393 = vmatpush2.msra.mxu0 %v2322
        %2394 = vmatprep.subr.mxu0 0.0
        %2395 = vmatpush2.msra.mxu0 %v2321
        %2396 = vmatprep.subr.mxu0 0.0
        %2397 = vmatpush2.msra.mxu0 %v2320
        %2398 = vmatprep.subr.mxu0 0.0
        %2399 = vmatpush2.msra.mxu0 %v2319
        %2400 = vmatprep.subr.mxu0 0.0
        %2401 = vmatpush2.msra.mxu0 %v2318
        %2402 = vmatprep.subr.mxu0 0.0
        %2403 = vmatpush2.msra.mxu0 %v2317
        %2404 = vmatprep.subr.mxu0 0.0
        %2405 = vmatpush2.msra.mxu0 %v2316
        %2406 = vmatprep.subr.mxu0 0.0
        %2407 = vmatpush2.msra.mxu0 %v2315
        %2408 = vmatprep.subr.mxu0 0.0
        %2409 = vmatpush2.msra.mxu0 %v2314
        %2410 = vmatprep.mubr.f32.mxu0 %v2170
        %2411 = vmatmul.mubr.f32.gmra.mxu0 %v2169
        %v2412 = vpop.f32.mrf.mxu0
        %v2413 = vadd.f32 0.0, %v2412
        %v2414 = vpop.f32.mrf.mxu0
        %2415 = vmatprep.mubr.f32.mxu0 %v2173
        %2416 = vmatmul.mubr.f32.gmra.mxu0 %v2172
        %v2417 = vpop.f32.mrf.mxu0
        %v2418 = vadd.f32 0.0, %v2417
        %v2419 = vpop.f32.mrf.mxu0
        %2420 = vmatprep.mubr.f32.mxu0 %v2176
        %2421 = vmatmul.mubr.f32.gmra.mxu0 %v2175
        %v2422 = vpop.f32.mrf.mxu0
        %v2423 = vadd.f32 0.0, %v2422
        %v2424 = vpop.f32.mrf.mxu0
        %2425 = vmatprep.mubr.f32.mxu0 %v2179
        %2426 = vmatmul.mubr.f32.gmra.mxu0 %v2178
        %v2427 = vpop.f32.mrf.mxu0
        %v2428 = vadd.f32 0.0, %v2427
        %v2429 = vpop.f32.mrf.mxu0
        %2430 = vmatprep.mubr.f32.mxu0 %v2182
        %2431 = vmatmul.mubr.f32.gmra.mxu0 %v2181
        %v2432 = vpop.f32.mrf.mxu0
        %v2433 = vadd.f32 0.0, %v2432
        %v2434 = vpop.f32.mrf.mxu0
        %2435 = vmatprep.mubr.f32.mxu0 %v2185
        %2436 = vmatmul.mubr.f32.gmra.mxu0 %v2184
        %v2437 = vpop.f32.mrf.mxu0
        %v2438 = vadd.f32 0.0, %v2437
        %v2439 = vpop.f32.mrf.mxu0
        %2440 = vmatprep.mubr.f32.mxu0 %v2188
        %2441 = vmatmul.mubr.f32.gmra.mxu0 %v2187
        %v2442 = vpop.f32.mrf.mxu0
        %v2443 = vadd.f32 0.0, %v2442
        %v2444 = vpop.f32.mrf.mxu0
        %2445 = vmatprep.mubr.f32.mxu0 %v2191
        %2446 = vmatmul.mubr.f32.gmra.mxu0 %v2190
        %v2447 = vpop.f32.mrf.mxu0
        %v2448 = vadd.f32 0.0, %v2447
        %v2449 = vpop.f32.mrf.mxu0
        %2450 = vmatprep.mubr.f32.mxu0 %v2194
        %2451 = vmatmul.mubr.f32.gmra.mxu0 %v2193
        %v2452 = vpop.f32.mrf.mxu0
        %v2453 = vadd.f32 0.0, %v2452
        %v2454 = vpop.f32.mrf.mxu0
        %2455 = vmatprep.mubr.f32.mxu0 %v2197
        %2456 = vmatmul.mubr.f32.gmra.mxu0 %v2196
        %v2457 = vpop.f32.mrf.mxu0
        %v2458 = vadd.f32 0.0, %v2457
        %v2459 = vpop.f32.mrf.mxu0
        %2460 = vmatprep.mubr.f32.mxu0 %v2200
        %2461 = vmatmul.mubr.f32.gmra.mxu0 %v2199
        %v2462 = vpop.f32.mrf.mxu0
        %v2463 = vadd.f32 0.0, %v2462
        %v2464 = vpop.f32.mrf.mxu0
        %2465 = vmatprep.mubr.f32.mxu0 %v2203
        %2466 = vmatmul.mubr.f32.gmra.mxu0 %v2202
        %v2467 = vpop.f32.mrf.mxu0
        %v2468 = vadd.f32 0.0, %v2467
        %v2469 = vpop.f32.mrf.mxu0
        %2470 = vmatprep.mubr.f32.mxu0 %v2206
        %2471 = vmatmul.mubr.f32.gmra.mxu0 %v2205
        %v2472 = vpop.f32.mrf.mxu0
        %v2473 = vadd.f32 0.0, %v2472
        %v2474 = vpop.f32.mrf.mxu0
        %2475 = vmatprep.mubr.f32.mxu0 %v2209
        %2476 = vmatmul.mubr.f32.gmra.mxu0 %v2208
        %v2477 = vpop.f32.mrf.mxu0
        %v2478 = vadd.f32 0.0, %v2477
        %v2479 = vpop.f32.mrf.mxu0
        %2480 = vmatprep.mubr.f32.mxu0 %v2212
        %2481 = vmatmul.mubr.f32.gmra.mxu0 %v2211
        %v2482 = vpop.f32.mrf.mxu0
        %v2483 = vadd.f32 0.0, %v2482
        %v2484 = vpop.f32.mrf.mxu0
        %2485 = vmatprep.mubr.f32.mxu0 %v2215
        %2486 = vmatmul.mubr.f32.gmra.mxu0 %v2214
        %v2487 = vpop.f32.mrf.mxu0
        %v2488 = vadd.f32 0.0, %v2487
        %v2489 = vpop.f32.mrf.mxu0
        %2490 = vmatprep.mubr.f32.mxu0 %v2218
        %2491 = vmatmul.mubr.f32.gmra.mxu0 %v2217
        %v2492 = vpop.f32.mrf.mxu0
        %v2493 = vadd.f32 0.0, %v2492
        %v2494 = vpop.f32.mrf.mxu0
        %2495 = vmatprep.mubr.f32.mxu0 %v2221
        %2496 = vmatmul.mubr.f32.gmra.mxu0 %v2220
        %v2497 = vpop.f32.mrf.mxu0
        %v2498 = vadd.f32 0.0, %v2497
        %v2499 = vpop.f32.mrf.mxu0
        %2500 = vmatprep.mubr.f32.mxu0 %v2224
        %2501 = vmatmul.mubr.f32.gmra.mxu0 %v2223
        %v2502 = vpop.f32.mrf.mxu0
        %v2503 = vadd.f32 0.0, %v2502
        %v2504 = vpop.f32.mrf.mxu0
        %2505 = vmatprep.mubr.f32.mxu0 %v2227
        %2506 = vmatmul.mubr.f32.gmra.mxu0 %v2226
        %v2507 = vpop.f32.mrf.mxu0
        %v2508 = vadd.f32 0.0, %v2507
        %v2509 = vpop.f32.mrf.mxu0
        %2510 = vmatprep.mubr.f32.mxu0 %v2230
        %2511 = vmatmul.mubr.f32.gmra.mxu0 %v2229
        %v2512 = vpop.f32.mrf.mxu0
        %v2513 = vadd.f32 0.0, %v2512
        %v2514 = vpop.f32.mrf.mxu0
        %2515 = vmatprep.mubr.f32.mxu0 %v2233
        %2516 = vmatmul.mubr.f32.gmra.mxu0 %v2232
        %v2517 = vpop.f32.mrf.mxu0
        %v2518 = vadd.f32 0.0, %v2517
        %v2519 = vpop.f32.mrf.mxu0
        %2520 = vmatprep.mubr.f32.mxu0 %v2236
        %2521 = vmatmul.mubr.f32.gmra.mxu0 %v2235
        %v2522 = vpop.f32.mrf.mxu0
        %v2523 = vadd.f32 0.0, %v2522
        %v2524 = vpop.f32.mrf.mxu0
        %2525 = vmatprep.mubr.f32.mxu0 %v2239
        %2526 = vmatmul.mubr.f32.gmra.mxu0 %v2238
        %v2527 = vpop.f32.mrf.mxu0
        %v2528 = vadd.f32 0.0, %v2527
        %v2529 = vpop.f32.mrf.mxu0
        %2530 = vmatprep.mubr.f32.mxu0 %v2242
        %2531 = vmatmul.mubr.f32.gmra.mxu0 %v2241
        %v2532 = vpop.f32.mrf.mxu0
        %v2533 = vadd.f32 0.0, %v2532
        %v2534 = vpop.f32.mrf.mxu0
        %2535 = vmatprep.mubr.f32.mxu0 %v2245
        %2536 = vmatmul.mubr.f32.gmra.mxu0 %v2244
        %v2537 = vpop.f32.mrf.mxu0
        %v2538 = vadd.f32 0.0, %v2537
        %v2539 = vpop.f32.mrf.mxu0
        %2540 = vmatprep.mubr.f32.mxu0 %v2248
        %2541 = vmatmul.mubr.f32.gmra.mxu0 %v2247
        %v2542 = vpop.f32.mrf.mxu0
        %v2543 = vadd.f32 0.0, %v2542
        %v2544 = vpop.f32.mrf.mxu0
        %2545 = vmatprep.mubr.f32.mxu0 %v2251
        %2546 = vmatmul.mubr.f32.gmra.mxu0 %v2250
        %v2547 = vpop.f32.mrf.mxu0
        %v2548 = vadd.f32 0.0, %v2547
        %v2549 = vpop.f32.mrf.mxu0
        %2550 = vmatprep.mubr.f32.mxu0 %v2254
        %2551 = vmatmul.mubr.f32.gmra.mxu0 %v2253
        %v2552 = vpop.f32.mrf.mxu0
        %v2553 = vadd.f32 0.0, %v2552
        %v2554 = vpop.f32.mrf.mxu0
        %2555 = vmatprep.mubr.f32.mxu0 %v2257
        %2556 = vmatmul.mubr.f32.gmra.mxu0 %v2256
        %v2557 = vpop.f32.mrf.mxu0
        %v2558 = vadd.f32 0.0, %v2557
        %v2559 = vpop.f32.mrf.mxu0
        %2560 = vmatprep.mubr.f32.mxu0 %v2260
        %2561 = vmatmul.mubr.f32.gmra.mxu0 %v2259
        %v2562 = vpop.f32.mrf.mxu0
        %v2563 = vadd.f32 0.0, %v2562
        %v2564 = vpop.f32.mrf.mxu0
        %2565 = vmatprep.mubr.f32.mxu0 %v2263
        %2566 = vmatmul.mubr.f32.gmra.mxu0 %v2262
        %v2567 = vpop.f32.mrf.mxu0
        %v2568 = vadd.f32 0.0, %v2567
        %v2569 = vpop.f32.mrf.mxu0
        %2570 = vdwg.mxu0
        %2571 = vmatprep.subr.mxu0 0.0
        %2572 = vmatpush1.msra.mxu0 %v2345
        %2573 = vmatprep.subr.mxu0 0.0
        %2574 = vmatpush1.msra.mxu0 %v2344
        %2575 = vmatprep.subr.mxu0 0.0
        %2576 = vmatpush1.msra.mxu0 %v2343
        %2577 = vmatprep.subr.mxu0 0.0
        %2578 = vmatpush1.msra.mxu0 %v2342
        %2579 = vmatprep.subr.mxu0 0.0
        %2580 = vmatpush1.msra.mxu0 %v2341
        %2581 = vmatprep.subr.mxu0 0.0
        %2582 = vmatpush1.msra.mxu0 %v2340
        %2583 = vmatprep.subr.mxu0 0.0
        %2584 = vmatpush1.msra.mxu0 %v2339
        %2585 = vmatprep.subr.mxu0 0.0
        %2586 = vmatpush1.msra.mxu0 %v2338
        %2587 = vmatprep.subr.mxu0 0.0
        %2588 = vmatpush1.msra.mxu0 %v2337
        %2589 = vmatprep.subr.mxu0 0.0
        %2590 = vmatpush1.msra.mxu0 %v2336
        %2591 = vmatprep.subr.mxu0 0.0
        %2592 = vmatpush1.msra.mxu0 %v2335
        %2593 = vmatprep.subr.mxu0 0.0
        %2594 = vmatpush1.msra.mxu0 %v2334
        %2595 = vmatprep.subr.mxu0 0.0
        %2596 = vmatpush1.msra.mxu0 %v2333
        %2597 = vmatprep.subr.mxu0 0.0
        %2598 = vmatpush1.msra.mxu0 %v2332
        %2599 = vmatprep.subr.mxu0 0.0
        %2600 = vmatpush1.msra.mxu0 %v2331
        %2601 = vmatprep.subr.mxu0 0.0
        %2602 = vmatpush1.msra.mxu0 %v2330
        %2603 = vmatprep.subr.mxu0 0.0
        %2604 = vmatpush2.msra.mxu0 0.0
        %2605 = vmatprep.subr.mxu0 0.0
        %2606 = vmatpush2.msra.mxu0 0.0
        %2607 = vmatprep.subr.mxu0 0.0
        %2608 = vmatpush2.msra.mxu0 0.0
        %2609 = vmatprep.subr.mxu0 0.0
        %2610 = vmatpush2.msra.mxu0 0.0
        %2611 = vmatprep.subr.mxu0 0.0
        %2612 = vmatpush2.msra.mxu0 0.0
        %2613 = vmatprep.subr.mxu0 0.0
        %2614 = vmatpush2.msra.mxu0 0.0
        %2615 = vmatprep.subr.mxu0 0.0
        %2616 = vmatpush2.msra.mxu0 0.0
        %2617 = vmatprep.subr.mxu0 0.0
        %2618 = vmatpush2.msra.mxu0 0.0
        %2619 = vmatprep.subr.mxu0 0.0
        %2620 = vmatpush2.msra.mxu0 0.0
        %2621 = vmatprep.subr.mxu0 0.0
        %2622 = vmatpush2.msra.mxu0 0.0
        %2623 = vmatprep.subr.mxu0 0.0
        %2624 = vmatpush2.msra.mxu0 0.0
        %2625 = vmatprep.subr.mxu0 0.0
        %2626 = vmatpush2.msra.mxu0 0.0
        %2627 = vmatprep.subr.mxu0 0.0
        %2628 = vmatpush2.msra.mxu0 0.0
        %2629 = vmatprep.subr.mxu0 0.0
        %2630 = vmatpush2.msra.mxu0 0.0
        %2631 = vmatprep.subr.mxu0 0.0
        %2632 = vmatpush2.msra.mxu0 0.0
        %2633 = vmatprep.subr.mxu0 0.0
        %2634 = vmatpush2.msra.mxu0 0.0
        %2635 = vmatprep.mubr.f32.mxu0 0.0
        %2636 = vmatmul.mubr.f32.gmra.mxu0 %v2171
        %v2637 = vpop.f32.mrf.mxu0
        %v2638 = vadd.f32 %v2413, %v2637
        %v2639 = vpop.f32.mrf.mxu0
        %2640 = vmatprep.mubr.f32.mxu0 0.0
        %2641 = vmatmul.mubr.f32.gmra.mxu0 %v2174
        %v2642 = vpop.f32.mrf.mxu0
        %v2643 = vadd.f32 %v2418, %v2642
        %v2644 = vpop.f32.mrf.mxu0
        %2645 = vmatprep.mubr.f32.mxu0 0.0
        %2646 = vmatmul.mubr.f32.gmra.mxu0 %v2177
        %v2647 = vpop.f32.mrf.mxu0
        %v2648 = vadd.f32 %v2423, %v2647
        %v2649 = vpop.f32.mrf.mxu0
        %2650 = vmatprep.mubr.f32.mxu0 0.0
        %2651 = vmatmul.mubr.f32.gmra.mxu0 %v2180
        %v2652 = vpop.f32.mrf.mxu0
        %v2653 = vadd.f32 %v2428, %v2652
        %v2654 = vpop.f32.mrf.mxu0
        %2655 = vmatprep.mubr.f32.mxu0 0.0
        %2656 = vmatmul.mubr.f32.gmra.mxu0 %v2183
        %v2657 = vpop.f32.mrf.mxu0
        %v2658 = vadd.f32 %v2433, %v2657
        %v2659 = vpop.f32.mrf.mxu0
        %2660 = vmatprep.mubr.f32.mxu0 0.0
        %2661 = vmatmul.mubr.f32.gmra.mxu0 %v2186
        %v2662 = vpop.f32.mrf.mxu0
        %v2663 = vadd.f32 %v2438, %v2662
        %v2664 = vpop.f32.mrf.mxu0
        %2665 = vmatprep.mubr.f32.mxu0 0.0
        %2666 = vmatmul.mubr.f32.gmra.mxu0 %v2189
        %v2667 = vpop.f32.mrf.mxu0
        %v2668 = vadd.f32 %v2443, %v2667
        %v2669 = vpop.f32.mrf.mxu0
        %2670 = vmatprep.mubr.f32.mxu0 0.0
        %2671 = vmatmul.mubr.f32.gmra.mxu0 %v2192
        %v2672 = vpop.f32.mrf.mxu0
        %v2673 = vadd.f32 %v2448, %v2672
        %v2674 = vpop.f32.mrf.mxu0
        %2675 = vmatprep.mubr.f32.mxu0 0.0
        %2676 = vmatmul.mubr.f32.gmra.mxu0 %v2195
        %v2677 = vpop.f32.mrf.mxu0
        %v2678 = vadd.f32 %v2453, %v2677
        %v2679 = vpop.f32.mrf.mxu0
        %2680 = vmatprep.mubr.f32.mxu0 0.0
        %2681 = vmatmul.mubr.f32.gmra.mxu0 %v2198
        %v2682 = vpop.f32.mrf.mxu0
        %v2683 = vadd.f32 %v2458, %v2682
        %v2684 = vpop.f32.mrf.mxu0
        %2685 = vmatprep.mubr.f32.mxu0 0.0
        %2686 = vmatmul.mubr.f32.gmra.mxu0 %v2201
        %v2687 = vpop.f32.mrf.mxu0
        %v2688 = vadd.f32 %v2463, %v2687
        %v2689 = vpop.f32.mrf.mxu0
        %2690 = vmatprep.mubr.f32.mxu0 0.0
        %2691 = vmatmul.mubr.f32.gmra.mxu0 %v2204
        %v2692 = vpop.f32.mrf.mxu0
        %v2693 = vadd.f32 %v2468, %v2692
        %v2694 = vpop.f32.mrf.mxu0
        %2695 = vmatprep.mubr.f32.mxu0 0.0
        %2696 = vmatmul.mubr.f32.gmra.mxu0 %v2207
        %v2697 = vpop.f32.mrf.mxu0
        %v2698 = vadd.f32 %v2473, %v2697
        %v2699 = vpop.f32.mrf.mxu0
        %2700 = vmatprep.mubr.f32.mxu0 0.0
        %2701 = vmatmul.mubr.f32.gmra.mxu0 %v2210
        %v2702 = vpop.f32.mrf.mxu0
        %v2703 = vadd.f32 %v2478, %v2702
        %v2704 = vpop.f32.mrf.mxu0
        %2705 = vmatprep.mubr.f32.mxu0 0.0
        %2706 = vmatmul.mubr.f32.gmra.mxu0 %v2213
        %v2707 = vpop.f32.mrf.mxu0
        %v2708 = vadd.f32 %v2483, %v2707
        %v2709 = vpop.f32.mrf.mxu0
        %2710 = vmatprep.mubr.f32.mxu0 0.0
        %2711 = vmatmul.mubr.f32.gmra.mxu0 %v2216
        %v2712 = vpop.f32.mrf.mxu0
        %v2713 = vadd.f32 %v2488, %v2712
        %v2714 = vpop.f32.mrf.mxu0
        %2715 = vmatprep.mubr.f32.mxu0 0.0
        %2716 = vmatmul.mubr.f32.gmra.mxu0 %v2219
        %v2717 = vpop.f32.mrf.mxu0
        %v2718 = vadd.f32 %v2493, %v2717
        %v2719 = vpop.f32.mrf.mxu0
        %2720 = vmatprep.mubr.f32.mxu0 0.0
        %2721 = vmatmul.mubr.f32.gmra.mxu0 %v2222
        %v2722 = vpop.f32.mrf.mxu0
        %v2723 = vadd.f32 %v2498, %v2722
        %v2724 = vpop.f32.mrf.mxu0
        %2725 = vmatprep.mubr.f32.mxu0 0.0
        %2726 = vmatmul.mubr.f32.gmra.mxu0 %v2225
        %v2727 = vpop.f32.mrf.mxu0
        %v2728 = vadd.f32 %v2503, %v2727
        %v2729 = vpop.f32.mrf.mxu0
        %2730 = vmatprep.mubr.f32.mxu0 0.0
        %2731 = vmatmul.mubr.f32.gmra.mxu0 %v2228
        %v2732 = vpop.f32.mrf.mxu0
        %v2733 = vadd.f32 %v2508, %v2732
        %v2734 = vpop.f32.mrf.mxu0
        %2735 = vmatprep.mubr.f32.mxu0 0.0
        %2736 = vmatmul.mubr.f32.gmra.mxu0 %v2231
        %v2737 = vpop.f32.mrf.mxu0
        %v2738 = vadd.f32 %v2513, %v2737
        %v2739 = vpop.f32.mrf.mxu0
        %2740 = vmatprep.mubr.f32.mxu0 0.0
        %2741 = vmatmul.mubr.f32.gmra.mxu0 %v2234
        %v2742 = vpop.f32.mrf.mxu0
        %v2743 = vadd.f32 %v2518, %v2742
        %v2744 = vpop.f32.mrf.mxu0
        %2745 = vmatprep.mubr.f32.mxu0 0.0
        %2746 = vmatmul.mubr.f32.gmra.mxu0 %v2237
        %v2747 = vpop.f32.mrf.mxu0
        %v2748 = vadd.f32 %v2523, %v2747
        %v2749 = vpop.f32.mrf.mxu0
        %2750 = vmatprep.mubr.f32.mxu0 0.0
        %2751 = vmatmul.mubr.f32.gmra.mxu0 %v2240
        %v2752 = vpop.f32.mrf.mxu0
        %v2753 = vadd.f32 %v2528, %v2752
        %v2754 = vpop.f32.mrf.mxu0
        %2755 = vmatprep.mubr.f32.mxu0 0.0
        %2756 = vmatmul.mubr.f32.gmra.mxu0 %v2243
        %v2757 = vpop.f32.mrf.mxu0
        %v2758 = vadd.f32 %v2533, %v2757
        %v2759 = vpop.f32.mrf.mxu0
        %2760 = vmatprep.mubr.f32.mxu0 0.0
        %2761 = vmatmul.mubr.f32.gmra.mxu0 %v2246
        %v2762 = vpop.f32.mrf.mxu0
        %v2763 = vadd.f32 %v2538, %v2762
        %v2764 = vpop.f32.mrf.mxu0
        %2765 = vmatprep.mubr.f32.mxu0 0.0
        %2766 = vmatmul.mubr.f32.gmra.mxu0 %v2249
        %v2767 = vpop.f32.mrf.mxu0
        %v2768 = vadd.f32 %v2543, %v2767
        %v2769 = vpop.f32.mrf.mxu0
        %2770 = vmatprep.mubr.f32.mxu0 0.0
        %2771 = vmatmul.mubr.f32.gmra.mxu0 %v2252
        %v2772 = vpop.f32.mrf.mxu0
        %v2773 = vadd.f32 %v2548, %v2772
        %v2774 = vpop.f32.mrf.mxu0
        %2775 = vmatprep.mubr.f32.mxu0 0.0
        %2776 = vmatmul.mubr.f32.gmra.mxu0 %v2255
        %v2777 = vpop.f32.mrf.mxu0
        %v2778 = vadd.f32 %v2553, %v2777
        %v2779 = vpop.f32.mrf.mxu0
        %2780 = vmatprep.mubr.f32.mxu0 0.0
        %2781 = vmatmul.mubr.f32.gmra.mxu0 %v2258
        %v2782 = vpop.f32.mrf.mxu0
        %v2783 = vadd.f32 %v2558, %v2782
        %v2784 = vpop.f32.mrf.mxu0
        %2785 = vmatprep.mubr.f32.mxu0 0.0
        %2786 = vmatmul.mubr.f32.gmra.mxu0 %v2261
        %v2787 = vpop.f32.mrf.mxu0
        %v2788 = vadd.f32 %v2563, %v2787
        %v2789 = vpop.f32.mrf.mxu0
        %2790 = vmatprep.mubr.f32.mxu0 0.0
        %2791 = vmatmul.mubr.f32.gmra.mxu0 %v2264
        %v2792 = vpop.f32.mrf.mxu0
        %v2793 = vadd.f32 %v2568, %v2792
        %v2794 = vpop.f32.mrf.mxu0
        %2795 = vdwg.mxu0
        %v2796 = vadd.f32 %v2265, %v2638
        %v2797 = vadd.f32 %v2266, %v2643
        %v2798 = vadd.f32 %v2267, %v2648
        %v2799 = vadd.f32 %v2268, %v2653
        %v2800 = vadd.f32 %v2269, %v2658
        %v2801 = vadd.f32 %v2270, %v2663
        %v2802 = vadd.f32 %v2271, %v2668
        %v2803 = vadd.f32 %v2272, %v2673
        %v2804 = vadd.f32 %v2273, %v2678
        %v2805 = vadd.f32 %v2274, %v2683
        %v2806 = vadd.f32 %v2275, %v2688
        %v2807 = vadd.f32 %v2276, %v2693
        %v2808 = vadd.f32 %v2277, %v2698
        %v2809 = vadd.f32 %v2278, %v2703
        %v2810 = vadd.f32 %v2279, %v2708
        %v2811 = vadd.f32 %v2280, %v2713
        %v2812 = vadd.f32 %v2281, %v2718
        %v2813 = vadd.f32 %v2282, %v2723
        %v2814 = vadd.f32 %v2283, %v2728
        %v2815 = vadd.f32 %v2284, %v2733
        %v2816 = vadd.f32 %v2285, %v2738
        %v2817 = vadd.f32 %v2286, %v2743
        %v2818 = vadd.f32 %v2287, %v2748
        %v2819 = vadd.f32 %v2288, %v2753
        %v2820 = vadd.f32 %v2289, %v2758
        %v2821 = vadd.f32 %v2290, %v2763
        %v2822 = vadd.f32 %v2291, %v2768
        %v2823 = vadd.f32 %v2292, %v2773
        %v2824 = vadd.f32 %v2293, %v2778
        %v2825 = vadd.f32 %v2294, %v2783
        %v2826 = vadd.f32 %v2295, %v2788
        %v2827 = vadd.f32 %v2296, %v2793
        %2828 = vst [vmem:[#allocation3] sm:$0xff] %v2796
        %2829 = vst [vmem:[#allocation3 + $0x8] sm:$0xff] %v2797
        %2830 = vst [vmem:[#allocation3 + $0x10] sm:$0xff] %v2798
        %2831 = vst [vmem:[#allocation3 + $0x18] sm:$0xff] %v2799
        %2832 = vst [vmem:[#allocation3 + $0x20] sm:$0xff] %v2800
        %2833 = vst [vmem:[#allocation3 + $0x28] sm:$0xff] %v2801
        %2834 = vst [vmem:[#allocation3 + $0x30] sm:$0xff] %v2802
        %2835 = vst [vmem:[#allocation3 + $0x38] sm:$0xff] %v2803
        %2836 = vst [vmem:[#allocation3 + $0x40] sm:$0xff] %v2804
        %2837 = vst [vmem:[#allocation3 + $0x48] sm:$0xff] %v2805
        %2838 = vst [vmem:[#allocation3 + $0x50] sm:$0xff] %v2806
        %2839 = vst [vmem:[#allocation3 + $0x58] sm:$0xff] %v2807
        %2840 = vst [vmem:[#allocation3 + $0x60] sm:$0xff] %v2808
        %2841 = vst [vmem:[#allocation3 + $0x68] sm:$0xff] %v2809
        %2842 = vst [vmem:[#allocation3 + $0x70] sm:$0xff] %v2810
        %2843 = vst [vmem:[#allocation3 + $0x78] sm:$0xff] %v2811
        %2844 = vst [vmem:[#allocation3 + $0x80] sm:$0xff] %v2812
        %2845 = vst [vmem:[#allocation3 + $0x88] sm:$0xff] %v2813
        %2846 = vst [vmem:[#allocation3 + $0x90] sm:$0xff] %v2814
        %2847 = vst [vmem:[#allocation3 + $0x98] sm:$0xff] %v2815
        %2848 = vst [vmem:[#allocation3 + $0xa0] sm:$0xff] %v2816
        %2849 = vst [vmem:[#allocation3 + $0xa8] sm:$0xff] %v2817
        %2850 = vst [vmem:[#allocation3 + $0xb0] sm:$0xff] %v2818
        %2851 = vst [vmem:[#allocation3 + $0xb8] sm:$0xff] %v2819
        %2852 = vst [vmem:[#allocation3 + $0xc0] sm:$0xff] %v2820
        %2853 = vst [vmem:[#allocation3 + $0xc8] sm:$0xff] %v2821
        %2854 = vst [vmem:[#allocation3 + $0xd0] sm:$0xff] %v2822
        %2855 = vst [vmem:[#allocation3 + $0xd8] sm:$0xff] %v2823
        %2856 = vst [vmem:[#allocation3 + $0xe0] sm:$0xff] %v2824
        %2857 = vst [vmem:[#allocation3 + $0xe8] sm:$0xff] %v2825
        %2858 = vst [vmem:[#allocation3 + $0xf0] sm:$0xff] %v2826
        %2859 = vst [vmem:[#allocation3 + $0xf8] sm:$0xff] %v2827
        %v2860 = vld [vmem:[#allocation3] sm:$0xff]
        %v2861 = vld [vmem:[#allocation3 + $0x8] sm:$0xff]
        %v2862 = vld [vmem:[#allocation3 + $0x10] sm:$0xff]
        %v2863 = vld [vmem:[#allocation3 + $0x18] sm:$0xff]
        %v2864 = vld [vmem:[#allocation3 + $0x20] sm:$0xff]
        %v2865 = vld [vmem:[#allocation3 + $0x28] sm:$0xff]
        %v2866 = vld [vmem:[#allocation3 + $0x30] sm:$0xff]
        %v2867 = vld [vmem:[#allocation3 + $0x38] sm:$0xff]
        %v2868 = vld [vmem:[#allocation3 + $0x40] sm:$0xff]
        %v2869 = vld [vmem:[#allocation3 + $0x48] sm:$0xff]
        %v2870 = vld [vmem:[#allocation3 + $0x50] sm:$0xff]
        %v2871 = vld [vmem:[#allocation3 + $0x58] sm:$0xff]
        %v2872 = vld [vmem:[#allocation3 + $0x60] sm:$0xff]
        %v2873 = vld [vmem:[#allocation3 + $0x68] sm:$0xff]
        %v2874 = vld [vmem:[#allocation3 + $0x70] sm:$0xff]
        %v2875 = vld [vmem:[#allocation3 + $0x78] sm:$0xff]
        %v2876 = vld [vmem:[#allocation3 + $0x80] sm:$0xff]
        %v2877 = vld [vmem:[#allocation3 + $0x88] sm:$0xff]
        %v2878 = vld [vmem:[#allocation3 + $0x90] sm:$0xff]
        %v2879 = vld [vmem:[#allocation3 + $0x98] sm:$0xff]
        %v2880 = vld [vmem:[#allocation3 + $0xa0] sm:$0xff]
        %v2881 = vld [vmem:[#allocation3 + $0xa8] sm:$0xff]
        %v2882 = vld [vmem:[#allocation3 + $0xb0] sm:$0xff]
        %v2883 = vld [vmem:[#allocation3 + $0xb8] sm:$0xff]
        %v2884 = vld [vmem:[#allocation3 + $0xc0] sm:$0xff]
        %v2885 = vld [vmem:[#allocation3 + $0xc8] sm:$0xff]
        %v2886 = vld [vmem:[#allocation3 + $0xd0] sm:$0xff]
        %v2887 = vld [vmem:[#allocation3 + $0xd8] sm:$0xff]
        %v2888 = vld [vmem:[#allocation3 + $0xe0] sm:$0xff]
        %v2889 = vld [vmem:[#allocation3 + $0xe8] sm:$0xff]
        %v2890 = vld [vmem:[#allocation3 + $0xf0] sm:$0xff]
        %v2891 = vld [vmem:[#allocation3 + $0xf8] sm:$0xff]
        %v2892 = vld [vmem:[%s269] sm:$0xff]
        %v2893 = vld [vmem:[%s269 + $0x8] sm:$0xff]
        %v2894 = vld [vmem:[%s269 + $0x10] sm:$0xff]
        %v2895 = vld [vmem:[%s269 + $0x18] sm:$0xff]
        %v2896 = vld [vmem:[%s269 + $0x20] sm:$0xff]
        %v2897 = vld [vmem:[%s269 + $0x28] sm:$0xff]
        %v2898 = vld [vmem:[%s269 + $0x30] sm:$0xff]
        %v2899 = vld [vmem:[%s269 + $0x38] sm:$0xff]
        %v2900 = vld [vmem:[%s269 + $0x40] sm:$0xff]
        %v2901 = vld [vmem:[%s269 + $0x48] sm:$0xff]
        %v2902 = vld [vmem:[%s269 + $0x50] sm:$0xff]
        %v2903 = vld [vmem:[%s269 + $0x58] sm:$0xff]
        %v2904 = vld [vmem:[%s269 + $0x60] sm:$0xff]
        %v2905 = vld [vmem:[%s269 + $0x68] sm:$0xff]
        %v2906 = vld [vmem:[%s269 + $0x70] sm:$0xff]
        %v2907 = vld [vmem:[%s269 + $0x78] sm:$0xff]
        %v2908 = vld [vmem:[%s269 + $0x80] sm:$0xff]
        %v2909 = vld [vmem:[%s269 + $0x88] sm:$0xff]
        %v2910 = vld [vmem:[%s269 + $0x90] sm:$0xff]
        %v2911 = vld [vmem:[%s269 + $0x98] sm:$0xff]
        %v2912 = vld [vmem:[%s269 + $0xa0] sm:$0xff]
        %v2913 = vld [vmem:[%s269 + $0xa8] sm:$0xff]
        %v2914 = vld [vmem:[%s269 + $0xb0] sm:$0xff]
        %v2915 = vld [vmem:[%s269 + $0xb8] sm:$0xff]
        %v2916 = vld [vmem:[%s269 + $0xc0] sm:$0xff]
        %v2917 = vld [vmem:[%s269 + $0xc8] sm:$0xff]
        %v2918 = vld [vmem:[%s269 + $0xd0] sm:$0xff]
        %v2919 = vld [vmem:[%s269 + $0xd8] sm:$0xff]
        %v2920 = vld [vmem:[%s269 + $0xe0] sm:$0xff]
        %v2921 = vld [vmem:[%s269 + $0xe8] sm:$0xff]
        %v2922 = vld [vmem:[%s269 + $0xf0] sm:$0xff]
        %v2923 = vld [vmem:[%s269 + $0xf8] sm:$0xff]
        %v2924 = vadd.f32 %v2860, %v2892
        %v2925 = vadd.f32 %v2861, %v2893
        %v2926 = vadd.f32 %v2862, %v2894
        %v2927 = vadd.f32 %v2863, %v2895
        %v2928 = vadd.f32 %v2864, %v2896
        %v2929 = vadd.f32 %v2865, %v2897
        %v2930 = vadd.f32 %v2866, %v2898
        %v2931 = vadd.f32 %v2867, %v2899
        %v2932 = vadd.f32 %v2868, %v2900
        %v2933 = vadd.f32 %v2869, %v2901
        %v2934 = vadd.f32 %v2870, %v2902
        %v2935 = vadd.f32 %v2871, %v2903
        %v2936 = vadd.f32 %v2872, %v2904
        %v2937 = vadd.f32 %v2873, %v2905
        %v2938 = vadd.f32 %v2874, %v2906
        %v2939 = vadd.f32 %v2875, %v2907
        %v2940 = vadd.f32 %v2876, %v2908
        %v2941 = vadd.f32 %v2877, %v2909
        %v2942 = vadd.f32 %v2878, %v2910
        %v2943 = vadd.f32 %v2879, %v2911
        %v2944 = vadd.f32 %v2880, %v2912
        %v2945 = vadd.f32 %v2881, %v2913
        %v2946 = vadd.f32 %v2882, %v2914
        %v2947 = vadd.f32 %v2883, %v2915
        %v2948 = vadd.f32 %v2884, %v2916
        %v2949 = vadd.f32 %v2885, %v2917
        %v2950 = vadd.f32 %v2886, %v2918
        %v2951 = vadd.f32 %v2887, %v2919
        %v2952 = vadd.f32 %v2888, %v2920
        %v2953 = vadd.f32 %v2889, %v2921
        %v2954 = vadd.f32 %v2890, %v2922
        %v2955 = vadd.f32 %v2891, %v2923
        %2956 = vst [vmem:[%s259] sm:$0xff] %v2924
        %2957 = vst [vmem:[%s259 + $0x8] sm:$0xff] %v2925
        %2958 = vst [vmem:[%s259 + $0x10] sm:$0xff] %v2926
        %2959 = vst [vmem:[%s259 + $0x18] sm:$0xff] %v2927
        %2960 = vst [vmem:[%s259 + $0x20] sm:$0xff] %v2928
        %2961 = vst [vmem:[%s259 + $0x28] sm:$0xff] %v2929
        %2962 = vst [vmem:[%s259 + $0x30] sm:$0xff] %v2930
        %2963 = vst [vmem:[%s259 + $0x38] sm:$0xff] %v2931
        %2964 = vst [vmem:[%s259 + $0x40] sm:$0xff] %v2932
        %2965 = vst [vmem:[%s259 + $0x48] sm:$0xff] %v2933
        %2966 = vst [vmem:[%s259 + $0x50] sm:$0xff] %v2934
        %2967 = vst [vmem:[%s259 + $0x58] sm:$0xff] %v2935
        %2968 = vst [vmem:[%s259 + $0x60] sm:$0xff] %v2936
        %2969 = vst [vmem:[%s259 + $0x68] sm:$0xff] %v2937
        %2970 = vst [vmem:[%s259 + $0x70] sm:$0xff] %v2938
        %2971 = vst [vmem:[%s259 + $0x78] sm:$0xff] %v2939
        %2972 = vst [vmem:[%s259 + $0x80] sm:$0xff] %v2940
        %2973 = vst [vmem:[%s259 + $0x88] sm:$0xff] %v2941
        %2974 = vst [vmem:[%s259 + $0x90] sm:$0xff] %v2942
        %2975 = vst [vmem:[%s259 + $0x98] sm:$0xff] %v2943
        %2976 = vst [vmem:[%s259 + $0xa0] sm:$0xff] %v2944
        %2977 = vst [vmem:[%s259 + $0xa8] sm:$0xff] %v2945
        %2978 = vst [vmem:[%s259 + $0xb0] sm:$0xff] %v2946
        %2979 = vst [vmem:[%s259 + $0xb8] sm:$0xff] %v2947
        %2980 = vst [vmem:[%s259 + $0xc0] sm:$0xff] %v2948
        %2981 = vst [vmem:[%s259 + $0xc8] sm:$0xff] %v2949
        %2982 = vst [vmem:[%s259 + $0xd0] sm:$0xff] %v2950
        %2983 = vst [vmem:[%s259 + $0xd8] sm:$0xff] %v2951
        %2984 = vst [vmem:[%s259 + $0xe0] sm:$0xff] %v2952
        %2985 = vst [vmem:[%s259 + $0xe8] sm:$0xff] %v2953
        %2986 = vst [vmem:[%s259 + $0xf0] sm:$0xff] %v2954
        %2987 = vst [vmem:[%s259 + $0xf8] sm:$0xff] %v2955
        %s2988 = sand.u32 %s164, 1
        %s2989 = scalar_lea.sflag [#allocation5], %s2988
        %s2990 = sand.u32 %s164, 1
        %s2991 = smul.addr %s2990, 256
        %s2992 = scalar_lea.vmem [#allocation4], %s2991
        // Predicated region
        $region45: #{block_forward.3} parent=43 // pred_check
          %p2993 = pneg %p174
        $region46: #{block_forward.3} parent=43 // pred_check_branch
          %2995 = sbr.rel (%p2993) target = $region48
        $region47: #{block_forward.3} parent=43 // pred_region
          %s2997 = ssub.s32 4096, 4096
          %2998 = vsyncadd %s2989, %s2997
          %s2999 = smul.addr %s20, 32
          %s3000 = smul.addr %s2999, 128
          %s3001 = scalar_lea.hbm %s6, %s3000
          %s3002 = sshll.u32 %s2992, 4
          %s3003 = int_to_ptr.vmem [resolvable:$true] %s3002
          %3008 = dma.vmem_to_hbm [thread:$0]  %s3003, 4096, %s3001, %s2989, 128, 128, 8
        $region48: #{block_forward.3} parent=43 // pred_fallthru
          _
      $region44: #{block_forward.3} parent=5 // pred_fallthru
        _
      %p3009 = scmp.le.s32.totalorder 2, %s15
      // Predicated region
      $region49: #{block_forward.3} parent=5 // pred_check
        %p3010 = pneg %p3009
      $region50: #{block_forward.3} parent=5 // pred_check_branch
        %3012 = sbr.rel (%p3010) target = $region52
      $region51: #{block_forward.3} parent=5 // pred_region
        %s3013 = ssub.s32 %s15, 2
        // Predicated region
        $region53: #{block_forward.3} parent=51 // pred_check
          %p3014 = pneg %p180
        $region54: #{block_forward.3} parent=51 // pred_check_branch
          %3016 = sbr.rel (%p3014) target = $region56
        $region55: #{block_forward.3} parent=51 // pred_region
          %s3017 = sand.u32 %s165, 1
          %s3018 = scalar_lea.sflag [#allocation5], %s3017
          %s3019 = sand.u32 %s165, 1
          %s3020 = smul.addr %s3019, 256
          %s3021 = scalar_lea.vmem [#allocation4], %s3020
          %3022 = dma.done %s3018, 4096
        $region56: #{block_forward.3} parent=51 // pred_fallthru
          _
      $region52: #{block_forward.3} parent=5 // pred_fallthru
        _
    $region6: #{block_forward.3} parent=1 // loop_footer
      %s19 = sadd.s32 1, %s15
    $region7: #{block_forward.3} parent=1 // loop_footer_branch
      %14 = sbr.rel target = $region3
    $region8: #{block_forward.3} parent=1 // loop_exit
      _
    %3023 = vsyncpa [#allocation5], 1
    %s3024 = scalar_lea.sflag [#allocation5], 1
    %3025 = vsyncpa %s3024, 1

</llo_original>
